<compile_context>
chip_gen: v7x
topology: tpu7x:2x2x1
jax: 0.10.0
libtpu: 0.0.40
codegen_flags: <defaults>
</compile_context>

<pallas_src>
import jax
import jax.numpy as jnp
import numpy as np
from jax import lax
from jax.experimental import pallas as pl
from jax.experimental.pallas import tpu as pltpu

LANE = 128
SUBLANE_BF16 = 16


def _round_up(x, m):
    return (x + m - 1) // m * m


# ---------------------------------------------------------------------------
# Fused kernel: 1x1+ReLU -> 3x3(d=1)+BN+ReLU -> 3x3(d=2)+BN+ReLU -> +residual
# ---------------------------------------------------------------------------
def _make_kernel(H, W, Wb, C, Cin):
    HWb = H * Wb
    bf16 = jnp.bfloat16

    def conv3x3_acc(pad_ref, w_ref, d):
        """3x3 conv, dilation d, as 9 accumulated matmuls.  Returns (HWb, C) f32.

        pad_ref: (H + 2d, Wb, C) bf16; interior at rows [d, d+H), cols [0, W);
        everything else is zero.  Row taps are leading-dim slices (free); column
        taps are applied as circular sublane rolls of the f32 matmul result (wraps
        land in zero columns, so values at cols < W are exact).
        """
        acc = None
        for kh in range(3):
            # Aligned full-width row block; reshape is free because Wb % 16 == 0.
            rows = pad_ref[d * kh:d * kh + H, :, :].reshape(HWb, C)
            for kw in range(3):
                term = jnp.dot(rows, w_ref[3 * kh + kw],
                               preferred_element_type=jnp.float32)
                delta = d * (kw - 1)                  # horizontal tap offset
                if delta != 0:
                    term = pltpu.roll(term, shift=(-delta) % HWb, axis=0)
                acc = term if acc is None else acc + term
        return acc

    def kernel(x_ref, w1_ref, b1_ref, w2_ref, sc2_ref, sh2_ref,
               w3_ref, sc3_ref, sh3_ref, o_ref, pad1_ref, pad2_ref):
        # ---- re-zero only the halo border (interior is fully overwritten) -----
        pad1_ref[0:1, :, :] = jnp.zeros((1, Wb, C), bf16)
        pad1_ref[1 + H:2 + H, :, :] = jnp.zeros((1, Wb, C), bf16)
        pad2_ref[0:2, :, :] = jnp.zeros((2, Wb, C), bf16)
        pad2_ref[2 + H:4 + H, :, :] = jnp.zeros((2, Wb, C), bf16)
        pad1_ref[:, W:, :] = jnp.zeros((H + 2, Wb - W, C), bf16)
        pad2_ref[:, W:, :] = jnp.zeros((H + 4, Wb - W, C), bf16)

        # ---- initial: 1x1 conv + bias + ReLU (bf16 MXU operands, f32 math) ----
        x2 = x_ref[...].astype(bf16).reshape(HWb, Cin)
        initial = jnp.maximum(
            jnp.dot(x2, w1_ref[...], preferred_element_type=jnp.float32)
            + b1_ref[...], 0.0)                          # (HWb, C) f32
        init3 = initial.reshape(H, Wb, C)
        o_ref[...] = init3                               # exact-f32 residual staged in o_ref
        pad1_ref[1:1 + H, :W, :] = init3[:, :W, :].astype(bf16)

        # ---- trunk conv 1: 3x3, dilation 1, folded BN + ReLU -------------------
        t1 = jnp.maximum(
            conv3x3_acc(pad1_ref, w2_ref, 1) * sc2_ref[...] + sh2_ref[...], 0.0)
        pad2_ref[2:2 + H, :W, :] = t1.reshape(H, Wb, C)[:, :W, :].astype(bf16)

        # ---- trunk conv 2: 3x3, dilation 2, folded BN + ReLU, + residual -------
        t2 = jnp.maximum(
            conv3x3_acc(pad2_ref, w3_ref, 2) * sc3_ref[...] + sh3_ref[...], 0.0)
        o_ref[...] = o_ref[...] + t2.reshape(H, Wb, C)

    return kernel


# ---------------------------------------------------------------------------
# Wrapper
# ---------------------------------------------------------------------------
def refinement_stage_block(x_nhwc, params):
    """x_nhwc: (N, H, W, Cin) float32 -> (N, H, W, Cout) float32."""
    N, H, W, Cin = x_nhwc.shape
    Cout = params["w1"].shape[1]
    C = _round_up(Cout, LANE)                 # lane-dense channel width
    # Padded width: >= W + 2 (dilation-2 circular halo) and a multiple of 16 so all
    # bf16 reshapes / loads are layout-free.
    Wb = _round_up(W + 2, SUBLANE_BF16)
    f32, bf16 = jnp.float32, jnp.bfloat16

    x_pad = jnp.pad(x_nhwc, ((0, 0), (0, 0), (0, Wb - W), (0, 0)))

    # Lane-pad Cout -> C; padded channels carry zero weight/bias/scale/shift so
    # they stay exactly zero end-to-end and are sliced off at the end.
    w1 = jnp.zeros((Cin, C), f32).at[:, :Cout].set(params["w1"]).astype(bf16)
    b1 = jnp.zeros((1, C), f32).at[:, :Cout].set(params["b1"])

    def pack_w3x3(w):          # HWIO (3,3,Cout,Cout) -> (9, C, C), tap-major
        wp = jnp.zeros((3, 3, C, C), f32).at[:, :, :Cout, :Cout].set(w)
        return wp.reshape(9, C, C).astype(bf16)

    def pack_vec(v):           # (1, Cout) -> (1, C)
        return jnp.zeros((1, C), f32).at[:, :Cout].set(v)

    w2, w3 = pack_w3x3(params["w2"]), pack_w3x3(params["w3"])
    sc2, sh2 = pack_vec(params["scale2"]), pack_vec(params["shift2"])
    sc3, sh3 = pack_vec(params["scale3"]), pack_vec(params["shift3"])

    def per_batch(h, w, c):
        return pl.BlockSpec((None, h, w, c), lambda n: (n, 0, 0, 0))

    def full(arr):
        nd = arr.ndim
        return pl.BlockSpec(arr.shape, lambda n, _nd=nd: (0,) * _nd)

    # VMEM budget: double-buffered in/out blocks + weights + halo scratch + f32
    # temporaries, with headroom; clamped under v7x's 64 MiB physical VMEM.
    blk_bytes = 2 * (H * Wb * Cin * 4 + H * Wb * C * 4)
    w_bytes = (Cin * C + 2 * 9 * C * C) * 2 + 5 * C * 4
    scratch_bytes = ((H + 2) + (H + 4)) * Wb * C * 2
    temp_bytes = 10 * H * Wb * C * 4
    vmem_limit = int(min(max(blk_bytes + w_bytes + scratch_bytes + temp_bytes
                             + (8 << 20), 32 << 20), 56 << 20))

    flops = N * (2 * H * Wb * Cin * C + 2 * (9 * 2 * H * Wb * C * C)
                 + 12 * H * Wb * C)
    bytes_accessed = (x_pad.size * 4
                      + (Cin * C + 2 * 9 * C * C) * 2 + 5 * C * 4
                      + N * H * Wb * C * 4)

    out = pl.pallas_call(
        _make_kernel(H, W, Wb, C, Cin),
        out_shape=jax.ShapeDtypeStruct((N, H, Wb, C), jnp.float32),
        grid=(N,),
        in_specs=[per_batch(H, Wb, Cin),
                  full(w1), full(b1),
                  full(w2), full(sc2), full(sh2),
                  full(w3), full(sc3), full(sh3)],
        out_specs=per_batch(H, Wb, C),
        scratch_shapes=[
            pltpu.VMEM((H + 2, Wb, C), bf16),   # halo buffer for the d=1 conv
            pltpu.VMEM((H + 4, Wb, C), bf16),   # halo buffer for the d=2 conv
        ],
        compiler_params=pltpu.CompilerParams(
            dimension_semantics=("parallel",),
            vmem_limit_bytes=vmem_limit),
        cost_estimate=pl.CostEstimate(flops=int(flops), transcendentals=0,
                                      bytes_accessed=int(bytes_accessed)),
    )(x_pad, w1, b1, w2, sc2, sh2, w3, sc3, sh3)

    return out[:, :, :W, :Cout]


# ---------------------------------------------------------------------------
# Pure-JAX f32 reference (for sanity checking)
# ---------------------------------------------------------------------------
def ref_forward(x_nhwc, p):
    def conv2d(x, w, dil):
        return lax.conv_general_dilated(
            x, w, window_strides=(1, 1), padding=[(dil, dil), (dil, dil)],
            rhs_dilation=(dil, dil), dimension_numbers=("NHWC", "HWIO", "NHWC"))

    init = jax.nn.relu(jnp.einsum("nhwc,co->nhwo", x_nhwc, p["w1"]) + p["b1"][0])
    t1 = jax.nn.relu(conv2d(init, p["w2"], 1) * p["scale2"][0] + p["shift2"][0])
    t2 = jax.nn.relu(conv2d(t1, p["w3"], 2) * p["scale3"][0] + p["shift3"][0])
    return init + t2


# ---------------------------------------------------------------------------
# Deterministic synthetic parameters (eval-mode BN folded to scale/shift)
# ---------------------------------------------------------------------------
def make_params(key, c_in, c_out):
    ks = jax.random.split(key, 16)
    eps = 1e-5

    def bn_fold(kg, kb, km, kv, bias):
        gamma = 1.0 + 0.1 * jax.random.normal(kg, (c_out,), jnp.float32)
        beta = 0.1 * jax.random.normal(kb, (c_out,), jnp.float32)
        mean = 0.1 * jax.random.normal(km, (c_out,), jnp.float32)
        var = 1.0 + 0.1 * jax.random.uniform(kv, (c_out,), jnp.float32)
        scale = gamma / jnp.sqrt(var + eps)
        shift = scale * (bias - mean) + beta
        return scale.reshape(1, c_out), shift.reshape(1, c_out)

    w1 = 0.1 * jax.random.normal(ks[0], (c_in, c_out), jnp.float32)
    b1 = 0.1 * jax.random.normal(ks[1], (1, c_out), jnp.float32)

    w2 = 0.1 * jax.random.normal(ks[2], (3, 3, c_out, c_out), jnp.float32)
    b2 = 0.1 * jax.random.normal(ks[3], (c_out,), jnp.float32)
    scale2, shift2 = bn_fold(ks[4], ks[5], ks[6], ks[7], b2)

    w3 = 0.1 * jax.random.normal(ks[8], (3, 3, c_out, c_out), jnp.float32)
    b3 = 0.1 * jax.random.normal(ks[9], (c_out,), jnp.float32)
    scale3, shift3 = bn_fold(ks[10], ks[11], ks[12], ks[13], b3)

    return {
        "w1": w1, "b1": b1,
        "w2": w2, "scale2": scale2, "shift2": shift2,
        "w3": w3, "scale3": scale3, "shift3": shift3,
    }


if __name__ == "__main__":
    N, C_IN, H, W = 2, 4, 16, 16
    C_OUT = 8

    key = jax.random.PRNGKey(0)
    k_x, k_p = jax.random.split(key)
    params = make_params(k_p, C_IN, C_OUT)

    # PyTorch-style NCHW input, transposed to the kernel's NHWC layout.
    x_nchw = jax.random.normal(k_x, (N, C_IN, H, W), jnp.float32)
    x_nhwc = jnp.transpose(x_nchw, (0, 2, 3, 1))

    out_nhwc = refinement_stage_block(x_nhwc, params)
    out_nchw = jnp.transpose(out_nhwc, (0, 3, 1, 2))
    jax.block_until_ready(out_nchw)

    ref = ref_forward(x_nhwc, params)
    # bf16 MXU operands (f32 accumulation) -> slightly looser tolerance than pure f32.
    np.testing.assert_allclose(np.asarray(out_nhwc), np.asarray(ref),
                               rtol=2e-2, atol=2e-2)

    print("KERNEL_OK")
</pallas_src>

<mosaic_0001>
module attributes {stable_mosaic.version = 11 : i64} {
  func.func @kernel(%arg0: i32, %arg1: memref<1x16x32x4xf32, #tpu.memory_space<vmem>>, %arg2: memref<4x128xbf16, #tpu.memory_space<vmem>>, %arg3: memref<1x128xf32, #tpu.memory_space<vmem>>, %arg4: memref<9x128x128xbf16, #tpu.memory_space<vmem>>, %arg5: memref<1x128xf32, #tpu.memory_space<vmem>>, %arg6: memref<1x128xf32, #tpu.memory_space<vmem>>, %arg7: memref<9x128x128xbf16, #tpu.memory_space<vmem>>, %arg8: memref<1x128xf32, #tpu.memory_space<vmem>>, %arg9: memref<1x128xf32, #tpu.memory_space<vmem>>, %arg10: memref<1x16x32x128xf32, #tpu.memory_space<vmem>>, %arg11: memref<18x32x128xbf16, #tpu.memory_space<vmem>>, %arg12: memref<20x32x128xbf16, #tpu.memory_space<vmem>>) attributes {dimension_semantics = [#tpu.dimension_semantics<parallel>], iteration_bounds = array<i64: 2>, scalar_prefetch = 0 : i64, scratch_operands = 2 : i64, tpu.core_type = #tpu.core_type<tc>, window_params = [{transform_indices = @transform_0, window_bounds = array<i64: 1, 16, 32, 4>}, {pipeline_mode = #tpu.pipeline_mode<synchronous>, transform_indices = @transform_1, window_bounds = array<i64: 4, 128>}, {pipeline_mode = #tpu.pipeline_mode<synchronous>, transform_indices = @transform_2, window_bounds = array<i64: 1, 128>}, {pipeline_mode = #tpu.pipeline_mode<synchronous>, transform_indices = @transform_3, window_bounds = array<i64: 9, 128, 128>}, {pipeline_mode = #tpu.pipeline_mode<synchronous>, transform_indices = @transform_4, window_bounds = array<i64: 1, 128>}, {pipeline_mode = #tpu.pipeline_mode<synchronous>, transform_indices = @transform_5, window_bounds = array<i64: 1, 128>}, {pipeline_mode = #tpu.pipeline_mode<synchronous>, transform_indices = @transform_6, window_bounds = array<i64: 9, 128, 128>}, {pipeline_mode = #tpu.pipeline_mode<synchronous>, transform_indices = @transform_7, window_bounds = array<i64: 1, 128>}, {pipeline_mode = #tpu.pipeline_mode<synchronous>, transform_indices = @transform_8, window_bounds = array<i64: 1, 128>}, {transform_indices = @transform_9, window_bounds = array<i64: 1, 16, 32, 128>}]} {
    %cst = arith.constant 0.000000e+00 : bf16
    %0 = vector.broadcast %cst : bf16 to vector<1x32x128xbf16>
    %c0 = arith.constant 0 : index
    %c0_0 = arith.constant 0 : index
    %c0_1 = arith.constant 0 : index
    %1 = vector.load %arg11[%c0, %c0_0, %c0_1] : memref<18x32x128xbf16, #tpu.memory_space<vmem>>, vector<1x32x128xbf16>
    tpu.vector_store %arg11[%c0, %c0_0, %c0_1], %0 {strides = array<i32>} : memref<18x32x128xbf16, #tpu.memory_space<vmem>>, vector<1x32x128xbf16>,
    %cst_2 = arith.constant 0.000000e+00 : bf16
    %2 = vector.broadcast %cst_2 : bf16 to vector<1x32x128xbf16>
    %c17 = arith.constant 17 : index
    %c0_3 = arith.constant 0 : index
    %c0_4 = arith.constant 0 : index
    %3 = vector.load %arg11[%c17, %c0_3, %c0_4] : memref<18x32x128xbf16, #tpu.memory_space<vmem>>, vector<1x32x128xbf16>
    tpu.vector_store %arg11[%c17, %c0_3, %c0_4], %2 {strides = array<i32>} : memref<18x32x128xbf16, #tpu.memory_space<vmem>>, vector<1x32x128xbf16>,
    %cst_5 = arith.constant 0.000000e+00 : bf16
    %4 = vector.broadcast %cst_5 : bf16 to vector<2x32x128xbf16>
    %c0_6 = arith.constant 0 : index
    %c0_7 = arith.constant 0 : index
    %c0_8 = arith.constant 0 : index
    %5 = vector.load %arg12[%c0_6, %c0_7, %c0_8] : memref<20x32x128xbf16, #tpu.memory_space<vmem>>, vector<2x32x128xbf16>
    tpu.vector_store %arg12[%c0_6, %c0_7, %c0_8], %4 {strides = array<i32>} : memref<20x32x128xbf16, #tpu.memory_space<vmem>>, vector<2x32x128xbf16>,
    %cst_9 = arith.constant 0.000000e+00 : bf16
    %6 = vector.broadcast %cst_9 : bf16 to vector<2x32x128xbf16>
    %c18 = arith.constant 18 : index
    %c0_10 = arith.constant 0 : index
    %c0_11 = arith.constant 0 : index
    %7 = vector.load %arg12[%c18, %c0_10, %c0_11] : memref<20x32x128xbf16, #tpu.memory_space<vmem>>, vector<2x32x128xbf16>
    tpu.vector_store %arg12[%c18, %c0_10, %c0_11], %6 {strides = array<i32>} : memref<20x32x128xbf16, #tpu.memory_space<vmem>>, vector<2x32x128xbf16>,
    %cst_12 = arith.constant 0.000000e+00 : bf16
    %8 = vector.broadcast %cst_12 : bf16 to vector<18x16x128xbf16>
    %c0_13 = arith.constant 0 : index
    %c16 = arith.constant 16 : index
    %c0_14 = arith.constant 0 : index
    %9 = vector.load %arg11[%c0_13, %c16, %c0_14] : memref<18x32x128xbf16, #tpu.memory_space<vmem>>, vector<18x16x128xbf16>
    tpu.vector_store %arg11[%c0_13, %c16, %c0_14], %8 {strides = array<i32>} : memref<18x32x128xbf16, #tpu.memory_space<vmem>>, vector<18x16x128xbf16>,
    %cst_15 = arith.constant 0.000000e+00 : bf16
    %10 = vector.broadcast %cst_15 : bf16 to vector<20x16x128xbf16>
    %c0_16 = arith.constant 0 : index
    %c16_17 = arith.constant 16 : index
    %c0_18 = arith.constant 0 : index
    %11 = vector.load %arg12[%c0_16, %c16_17, %c0_18] : memref<20x32x128xbf16, #tpu.memory_space<vmem>>, vector<20x16x128xbf16>
    tpu.vector_store %arg12[%c0_16, %c16_17, %c0_18], %10 {strides = array<i32>} : memref<20x32x128xbf16, #tpu.memory_space<vmem>>, vector<20x16x128xbf16>,
    %c0_19 = arith.constant 0 : index
    %c0_20 = arith.constant 0 : index
    %c0_21 = arith.constant 0 : index
    %c0_22 = arith.constant 0 : index
    %12 = vector.load %arg1[%c0_19, %c0_20, %c0_21, %c0_22] : memref<1x16x32x4xf32, #tpu.memory_space<vmem>>, vector<1x16x32x4xf32>
    %13 = vector.shape_cast %12 : vector<1x16x32x4xf32> to vector<16x32x4xf32>
    %14 = arith.truncf %13 : vector<16x32x4xf32> to vector<16x32x4xbf16>
    %15 = vector.shape_cast %14 : vector<16x32x4xbf16> to vector<512x4xbf16>
    %c0_23 = arith.constant 0 : index
    %c0_24 = arith.constant 0 : index
    %16 = vector.load %arg2[%c0_23, %c0_24] : memref<4x128xbf16, #tpu.memory_space<vmem>>, vector<4x128xbf16>
    %cst_25 = arith.constant dense<0.000000e+00> : vector<512x128xf32>
    %17 = tpu.matmul %15, %16, %cst_25 {dimension_numbers = #tpu.dot_dimension_numbers<[1], [0], [0], [1], [0, 0, 1, 1], [], []>} : vector<512x4xbf16>, vector<4x128xbf16>, vector<512x128xf32> -> vector<512x128xf32>
    %c0_26 = arith.constant 0 : index
    %c0_27 = arith.constant 0 : index
    %18 = vector.load %arg3[%c0_26, %c0_27] : memref<1x128xf32, #tpu.memory_space<vmem>>, vector<1x128xf32>
    %19 = vector.broadcast %18 : vector<1x128xf32> to vector<512x128xf32>
    %20 = arith.addf %17, %19 : vector<512x128xf32>
    %cst_28 = arith.constant 0.000000e+00 : f32
    %21 = vector.broadcast %cst_28 : f32 to vector<512x128xf32>
    %22 = arith.maximumf %20, %21 : vector<512x128xf32>
    %23 = vector.shape_cast %22 : vector<512x128xf32> to vector<16x32x128xf32>
    %c0_29 = arith.constant 0 : index
    %c0_30 = arith.constant 0 : index
    %c0_31 = arith.constant 0 : index
    %c0_32 = arith.constant 0 : index
    %24 = vector.load %arg10[%c0_29, %c0_30, %c0_31, %c0_32] : memref<1x16x32x128xf32, #tpu.memory_space<vmem>>, vector<1x16x32x128xf32>
    %25 = vector.shape_cast %24 : vector<1x16x32x128xf32> to vector<16x32x128xf32>
    %26 = vector.shape_cast %23 : vector<16x32x128xf32> to vector<1x16x32x128xf32>
    tpu.vector_store %arg10[%c0_29, %c0_30, %c0_31, %c0_32], %26 {strides = array<i32>} : memref<1x16x32x128xf32, #tpu.memory_space<vmem>>, vector<1x16x32x128xf32>,
    %27 = vector.extract_strided_slice %23 {offsets = [0, 0, 0], sizes = [16, 16, 128], strides = [1, 1, 1]} : vector<16x32x128xf32> to vector<16x16x128xf32>
    %28 = arith.truncf %27 : vector<16x16x128xf32> to vector<16x16x128xbf16>
    %c1 = arith.constant 1 : index
    %c0_33 = arith.constant 0 : index
    %c0_34 = arith.constant 0 : index
    %29 = vector.load %arg11[%c1, %c0_33, %c0_34] : memref<18x32x128xbf16, #tpu.memory_space<vmem>>, vector<16x16x128xbf16>
    tpu.vector_store %arg11[%c1, %c0_33, %c0_34], %28 {strides = array<i32>} : memref<18x32x128xbf16, #tpu.memory_space<vmem>>, vector<16x16x128xbf16>,
    %c0_35 = arith.constant 0 : index
    %c0_36 = arith.constant 0 : index
    %c0_37 = arith.constant 0 : index
    %30 = vector.load %arg11[%c0_35, %c0_36, %c0_37] : memref<18x32x128xbf16, #tpu.memory_space<vmem>>, vector<16x32x128xbf16>
    %31 = vector.shape_cast %30 : vector<16x32x128xbf16> to vector<512x128xbf16>
    %c0_38 = arith.constant 0 : index
    %c0_39 = arith.constant 0 : index
    %c0_40 = arith.constant 0 : index
    %32 = vector.load %arg4[%c0_38, %c0_39, %c0_40] : memref<9x128x128xbf16, #tpu.memory_space<vmem>>, vector<1x128x128xbf16>
    %33 = vector.shape_cast %32 : vector<1x128x128xbf16> to vector<128x128xbf16>
    %cst_41 = arith.constant dense<0.000000e+00> : vector<512x128xf32>
    %34 = tpu.matmul %31, %33, %cst_41 {dimension_numbers = #tpu.dot_dimension_numbers<[1], [0], [0], [1], [0, 0, 1, 1], [], []>} : vector<512x128xbf16>, vector<128x128xbf16>, vector<512x128xf32> -> vector<512x128xf32>
    %c1_i32 = arith.constant 1 : i32
    %35 = tpu.dynamic_rotate %34 by %c1_i32 dim 0 : vector<512x128xf32>, i32 -> vector<512x128xf32>
    %c1_42 = arith.constant 1 : index
    %c0_43 = arith.constant 0 : index
    %c0_44 = arith.constant 0 : index
    %36 = vector.load %arg4[%c1_42, %c0_43, %c0_44] : memref<9x128x128xbf16, #tpu.memory_space<vmem>>, vector<1x128x128xbf16>
    %37 = vector.shape_cast %36 : vector<1x128x128xbf16> to vector<128x128xbf16>
    %cst_45 = arith.constant dense<0.000000e+00> : vector<512x128xf32>
    %38 = tpu.matmul %31, %37, %cst_45 {dimension_numbers = #tpu.dot_dimension_numbers<[1], [0], [0], [1], [0, 0, 1, 1], [], []>} : vector<512x128xbf16>, vector<128x128xbf16>, vector<512x128xf32> -> vector<512x128xf32>
    %39 = arith.addf %35, %38 : vector<512x128xf32>
    %c2 = arith.constant 2 : index
    %c0_46 = arith.constant 0 : index
    %c0_47 = arith.constant 0 : index
    %40 = vector.load %arg4[%c2, %c0_46, %c0_47] : memref<9x128x128xbf16, #tpu.memory_space<vmem>>, vector<1x128x128xbf16>
    %41 = vector.shape_cast %40 : vector<1x128x128xbf16> to vector<128x128xbf16>
    %cst_48 = arith.constant dense<0.000000e+00> : vector<512x128xf32>
    %42 = tpu.matmul %31, %41, %cst_48 {dimension_numbers = #tpu.dot_dimension_numbers<[1], [0], [0], [1], [0, 0, 1, 1], [], []>} : vector<512x128xbf16>, vector<128x128xbf16>, vector<512x128xf32> -> vector<512x128xf32>
    %c511_i32 = arith.constant 511 : i32
    %43 = tpu.dynamic_rotate %42 by %c511_i32 dim 0 : vector<512x128xf32>, i32 -> vector<512x128xf32>
    %44 = arith.addf %39, %43 : vector<512x128xf32>
    %c1_49 = arith.constant 1 : index
    %c0_50 = arith.constant 0 : index
    %c0_51 = arith.constant 0 : index
    %45 = vector.load %arg11[%c1_49, %c0_50, %c0_51] : memref<18x32x128xbf16, #tpu.memory_space<vmem>>, vector<16x32x128xbf16>
    %46 = vector.shape_cast %45 : vector<16x32x128xbf16> to vector<512x128xbf16>
    %c3 = arith.constant 3 : index
    %c0_52 = arith.constant 0 : index
    %c0_53 = arith.constant 0 : index
    %47 = vector.load %arg4[%c3, %c0_52, %c0_53] : memref<9x128x128xbf16, #tpu.memory_space<vmem>>, vector<1x128x128xbf16>
    %48 = vector.shape_cast %47 : vector<1x128x128xbf16> to vector<128x128xbf16>
    %cst_54 = arith.constant dense<0.000000e+00> : vector<512x128xf32>
    %49 = tpu.matmul %46, %48, %cst_54 {dimension_numbers = #tpu.dot_dimension_numbers<[1], [0], [0], [1], [0, 0, 1, 1], [], []>} : vector<512x128xbf16>, vector<128x128xbf16>, vector<512x128xf32> -> vector<512x128xf32>
    %c1_i32_55 = arith.constant 1 : i32
    %50 = tpu.dynamic_rotate %49 by %c1_i32_55 dim 0 : vector<512x128xf32>, i32 -> vector<512x128xf32>
    %51 = arith.addf %44, %50 : vector<512x128xf32>
    %c4 = arith.constant 4 : index
    %c0_56 = arith.constant 0 : index
    %c0_57 = arith.constant 0 : index
    %52 = vector.load %arg4[%c4, %c0_56, %c0_57] : memref<9x128x128xbf16, #tpu.memory_space<vmem>>, vector<1x128x128xbf16>
    %53 = vector.shape_cast %52 : vector<1x128x128xbf16> to vector<128x128xbf16>
    %cst_58 = arith.constant dense<0.000000e+00> : vector<512x128xf32>
    %54 = tpu.matmul %46, %53, %cst_58 {dimension_numbers = #tpu.dot_dimension_numbers<[1], [0], [0], [1], [0, 0, 1, 1], [], []>} : vector<512x128xbf16>, vector<128x128xbf16>, vector<512x128xf32> -> vector<512x128xf32>
    %55 = arith.addf %51, %54 : vector<512x128xf32>
    %c5 = arith.constant 5 : index
    %c0_59 = arith.constant 0 : index
    %c0_60 = arith.constant 0 : index
    %56 = vector.load %arg4[%c5, %c0_59, %c0_60] : memref<9x128x128xbf16, #tpu.memory_space<vmem>>, vector<1x128x128xbf16>
    %57 = vector.shape_cast %56 : vector<1x128x128xbf16> to vector<128x128xbf16>
    %cst_61 = arith.constant dense<0.000000e+00> : vector<512x128xf32>
    %58 = tpu.matmul %46, %57, %cst_61 {dimension_numbers = #tpu.dot_dimension_numbers<[1], [0], [0], [1], [0, 0, 1, 1], [], []>} : vector<512x128xbf16>, vector<128x128xbf16>, vector<512x128xf32> -> vector<512x128xf32>
    %c511_i32_62 = arith.constant 511 : i32
    %59 = tpu.dynamic_rotate %58 by %c511_i32_62 dim 0 : vector<512x128xf32>, i32 -> vector<512x128xf32>
    %60 = arith.addf %55, %59 : vector<512x128xf32>
    %c2_63 = arith.constant 2 : index
    %c0_64 = arith.constant 0 : index
    %c0_65 = arith.constant 0 : index
    %61 = vector.load %arg11[%c2_63, %c0_64, %c0_65] : memref<18x32x128xbf16, #tpu.memory_space<vmem>>, vector<16x32x128xbf16>
    %62 = vector.shape_cast %61 : vector<16x32x128xbf16> to vector<512x128xbf16>
    %c6 = arith.constant 6 : index
    %c0_66 = arith.constant 0 : index
    %c0_67 = arith.constant 0 : index
    %63 = vector.load %arg4[%c6, %c0_66, %c0_67] : memref<9x128x128xbf16, #tpu.memory_space<vmem>>, vector<1x128x128xbf16>
    %64 = vector.shape_cast %63 : vector<1x128x128xbf16> to vector<128x128xbf16>
    %cst_68 = arith.constant dense<0.000000e+00> : vector<512x128xf32>
    %65 = tpu.matmul %62, %64, %cst_68 {dimension_numbers = #tpu.dot_dimension_numbers<[1], [0], [0], [1], [0, 0, 1, 1], [], []>} : vector<512x128xbf16>, vector<128x128xbf16>, vector<512x128xf32> -> vector<512x128xf32>
    %c1_i32_69 = arith.constant 1 : i32
    %66 = tpu.dynamic_rotate %65 by %c1_i32_69 dim 0 : vector<512x128xf32>, i32 -> vector<512x128xf32>
    %67 = arith.addf %60, %66 : vector<512x128xf32>
    %c7 = arith.constant 7 : index
    %c0_70 = arith.constant 0 : index
    %c0_71 = arith.constant 0 : index
    %68 = vector.load %arg4[%c7, %c0_70, %c0_71] : memref<9x128x128xbf16, #tpu.memory_space<vmem>>, vector<1x128x128xbf16>
    %69 = vector.shape_cast %68 : vector<1x128x128xbf16> to vector<128x128xbf16>
    %cst_72 = arith.constant dense<0.000000e+00> : vector<512x128xf32>
    %70 = tpu.matmul %62, %69, %cst_72 {dimension_numbers = #tpu.dot_dimension_numbers<[1], [0], [0], [1], [0, 0, 1, 1], [], []>} : vector<512x128xbf16>, vector<128x128xbf16>, vector<512x128xf32> -> vector<512x128xf32>
    %71 = arith.addf %67, %70 : vector<512x128xf32>
    %c8 = arith.constant 8 : index
    %c0_73 = arith.constant 0 : index
    %c0_74 = arith.constant 0 : index
    %72 = vector.load %arg4[%c8, %c0_73, %c0_74] : memref<9x128x128xbf16, #tpu.memory_space<vmem>>, vector<1x128x128xbf16>
    %73 = vector.shape_cast %72 : vector<1x128x128xbf16> to vector<128x128xbf16>
    %cst_75 = arith.constant dense<0.000000e+00> : vector<512x128xf32>
    %74 = tpu.matmul %62, %73, %cst_75 {dimension_numbers = #tpu.dot_dimension_numbers<[1], [0], [0], [1], [0, 0, 1, 1], [], []>} : vector<512x128xbf16>, vector<128x128xbf16>, vector<512x128xf32> -> vector<512x128xf32>
    %c511_i32_76 = arith.constant 511 : i32
    %75 = tpu.dynamic_rotate %74 by %c511_i32_76 dim 0 : vector<512x128xf32>, i32 -> vector<512x128xf32>
    %76 = arith.addf %71, %75 : vector<512x128xf32>
    %c0_77 = arith.constant 0 : index
    %c0_78 = arith.constant 0 : index
    %77 = vector.load %arg5[%c0_77, %c0_78] : memref<1x128xf32, #tpu.memory_space<vmem>>, vector<1x128xf32>
    %78 = vector.broadcast %77 : vector<1x128xf32> to vector<512x128xf32>
    %79 = arith.mulf %76, %78 : vector<512x128xf32>
    %c0_79 = arith.constant 0 : index
    %c0_80 = arith.constant 0 : index
    %80 = vector.load %arg6[%c0_79, %c0_80] : memref<1x128xf32, #tpu.memory_space<vmem>>, vector<1x128xf32>
    %81 = vector.broadcast %80 : vector<1x128xf32> to vector<512x128xf32>
    %82 = arith.addf %79, %81 : vector<512x128xf32>
    %cst_81 = arith.constant 0.000000e+00 : f32
    %83 = vector.broadcast %cst_81 : f32 to vector<512x128xf32>
    %84 = arith.maximumf %82, %83 : vector<512x128xf32>
    %85 = vector.shape_cast %84 : vector<512x128xf32> to vector<16x32x128xf32>
    %86 = vector.extract_strided_slice %85 {offsets = [0, 0, 0], sizes = [16, 16, 128], strides = [1, 1, 1]} : vector<16x32x128xf32> to vector<16x16x128xf32>
    %87 = arith.truncf %86 : vector<16x16x128xf32> to vector<16x16x128xbf16>
    %c2_82 = arith.constant 2 : index
    %c0_83 = arith.constant 0 : index
    %c0_84 = arith.constant 0 : index
    %88 = vector.load %arg12[%c2_82, %c0_83, %c0_84] : memref<20x32x128xbf16, #tpu.memory_space<vmem>>, vector<16x16x128xbf16>
    tpu.vector_store %arg12[%c2_82, %c0_83, %c0_84], %87 {strides = array<i32>} : memref<20x32x128xbf16, #tpu.memory_space<vmem>>, vector<16x16x128xbf16>,
    %c0_85 = arith.constant 0 : index
    %c0_86 = arith.constant 0 : index
    %c0_87 = arith.constant 0 : index
    %89 = vector.load %arg12[%c0_85, %c0_86, %c0_87] : memref<20x32x128xbf16, #tpu.memory_space<vmem>>, vector<16x32x128xbf16>
    %90 = vector.shape_cast %89 : vector<16x32x128xbf16> to vector<512x128xbf16>
    %c0_88 = arith.constant 0 : index
    %c0_89 = arith.constant 0 : index
    %c0_90 = arith.constant 0 : index
    %91 = vector.load %arg7[%c0_88, %c0_89, %c0_90] : memref<9x128x128xbf16, #tpu.memory_space<vmem>>, vector<1x128x128xbf16>
    %92 = vector.shape_cast %91 : vector<1x128x128xbf16> to vector<128x128xbf16>
    %cst_91 = arith.constant dense<0.000000e+00> : vector<512x128xf32>
    %93 = tpu.matmul %90, %92, %cst_91 {dimension_numbers = #tpu.dot_dimension_numbers<[1], [0], [0], [1], [0, 0, 1, 1], [], []>} : vector<512x128xbf16>, vector<128x128xbf16>, vector<512x128xf32> -> vector<512x128xf32>
    %c2_i32 = arith.constant 2 : i32
    %94 = tpu.dynamic_rotate %93 by %c2_i32 dim 0 : vector<512x128xf32>, i32 -> vector<512x128xf32>
    %c1_92 = arith.constant 1 : index
    %c0_93 = arith.constant 0 : index
    %c0_94 = arith.constant 0 : index
    %95 = vector.load %arg7[%c1_92, %c0_93, %c0_94] : memref<9x128x128xbf16, #tpu.memory_space<vmem>>, vector<1x128x128xbf16>
    %96 = vector.shape_cast %95 : vector<1x128x128xbf16> to vector<128x128xbf16>
    %cst_95 = arith.constant dense<0.000000e+00> : vector<512x128xf32>
    %97 = tpu.matmul %90, %96, %cst_95 {dimension_numbers = #tpu.dot_dimension_numbers<[1], [0], [0], [1], [0, 0, 1, 1], [], []>} : vector<512x128xbf16>, vector<128x128xbf16>, vector<512x128xf32> -> vector<512x128xf32>
    %98 = arith.addf %94, %97 : vector<512x128xf32>
    %c2_96 = arith.constant 2 : index
    %c0_97 = arith.constant 0 : index
    %c0_98 = arith.constant 0 : index
    %99 = vector.load %arg7[%c2_96, %c0_97, %c0_98] : memref<9x128x128xbf16, #tpu.memory_space<vmem>>, vector<1x128x128xbf16>
    %100 = vector.shape_cast %99 : vector<1x128x128xbf16> to vector<128x128xbf16>
    %cst_99 = arith.constant dense<0.000000e+00> : vector<512x128xf32>
    %101 = tpu.matmul %90, %100, %cst_99 {dimension_numbers = #tpu.dot_dimension_numbers<[1], [0], [0], [1], [0, 0, 1, 1], [], []>} : vector<512x128xbf16>, vector<128x128xbf16>, vector<512x128xf32> -> vector<512x128xf32>
    %c510_i32 = arith.constant 510 : i32
    %102 = tpu.dynamic_rotate %101 by %c510_i32 dim 0 : vector<512x128xf32>, i32 -> vector<512x128xf32>
    %103 = arith.addf %98, %102 : vector<512x128xf32>
    %c2_100 = arith.constant 2 : index
    %c0_101 = arith.constant 0 : index
    %c0_102 = arith.constant 0 : index
    %104 = vector.load %arg12[%c2_100, %c0_101, %c0_102] : memref<20x32x128xbf16, #tpu.memory_space<vmem>>, vector<16x32x128xbf16>
    %105 = vector.shape_cast %104 : vector<16x32x128xbf16> to vector<512x128xbf16>
    %c3_103 = arith.constant 3 : index
    %c0_104 = arith.constant 0 : index
    %c0_105 = arith.constant 0 : index
    %106 = vector.load %arg7[%c3_103, %c0_104, %c0_105] : memref<9x128x128xbf16, #tpu.memory_space<vmem>>, vector<1x128x128xbf16>
    %107 = vector.shape_cast %106 : vector<1x128x128xbf16> to vector<128x128xbf16>
    %cst_106 = arith.constant dense<0.000000e+00> : vector<512x128xf32>
    %108 = tpu.matmul %105, %107, %cst_106 {dimension_numbers = #tpu.dot_dimension_numbers<[1], [0], [0], [1], [0, 0, 1, 1], [], []>} : vector<512x128xbf16>, vector<128x128xbf16>, vector<512x128xf32> -> vector<512x128xf32>
    %c2_i32_107 = arith.constant 2 : i32
    %109 = tpu.dynamic_rotate %108 by %c2_i32_107 dim 0 : vector<512x128xf32>, i32 -> vector<512x128xf32>
    %110 = arith.addf %103, %109 : vector<512x128xf32>
    %c4_108 = arith.constant 4 : index
    %c0_109 = arith.constant 0 : index
    %c0_110 = arith.constant 0 : index
    %111 = vector.load %arg7[%c4_108, %c0_109, %c0_110] : memref<9x128x128xbf16, #tpu.memory_space<vmem>>, vector<1x128x128xbf16>
    %112 = vector.shape_cast %111 : vector<1x128x128xbf16> to vector<128x128xbf16>
    %cst_111 = arith.constant dense<0.000000e+00> : vector<512x128xf32>
    %113 = tpu.matmul %105, %112, %cst_111 {dimension_numbers = #tpu.dot_dimension_numbers<[1], [0], [0], [1], [0, 0, 1, 1], [], []>} : vector<512x128xbf16>, vector<128x128xbf16>, vector<512x128xf32> -> vector<512x128xf32>
    %114 = arith.addf %110, %113 : vector<512x128xf32>
    %c5_112 = arith.constant 5 : index
    %c0_113 = arith.constant 0 : index
    %c0_114 = arith.constant 0 : index
    %115 = vector.load %arg7[%c5_112, %c0_113, %c0_114] : memref<9x128x128xbf16, #tpu.memory_space<vmem>>, vector<1x128x128xbf16>
    %116 = vector.shape_cast %115 : vector<1x128x128xbf16> to vector<128x128xbf16>
    %cst_115 = arith.constant dense<0.000000e+00> : vector<512x128xf32>
    %117 = tpu.matmul %105, %116, %cst_115 {dimension_numbers = #tpu.dot_dimension_numbers<[1], [0], [0], [1], [0, 0, 1, 1], [], []>} : vector<512x128xbf16>, vector<128x128xbf16>, vector<512x128xf32> -> vector<512x128xf32>
    %c510_i32_116 = arith.constant 510 : i32
    %118 = tpu.dynamic_rotate %117 by %c510_i32_116 dim 0 : vector<512x128xf32>, i32 -> vector<512x128xf32>
    %119 = arith.addf %114, %118 : vector<512x128xf32>
    %c4_117 = arith.constant 4 : index
    %c0_118 = arith.constant 0 : index
    %c0_119 = arith.constant 0 : index
    %120 = vector.load %arg12[%c4_117, %c0_118, %c0_119] : memref<20x32x128xbf16, #tpu.memory_space<vmem>>, vector<16x32x128xbf16>
    %121 = vector.shape_cast %120 : vector<16x32x128xbf16> to vector<512x128xbf16>
    %c6_120 = arith.constant 6 : index
    %c0_121 = arith.constant 0 : index
    %c0_122 = arith.constant 0 : index
    %122 = vector.load %arg7[%c6_120, %c0_121, %c0_122] : memref<9x128x128xbf16, #tpu.memory_space<vmem>>, vector<1x128x128xbf16>
    %123 = vector.shape_cast %122 : vector<1x128x128xbf16> to vector<128x128xbf16>
    %cst_123 = arith.constant dense<0.000000e+00> : vector<512x128xf32>
    %124 = tpu.matmul %121, %123, %cst_123 {dimension_numbers = #tpu.dot_dimension_numbers<[1], [0], [0], [1], [0, 0, 1, 1], [], []>} : vector<512x128xbf16>, vector<128x128xbf16>, vector<512x128xf32> -> vector<512x128xf32>
    %c2_i32_124 = arith.constant 2 : i32
    %125 = tpu.dynamic_rotate %124 by %c2_i32_124 dim 0 : vector<512x128xf32>, i32 -> vector<512x128xf32>
    %126 = arith.addf %119, %125 : vector<512x128xf32>
    %c7_125 = arith.constant 7 : index
    %c0_126 = arith.constant 0 : index
    %c0_127 = arith.constant 0 : index
    %127 = vector.load %arg7[%c7_125, %c0_126, %c0_127] : memref<9x128x128xbf16, #tpu.memory_space<vmem>>, vector<1x128x128xbf16>
    %128 = vector.shape_cast %127 : vector<1x128x128xbf16> to vector<128x128xbf16>
    %cst_128 = arith.constant dense<0.000000e+00> : vector<512x128xf32>
    %129 = tpu.matmul %121, %128, %cst_128 {dimension_numbers = #tpu.dot_dimension_numbers<[1], [0], [0], [1], [0, 0, 1, 1], [], []>} : vector<512x128xbf16>, vector<128x128xbf16>, vector<512x128xf32> -> vector<512x128xf32>
    %130 = arith.addf %126, %129 : vector<512x128xf32>
    %c8_129 = arith.constant 8 : index
    %c0_130 = arith.constant 0 : index
    %c0_131 = arith.constant 0 : index
    %131 = vector.load %arg7[%c8_129, %c0_130, %c0_131] : memref<9x128x128xbf16, #tpu.memory_space<vmem>>, vector<1x128x128xbf16>
    %132 = vector.shape_cast %131 : vector<1x128x128xbf16> to vector<128x128xbf16>
    %cst_132 = arith.constant dense<0.000000e+00> : vector<512x128xf32>
    %133 = tpu.matmul %121, %132, %cst_132 {dimension_numbers = #tpu.dot_dimension_numbers<[1], [0], [0], [1], [0, 0, 1, 1], [], []>} : vector<512x128xbf16>, vector<128x128xbf16>, vector<512x128xf32> -> vector<512x128xf32>
    %c510_i32_133 = arith.constant 510 : i32
    %134 = tpu.dynamic_rotate %133 by %c510_i32_133 dim 0 : vector<512x128xf32>, i32 -> vector<512x128xf32>
    %135 = arith.addf %130, %134 : vector<512x128xf32>
    %c0_134 = arith.constant 0 : index
    %c0_135 = arith.constant 0 : index
    %136 = vector.load %arg8[%c0_134, %c0_135] : memref<1x128xf32, #tpu.memory_space<vmem>>, vector<1x128xf32>
    %137 = vector.broadcast %136 : vector<1x128xf32> to vector<512x128xf32>
    %138 = arith.mulf %135, %137 : vector<512x128xf32>
    %c0_136 = arith.constant 0 : index
    %c0_137 = arith.constant 0 : index
    %139 = vector.load %arg9[%c0_136, %c0_137] : memref<1x128xf32, #tpu.memory_space<vmem>>, vector<1x128xf32>
    %140 = vector.broadcast %139 : vector<1x128xf32> to vector<512x128xf32>
    %141 = arith.addf %138, %140 : vector<512x128xf32>
    %cst_138 = arith.constant 0.000000e+00 : f32
    %142 = vector.broadcast %cst_138 : f32 to vector<512x128xf32>
    %143 = arith.maximumf %141, %142 : vector<512x128xf32>
    %c0_139 = arith.constant 0 : index
    %c0_140 = arith.constant 0 : index
    %c0_141 = arith.constant 0 : index
    %c0_142 = arith.constant 0 : index
    %144 = vector.load %arg10[%c0_139, %c0_140, %c0_141, %c0_142] : memref<1x16x32x128xf32, #tpu.memory_space<vmem>>, vector<1x16x32x128xf32>
    %145 = vector.shape_cast %144 : vector<1x16x32x128xf32> to vector<16x32x128xf32>
    %146 = vector.shape_cast %143 : vector<512x128xf32> to vector<16x32x128xf32>
    %147 = arith.addf %145, %146 : vector<16x32x128xf32>
    %c0_143 = arith.constant 0 : index
    %c0_144 = arith.constant 0 : index
    %c0_145 = arith.constant 0 : index
    %c0_146 = arith.constant 0 : index
    %148 = vector.load %arg10[%c0_143, %c0_144, %c0_145, %c0_146] : memref<1x16x32x128xf32, #tpu.memory_space<vmem>>, vector<1x16x32x128xf32>
    %149 = vector.shape_cast %148 : vector<1x16x32x128xf32> to vector<16x32x128xf32>
    %150 = vector.shape_cast %147 : vector<16x32x128xf32> to vector<1x16x32x128xf32>
    tpu.vector_store %arg10[%c0_143, %c0_144, %c0_145, %c0_146], %150 {strides = array<i32>} : memref<1x16x32x128xf32, #tpu.memory_space<vmem>>, vector<1x16x32x128xf32>,
    return
  }
  func.func @transform_0(%arg0: i32) -> (i32, i32, i32, i32) {
    %c0_i32 = arith.constant 0 : i32
    %c0_i32_0 = arith.constant 0 : i32
    %c0_i32_1 = arith.constant 0 : i32
    %c0_i32_2 = arith.constant 0 : i32
    return %arg0, %c0_i32, %c0_i32_0, %c0_i32_1 : i32, i32, i32, i32
  }
  func.func @transform_1(%arg0: i32) -> (i32, i32) {
    %c0_i32 = arith.constant 0 : i32
    %c0_i32_0 = arith.constant 0 : i32
    %c0_i32_1 = arith.constant 0 : i32
    return %c0_i32, %c0_i32_0 : i32, i32
  }
  func.func @transform_2(%arg0: i32) -> (i32, i32) {
    %c0_i32 = arith.constant 0 : i32
    %c0_i32_0 = arith.constant 0 : i32
    %c0_i32_1 = arith.constant 0 : i32
    return %c0_i32, %c0_i32_0 : i32, i32
  }
  func.func @transform_3(%arg0: i32) -> (i32, i32, i32) {
    %c0_i32 = arith.constant 0 : i32
    %c0_i32_0 = arith.constant 0 : i32
    %c0_i32_1 = arith.constant 0 : i32
    %c0_i32_2 = arith.constant 0 : i32
    return %c0_i32, %c0_i32_0, %c0_i32_1 : i32, i32, i32
  }
  func.func @transform_4(%arg0: i32) -> (i32, i32) {
    %c0_i32 = arith.constant 0 : i32
    %c0_i32_0 = arith.constant 0 : i32
    %c0_i32_1 = arith.constant 0 : i32
    return %c0_i32, %c0_i32_0 : i32, i32
  }
  func.func @transform_5(%arg0: i32) -> (i32, i32) {
    %c0_i32 = arith.constant 0 : i32
    %c0_i32_0 = arith.constant 0 : i32
    %c0_i32_1 = arith.constant 0 : i32
    return %c0_i32, %c0_i32_0 : i32, i32
  }
  func.func @transform_6(%arg0: i32) -> (i32, i32, i32) {
    %c0_i32 = arith.constant 0 : i32
    %c0_i32_0 = arith.constant 0 : i32
    %c0_i32_1 = arith.constant 0 : i32
    %c0_i32_2 = arith.constant 0 : i32
    return %c0_i32, %c0_i32_0, %c0_i32_1 : i32, i32, i32
  }
  func.func @transform_7(%arg0: i32) -> (i32, i32) {
    %c0_i32 = arith.constant 0 : i32
    %c0_i32_0 = arith.constant 0 : i32
    %c0_i32_1 = arith.constant 0 : i32
    return %c0_i32, %c0_i32_0 : i32, i32
  }
  func.func @transform_8(%arg0: i32) -> (i32, i32) {
    %c0_i32 = arith.constant 0 : i32
    %c0_i32_0 = arith.constant 0 : i32
    %c0_i32_1 = arith.constant 0 : i32
    return %c0_i32, %c0_i32_0 : i32, i32
  }
  func.func @transform_9(%arg0: i32) -> (i32, i32, i32, i32) {
    %c0_i32 = arith.constant 0 : i32
    %c0_i32_0 = arith.constant 0 : i32
    %c0_i32_1 = arith.constant 0 : i32
    %c0_i32_2 = arith.constant 0 : i32
    return %arg0, %c0_i32, %c0_i32_0, %c0_i32_1 : i32, i32, i32, i32
  }
}

</mosaic_0001>

<llo_original>
// kernel: tpu_custom_call.1
$region0: #{tpu_custom_call.1}
  #allocation0 [shape = 'u32[]', space=smem, size = 0x4, offset = 0x4, fixed_abs, tag = 'smem constant byte address 0x4 - core index']
  #allocation1 [shape = 'u32[144,128]{1,0:T(1,128)}', space=vmem, size = 0x12000, scoped, tag = 'internal scratch']
  #allocation2 [shape = 'bf16[18,32,128]{2,1,0:T(16,128)(2,1)}', space=vmem, size = 0x24000, scoped, tag = 'scratch operand']
  #allocation3 [shape = 'bf16[20,32,128]{2,1,0:T(16,128)(2,1)}', space=vmem, size = 0x28000, scoped, tag = 'scratch operand']
  %s0 = inlined_call_operand.vmem [shape: f32[2,16,32,4], index: 0, kind: input, shape index: {}]
  %s1 = inlined_call_operand.hbm [shape: bf16[4,128], index: 1, kind: input, shape index: {}]
  %s2 = inlined_call_operand.hbm [shape: f32[1,128], index: 2, kind: input, shape index: {}]
  %s3 = inlined_call_operand.vmem [shape: bf16[9,128,128], index: 3, kind: input, shape index: {}]
  %s4 = inlined_call_operand.vmem [shape: f32[1,128], index: 4, kind: input, shape index: {}]
  %s5 = inlined_call_operand.vmem [shape: f32[1,128], index: 5, kind: input, shape index: {}]
  %s6 = inlined_call_operand.vmem [shape: bf16[9,128,128], index: 6, kind: input, shape index: {}]
  %s7 = inlined_call_operand.vmem [shape: f32[1,128], index: 7, kind: input, shape index: {}]
  %s8 = inlined_call_operand.vmem [shape: f32[1,128], index: 8, kind: input, shape index: {}]
  %s9 = inlined_call_operand.hbm [shape: f32[2,16,32,128], index: 9, kind: output, shape index: {}]
  %s10 = sld [smem:[#allocation0]]
  $region77: #{tpu_custom_call.1} parent=0
    _
  %s12 = ssub.s32 1, %s10
  %s13 = scalar_select 0, %s12, %s10
  $region1: #{tpu_custom_call.1} parent=0
    #allocation4 [shape = 'u8[1024]{0}', space=vmem, size = 0x400, scoped, tag = 'input window, operand 1, single buffered']
    #allocation5 [shape = 's32[2]{0}', space=sflag, size = 0x8, scoped, tag = 'scoped memory for tpu_custom_call.1']
    #allocation6 [shape = 's32[2]{0}', space=sflag, size = 0x8, scoped, tag = 'scoped memory for tpu_custom_call.1']
    #allocation7 [shape = 'u8[512]{0}', space=vmem, size = 0x400, scoped, tag = 'input window, operand 2, single buffered']
    #allocation8 [shape = 's32[1]{0}', space=sflag, size = 0x4, scoped, tag = 'scoped memory for tpu_custom_call.1']
    #allocation9 [shape = 'u8[524288]{0}', space=vmem, size = 0x80000, scoped, tag = 'output window, operand 0']
    %14 = vsyncpa [#allocation5], 0
    %15 = vsyncpa [#allocation8], 0
    %16 = vsyncpa [#allocation6], 0
    %s17 = scalar_lea.sflag [#allocation6], 1
    %18 = vsyncpa %s17, 0
    loop: start=0, step=1, limit=4
    $region2: #{tpu_custom_call.1} parent=1 // loop_pre_header
      _
    $region3: #{tpu_custom_call.1} parent=1 // loop_header
      %s20 = sphi 0, %s24
      %p21 = scmp.ge.s32.totalorder %s20, 4
      %s30 = sphi 0, %s32
      %s33 = sphi 0, %s30
      %s34 = sphi 0, %s33
      %s50 = sphi 0, %s34
      %s54 = sphi 0, %s54
      %s56 = sphi 0, %s54
      %s57 = sphi 0, %s56
      %s71 = sphi 0, %s57
      %s75 = sphi 0, %s75
      %s77 = sphi 0, %s75
      %s78 = sphi 0, %s77
      %s92 = sphi 0, %s78
      %s96 = sphi 0, %s96
      %s98 = sphi 0, %s96
      %s99 = sphi 0, %s98
      %s113 = sphi 0, %s99
      %s117 = sphi 0, %s117
      %s119 = sphi 0, %s117
      %s120 = sphi 0, %s119
      %s134 = sphi 0, %s120
      %s138 = sphi 0, %s138
      %s140 = sphi 0, %s138
      %s141 = sphi 0, %s140
      %s155 = sphi 0, %s141
      %s159 = sphi 0, %s159
      %s161 = sphi 0, %s159
      %s162 = sphi 0, %s161
      %s176 = sphi 0, %s162
      %s180 = sphi 0, %s180
      %s182 = sphi 0, %s180
      %s183 = sphi 0, %s182
      %s197 = sphi 0, %s183
      %s201 = sphi 0, %s201
      %s203 = sphi 0, %s201
      %s204 = sphi 0, %s203
      %s218 = sphi 0, %s204
      %s224 = sphi 0, %s226
      %s227 = sphi 0, %s224
      %s228 = sphi 0, %s227
      %s244 = sphi 0, %s228
    $region4: #{tpu_custom_call.1} parent=1 // loop_header_branch
      %23 = sbr.rel (%p21) target = $region8
    $region5: #{tpu_custom_call.1} parent=1 // loop_body
      %s25 = ssub.s32 %s20, 1
      %s26 = ssub.s32 %s20, 2
      %s27 = sadd.s32 %s20, 1
      %s28 = ssub.s32 %s20, %s27
      %p29 = scmp.eq.s32.totalorder %s28, 0
      %s31 = sadd.s32 %s30, 1
      %s32 = scalar_select %p29, %s30, %s31
      %p35 = pneg %p29
      %p36 = scmp.eq.s32.totalorder %s20, 1
      %p37 = por %p35, %p36
      %p38 = scmp.ne.s32.totalorder %s30, %s33
      %p39 = scmp.eq.s32.totalorder %s20, 0
      %p40 = por %p38, %p39
      %p41 = scmp.ne.s32.totalorder %s30, %s33
      %p42 = scmp.eq.s32.totalorder %s25, 1
      %p43 = por %p41, %p42
      %p44 = scmp.ne.s32.totalorder %s33, %s34
      %p45 = scmp.eq.s32.totalorder %s25, 0
      %p46 = por %p44, %p45
      %p47 = scmp.ne.s32.totalorder %s33, %s34
      %p48 = scmp.eq.s32.totalorder %s26, 1
      %p49 = por %p47, %p48
      %p51 = scmp.ne.s32.totalorder %s34, %s50
      %p52 = scmp.eq.s32.totalorder %s26, 0
      %p53 = por %p51, %p52
      %s55 = sadd.s32 %s54, 1
      %p58 = scmp.eq.s32.totalorder %s20, 1
      %p59 = scmp.ne.s32.totalorder %s54, %s56
      %p60 = scmp.eq.s32.totalorder %s20, 0
      %p61 = por %p59, %p60
      %p62 = scmp.ne.s32.totalorder %s54, %s56
      %p63 = scmp.eq.s32.totalorder %s25, 1
      %p64 = por %p62, %p63
      %p65 = scmp.ne.s32.totalorder %s56, %s57
      %p66 = scmp.eq.s32.totalorder %s25, 0
      %p67 = por %p65, %p66
      %p68 = scmp.ne.s32.totalorder %s56, %s57
      %p69 = scmp.eq.s32.totalorder %s26, 1
      %p70 = por %p68, %p69
      %p72 = scmp.ne.s32.totalorder %s57, %s71
      %p73 = scmp.eq.s32.totalorder %s26, 0
      %p74 = por %p72, %p73
      %s76 = sadd.s32 %s75, 1
      %p79 = scmp.eq.s32.totalorder %s20, 1
      %p80 = scmp.ne.s32.totalorder %s75, %s77
      %p81 = scmp.eq.s32.totalorder %s20, 0
      %p82 = por %p80, %p81
      %p83 = scmp.ne.s32.totalorder %s75, %s77
      %p84 = scmp.eq.s32.totalorder %s25, 1
      %p85 = por %p83, %p84
      %p86 = scmp.ne.s32.totalorder %s77, %s78
      %p87 = scmp.eq.s32.totalorder %s25, 0
      %p88 = por %p86, %p87
      %p89 = scmp.ne.s32.totalorder %s77, %s78
      %p90 = scmp.eq.s32.totalorder %s26, 1
      %p91 = por %p89, %p90
      %p93 = scmp.ne.s32.totalorder %s78, %s92
      %p94 = scmp.eq.s32.totalorder %s26, 0
      %p95 = por %p93, %p94
      %s97 = sadd.s32 %s96, 1
      %p100 = scmp.eq.s32.totalorder %s20, 1
      %p101 = scmp.ne.s32.totalorder %s96, %s98
      %p102 = scmp.eq.s32.totalorder %s20, 0
      %p103 = por %p101, %p102
      %p104 = scmp.ne.s32.totalorder %s96, %s98
      %p105 = scmp.eq.s32.totalorder %s25, 1
      %p106 = por %p104, %p105
      %p107 = scmp.ne.s32.totalorder %s98, %s99
      %p108 = scmp.eq.s32.totalorder %s25, 0
      %p109 = por %p107, %p108
      %p110 = scmp.ne.s32.totalorder %s98, %s99
      %p111 = scmp.eq.s32.totalorder %s26, 1
      %p112 = por %p110, %p111
      %p114 = scmp.ne.s32.totalorder %s99, %s113
      %p115 = scmp.eq.s32.totalorder %s26, 0
      %p116 = por %p114, %p115
      %s118 = sadd.s32 %s117, 1
      %p121 = scmp.eq.s32.totalorder %s20, 1
      %p122 = scmp.ne.s32.totalorder %s117, %s119
      %p123 = scmp.eq.s32.totalorder %s20, 0
      %p124 = por %p122, %p123
      %p125 = scmp.ne.s32.totalorder %s117, %s119
      %p126 = scmp.eq.s32.totalorder %s25, 1
      %p127 = por %p125, %p126
      %p128 = scmp.ne.s32.totalorder %s119, %s120
      %p129 = scmp.eq.s32.totalorder %s25, 0
      %p130 = por %p128, %p129
      %p131 = scmp.ne.s32.totalorder %s119, %s120
      %p132 = scmp.eq.s32.totalorder %s26, 1
      %p133 = por %p131, %p132
      %p135 = scmp.ne.s32.totalorder %s120, %s134
      %p136 = scmp.eq.s32.totalorder %s26, 0
      %p137 = por %p135, %p136
      %s139 = sadd.s32 %s138, 1
      %p142 = scmp.eq.s32.totalorder %s20, 1
      %p143 = scmp.ne.s32.totalorder %s138, %s140
      %p144 = scmp.eq.s32.totalorder %s20, 0
      %p145 = por %p143, %p144
      %p146 = scmp.ne.s32.totalorder %s138, %s140
      %p147 = scmp.eq.s32.totalorder %s25, 1
      %p148 = por %p146, %p147
      %p149 = scmp.ne.s32.totalorder %s140, %s141
      %p150 = scmp.eq.s32.totalorder %s25, 0
      %p151 = por %p149, %p150
      %p152 = scmp.ne.s32.totalorder %s140, %s141
      %p153 = scmp.eq.s32.totalorder %s26, 1
      %p154 = por %p152, %p153
      %p156 = scmp.ne.s32.totalorder %s141, %s155
      %p157 = scmp.eq.s32.totalorder %s26, 0
      %p158 = por %p156, %p157
      %s160 = sadd.s32 %s159, 1
      %p163 = scmp.eq.s32.totalorder %s20, 1
      %p164 = scmp.ne.s32.totalorder %s159, %s161
      %p165 = scmp.eq.s32.totalorder %s20, 0
      %p166 = por %p164, %p165
      %p167 = scmp.ne.s32.totalorder %s159, %s161
      %p168 = scmp.eq.s32.totalorder %s25, 1
      %p169 = por %p167, %p168
      %p170 = scmp.ne.s32.totalorder %s161, %s162
      %p171 = scmp.eq.s32.totalorder %s25, 0
      %p172 = por %p170, %p171
      %p173 = scmp.ne.s32.totalorder %s161, %s162
      %p174 = scmp.eq.s32.totalorder %s26, 1
      %p175 = por %p173, %p174
      %p177 = scmp.ne.s32.totalorder %s162, %s176
      %p178 = scmp.eq.s32.totalorder %s26, 0
      %p179 = por %p177, %p178
      %s181 = sadd.s32 %s180, 1
      %p184 = scmp.eq.s32.totalorder %s20, 1
      %p185 = scmp.ne.s32.totalorder %s180, %s182
      %p186 = scmp.eq.s32.totalorder %s20, 0
      %p187 = por %p185, %p186
      %p188 = scmp.ne.s32.totalorder %s180, %s182
      %p189 = scmp.eq.s32.totalorder %s25, 1
      %p190 = por %p188, %p189
      %p191 = scmp.ne.s32.totalorder %s182, %s183
      %p192 = scmp.eq.s32.totalorder %s25, 0
      %p193 = por %p191, %p192
      %p194 = scmp.ne.s32.totalorder %s182, %s183
      %p195 = scmp.eq.s32.totalorder %s26, 1
      %p196 = por %p194, %p195
      %p198 = scmp.ne.s32.totalorder %s183, %s197
      %p199 = scmp.eq.s32.totalorder %s26, 0
      %p200 = por %p198, %p199
      %s202 = sadd.s32 %s201, 1
      %p205 = scmp.eq.s32.totalorder %s20, 1
      %p206 = scmp.ne.s32.totalorder %s201, %s203
      %p207 = scmp.eq.s32.totalorder %s20, 0
      %p208 = por %p206, %p207
      %p209 = scmp.ne.s32.totalorder %s201, %s203
      %p210 = scmp.eq.s32.totalorder %s25, 1
      %p211 = por %p209, %p210
      %p212 = scmp.ne.s32.totalorder %s203, %s204
      %p213 = scmp.eq.s32.totalorder %s25, 0
      %p214 = por %p212, %p213
      %p215 = scmp.ne.s32.totalorder %s203, %s204
      %p216 = scmp.eq.s32.totalorder %s26, 1
      %p217 = por %p215, %p216
      %p219 = scmp.ne.s32.totalorder %s204, %s218
      %p220 = scmp.eq.s32.totalorder %s26, 0
      %p221 = por %p219, %p220
      %s222 = ssub.s32 %s20, %s27
      %p223 = scmp.eq.s32.totalorder %s222, 0
      %s225 = sadd.s32 %s224, 1
      %s226 = scalar_select %p223, %s224, %s225
      %p229 = pneg %p223
      %p230 = scmp.eq.s32.totalorder %s20, 1
      %p231 = por %p229, %p230
      %p232 = scmp.ne.s32.totalorder %s224, %s227
      %p233 = scmp.eq.s32.totalorder %s20, 0
      %p234 = por %p232, %p233
      %p235 = scmp.ne.s32.totalorder %s224, %s227
      %p236 = scmp.eq.s32.totalorder %s25, 1
      %p237 = por %p235, %p236
      %p238 = scmp.ne.s32.totalorder %s227, %s228
      %p239 = scmp.eq.s32.totalorder %s25, 0
      %p240 = por %p238, %p239
      %p241 = scmp.ne.s32.totalorder %s227, %s228
      %p242 = scmp.eq.s32.totalorder %s26, 1
      %p243 = por %p241, %p242
      %p245 = scmp.ne.s32.totalorder %s228, %s244
      %p246 = scmp.eq.s32.totalorder %s26, 0
      %p247 = por %p245, %p246
      %p248 = scmp.le.s32.totalorder 1, %s20
      %p249 = scmp.lt.s32.totalorder %s20, 3
      %p250 = pnand %p248, %p249
      %p251 = pneg %p250
      // Predicated region
      $region9: #{tpu_custom_call.1} parent=5 // pred_check
        _
      $region10: #{tpu_custom_call.1} parent=5 // pred_check_branch
        %253 = sbr.rel (%p250) target = $region12
      $region11: #{tpu_custom_call.1} parent=5 // pred_region
        %s254 = ssub.s32 %s20, 1
        // Predicated region
        $region13: #{tpu_custom_call.1} parent=11 // pred_check
          %p255 = pneg %p67
        $region14: #{tpu_custom_call.1} parent=11 // pred_check_branch
          %257 = sbr.rel (%p255) target = $region16
        $region15: #{tpu_custom_call.1} parent=11 // pred_region
          %s259 = ssub.s32 32, 32
          %260 = vsyncadd [#allocation5], %s259
          %s262 = sshll.u32 [#allocation4], 4
          %s263 = int_to_ptr.vmem [resolvable:$true] %s262
          %265 = dma.hbm_to_vmem [thread:$0]  %s1, 32, %s263, [#allocation5]
        $region16: #{tpu_custom_call.1} parent=11 // pred_fallthru
          _
        // Predicated region
        $region17: #{tpu_custom_call.1} parent=11 // pred_check
          %p266 = pneg %p88
        $region18: #{tpu_custom_call.1} parent=11 // pred_check_branch
          %268 = sbr.rel (%p266) target = $region20
        $region19: #{tpu_custom_call.1} parent=11 // pred_region
          %s270 = ssub.s32 16, 16
          %271 = vsyncadd [#allocation8], %s270
          %s273 = sshll.u32 [#allocation7], 4
          %s274 = int_to_ptr.vmem [resolvable:$true] %s273
          %276 = dma.hbm_to_vmem [thread:$0]  %s2, 16, %s274, [#allocation8]
        $region20: #{tpu_custom_call.1} parent=11 // pred_fallthru
          _
        // Predicated region
        $region21: #{tpu_custom_call.1} parent=11 // pred_check
          %p277 = pneg %p109
        $region22: #{tpu_custom_call.1} parent=11 // pred_check_branch
          %279 = sbr.rel (%p277) target = $region24
        $region23: #{tpu_custom_call.1} parent=11 // pred_region
          _
        $region24: #{tpu_custom_call.1} parent=11 // pred_fallthru
          _
        // Predicated region
        $region25: #{tpu_custom_call.1} parent=11 // pred_check
          %p280 = pneg %p130
        $region26: #{tpu_custom_call.1} parent=11 // pred_check_branch
          %282 = sbr.rel (%p280) target = $region28
        $region27: #{tpu_custom_call.1} parent=11 // pred_region
          _
        $region28: #{tpu_custom_call.1} parent=11 // pred_fallthru
          _
        // Predicated region
        $region29: #{tpu_custom_call.1} parent=11 // pred_check
          %p283 = pneg %p151
        $region30: #{tpu_custom_call.1} parent=11 // pred_check_branch
          %285 = sbr.rel (%p283) target = $region32
        $region31: #{tpu_custom_call.1} parent=11 // pred_region
          _
        $region32: #{tpu_custom_call.1} parent=11 // pred_fallthru
          _
        // Predicated region
        $region33: #{tpu_custom_call.1} parent=11 // pred_check
          %p286 = pneg %p172
        $region34: #{tpu_custom_call.1} parent=11 // pred_check_branch
          %288 = sbr.rel (%p286) target = $region36
        $region35: #{tpu_custom_call.1} parent=11 // pred_region
          _
        $region36: #{tpu_custom_call.1} parent=11 // pred_fallthru
          _
        // Predicated region
        $region37: #{tpu_custom_call.1} parent=11 // pred_check
          %p289 = pneg %p193
        $region38: #{tpu_custom_call.1} parent=11 // pred_check_branch
          %291 = sbr.rel (%p289) target = $region40
        $region39: #{tpu_custom_call.1} parent=11 // pred_region
          _
        $region40: #{tpu_custom_call.1} parent=11 // pred_fallthru
          _
        // Predicated region
        $region41: #{tpu_custom_call.1} parent=11 // pred_check
          %p292 = pneg %p214
        $region42: #{tpu_custom_call.1} parent=11 // pred_check_branch
          %294 = sbr.rel (%p292) target = $region44
        $region43: #{tpu_custom_call.1} parent=11 // pred_region
          _
        $region44: #{tpu_custom_call.1} parent=11 // pred_fallthru
          _
      $region12: #{tpu_custom_call.1} parent=5 // pred_fallthru
        _
      %p295 = scmp.lt.s32.totalorder %s20, 2
      // Predicated region
      $region45: #{tpu_custom_call.1} parent=5 // pred_check
        %p296 = pneg %p295
      $region46: #{tpu_custom_call.1} parent=5 // pred_check_branch
        %298 = sbr.rel (%p296) target = $region48
      $region47: #{tpu_custom_call.1} parent=5 // pred_region
        // Predicated region
        $region49: #{tpu_custom_call.1} parent=47 // pred_check
          %p299 = pneg %p40
        $region50: #{tpu_custom_call.1} parent=47 // pred_check_branch
          %301 = sbr.rel (%p299) target = $region52
        $region51: #{tpu_custom_call.1} parent=47 // pred_region
          %p302 = scmp.lt.s32.totalorder %s20, 1
          %s303 = scalar_select %p302, %s20, 1
          %s304 = smul.addr %s303, 64
          %s305 = smul.addr %s304, 8
          %s306 = scalar_lea.vmem %s0, %s305
        $region52: #{tpu_custom_call.1} parent=47 // pred_fallthru
          _
      $region48: #{tpu_custom_call.1} parent=5 // pred_fallthru
        _
      %p307 = scmp.le.s32.totalorder 1, %s20
      %p308 = scmp.lt.s32.totalorder %s20, 3
      %p309 = pnand %p307, %p308
      %p310 = pneg %p309
      // Predicated region
      $region53: #{tpu_custom_call.1} parent=5 // pred_check
        _
      $region54: #{tpu_custom_call.1} parent=5 // pred_check_branch
        %312 = sbr.rel (%p309) target = $region56
      $region55: #{tpu_custom_call.1} parent=5 // pred_region
        %s313 = ssub.s32 %s20, 1
        // Predicated region
        $region57: #{tpu_custom_call.1} parent=55 // pred_check
          %p314 = pneg %p67
        $region58: #{tpu_custom_call.1} parent=55 // pred_check_branch
          %316 = sbr.rel (%p314) target = $region60
        $region59: #{tpu_custom_call.1} parent=55 // pred_region
          %317 = dma.done [#allocation5], 32
        $region60: #{tpu_custom_call.1} parent=55 // pred_fallthru
          _
        // Predicated region
        $region61: #{tpu_custom_call.1} parent=55 // pred_check
          %p318 = pneg %p88
        $region62: #{tpu_custom_call.1} parent=55 // pred_check_branch
          %320 = sbr.rel (%p318) target = $region64
        $region63: #{tpu_custom_call.1} parent=55 // pred_region
          %321 = dma.done [#allocation8], 16
        $region64: #{tpu_custom_call.1} parent=55 // pred_fallthru
          _
        %p322 = scmp.lt.s32.totalorder %s25, 1
        %s323 = scalar_select %p322, %s25, 1
        %s324 = smul.addr %s323, 64
        %s325 = smul.addr %s324, 8
        %s326 = scalar_lea.vmem %s0, %s325
        %p327 = pneg %p46
        %p328 = pneg %p43
        %p329 = pneg %p67
        %p330 = pneg %p64
        %p331 = pneg %p88
        %p332 = pneg %p85
        %p333 = pneg %p109
        %p334 = pneg %p106
        %p335 = pneg %p130
        %p336 = pneg %p127
        %p337 = pneg %p151
        %p338 = pneg %p148
        %p339 = pneg %p172
        %p340 = pneg %p169
        %p341 = pneg %p193
        %p342 = pneg %p190
        %p343 = pneg %p214
        %p344 = pneg %p211
        %p345 = pneg %p240
        %p346 = pneg %p237
        %s347 = sand.u32 %s227, 1
        %s348 = scalar_lea.sflag [#allocation6], %s347
        %s349 = sand.u32 %s227, 1
        %s350 = smul.addr %s349, 512
        %s351 = scalar_lea.vmem [#allocation9], %s350
        %p352 = scmp.lt.s32.totalorder %s25, 1
        %s353 = scalar_select %p352, %s25, 1
        %s354 = smul.addr %s353, 64
        %s355 = smul.addr %s354, 8
        %s356 = scalar_lea.vmem %s0, %s355
        %358 = vst [vmem:[#allocation2] sm:$0xff] 0
        %359 = vst [vmem:[#allocation2 + $0x8] sm:$0xff] 0
        %s360 = scalar_lea.vmem [#allocation2], 272
        %361 = vst [vmem:[%s360] sm:$0xff] 0
        %362 = vst [vmem:[%s360 + $0x8] sm:$0xff] 0
        %363 = vst [vmem:[#allocation3] sm:$0xff] 0
        %364 = vst [vmem:[#allocation3 + $0x8] sm:$0xff] 0
        %365 = vst [vmem:[#allocation3 + $0x10] sm:$0xff] 0
        %366 = vst [vmem:[#allocation3 + $0x18] sm:$0xff] 0
        %s367 = scalar_lea.vmem [#allocation3], 288
        %368 = vst [vmem:[%s367] sm:$0xff] 0
        %369 = vst [vmem:[%s367 + $0x8] sm:$0xff] 0
        %370 = vst [vmem:[%s367 + $0x10] sm:$0xff] 0
        %371 = vst [vmem:[%s367 + $0x18] sm:$0xff] 0
        %372 = vst [vmem:[#allocation2 + $0x8] sm:$0xff] 0
        %373 = vst [vmem:[#allocation2 + $0x18] sm:$0xff] 0
        %374 = vst [vmem:[#allocation2 + $0x28] sm:$0xff] 0
        %375 = vst [vmem:[#allocation2 + $0x38] sm:$0xff] 0
        %376 = vst [vmem:[#allocation2 + $0x48] sm:$0xff] 0
        %377 = vst [vmem:[#allocation2 + $0x58] sm:$0xff] 0
        %378 = vst [vmem:[#allocation2 + $0x68] sm:$0xff] 0
        %379 = vst [vmem:[#allocation2 + $0x78] sm:$0xff] 0
        %380 = vst [vmem:[#allocation2 + $0x88] sm:$0xff] 0
        %381 = vst [vmem:[#allocation2 + $0x98] sm:$0xff] 0
        %382 = vst [vmem:[#allocation2 + $0xa8] sm:$0xff] 0
        %383 = vst [vmem:[#allocation2 + $0xb8] sm:$0xff] 0
        %384 = vst [vmem:[#allocation2 + $0xc8] sm:$0xff] 0
        %385 = vst [vmem:[#allocation2 + $0xd8] sm:$0xff] 0
        %386 = vst [vmem:[#allocation2 + $0xe8] sm:$0xff] 0
        %387 = vst [vmem:[#allocation2 + $0xf8] sm:$0xff] 0
        %388 = vst [vmem:[#allocation2 + $0x108] sm:$0xff] 0
        %389 = vst [vmem:[#allocation2 + $0x118] sm:$0xff] 0
        %390 = vst [vmem:[#allocation3 + $0x8] sm:$0xff] 0
        %391 = vst [vmem:[#allocation3 + $0x18] sm:$0xff] 0
        %392 = vst [vmem:[#allocation3 + $0x28] sm:$0xff] 0
        %393 = vst [vmem:[#allocation3 + $0x38] sm:$0xff] 0
        %394 = vst [vmem:[#allocation3 + $0x48] sm:$0xff] 0
        %395 = vst [vmem:[#allocation3 + $0x58] sm:$0xff] 0
        %396 = vst [vmem:[#allocation3 + $0x68] sm:$0xff] 0
        %397 = vst [vmem:[#allocation3 + $0x78] sm:$0xff] 0
        %398 = vst [vmem:[#allocation3 + $0x88] sm:$0xff] 0
        %399 = vst [vmem:[#allocation3 + $0x98] sm:$0xff] 0
        %400 = vst [vmem:[#allocation3 + $0xa8] sm:$0xff] 0
        %401 = vst [vmem:[#allocation3 + $0xb8] sm:$0xff] 0
        %402 = vst [vmem:[#allocation3 + $0xc8] sm:$0xff] 0
        %403 = vst [vmem:[#allocation3 + $0xd8] sm:$0xff] 0
        %404 = vst [vmem:[#allocation3 + $0xe8] sm:$0xff] 0
        %405 = vst [vmem:[#allocation3 + $0xf8] sm:$0xff] 0
        %406 = vst [vmem:[#allocation3 + $0x108] sm:$0xff] 0
        %407 = vst [vmem:[#allocation3 + $0x118] sm:$0xff] 0
        %408 = vst [vmem:[#allocation3 + $0x128] sm:$0xff] 0
        %409 = vst [vmem:[#allocation3 + $0x138] sm:$0xff] 0
        %v410 = vld [vmem:[%s356] sm:$0xff]
        %v411 = vld [vmem:[%s356 + $0x8] sm:$0xff]
        %v412 = vld [vmem:[%s356 + $0x10] sm:$0xff]
        %v413 = vld [vmem:[%s356 + $0x18] sm:$0xff]
        %v414 = vld [vmem:[%s356 + $0x20] sm:$0xff]
        %v415 = vld [vmem:[%s356 + $0x28] sm:$0xff]
        %v416 = vld [vmem:[%s356 + $0x30] sm:$0xff]
        %v417 = vld [vmem:[%s356 + $0x38] sm:$0xff]
        %v418 = vld [vmem:[%s356 + $0x40] sm:$0xff]
        %v419 = vld [vmem:[%s356 + $0x48] sm:$0xff]
        %v420 = vld [vmem:[%s356 + $0x50] sm:$0xff]
        %v421 = vld [vmem:[%s356 + $0x58] sm:$0xff]
        %v422 = vld [vmem:[%s356 + $0x60] sm:$0xff]
        %v423 = vld [vmem:[%s356 + $0x68] sm:$0xff]
        %v424 = vld [vmem:[%s356 + $0x70] sm:$0xff]
        %v425 = vld [vmem:[%s356 + $0x78] sm:$0xff]
        %v426 = vld [vmem:[%s356 + $0x80] sm:$0xff]
        %v427 = vld [vmem:[%s356 + $0x88] sm:$0xff]
        %v428 = vld [vmem:[%s356 + $0x90] sm:$0xff]
        %v429 = vld [vmem:[%s356 + $0x98] sm:$0xff]
        %v430 = vld [vmem:[%s356 + $0xa0] sm:$0xff]
        %v431 = vld [vmem:[%s356 + $0xa8] sm:$0xff]
        %v432 = vld [vmem:[%s356 + $0xb0] sm:$0xff]
        %v433 = vld [vmem:[%s356 + $0xb8] sm:$0xff]
        %v434 = vld [vmem:[%s356 + $0xc0] sm:$0xff]
        %v435 = vld [vmem:[%s356 + $0xc8] sm:$0xff]
        %v436 = vld [vmem:[%s356 + $0xd0] sm:$0xff]
        %v437 = vld [vmem:[%s356 + $0xd8] sm:$0xff]
        %v438 = vld [vmem:[%s356 + $0xe0] sm:$0xff]
        %v439 = vld [vmem:[%s356 + $0xe8] sm:$0xff]
        %v440 = vld [vmem:[%s356 + $0xf0] sm:$0xff]
        %v441 = vld [vmem:[%s356 + $0xf8] sm:$0xff]
        %v442 = vld [vmem:[%s356 + $0x100] sm:$0xff]
        %v443 = vld [vmem:[%s356 + $0x108] sm:$0xff]
        %v444 = vld [vmem:[%s356 + $0x110] sm:$0xff]
        %v445 = vld [vmem:[%s356 + $0x118] sm:$0xff]
        %v446 = vld [vmem:[%s356 + $0x120] sm:$0xff]
        %v447 = vld [vmem:[%s356 + $0x128] sm:$0xff]
        %v448 = vld [vmem:[%s356 + $0x130] sm:$0xff]
        %v449 = vld [vmem:[%s356 + $0x138] sm:$0xff]
        %v450 = vld [vmem:[%s356 + $0x140] sm:$0xff]
        %v451 = vld [vmem:[%s356 + $0x148] sm:$0xff]
        %v452 = vld [vmem:[%s356 + $0x150] sm:$0xff]
        %v453 = vld [vmem:[%s356 + $0x158] sm:$0xff]
        %v454 = vld [vmem:[%s356 + $0x160] sm:$0xff]
        %v455 = vld [vmem:[%s356 + $0x168] sm:$0xff]
        %v456 = vld [vmem:[%s356 + $0x170] sm:$0xff]
        %v457 = vld [vmem:[%s356 + $0x178] sm:$0xff]
        %v458 = vld [vmem:[%s356 + $0x180] sm:$0xff]
        %v459 = vld [vmem:[%s356 + $0x188] sm:$0xff]
        %v460 = vld [vmem:[%s356 + $0x190] sm:$0xff]
        %v461 = vld [vmem:[%s356 + $0x198] sm:$0xff]
        %v462 = vld [vmem:[%s356 + $0x1a0] sm:$0xff]
        %v463 = vld [vmem:[%s356 + $0x1a8] sm:$0xff]
        %v464 = vld [vmem:[%s356 + $0x1b0] sm:$0xff]
        %v465 = vld [vmem:[%s356 + $0x1b8] sm:$0xff]
        %v466 = vld [vmem:[%s356 + $0x1c0] sm:$0xff]
        %v467 = vld [vmem:[%s356 + $0x1c8] sm:$0xff]
        %v468 = vld [vmem:[%s356 + $0x1d0] sm:$0xff]
        %v469 = vld [vmem:[%s356 + $0x1d8] sm:$0xff]
        %v470 = vld [vmem:[%s356 + $0x1e0] sm:$0xff]
        %v471 = vld [vmem:[%s356 + $0x1e8] sm:$0xff]
        %v472 = vld [vmem:[%s356 + $0x1f0] sm:$0xff]
        %v473 = vld [vmem:[%s356 + $0x1f8] sm:$0xff]
        %v474 = vpack.c.bf16 %v411, %v410
        %v475 = vpack.c.bf16 %v413, %v412
        %v476 = vpack.c.bf16 %v415, %v414
        %v477 = vpack.c.bf16 %v417, %v416
        %v478 = vpack.c.bf16 %v419, %v418
        %v479 = vpack.c.bf16 %v421, %v420
        %v480 = vpack.c.bf16 %v423, %v422
        %v481 = vpack.c.bf16 %v425, %v424
        %v482 = vpack.c.bf16 %v427, %v426
        %v483 = vpack.c.bf16 %v429, %v428
        %v484 = vpack.c.bf16 %v431, %v430
        %v485 = vpack.c.bf16 %v433, %v432
        %v486 = vpack.c.bf16 %v435, %v434
        %v487 = vpack.c.bf16 %v437, %v436
        %v488 = vpack.c.bf16 %v439, %v438
        %v489 = vpack.c.bf16 %v441, %v440
        %v490 = vpack.c.bf16 %v443, %v442
        %v491 = vpack.c.bf16 %v445, %v444
        %v492 = vpack.c.bf16 %v447, %v446
        %v493 = vpack.c.bf16 %v449, %v448
        %v494 = vpack.c.bf16 %v451, %v450
        %v495 = vpack.c.bf16 %v453, %v452
        %v496 = vpack.c.bf16 %v455, %v454
        %v497 = vpack.c.bf16 %v457, %v456
        %v498 = vpack.c.bf16 %v459, %v458
        %v499 = vpack.c.bf16 %v461, %v460
        %v500 = vpack.c.bf16 %v463, %v462
        %v501 = vpack.c.bf16 %v465, %v464
        %v502 = vpack.c.bf16 %v467, %v466
        %v503 = vpack.c.bf16 %v469, %v468
        %v504 = vpack.c.bf16 %v471, %v470
        %v505 = vpack.c.bf16 %v473, %v472
        %v506 = vld [vmem:[#allocation4] sm:$0x3]
        %v507 = vld [vmem:[#allocation7] sm:$0x1]
        %v509 = vlaneseq
        %v510 = vshrl.u32 %v509, 7
        %v511 = vsub.s32 0, %v510
        %v512 = vrot.slane %v507, %v511
        %vm514 = vcmask 31744
        %v516 = vsel %vm514, %v474, 0
        %v519 = vsel %vm514, %v475, 0
        %v522 = vsel %vm514, %v476, 0
        %v525 = vsel %vm514, %v477, 0
        %v528 = vsel %vm514, %v478, 0
        %v531 = vsel %vm514, %v479, 0
        %v534 = vsel %vm514, %v480, 0
        %v537 = vsel %vm514, %v481, 0
        %v540 = vsel %vm514, %v482, 0
        %v543 = vsel %vm514, %v483, 0
        %v546 = vsel %vm514, %v484, 0
        %v549 = vsel %vm514, %v485, 0
        %v552 = vsel %vm514, %v486, 0
        %v555 = vsel %vm514, %v487, 0
        %v558 = vsel %vm514, %v488, 0
        %v561 = vsel %vm514, %v489, 0
        %v564 = vsel %vm514, %v490, 0
        %v567 = vsel %vm514, %v491, 0
        %v570 = vsel %vm514, %v492, 0
        %v573 = vsel %vm514, %v493, 0
        %v576 = vsel %vm514, %v494, 0
        %v579 = vsel %vm514, %v495, 0
        %v582 = vsel %vm514, %v496, 0
        %v585 = vsel %vm514, %v497, 0
        %v588 = vsel %vm514, %v498, 0
        %v591 = vsel %vm514, %v499, 0
        %v594 = vsel %vm514, %v500, 0
        %v597 = vsel %vm514, %v501, 0
        %v600 = vsel %vm514, %v502, 0
        %v603 = vsel %vm514, %v503, 0
        %v606 = vsel %vm514, %v504, 0
        %v609 = vsel %vm514, %v505, 0
        %vm611 = vcmask 1041408
        %v613 = vsel %vm611, %v506, 0
        %615 = vmatprep.subr.bf16.mxu0 0
        %616 = vmatpush1.bf16.msra.mxu0 %v613
        %617 = vmatprep.subr.bf16.mxu0 0
        %618 = vmatpush1.bf16.msra.mxu0 0
        %619 = vmatprep.subr.bf16.mxu0 0
        %620 = vmatpush1.bf16.msra.mxu0 0
        %621 = vmatprep.subr.bf16.mxu0 0
        %622 = vmatpush1.bf16.msra.mxu0 0
        %623 = vmatprep.subr.bf16.mxu0 0
        %624 = vmatpush1.bf16.msra.mxu0 0
        %625 = vmatprep.subr.bf16.mxu0 0
        %626 = vmatpush1.bf16.msra.mxu0 0
        %627 = vmatprep.subr.bf16.mxu0 0
        %628 = vmatpush1.bf16.msra.mxu0 0
        %629 = vmatprep.subr.bf16.mxu0 0
        %630 = vmatpush1.bf16.msra.mxu0 0
        %631 = vmatprep.subr.bf16.mxu0 0
        %632 = vmatpush1.bf16.msra.mxu0 0
        %633 = vmatprep.subr.bf16.mxu0 0
        %634 = vmatpush1.bf16.msra.mxu0 0
        %635 = vmatprep.subr.bf16.mxu0 0
        %636 = vmatpush1.bf16.msra.mxu0 0
        %637 = vmatprep.subr.bf16.mxu0 0
        %638 = vmatpush1.bf16.msra.mxu0 0
        %639 = vmatprep.subr.bf16.mxu0 0
        %640 = vmatpush1.bf16.msra.mxu0 0
        %641 = vmatprep.subr.bf16.mxu0 0
        %642 = vmatpush1.bf16.msra.mxu0 0
        %643 = vmatprep.subr.bf16.mxu0 0
        %644 = vmatpush1.bf16.msra.mxu0 0
        %645 = vmatprep.subr.bf16.mxu0 0
        %646 = vmatpush1.bf16.msra.mxu0 0
        %647 = vmatprep.mubr.bf16.mxu0 0
        %648 = vmatmul.mubr.bf16.gmra.mrb[0].mxu0 %v516
        %v649 = vpop.f32.mrb[0].mxu0
        %v650 = vadd.f32 %v512, %v649
        %v651 = vpop.f32.mrb[0].mxu0
        %v652 = vpop.f32.mrb[0].mxu0
        %v653 = vadd.f32 %v512, %v652
        %v654 = vpop.f32.mrb[0].mxu0
        %655 = vmatprep.mubr.bf16.mxu0 0
        %656 = vmatmul.mubr.bf16.gmra.mrb[0].mxu0 %v519
        %v657 = vpop.f32.mrb[0].mxu0
        %v658 = vadd.f32 %v512, %v657
        %v659 = vpop.f32.mrb[0].mxu0
        %v660 = vpop.f32.mrb[0].mxu0
        %v661 = vadd.f32 %v512, %v660
        %v662 = vpop.f32.mrb[0].mxu0
        %663 = vmatprep.mubr.bf16.mxu0 0
        %664 = vmatmul.mubr.bf16.gmra.mrb[0].mxu0 %v522
        %v665 = vpop.f32.mrb[0].mxu0
        %v666 = vadd.f32 %v512, %v665
        %v667 = vpop.f32.mrb[0].mxu0
        %v668 = vpop.f32.mrb[0].mxu0
        %v669 = vadd.f32 %v512, %v668
        %v670 = vpop.f32.mrb[0].mxu0
        %671 = vmatprep.mubr.bf16.mxu0 0
        %672 = vmatmul.mubr.bf16.gmra.mrb[0].mxu0 %v525
        %v673 = vpop.f32.mrb[0].mxu0
        %v674 = vadd.f32 %v512, %v673
        %v675 = vpop.f32.mrb[0].mxu0
        %v676 = vpop.f32.mrb[0].mxu0
        %v677 = vadd.f32 %v512, %v676
        %v678 = vpop.f32.mrb[0].mxu0
        %679 = vmatprep.mubr.bf16.mxu0 0
        %680 = vmatmul.mubr.bf16.gmra.mrb[0].mxu0 %v528
        %v681 = vpop.f32.mrb[0].mxu0
        %v682 = vadd.f32 %v512, %v681
        %v683 = vpop.f32.mrb[0].mxu0
        %v684 = vpop.f32.mrb[0].mxu0
        %v685 = vadd.f32 %v512, %v684
        %v686 = vpop.f32.mrb[0].mxu0
        %687 = vmatprep.mubr.bf16.mxu0 0
        %688 = vmatmul.mubr.bf16.gmra.mrb[0].mxu0 %v531
        %v689 = vpop.f32.mrb[0].mxu0
        %v690 = vadd.f32 %v512, %v689
        %v691 = vpop.f32.mrb[0].mxu0
        %v692 = vpop.f32.mrb[0].mxu0
        %v693 = vadd.f32 %v512, %v692
        %v694 = vpop.f32.mrb[0].mxu0
        %695 = vmatprep.mubr.bf16.mxu0 0
        %696 = vmatmul.mubr.bf16.gmra.mrb[0].mxu0 %v534
        %v697 = vpop.f32.mrb[0].mxu0
        %v698 = vadd.f32 %v512, %v697
        %v699 = vpop.f32.mrb[0].mxu0
        %v700 = vpop.f32.mrb[0].mxu0
        %v701 = vadd.f32 %v512, %v700
        %v702 = vpop.f32.mrb[0].mxu0
        %703 = vmatprep.mubr.bf16.mxu0 0
        %704 = vmatmul.mubr.bf16.gmra.mrb[0].mxu0 %v537
        %v705 = vpop.f32.mrb[0].mxu0
        %v706 = vadd.f32 %v512, %v705
        %v707 = vpop.f32.mrb[0].mxu0
        %v708 = vpop.f32.mrb[0].mxu0
        %v709 = vadd.f32 %v512, %v708
        %v710 = vpop.f32.mrb[0].mxu0
        %711 = vmatprep.mubr.bf16.mxu0 0
        %712 = vmatmul.mubr.bf16.gmra.mrb[0].mxu0 %v540
        %v713 = vpop.f32.mrb[0].mxu0
        %v714 = vadd.f32 %v512, %v713
        %v715 = vpop.f32.mrb[0].mxu0
        %v716 = vpop.f32.mrb[0].mxu0
        %v717 = vadd.f32 %v512, %v716
        %v718 = vpop.f32.mrb[0].mxu0
        %719 = vmatprep.mubr.bf16.mxu0 0
        %720 = vmatmul.mubr.bf16.gmra.mrb[0].mxu0 %v543
        %v721 = vpop.f32.mrb[0].mxu0
        %v722 = vadd.f32 %v512, %v721
        %v723 = vpop.f32.mrb[0].mxu0
        %v724 = vpop.f32.mrb[0].mxu0
        %v725 = vadd.f32 %v512, %v724
        %v726 = vpop.f32.mrb[0].mxu0
        %727 = vmatprep.mubr.bf16.mxu0 0
        %728 = vmatmul.mubr.bf16.gmra.mrb[0].mxu0 %v546
        %v729 = vpop.f32.mrb[0].mxu0
        %v730 = vadd.f32 %v512, %v729
        %v731 = vpop.f32.mrb[0].mxu0
        %v732 = vpop.f32.mrb[0].mxu0
        %v733 = vadd.f32 %v512, %v732
        %v734 = vpop.f32.mrb[0].mxu0
        %735 = vmatprep.mubr.bf16.mxu0 0
        %736 = vmatmul.mubr.bf16.gmra.mrb[0].mxu0 %v549
        %v737 = vpop.f32.mrb[0].mxu0
        %v738 = vadd.f32 %v512, %v737
        %v739 = vpop.f32.mrb[0].mxu0
        %v740 = vpop.f32.mrb[0].mxu0
        %v741 = vadd.f32 %v512, %v740
        %v742 = vpop.f32.mrb[0].mxu0
        %743 = vmatprep.mubr.bf16.mxu0 0
        %744 = vmatmul.mubr.bf16.gmra.mrb[0].mxu0 %v552
        %v745 = vpop.f32.mrb[0].mxu0
        %v746 = vadd.f32 %v512, %v745
        %v747 = vpop.f32.mrb[0].mxu0
        %v748 = vpop.f32.mrb[0].mxu0
        %v749 = vadd.f32 %v512, %v748
        %v750 = vpop.f32.mrb[0].mxu0
        %751 = vmatprep.mubr.bf16.mxu0 0
        %752 = vmatmul.mubr.bf16.gmra.mrb[0].mxu0 %v555
        %v753 = vpop.f32.mrb[0].mxu0
        %v754 = vadd.f32 %v512, %v753
        %v755 = vpop.f32.mrb[0].mxu0
        %v756 = vpop.f32.mrb[0].mxu0
        %v757 = vadd.f32 %v512, %v756
        %v758 = vpop.f32.mrb[0].mxu0
        %759 = vmatprep.mubr.bf16.mxu0 0
        %760 = vmatmul.mubr.bf16.gmra.mrb[0].mxu0 %v558
        %v761 = vpop.f32.mrb[0].mxu0
        %v762 = vadd.f32 %v512, %v761
        %v763 = vpop.f32.mrb[0].mxu0
        %v764 = vpop.f32.mrb[0].mxu0
        %v765 = vadd.f32 %v512, %v764
        %v766 = vpop.f32.mrb[0].mxu0
        %767 = vmatprep.mubr.bf16.mxu0 0
        %768 = vmatmul.mubr.bf16.gmra.mrb[0].mxu0 %v561
        %v769 = vpop.f32.mrb[0].mxu0
        %v770 = vadd.f32 %v512, %v769
        %v771 = vpop.f32.mrb[0].mxu0
        %v772 = vpop.f32.mrb[0].mxu0
        %v773 = vadd.f32 %v512, %v772
        %v774 = vpop.f32.mrb[0].mxu0
        %775 = vmatprep.mubr.bf16.mxu0 0
        %776 = vmatmul.mubr.bf16.gmra.mrb[0].mxu0 %v564
        %v777 = vpop.f32.mrb[0].mxu0
        %v778 = vadd.f32 %v512, %v777
        %v779 = vpop.f32.mrb[0].mxu0
        %v780 = vpop.f32.mrb[0].mxu0
        %v781 = vadd.f32 %v512, %v780
        %v782 = vpop.f32.mrb[0].mxu0
        %783 = vmatprep.mubr.bf16.mxu0 0
        %784 = vmatmul.mubr.bf16.gmra.mrb[0].mxu0 %v567
        %v785 = vpop.f32.mrb[0].mxu0
        %v786 = vadd.f32 %v512, %v785
        %v787 = vpop.f32.mrb[0].mxu0
        %v788 = vpop.f32.mrb[0].mxu0
        %v789 = vadd.f32 %v512, %v788
        %v790 = vpop.f32.mrb[0].mxu0
        %791 = vmatprep.mubr.bf16.mxu0 0
        %792 = vmatmul.mubr.bf16.gmra.mrb[0].mxu0 %v570
        %v793 = vpop.f32.mrb[0].mxu0
        %v794 = vadd.f32 %v512, %v793
        %v795 = vpop.f32.mrb[0].mxu0
        %v796 = vpop.f32.mrb[0].mxu0
        %v797 = vadd.f32 %v512, %v796
        %v798 = vpop.f32.mrb[0].mxu0
        %799 = vmatprep.mubr.bf16.mxu0 0
        %800 = vmatmul.mubr.bf16.gmra.mrb[0].mxu0 %v573
        %v801 = vpop.f32.mrb[0].mxu0
        %v802 = vadd.f32 %v512, %v801
        %v803 = vpop.f32.mrb[0].mxu0
        %v804 = vpop.f32.mrb[0].mxu0
        %v805 = vadd.f32 %v512, %v804
        %v806 = vpop.f32.mrb[0].mxu0
        %807 = vmatprep.mubr.bf16.mxu0 0
        %808 = vmatmul.mubr.bf16.gmra.mrb[0].mxu0 %v576
        %v809 = vpop.f32.mrb[0].mxu0
        %v810 = vadd.f32 %v512, %v809
        %v811 = vpop.f32.mrb[0].mxu0
        %v812 = vpop.f32.mrb[0].mxu0
        %v813 = vadd.f32 %v512, %v812
        %v814 = vpop.f32.mrb[0].mxu0
        %815 = vmatprep.mubr.bf16.mxu0 0
        %816 = vmatmul.mubr.bf16.gmra.mrb[0].mxu0 %v579
        %v817 = vpop.f32.mrb[0].mxu0
        %v818 = vadd.f32 %v512, %v817
        %v819 = vpop.f32.mrb[0].mxu0
        %v820 = vpop.f32.mrb[0].mxu0
        %v821 = vadd.f32 %v512, %v820
        %v822 = vpop.f32.mrb[0].mxu0
        %823 = vmatprep.mubr.bf16.mxu0 0
        %824 = vmatmul.mubr.bf16.gmra.mrb[0].mxu0 %v582
        %v825 = vpop.f32.mrb[0].mxu0
        %v826 = vadd.f32 %v512, %v825
        %v827 = vpop.f32.mrb[0].mxu0
        %v828 = vpop.f32.mrb[0].mxu0
        %v829 = vadd.f32 %v512, %v828
        %v830 = vpop.f32.mrb[0].mxu0
        %831 = vmatprep.mubr.bf16.mxu0 0
        %832 = vmatmul.mubr.bf16.gmra.mrb[0].mxu0 %v585
        %v833 = vpop.f32.mrb[0].mxu0
        %v834 = vadd.f32 %v512, %v833
        %v835 = vpop.f32.mrb[0].mxu0
        %v836 = vpop.f32.mrb[0].mxu0
        %v837 = vadd.f32 %v512, %v836
        %v838 = vpop.f32.mrb[0].mxu0
        %839 = vmatprep.mubr.bf16.mxu0 0
        %840 = vmatmul.mubr.bf16.gmra.mrb[0].mxu0 %v588
        %v841 = vpop.f32.mrb[0].mxu0
        %v842 = vadd.f32 %v512, %v841
        %v843 = vpop.f32.mrb[0].mxu0
        %v844 = vpop.f32.mrb[0].mxu0
        %v845 = vadd.f32 %v512, %v844
        %v846 = vpop.f32.mrb[0].mxu0
        %847 = vmatprep.mubr.bf16.mxu0 0
        %848 = vmatmul.mubr.bf16.gmra.mrb[0].mxu0 %v591
        %v849 = vpop.f32.mrb[0].mxu0
        %v850 = vadd.f32 %v512, %v849
        %v851 = vpop.f32.mrb[0].mxu0
        %v852 = vpop.f32.mrb[0].mxu0
        %v853 = vadd.f32 %v512, %v852
        %v854 = vpop.f32.mrb[0].mxu0
        %855 = vmatprep.mubr.bf16.mxu0 0
        %856 = vmatmul.mubr.bf16.gmra.mrb[0].mxu0 %v594
        %v857 = vpop.f32.mrb[0].mxu0
        %v858 = vadd.f32 %v512, %v857
        %v859 = vpop.f32.mrb[0].mxu0
        %v860 = vpop.f32.mrb[0].mxu0
        %v861 = vadd.f32 %v512, %v860
        %v862 = vpop.f32.mrb[0].mxu0
        %863 = vmatprep.mubr.bf16.mxu0 0
        %864 = vmatmul.mubr.bf16.gmra.mrb[0].mxu0 %v597
        %v865 = vpop.f32.mrb[0].mxu0
        %v866 = vadd.f32 %v512, %v865
        %v867 = vpop.f32.mrb[0].mxu0
        %v868 = vpop.f32.mrb[0].mxu0
        %v869 = vadd.f32 %v512, %v868
        %v870 = vpop.f32.mrb[0].mxu0
        %871 = vmatprep.mubr.bf16.mxu0 0
        %872 = vmatmul.mubr.bf16.gmra.mrb[0].mxu0 %v600
        %v873 = vpop.f32.mrb[0].mxu0
        %v874 = vadd.f32 %v512, %v873
        %v875 = vpop.f32.mrb[0].mxu0
        %v876 = vpop.f32.mrb[0].mxu0
        %v877 = vadd.f32 %v512, %v876
        %v878 = vpop.f32.mrb[0].mxu0
        %879 = vmatprep.mubr.bf16.mxu0 0
        %880 = vmatmul.mubr.bf16.gmra.mrb[0].mxu0 %v603
        %v881 = vpop.f32.mrb[0].mxu0
        %v882 = vadd.f32 %v512, %v881
        %v883 = vpop.f32.mrb[0].mxu0
        %v884 = vpop.f32.mrb[0].mxu0
        %v885 = vadd.f32 %v512, %v884
        %v886 = vpop.f32.mrb[0].mxu0
        %887 = vmatprep.mubr.bf16.mxu0 0
        %888 = vmatmul.mubr.bf16.gmra.mrb[0].mxu0 %v606
        %v889 = vpop.f32.mrb[0].mxu0
        %v890 = vadd.f32 %v512, %v889
        %v891 = vpop.f32.mrb[0].mxu0
        %v892 = vpop.f32.mrb[0].mxu0
        %v893 = vadd.f32 %v512, %v892
        %v894 = vpop.f32.mrb[0].mxu0
        %895 = vmatprep.mubr.bf16.mxu0 0
        %896 = vmatmul.mubr.bf16.gmra.mrb[0].mxu0 %v609
        %v897 = vpop.f32.mrb[0].mxu0
        %v898 = vadd.f32 %v512, %v897
        %v899 = vpop.f32.mrb[0].mxu0
        %v900 = vpop.f32.mrb[0].mxu0
        %v901 = vadd.f32 %v512, %v900
        %v902 = vpop.f32.mrb[0].mxu0
        %903 = vdwg.mxu0
        %v904 = vmax.f32 %v650, 0.0
        %v905 = vmax.f32 %v653, 0.0
        %v906 = vmax.f32 %v658, 0.0
        %v907 = vmax.f32 %v661, 0.0
        %v908 = vmax.f32 %v666, 0.0
        %v909 = vmax.f32 %v669, 0.0
        %v910 = vmax.f32 %v674, 0.0
        %v911 = vmax.f32 %v677, 0.0
        %v912 = vmax.f32 %v682, 0.0
        %v913 = vmax.f32 %v685, 0.0
        %v914 = vmax.f32 %v690, 0.0
        %v915 = vmax.f32 %v693, 0.0
        %v916 = vmax.f32 %v698, 0.0
        %v917 = vmax.f32 %v701, 0.0
        %v918 = vmax.f32 %v706, 0.0
        %v919 = vmax.f32 %v709, 0.0
        %v920 = vmax.f32 %v714, 0.0
        %v921 = vmax.f32 %v717, 0.0
        %v922 = vmax.f32 %v722, 0.0
        %v923 = vmax.f32 %v725, 0.0
        %v924 = vmax.f32 %v730, 0.0
        %v925 = vmax.f32 %v733, 0.0
        %v926 = vmax.f32 %v738, 0.0
        %v927 = vmax.f32 %v741, 0.0
        %v928 = vmax.f32 %v746, 0.0
        %v929 = vmax.f32 %v749, 0.0
        %v930 = vmax.f32 %v754, 0.0
        %v931 = vmax.f32 %v757, 0.0
        %v932 = vmax.f32 %v762, 0.0
        %v933 = vmax.f32 %v765, 0.0
        %v934 = vmax.f32 %v770, 0.0
        %v935 = vmax.f32 %v773, 0.0
        %v936 = vmax.f32 %v778, 0.0
        %v937 = vmax.f32 %v781, 0.0
        %v938 = vmax.f32 %v786, 0.0
        %v939 = vmax.f32 %v789, 0.0
        %v940 = vmax.f32 %v794, 0.0
        %v941 = vmax.f32 %v797, 0.0
        %v942 = vmax.f32 %v802, 0.0
        %v943 = vmax.f32 %v805, 0.0
        %v944 = vmax.f32 %v810, 0.0
        %v945 = vmax.f32 %v813, 0.0
        %v946 = vmax.f32 %v818, 0.0
        %v947 = vmax.f32 %v821, 0.0
        %v948 = vmax.f32 %v826, 0.0
        %v949 = vmax.f32 %v829, 0.0
        %v950 = vmax.f32 %v834, 0.0
        %v951 = vmax.f32 %v837, 0.0
        %v952 = vmax.f32 %v842, 0.0
        %v953 = vmax.f32 %v845, 0.0
        %v954 = vmax.f32 %v850, 0.0
        %v955 = vmax.f32 %v853, 0.0
        %v956 = vmax.f32 %v858, 0.0
        %v957 = vmax.f32 %v861, 0.0
        %v958 = vmax.f32 %v866, 0.0
        %v959 = vmax.f32 %v869, 0.0
        %v960 = vmax.f32 %v874, 0.0
        %v961 = vmax.f32 %v877, 0.0
        %v962 = vmax.f32 %v882, 0.0
        %v963 = vmax.f32 %v885, 0.0
        %v964 = vmax.f32 %v890, 0.0
        %v965 = vmax.f32 %v893, 0.0
        %v966 = vmax.f32 %v898, 0.0
        %v967 = vmax.f32 %v901, 0.0
        %968 = vst [vmem:[%s351] sm:$0xff] %v904
        %969 = vst [vmem:[%s351 + $0x8] sm:$0xff] %v905
        %970 = vst [vmem:[%s351 + $0x10] sm:$0xff] %v906
        %971 = vst [vmem:[%s351 + $0x18] sm:$0xff] %v907
        %972 = vst [vmem:[%s351 + $0x20] sm:$0xff] %v908
        %973 = vst [vmem:[%s351 + $0x28] sm:$0xff] %v909
        %974 = vst [vmem:[%s351 + $0x30] sm:$0xff] %v910
        %975 = vst [vmem:[%s351 + $0x38] sm:$0xff] %v911
        %976 = vst [vmem:[%s351 + $0x40] sm:$0xff] %v912
        %977 = vst [vmem:[%s351 + $0x48] sm:$0xff] %v913
        %978 = vst [vmem:[%s351 + $0x50] sm:$0xff] %v914
        %979 = vst [vmem:[%s351 + $0x58] sm:$0xff] %v915
        %980 = vst [vmem:[%s351 + $0x60] sm:$0xff] %v916
        %981 = vst [vmem:[%s351 + $0x68] sm:$0xff] %v917
        %982 = vst [vmem:[%s351 + $0x70] sm:$0xff] %v918
        %983 = vst [vmem:[%s351 + $0x78] sm:$0xff] %v919
        %984 = vst [vmem:[%s351 + $0x80] sm:$0xff] %v920
        %985 = vst [vmem:[%s351 + $0x88] sm:$0xff] %v921
        %986 = vst [vmem:[%s351 + $0x90] sm:$0xff] %v922
        %987 = vst [vmem:[%s351 + $0x98] sm:$0xff] %v923
        %988 = vst [vmem:[%s351 + $0xa0] sm:$0xff] %v924
        %989 = vst [vmem:[%s351 + $0xa8] sm:$0xff] %v925
        %990 = vst [vmem:[%s351 + $0xb0] sm:$0xff] %v926
        %991 = vst [vmem:[%s351 + $0xb8] sm:$0xff] %v927
        %992 = vst [vmem:[%s351 + $0xc0] sm:$0xff] %v928
        %993 = vst [vmem:[%s351 + $0xc8] sm:$0xff] %v929
        %994 = vst [vmem:[%s351 + $0xd0] sm:$0xff] %v930
        %995 = vst [vmem:[%s351 + $0xd8] sm:$0xff] %v931
        %996 = vst [vmem:[%s351 + $0xe0] sm:$0xff] %v932
        %997 = vst [vmem:[%s351 + $0xe8] sm:$0xff] %v933
        %998 = vst [vmem:[%s351 + $0xf0] sm:$0xff] %v934
        %999 = vst [vmem:[%s351 + $0xf8] sm:$0xff] %v935
        %1000 = vst [vmem:[%s351 + $0x100] sm:$0xff] %v936
        %1001 = vst [vmem:[%s351 + $0x108] sm:$0xff] %v937
        %1002 = vst [vmem:[%s351 + $0x110] sm:$0xff] %v938
        %1003 = vst [vmem:[%s351 + $0x118] sm:$0xff] %v939
        %1004 = vst [vmem:[%s351 + $0x120] sm:$0xff] %v940
        %1005 = vst [vmem:[%s351 + $0x128] sm:$0xff] %v941
        %1006 = vst [vmem:[%s351 + $0x130] sm:$0xff] %v942
        %1007 = vst [vmem:[%s351 + $0x138] sm:$0xff] %v943
        %1008 = vst [vmem:[%s351 + $0x140] sm:$0xff] %v944
        %1009 = vst [vmem:[%s351 + $0x148] sm:$0xff] %v945
        %1010 = vst [vmem:[%s351 + $0x150] sm:$0xff] %v946
        %1011 = vst [vmem:[%s351 + $0x158] sm:$0xff] %v947
        %1012 = vst [vmem:[%s351 + $0x160] sm:$0xff] %v948
        %1013 = vst [vmem:[%s351 + $0x168] sm:$0xff] %v949
        %1014 = vst [vmem:[%s351 + $0x170] sm:$0xff] %v950
        %1015 = vst [vmem:[%s351 + $0x178] sm:$0xff] %v951
        %1016 = vst [vmem:[%s351 + $0x180] sm:$0xff] %v952
        %1017 = vst [vmem:[%s351 + $0x188] sm:$0xff] %v953
        %1018 = vst [vmem:[%s351 + $0x190] sm:$0xff] %v954
        %1019 = vst [vmem:[%s351 + $0x198] sm:$0xff] %v955
        %1020 = vst [vmem:[%s351 + $0x1a0] sm:$0xff] %v956
        %1021 = vst [vmem:[%s351 + $0x1a8] sm:$0xff] %v957
        %1022 = vst [vmem:[%s351 + $0x1b0] sm:$0xff] %v958
        %1023 = vst [vmem:[%s351 + $0x1b8] sm:$0xff] %v959
        %1024 = vst [vmem:[%s351 + $0x1c0] sm:$0xff] %v960
        %1025 = vst [vmem:[%s351 + $0x1c8] sm:$0xff] %v961
        %1026 = vst [vmem:[%s351 + $0x1d0] sm:$0xff] %v962
        %1027 = vst [vmem:[%s351 + $0x1d8] sm:$0xff] %v963
        %1028 = vst [vmem:[%s351 + $0x1e0] sm:$0xff] %v964
        %1029 = vst [vmem:[%s351 + $0x1e8] sm:$0xff] %v965
        %1030 = vst [vmem:[%s351 + $0x1f0] sm:$0xff] %v966
        %1031 = vst [vmem:[%s351 + $0x1f8] sm:$0xff] %v967
        %v1032 = vpack.c.bf16 %v905, %v904
        %v1033 = vpack.c.bf16 %v909, %v908
        %v1034 = vpack.c.bf16 %v913, %v912
        %v1035 = vpack.c.bf16 %v917, %v916
        %v1036 = vpack.c.bf16 %v921, %v920
        %v1037 = vpack.c.bf16 %v925, %v924
        %v1038 = vpack.c.bf16 %v929, %v928
        %v1039 = vpack.c.bf16 %v933, %v932
        %v1040 = vpack.c.bf16 %v937, %v936
        %v1041 = vpack.c.bf16 %v941, %v940
        %v1042 = vpack.c.bf16 %v945, %v944
        %v1043 = vpack.c.bf16 %v949, %v948
        %v1044 = vpack.c.bf16 %v953, %v952
        %v1045 = vpack.c.bf16 %v957, %v956
        %v1046 = vpack.c.bf16 %v961, %v960
        %v1047 = vpack.c.bf16 %v965, %v964
        %s1048 = scalar_lea.vmem [#allocation2], 16
        %1049 = vst [vmem:[%s1048] sm:$0xff] %v1032
        %1050 = vst [vmem:[%s1048 + $0x10] sm:$0xff] %v1033
        %1051 = vst [vmem:[%s1048 + $0x20] sm:$0xff] %v1034
        %1052 = vst [vmem:[%s1048 + $0x30] sm:$0xff] %v1035
        %1053 = vst [vmem:[%s1048 + $0x40] sm:$0xff] %v1036
        %1054 = vst [vmem:[%s1048 + $0x50] sm:$0xff] %v1037
        %1055 = vst [vmem:[%s1048 + $0x60] sm:$0xff] %v1038
        %1056 = vst [vmem:[%s1048 + $0x70] sm:$0xff] %v1039
        %1057 = vst [vmem:[%s1048 + $0x80] sm:$0xff] %v1040
        %1058 = vst [vmem:[%s1048 + $0x90] sm:$0xff] %v1041
        %1059 = vst [vmem:[%s1048 + $0xa0] sm:$0xff] %v1042
        %1060 = vst [vmem:[%s1048 + $0xb0] sm:$0xff] %v1043
        %1061 = vst [vmem:[%s1048 + $0xc0] sm:$0xff] %v1044
        %1062 = vst [vmem:[%s1048 + $0xd0] sm:$0xff] %v1045
        %1063 = vst [vmem:[%s1048 + $0xe0] sm:$0xff] %v1046
        %1064 = vst [vmem:[%s1048 + $0xf0] sm:$0xff] %v1047
        %v1065 = vld [vmem:[#allocation2] sm:$0xff]
        %v1066 = vld [vmem:[#allocation2 + $0x8] sm:$0xff]
        %v1067 = vld [vmem:[#allocation2 + $0x10] sm:$0xff]
        %v1068 = vld [vmem:[#allocation2 + $0x18] sm:$0xff]
        %v1069 = vld [vmem:[#allocation2 + $0x20] sm:$0xff]
        %v1070 = vld [vmem:[#allocation2 + $0x28] sm:$0xff]
        %v1071 = vld [vmem:[#allocation2 + $0x30] sm:$0xff]
        %v1072 = vld [vmem:[#allocation2 + $0x38] sm:$0xff]
        %v1073 = vld [vmem:[#allocation2 + $0x40] sm:$0xff]
        %v1074 = vld [vmem:[#allocation2 + $0x48] sm:$0xff]
        %v1075 = vld [vmem:[#allocation2 + $0x50] sm:$0xff]
        %v1076 = vld [vmem:[#allocation2 + $0x58] sm:$0xff]
        %v1077 = vld [vmem:[#allocation2 + $0x60] sm:$0xff]
        %v1078 = vld [vmem:[#allocation2 + $0x68] sm:$0xff]
        %v1079 = vld [vmem:[#allocation2 + $0x70] sm:$0xff]
        %v1080 = vld [vmem:[#allocation2 + $0x78] sm:$0xff]
        %v1081 = vld [vmem:[#allocation2 + $0x80] sm:$0xff]
        %v1082 = vld [vmem:[#allocation2 + $0x88] sm:$0xff]
        %v1083 = vld [vmem:[#allocation2 + $0x90] sm:$0xff]
        %v1084 = vld [vmem:[#allocation2 + $0x98] sm:$0xff]
        %v1085 = vld [vmem:[#allocation2 + $0xa0] sm:$0xff]
        %v1086 = vld [vmem:[#allocation2 + $0xa8] sm:$0xff]
        %v1087 = vld [vmem:[#allocation2 + $0xb0] sm:$0xff]
        %v1088 = vld [vmem:[#allocation2 + $0xb8] sm:$0xff]
        %v1089 = vld [vmem:[#allocation2 + $0xc0] sm:$0xff]
        %v1090 = vld [vmem:[#allocation2 + $0xc8] sm:$0xff]
        %v1091 = vld [vmem:[#allocation2 + $0xd0] sm:$0xff]
        %v1092 = vld [vmem:[#allocation2 + $0xd8] sm:$0xff]
        %v1093 = vld [vmem:[#allocation2 + $0xe0] sm:$0xff]
        %v1094 = vld [vmem:[#allocation2 + $0xe8] sm:$0xff]
        %v1095 = vld [vmem:[#allocation2 + $0xf0] sm:$0xff]
        %v1096 = vld [vmem:[#allocation2 + $0xf8] sm:$0xff]
        %v1097 = vld [vmem:[%s3] sm:$0xf]
        %v1098 = vld [vmem:[%s3 + $0x4] sm:$0xf]
        %v1099 = vld [vmem:[%s3 + $0x8] sm:$0xf]
        %v1100 = vld [vmem:[%s3 + $0xc] sm:$0xf]
        %v1101 = vld [vmem:[%s3 + $0x10] sm:$0xf]
        %v1102 = vld [vmem:[%s3 + $0x14] sm:$0xf]
        %v1103 = vld [vmem:[%s3 + $0x18] sm:$0xf]
        %v1104 = vld [vmem:[%s3 + $0x1c] sm:$0xf]
        %v1105 = vld [vmem:[%s3 + $0x20] sm:$0xf]
        %v1106 = vld [vmem:[%s3 + $0x24] sm:$0xf]
        %v1107 = vld [vmem:[%s3 + $0x28] sm:$0xf]
        %v1108 = vld [vmem:[%s3 + $0x2c] sm:$0xf]
        %v1109 = vld [vmem:[%s3 + $0x30] sm:$0xf]
        %v1110 = vld [vmem:[%s3 + $0x34] sm:$0xf]
        %v1111 = vld [vmem:[%s3 + $0x38] sm:$0xf]
        %v1112 = vld [vmem:[%s3 + $0x3c] sm:$0xf]
        %v1129 = vunpack.c.l.b16 %v1097
        %v1130 = vunpack.c.l.b16 %v1098
        %v1131 = vunpack.c.l.b16 %v1099
        %v1132 = vunpack.c.l.b16 %v1100
        %v1133 = vunpack.c.l.b16 %v1101
        %v1134 = vunpack.c.l.b16 %v1102
        %v1135 = vunpack.c.l.b16 %v1103
        %v1136 = vunpack.c.l.b16 %v1104
        %v1137 = vunpack.c.l.b16 %v1105
        %v1138 = vunpack.c.l.b16 %v1106
        %v1139 = vunpack.c.l.b16 %v1107
        %v1140 = vunpack.c.l.b16 %v1108
        %v1141 = vunpack.c.l.b16 %v1109
        %v1142 = vunpack.c.l.b16 %v1110
        %v1143 = vunpack.c.l.b16 %v1111
        %v1144 = vunpack.c.l.b16 %v1112
        %v1145 = vpack.c.b16 %v1130, %v1129
        %v1146 = vpack.c.b16 %v1132, %v1131
        %v1147 = vpack.c.b16 %v1134, %v1133
        %v1148 = vpack.c.b16 %v1136, %v1135
        %v1149 = vpack.c.b16 %v1138, %v1137
        %v1150 = vpack.c.b16 %v1140, %v1139
        %v1151 = vpack.c.b16 %v1142, %v1141
        %v1152 = vpack.c.b16 %v1144, %v1143
        %1161 = vmatprep.subr.bf16.mxu0 0
        %1162 = vmatpush1.bf16.msra.mxu0 %v1145
        %1163 = vmatprep.subr.bf16.mxu0 0
        %1164 = vmatpush1.bf16.msra.mxu0 %v1146
        %1165 = vmatprep.subr.bf16.mxu0 0
        %1166 = vmatpush1.bf16.msra.mxu0 %v1147
        %1167 = vmatprep.subr.bf16.mxu0 0
        %1168 = vmatpush1.bf16.msra.mxu0 %v1148
        %1169 = vmatprep.subr.bf16.mxu0 0
        %1170 = vmatpush1.bf16.msra.mxu0 %v1149
        %1171 = vmatprep.subr.bf16.mxu0 0
        %1172 = vmatpush1.bf16.msra.mxu0 %v1150
        %1173 = vmatprep.subr.bf16.mxu0 0
        %1174 = vmatpush1.bf16.msra.mxu0 %v1151
        %1175 = vmatprep.subr.bf16.mxu0 0
        %1176 = vmatpush1.bf16.msra.mxu0 %v1152
        %1177 = vmatprep.subr.bf16.mxu0 0
        %1178 = vmatpush1.bf16.msra.mxu0 0
        %1179 = vmatprep.subr.bf16.mxu0 0
        %1180 = vmatpush1.bf16.msra.mxu0 0
        %1181 = vmatprep.subr.bf16.mxu0 0
        %1182 = vmatpush1.bf16.msra.mxu0 0
        %1183 = vmatprep.subr.bf16.mxu0 0
        %1184 = vmatpush1.bf16.msra.mxu0 0
        %1185 = vmatprep.subr.bf16.mxu0 0
        %1186 = vmatpush1.bf16.msra.mxu0 0
        %1187 = vmatprep.subr.bf16.mxu0 0
        %1188 = vmatpush1.bf16.msra.mxu0 0
        %1189 = vmatprep.subr.bf16.mxu0 0
        %1190 = vmatpush1.bf16.msra.mxu0 0
        %1191 = vmatprep.subr.bf16.mxu0 0
        %1192 = vmatpush1.bf16.msra.mxu0 0
        %1193 = vmatprep.mubr.bf16.mxu0 0
        %1194 = vmatmul.mubr.bf16.gmra.mrb[0].mxu0 %v1065
        %v1195 = vpop.f32.mrb[0].mxu0
        %v1196 = vadd.f32 0.0, %v1195
        %v1197 = vpop.f32.mrb[0].mxu0
        %v1198 = vpop.f32.mrb[0].mxu0
        %v1199 = vadd.f32 0.0, %v1198
        %v1200 = vpop.f32.mrb[0].mxu0
        %1201 = vmatprep.mubr.bf16.mxu0 0
        %1202 = vmatmul.mubr.bf16.gmra.mrb[0].mxu0 %v1066
        %v1203 = vpop.f32.mrb[0].mxu0
        %v1204 = vpop.f32.mrb[0].mxu0
        %v1205 = vpop.f32.mrb[0].mxu0
        %v1206 = vadd.f32 0.0, %v1205
        %v1207 = vpop.f32.mrb[0].mxu0
        %1208 = vmatprep.mubr.bf16.mxu0 0
        %1209 = vmatmul.mubr.bf16.gmra.mrb[0].mxu0 %v1067
        %v1210 = vpop.f32.mrb[0].mxu0
        %v1211 = vadd.f32 0.0, %v1210
        %v1212 = vpop.f32.mrb[0].mxu0
        %v1213 = vpop.f32.mrb[0].mxu0
        %v1214 = vadd.f32 0.0, %v1213
        %v1215 = vpop.f32.mrb[0].mxu0
        %1216 = vmatprep.mubr.bf16.mxu0 0
        %1217 = vmatmul.mubr.bf16.gmra.mrb[0].mxu0 %v1068
        %v1218 = vpop.f32.mrb[0].mxu0
        %v1219 = vpop.f32.mrb[0].mxu0
        %v1220 = vpop.f32.mrb[0].mxu0
        %v1221 = vadd.f32 0.0, %v1220
        %v1222 = vpop.f32.mrb[0].mxu0
        %1223 = vmatprep.mubr.bf16.mxu0 0
        %1224 = vmatmul.mubr.bf16.gmra.mrb[0].mxu0 %v1069
        %v1225 = vpop.f32.mrb[0].mxu0
        %v1226 = vadd.f32 0.0, %v1225
        %v1227 = vpop.f32.mrb[0].mxu0
        %v1228 = vpop.f32.mrb[0].mxu0
        %v1229 = vadd.f32 0.0, %v1228
        %v1230 = vpop.f32.mrb[0].mxu0
        %1231 = vmatprep.mubr.bf16.mxu0 0
        %1232 = vmatmul.mubr.bf16.gmra.mrb[0].mxu0 %v1070
        %v1233 = vpop.f32.mrb[0].mxu0
        %v1234 = vpop.f32.mrb[0].mxu0
        %v1235 = vpop.f32.mrb[0].mxu0
        %v1236 = vadd.f32 0.0, %v1235
        %v1237 = vpop.f32.mrb[0].mxu0
        %1238 = vmatprep.mubr.bf16.mxu0 0
        %1239 = vmatmul.mubr.bf16.gmra.mrb[0].mxu0 %v1071
        %v1240 = vpop.f32.mrb[0].mxu0
        %v1241 = vadd.f32 0.0, %v1240
        %v1242 = vpop.f32.mrb[0].mxu0
        %v1243 = vpop.f32.mrb[0].mxu0
        %v1244 = vadd.f32 0.0, %v1243
        %v1245 = vpop.f32.mrb[0].mxu0
        %1246 = vmatprep.mubr.bf16.mxu0 0
        %1247 = vmatmul.mubr.bf16.gmra.mrb[0].mxu0 %v1072
        %v1248 = vpop.f32.mrb[0].mxu0
        %v1249 = vpop.f32.mrb[0].mxu0
        %v1250 = vpop.f32.mrb[0].mxu0
        %v1251 = vadd.f32 0.0, %v1250
        %v1252 = vpop.f32.mrb[0].mxu0
        %1253 = vmatprep.mubr.bf16.mxu0 0
        %1254 = vmatmul.mubr.bf16.gmra.mrb[0].mxu0 %v1073
        %v1255 = vpop.f32.mrb[0].mxu0
        %v1256 = vadd.f32 0.0, %v1255
        %v1257 = vpop.f32.mrb[0].mxu0
        %v1258 = vpop.f32.mrb[0].mxu0
        %v1259 = vadd.f32 0.0, %v1258
        %v1260 = vpop.f32.mrb[0].mxu0
        %1261 = vmatprep.mubr.bf16.mxu0 0
        %1262 = vmatmul.mubr.bf16.gmra.mrb[0].mxu0 %v1074
        %v1263 = vpop.f32.mrb[0].mxu0
        %v1264 = vpop.f32.mrb[0].mxu0
        %v1265 = vpop.f32.mrb[0].mxu0
        %v1266 = vadd.f32 0.0, %v1265
        %v1267 = vpop.f32.mrb[0].mxu0
        %1268 = vmatprep.mubr.bf16.mxu0 0
        %1269 = vmatmul.mubr.bf16.gmra.mrb[0].mxu0 %v1075
        %v1270 = vpop.f32.mrb[0].mxu0
        %v1271 = vadd.f32 0.0, %v1270
        %v1272 = vpop.f32.mrb[0].mxu0
        %v1273 = vpop.f32.mrb[0].mxu0
        %v1274 = vadd.f32 0.0, %v1273
        %v1275 = vpop.f32.mrb[0].mxu0
        %1276 = vmatprep.mubr.bf16.mxu0 0
        %1277 = vmatmul.mubr.bf16.gmra.mrb[0].mxu0 %v1076
        %v1278 = vpop.f32.mrb[0].mxu0
        %v1279 = vpop.f32.mrb[0].mxu0
        %v1280 = vpop.f32.mrb[0].mxu0
        %v1281 = vadd.f32 0.0, %v1280
        %v1282 = vpop.f32.mrb[0].mxu0
        %1283 = vmatprep.mubr.bf16.mxu0 0
        %1284 = vmatmul.mubr.bf16.gmra.mrb[0].mxu0 %v1077
        %v1285 = vpop.f32.mrb[0].mxu0
        %v1286 = vadd.f32 0.0, %v1285
        %v1287 = vpop.f32.mrb[0].mxu0
        %v1288 = vpop.f32.mrb[0].mxu0
        %v1289 = vadd.f32 0.0, %v1288
        %v1290 = vpop.f32.mrb[0].mxu0
        %1291 = vmatprep.mubr.bf16.mxu0 0
        %1292 = vmatmul.mubr.bf16.gmra.mrb[0].mxu0 %v1078
        %v1293 = vpop.f32.mrb[0].mxu0
        %v1294 = vpop.f32.mrb[0].mxu0
        %v1295 = vpop.f32.mrb[0].mxu0
        %v1296 = vadd.f32 0.0, %v1295
        %v1297 = vpop.f32.mrb[0].mxu0
        %1298 = vmatprep.mubr.bf16.mxu0 0
        %1299 = vmatmul.mubr.bf16.gmra.mrb[0].mxu0 %v1079
        %v1300 = vpop.f32.mrb[0].mxu0
        %v1301 = vadd.f32 0.0, %v1300
        %v1302 = vpop.f32.mrb[0].mxu0
        %v1303 = vpop.f32.mrb[0].mxu0
        %v1304 = vadd.f32 0.0, %v1303
        %v1305 = vpop.f32.mrb[0].mxu0
        %1306 = vmatprep.mubr.bf16.mxu0 0
        %1307 = vmatmul.mubr.bf16.gmra.mrb[0].mxu0 %v1080
        %v1308 = vpop.f32.mrb[0].mxu0
        %v1309 = vpop.f32.mrb[0].mxu0
        %v1310 = vpop.f32.mrb[0].mxu0
        %v1311 = vadd.f32 0.0, %v1310
        %v1312 = vpop.f32.mrb[0].mxu0
        %1313 = vmatprep.mubr.bf16.mxu0 0
        %1314 = vmatmul.mubr.bf16.gmra.mrb[0].mxu0 %v1081
        %v1315 = vpop.f32.mrb[0].mxu0
        %v1316 = vadd.f32 0.0, %v1315
        %v1317 = vpop.f32.mrb[0].mxu0
        %v1318 = vpop.f32.mrb[0].mxu0
        %v1319 = vadd.f32 0.0, %v1318
        %v1320 = vpop.f32.mrb[0].mxu0
        %1321 = vmatprep.mubr.bf16.mxu0 0
        %1322 = vmatmul.mubr.bf16.gmra.mrb[0].mxu0 %v1082
        %v1323 = vpop.f32.mrb[0].mxu0
        %v1324 = vpop.f32.mrb[0].mxu0
        %v1325 = vpop.f32.mrb[0].mxu0
        %v1326 = vadd.f32 0.0, %v1325
        %v1327 = vpop.f32.mrb[0].mxu0
        %1328 = vmatprep.mubr.bf16.mxu0 0
        %1329 = vmatmul.mubr.bf16.gmra.mrb[0].mxu0 %v1083
        %v1330 = vpop.f32.mrb[0].mxu0
        %v1331 = vadd.f32 0.0, %v1330
        %v1332 = vpop.f32.mrb[0].mxu0
        %v1333 = vpop.f32.mrb[0].mxu0
        %v1334 = vadd.f32 0.0, %v1333
        %v1335 = vpop.f32.mrb[0].mxu0
        %1336 = vmatprep.mubr.bf16.mxu0 0
        %1337 = vmatmul.mubr.bf16.gmra.mrb[0].mxu0 %v1084
        %v1338 = vpop.f32.mrb[0].mxu0
        %v1339 = vpop.f32.mrb[0].mxu0
        %v1340 = vpop.f32.mrb[0].mxu0
        %v1341 = vadd.f32 0.0, %v1340
        %v1342 = vpop.f32.mrb[0].mxu0
        %1343 = vmatprep.mubr.bf16.mxu0 0
        %1344 = vmatmul.mubr.bf16.gmra.mrb[0].mxu0 %v1085
        %v1345 = vpop.f32.mrb[0].mxu0
        %v1346 = vadd.f32 0.0, %v1345
        %v1347 = vpop.f32.mrb[0].mxu0
        %v1348 = vpop.f32.mrb[0].mxu0
        %v1349 = vadd.f32 0.0, %v1348
        %v1350 = vpop.f32.mrb[0].mxu0
        %1351 = vmatprep.mubr.bf16.mxu0 0
        %1352 = vmatmul.mubr.bf16.gmra.mrb[0].mxu0 %v1086
        %v1353 = vpop.f32.mrb[0].mxu0
        %v1354 = vpop.f32.mrb[0].mxu0
        %v1355 = vpop.f32.mrb[0].mxu0
        %v1356 = vadd.f32 0.0, %v1355
        %v1357 = vpop.f32.mrb[0].mxu0
        %1358 = vmatprep.mubr.bf16.mxu0 0
        %1359 = vmatmul.mubr.bf16.gmra.mrb[0].mxu0 %v1087
        %v1360 = vpop.f32.mrb[0].mxu0
        %v1361 = vadd.f32 0.0, %v1360
        %v1362 = vpop.f32.mrb[0].mxu0
        %v1363 = vpop.f32.mrb[0].mxu0
        %v1364 = vadd.f32 0.0, %v1363
        %v1365 = vpop.f32.mrb[0].mxu0
        %1366 = vmatprep.mubr.bf16.mxu0 0
        %1367 = vmatmul.mubr.bf16.gmra.mrb[0].mxu0 %v1088
        %v1368 = vpop.f32.mrb[0].mxu0
        %v1369 = vpop.f32.mrb[0].mxu0
        %v1370 = vpop.f32.mrb[0].mxu0
        %v1371 = vadd.f32 0.0, %v1370
        %v1372 = vpop.f32.mrb[0].mxu0
        %1373 = vmatprep.mubr.bf16.mxu0 0
        %1374 = vmatmul.mubr.bf16.gmra.mrb[0].mxu0 %v1089
        %v1375 = vpop.f32.mrb[0].mxu0
        %v1376 = vadd.f32 0.0, %v1375
        %v1377 = vpop.f32.mrb[0].mxu0
        %v1378 = vpop.f32.mrb[0].mxu0
        %v1379 = vadd.f32 0.0, %v1378
        %v1380 = vpop.f32.mrb[0].mxu0
        %1381 = vmatprep.mubr.bf16.mxu0 0
        %1382 = vmatmul.mubr.bf16.gmra.mrb[0].mxu0 %v1090
        %v1383 = vpop.f32.mrb[0].mxu0
        %v1384 = vpop.f32.mrb[0].mxu0
        %v1385 = vpop.f32.mrb[0].mxu0
        %v1386 = vadd.f32 0.0, %v1385
        %v1387 = vpop.f32.mrb[0].mxu0
        %1388 = vmatprep.mubr.bf16.mxu0 0
        %1389 = vmatmul.mubr.bf16.gmra.mrb[0].mxu0 %v1091
        %v1390 = vpop.f32.mrb[0].mxu0
        %v1391 = vadd.f32 0.0, %v1390
        %v1392 = vpop.f32.mrb[0].mxu0
        %v1393 = vpop.f32.mrb[0].mxu0
        %v1394 = vadd.f32 0.0, %v1393
        %v1395 = vpop.f32.mrb[0].mxu0
        %1396 = vmatprep.mubr.bf16.mxu0 0
        %1397 = vmatmul.mubr.bf16.gmra.mrb[0].mxu0 %v1092
        %v1398 = vpop.f32.mrb[0].mxu0
        %v1399 = vpop.f32.mrb[0].mxu0
        %v1400 = vpop.f32.mrb[0].mxu0
        %v1401 = vadd.f32 0.0, %v1400
        %v1402 = vpop.f32.mrb[0].mxu0
        %1403 = vmatprep.mubr.bf16.mxu0 0
        %1404 = vmatmul.mubr.bf16.gmra.mrb[0].mxu0 %v1093
        %v1405 = vpop.f32.mrb[0].mxu0
        %v1406 = vadd.f32 0.0, %v1405
        %v1407 = vpop.f32.mrb[0].mxu0
        %v1408 = vpop.f32.mrb[0].mxu0
        %v1409 = vadd.f32 0.0, %v1408
        %v1410 = vpop.f32.mrb[0].mxu0
        %1411 = vmatprep.mubr.bf16.mxu0 0
        %1412 = vmatmul.mubr.bf16.gmra.mrb[0].mxu0 %v1094
        %v1413 = vpop.f32.mrb[0].mxu0
        %v1414 = vpop.f32.mrb[0].mxu0
        %v1415 = vpop.f32.mrb[0].mxu0
        %v1416 = vadd.f32 0.0, %v1415
        %v1417 = vpop.f32.mrb[0].mxu0
        %1418 = vmatprep.mubr.bf16.mxu0 0
        %1419 = vmatmul.mubr.bf16.gmra.mrb[0].mxu0 %v1095
        %v1420 = vpop.f32.mrb[0].mxu0
        %v1421 = vadd.f32 0.0, %v1420
        %v1422 = vpop.f32.mrb[0].mxu0
        %v1423 = vpop.f32.mrb[0].mxu0
        %v1424 = vadd.f32 0.0, %v1423
        %v1425 = vpop.f32.mrb[0].mxu0
        %1426 = vmatprep.mubr.bf16.mxu0 0
        %1427 = vmatmul.mubr.bf16.gmra.mrb[0].mxu0 %v1096
        %v1428 = vpop.f32.mrb[0].mxu0
        %v1429 = vpop.f32.mrb[0].mxu0
        %v1430 = vpop.f32.mrb[0].mxu0
        %v1431 = vadd.f32 0.0, %v1430
        %v1432 = vpop.f32.mrb[0].mxu0
        %1433 = vdwg.mxu0
        %v1434 = vrot.slane %v1196, 7
        %v1435 = vrot.slane %v1199, 7
        %v1436 = vrot.slane %v1206, 7
        %v1437 = vrot.slane %v1211, 7
        %v1438 = vrot.slane %v1214, 7
        %v1439 = vrot.slane %v1221, 7
        %v1440 = vrot.slane %v1226, 7
        %v1441 = vrot.slane %v1229, 7
        %v1442 = vrot.slane %v1236, 7
        %v1443 = vrot.slane %v1241, 7
        %v1444 = vrot.slane %v1244, 7
        %v1445 = vrot.slane %v1251, 7
        %v1446 = vrot.slane %v1256, 7
        %v1447 = vrot.slane %v1259, 7
        %v1448 = vrot.slane %v1266, 7
        %v1449 = vrot.slane %v1271, 7
        %v1450 = vrot.slane %v1274, 7
        %v1451 = vrot.slane %v1281, 7
        %v1452 = vrot.slane %v1286, 7
        %v1453 = vrot.slane %v1289, 7
        %v1454 = vrot.slane %v1296, 7
        %v1455 = vrot.slane %v1301, 7
        %v1456 = vrot.slane %v1304, 7
        %v1457 = vrot.slane %v1311, 7
        %v1458 = vrot.slane %v1316, 7
        %v1459 = vrot.slane %v1319, 7
        %v1460 = vrot.slane %v1326, 7
        %v1461 = vrot.slane %v1331, 7
        %v1462 = vrot.slane %v1334, 7
        %v1463 = vrot.slane %v1341, 7
        %v1464 = vrot.slane %v1346, 7
        %v1465 = vrot.slane %v1349, 7
        %v1466 = vrot.slane %v1356, 7
        %v1467 = vrot.slane %v1361, 7
        %v1468 = vrot.slane %v1364, 7
        %v1469 = vrot.slane %v1371, 7
        %v1470 = vrot.slane %v1376, 7
        %v1471 = vrot.slane %v1379, 7
        %v1472 = vrot.slane %v1386, 7
        %v1473 = vrot.slane %v1391, 7
        %v1474 = vrot.slane %v1394, 7
        %v1475 = vrot.slane %v1401, 7
        %v1476 = vrot.slane %v1406, 7
        %v1477 = vrot.slane %v1409, 7
        %v1478 = vrot.slane %v1416, 7
        %v1479 = vrot.slane %v1421, 7
        %v1480 = vrot.slane %v1424, 7
        %v1481 = vrot.slane %v1431, 7
        %v1482 = vlaneseq
        %v1483 = vshrl.u32 %v1482, 7
        %vm1484 = vcmp.lt.s32.totalorder %v1483, 1
        %v1485 = vsel %vm1484, %v1479, %v1480
        %v1486 = vsel %vm1484, %v1478, %v1479
        %v1487 = vsel %vm1484, %v1476, %v1477
        %v1488 = vsel %vm1484, %v1475, %v1476
        %v1489 = vsel %vm1484, %v1473, %v1474
        %v1490 = vsel %vm1484, %v1472, %v1473
        %v1491 = vsel %vm1484, %v1470, %v1471
        %v1492 = vsel %vm1484, %v1469, %v1470
        %v1493 = vsel %vm1484, %v1467, %v1468
        %v1494 = vsel %vm1484, %v1466, %v1467
        %v1495 = vsel %vm1484, %v1464, %v1465
        %v1496 = vsel %vm1484, %v1463, %v1464
        %v1497 = vsel %vm1484, %v1461, %v1462
        %v1498 = vsel %vm1484, %v1460, %v1461
        %v1499 = vsel %vm1484, %v1458, %v1459
        %v1500 = vsel %vm1484, %v1457, %v1458
        %v1501 = vsel %vm1484, %v1455, %v1456
        %v1502 = vsel %vm1484, %v1454, %v1455
        %v1503 = vsel %vm1484, %v1452, %v1453
        %v1504 = vsel %vm1484, %v1451, %v1452
        %v1505 = vsel %vm1484, %v1449, %v1450
        %v1506 = vsel %vm1484, %v1448, %v1449
        %v1507 = vsel %vm1484, %v1446, %v1447
        %v1508 = vsel %vm1484, %v1445, %v1446
        %v1509 = vsel %vm1484, %v1443, %v1444
        %v1510 = vsel %vm1484, %v1442, %v1443
        %v1511 = vsel %vm1484, %v1440, %v1441
        %v1512 = vsel %vm1484, %v1439, %v1440
        %v1513 = vsel %vm1484, %v1437, %v1438
        %v1514 = vsel %vm1484, %v1436, %v1437
        %v1515 = vsel %vm1484, %v1434, %v1435
        %v1516 = vsel %vm1484, %v1481, %v1434
        %s1517 = scalar_lea.vmem %s3, 64
        %v1518 = vld [vmem:[%s1517] sm:$0xf]
        %v1519 = vld [vmem:[%s1517 + $0x4] sm:$0xf]
        %v1520 = vld [vmem:[%s1517 + $0x8] sm:$0xf]
        %v1521 = vld [vmem:[%s1517 + $0xc] sm:$0xf]
        %v1522 = vld [vmem:[%s1517 + $0x10] sm:$0xf]
        %v1523 = vld [vmem:[%s1517 + $0x14] sm:$0xf]
        %v1524 = vld [vmem:[%s1517 + $0x18] sm:$0xf]
        %v1525 = vld [vmem:[%s1517 + $0x1c] sm:$0xf]
        %v1526 = vld [vmem:[%s1517 + $0x20] sm:$0xf]
        %v1527 = vld [vmem:[%s1517 + $0x24] sm:$0xf]
        %v1528 = vld [vmem:[%s1517 + $0x28] sm:$0xf]
        %v1529 = vld [vmem:[%s1517 + $0x2c] sm:$0xf]
        %v1530 = vld [vmem:[%s1517 + $0x30] sm:$0xf]
        %v1531 = vld [vmem:[%s1517 + $0x34] sm:$0xf]
        %v1532 = vld [vmem:[%s1517 + $0x38] sm:$0xf]
        %v1533 = vld [vmem:[%s1517 + $0x3c] sm:$0xf]
        %v1550 = vunpack.c.l.b16 %v1518
        %v1551 = vunpack.c.l.b16 %v1519
        %v1552 = vunpack.c.l.b16 %v1520
        %v1553 = vunpack.c.l.b16 %v1521
        %v1554 = vunpack.c.l.b16 %v1522
        %v1555 = vunpack.c.l.b16 %v1523
        %v1556 = vunpack.c.l.b16 %v1524
        %v1557 = vunpack.c.l.b16 %v1525
        %v1558 = vunpack.c.l.b16 %v1526
        %v1559 = vunpack.c.l.b16 %v1527
        %v1560 = vunpack.c.l.b16 %v1528
        %v1561 = vunpack.c.l.b16 %v1529
        %v1562 = vunpack.c.l.b16 %v1530
        %v1563 = vunpack.c.l.b16 %v1531
        %v1564 = vunpack.c.l.b16 %v1532
        %v1565 = vunpack.c.l.b16 %v1533
        %v1566 = vpack.c.b16 %v1551, %v1550
        %v1567 = vpack.c.b16 %v1553, %v1552
        %v1568 = vpack.c.b16 %v1555, %v1554
        %v1569 = vpack.c.b16 %v1557, %v1556
        %v1570 = vpack.c.b16 %v1559, %v1558
        %v1571 = vpack.c.b16 %v1561, %v1560
        %v1572 = vpack.c.b16 %v1563, %v1562
        %v1573 = vpack.c.b16 %v1565, %v1564
        %1582 = vmatprep.subr.bf16.mxu0 0
        %1583 = vmatpush1.bf16.msra.mxu0 %v1566
        %1584 = vmatprep.subr.bf16.mxu0 0
        %1585 = vmatpush1.bf16.msra.mxu0 %v1567
        %1586 = vmatprep.subr.bf16.mxu0 0
        %1587 = vmatpush1.bf16.msra.mxu0 %v1568
        %1588 = vmatprep.subr.bf16.mxu0 0
        %1589 = vmatpush1.bf16.msra.mxu0 %v1569
        %1590 = vmatprep.subr.bf16.mxu0 0
        %1591 = vmatpush1.bf16.msra.mxu0 %v1570
        %1592 = vmatprep.subr.bf16.mxu0 0
        %1593 = vmatpush1.bf16.msra.mxu0 %v1571
        %1594 = vmatprep.subr.bf16.mxu0 0
        %1595 = vmatpush1.bf16.msra.mxu0 %v1572
        %1596 = vmatprep.subr.bf16.mxu0 0
        %1597 = vmatpush1.bf16.msra.mxu0 %v1573
        %1598 = vmatprep.subr.bf16.mxu0 0
        %1599 = vmatpush1.bf16.msra.mxu0 0
        %1600 = vmatprep.subr.bf16.mxu0 0
        %1601 = vmatpush1.bf16.msra.mxu0 0
        %1602 = vmatprep.subr.bf16.mxu0 0
        %1603 = vmatpush1.bf16.msra.mxu0 0
        %1604 = vmatprep.subr.bf16.mxu0 0
        %1605 = vmatpush1.bf16.msra.mxu0 0
        %1606 = vmatprep.subr.bf16.mxu0 0
        %1607 = vmatpush1.bf16.msra.mxu0 0
        %1608 = vmatprep.subr.bf16.mxu0 0
        %1609 = vmatpush1.bf16.msra.mxu0 0
        %1610 = vmatprep.subr.bf16.mxu0 0
        %1611 = vmatpush1.bf16.msra.mxu0 0
        %1612 = vmatprep.subr.bf16.mxu0 0
        %1613 = vmatpush1.bf16.msra.mxu0 0
        %1614 = vmatprep.mubr.bf16.mxu0 0
        %1615 = vmatmul.mubr.bf16.gmra.mrb[0].mxu0 %v1065
        %v1616 = vpop.f32.mrb[0].mxu0
        %v1617 = vadd.f32 0.0, %v1616
        %v1618 = vpop.f32.mrb[0].mxu0
        %v1619 = vpop.f32.mrb[0].mxu0
        %v1620 = vadd.f32 0.0, %v1619
        %v1621 = vpop.f32.mrb[0].mxu0
        %1622 = vmatprep.mubr.bf16.mxu0 0
        %1623 = vmatmul.mubr.bf16.gmra.mrb[0].mxu0 %v1066
        %v1624 = vpop.f32.mrb[0].mxu0
        %v1625 = vpop.f32.mrb[0].mxu0
        %v1626 = vpop.f32.mrb[0].mxu0
        %v1627 = vpop.f32.mrb[0].mxu0
        %1628 = vmatprep.mubr.bf16.mxu0 0
        %1629 = vmatmul.mubr.bf16.gmra.mrb[0].mxu0 %v1067
        %v1630 = vpop.f32.mrb[0].mxu0
        %v1631 = vadd.f32 0.0, %v1630
        %v1632 = vpop.f32.mrb[0].mxu0
        %v1633 = vpop.f32.mrb[0].mxu0
        %v1634 = vadd.f32 0.0, %v1633
        %v1635 = vpop.f32.mrb[0].mxu0
        %1636 = vmatprep.mubr.bf16.mxu0 0
        %1637 = vmatmul.mubr.bf16.gmra.mrb[0].mxu0 %v1068
        %v1638 = vpop.f32.mrb[0].mxu0
        %v1639 = vpop.f32.mrb[0].mxu0
        %v1640 = vpop.f32.mrb[0].mxu0
        %v1641 = vpop.f32.mrb[0].mxu0
        %1642 = vmatprep.mubr.bf16.mxu0 0
        %1643 = vmatmul.mubr.bf16.gmra.mrb[0].mxu0 %v1069
        %v1644 = vpop.f32.mrb[0].mxu0
        %v1645 = vadd.f32 0.0, %v1644
        %v1646 = vpop.f32.mrb[0].mxu0
        %v1647 = vpop.f32.mrb[0].mxu0
        %v1648 = vadd.f32 0.0, %v1647
        %v1649 = vpop.f32.mrb[0].mxu0
        %1650 = vmatprep.mubr.bf16.mxu0 0
        %1651 = vmatmul.mubr.bf16.gmra.mrb[0].mxu0 %v1070
        %v1652 = vpop.f32.mrb[0].mxu0
        %v1653 = vpop.f32.mrb[0].mxu0
        %v1654 = vpop.f32.mrb[0].mxu0
        %v1655 = vpop.f32.mrb[0].mxu0
        %1656 = vmatprep.mubr.bf16.mxu0 0
        %1657 = vmatmul.mubr.bf16.gmra.mrb[0].mxu0 %v1071
        %v1658 = vpop.f32.mrb[0].mxu0
        %v1659 = vadd.f32 0.0, %v1658
        %v1660 = vpop.f32.mrb[0].mxu0
        %v1661 = vpop.f32.mrb[0].mxu0
        %v1662 = vadd.f32 0.0, %v1661
        %v1663 = vpop.f32.mrb[0].mxu0
        %1664 = vmatprep.mubr.bf16.mxu0 0
        %1665 = vmatmul.mubr.bf16.gmra.mrb[0].mxu0 %v1072
        %v1666 = vpop.f32.mrb[0].mxu0
        %v1667 = vpop.f32.mrb[0].mxu0
        %v1668 = vpop.f32.mrb[0].mxu0
        %v1669 = vpop.f32.mrb[0].mxu0
        %1670 = vmatprep.mubr.bf16.mxu0 0
        %1671 = vmatmul.mubr.bf16.gmra.mrb[0].mxu0 %v1073
        %v1672 = vpop.f32.mrb[0].mxu0
        %v1673 = vadd.f32 0.0, %v1672
        %v1674 = vpop.f32.mrb[0].mxu0
        %v1675 = vpop.f32.mrb[0].mxu0
        %v1676 = vadd.f32 0.0, %v1675
        %v1677 = vpop.f32.mrb[0].mxu0
        %1678 = vmatprep.mubr.bf16.mxu0 0
        %1679 = vmatmul.mubr.bf16.gmra.mrb[0].mxu0 %v1074
        %v1680 = vpop.f32.mrb[0].mxu0
        %v1681 = vpop.f32.mrb[0].mxu0
        %v1682 = vpop.f32.mrb[0].mxu0
        %v1683 = vpop.f32.mrb[0].mxu0
        %1684 = vmatprep.mubr.bf16.mxu0 0
        %1685 = vmatmul.mubr.bf16.gmra.mrb[0].mxu0 %v1075
        %v1686 = vpop.f32.mrb[0].mxu0
        %v1687 = vadd.f32 0.0, %v1686
        %v1688 = vpop.f32.mrb[0].mxu0
        %v1689 = vpop.f32.mrb[0].mxu0
        %v1690 = vadd.f32 0.0, %v1689
        %v1691 = vpop.f32.mrb[0].mxu0
        %1692 = vmatprep.mubr.bf16.mxu0 0
        %1693 = vmatmul.mubr.bf16.gmra.mrb[0].mxu0 %v1076
        %v1694 = vpop.f32.mrb[0].mxu0
        %v1695 = vpop.f32.mrb[0].mxu0
        %v1696 = vpop.f32.mrb[0].mxu0
        %v1697 = vpop.f32.mrb[0].mxu0
        %1698 = vmatprep.mubr.bf16.mxu0 0
        %1699 = vmatmul.mubr.bf16.gmra.mrb[0].mxu0 %v1077
        %v1700 = vpop.f32.mrb[0].mxu0
        %v1701 = vadd.f32 0.0, %v1700
        %v1702 = vpop.f32.mrb[0].mxu0
        %v1703 = vpop.f32.mrb[0].mxu0
        %v1704 = vadd.f32 0.0, %v1703
        %v1705 = vpop.f32.mrb[0].mxu0
        %1706 = vmatprep.mubr.bf16.mxu0 0
        %1707 = vmatmul.mubr.bf16.gmra.mrb[0].mxu0 %v1078
        %v1708 = vpop.f32.mrb[0].mxu0
        %v1709 = vpop.f32.mrb[0].mxu0
        %v1710 = vpop.f32.mrb[0].mxu0
        %v1711 = vpop.f32.mrb[0].mxu0
        %1712 = vmatprep.mubr.bf16.mxu0 0
        %1713 = vmatmul.mubr.bf16.gmra.mrb[0].mxu0 %v1079
        %v1714 = vpop.f32.mrb[0].mxu0
        %v1715 = vadd.f32 0.0, %v1714
        %v1716 = vpop.f32.mrb[0].mxu0
        %v1717 = vpop.f32.mrb[0].mxu0
        %v1718 = vadd.f32 0.0, %v1717
        %v1719 = vpop.f32.mrb[0].mxu0
        %1720 = vmatprep.mubr.bf16.mxu0 0
        %1721 = vmatmul.mubr.bf16.gmra.mrb[0].mxu0 %v1080
        %v1722 = vpop.f32.mrb[0].mxu0
        %v1723 = vpop.f32.mrb[0].mxu0
        %v1724 = vpop.f32.mrb[0].mxu0
        %v1725 = vpop.f32.mrb[0].mxu0
        %1726 = vmatprep.mubr.bf16.mxu0 0
        %1727 = vmatmul.mubr.bf16.gmra.mrb[0].mxu0 %v1081
        %v1728 = vpop.f32.mrb[0].mxu0
        %v1729 = vadd.f32 0.0, %v1728
        %v1730 = vpop.f32.mrb[0].mxu0
        %v1731 = vpop.f32.mrb[0].mxu0
        %v1732 = vadd.f32 0.0, %v1731
        %v1733 = vpop.f32.mrb[0].mxu0
        %1734 = vmatprep.mubr.bf16.mxu0 0
        %1735 = vmatmul.mubr.bf16.gmra.mrb[0].mxu0 %v1082
        %v1736 = vpop.f32.mrb[0].mxu0
        %v1737 = vpop.f32.mrb[0].mxu0
        %v1738 = vpop.f32.mrb[0].mxu0
        %v1739 = vpop.f32.mrb[0].mxu0
        %1740 = vmatprep.mubr.bf16.mxu0 0
        %1741 = vmatmul.mubr.bf16.gmra.mrb[0].mxu0 %v1083
        %v1742 = vpop.f32.mrb[0].mxu0
        %v1743 = vadd.f32 0.0, %v1742
        %v1744 = vpop.f32.mrb[0].mxu0
        %v1745 = vpop.f32.mrb[0].mxu0
        %v1746 = vadd.f32 0.0, %v1745
        %v1747 = vpop.f32.mrb[0].mxu0
        %1748 = vmatprep.mubr.bf16.mxu0 0
        %1749 = vmatmul.mubr.bf16.gmra.mrb[0].mxu0 %v1084
        %v1750 = vpop.f32.mrb[0].mxu0
        %v1751 = vpop.f32.mrb[0].mxu0
        %v1752 = vpop.f32.mrb[0].mxu0
        %v1753 = vpop.f32.mrb[0].mxu0
        %1754 = vmatprep.mubr.bf16.mxu0 0
        %1755 = vmatmul.mubr.bf16.gmra.mrb[0].mxu0 %v1085
        %v1756 = vpop.f32.mrb[0].mxu0
        %v1757 = vadd.f32 0.0, %v1756
        %v1758 = vpop.f32.mrb[0].mxu0
        %v1759 = vpop.f32.mrb[0].mxu0
        %v1760 = vadd.f32 0.0, %v1759
        %v1761 = vpop.f32.mrb[0].mxu0
        %1762 = vmatprep.mubr.bf16.mxu0 0
        %1763 = vmatmul.mubr.bf16.gmra.mrb[0].mxu0 %v1086
        %v1764 = vpop.f32.mrb[0].mxu0
        %v1765 = vpop.f32.mrb[0].mxu0
        %v1766 = vpop.f32.mrb[0].mxu0
        %v1767 = vpop.f32.mrb[0].mxu0
        %1768 = vmatprep.mubr.bf16.mxu0 0
        %1769 = vmatmul.mubr.bf16.gmra.mrb[0].mxu0 %v1087
        %v1770 = vpop.f32.mrb[0].mxu0
        %v1771 = vadd.f32 0.0, %v1770
        %v1772 = vpop.f32.mrb[0].mxu0
        %v1773 = vpop.f32.mrb[0].mxu0
        %v1774 = vadd.f32 0.0, %v1773
        %v1775 = vpop.f32.mrb[0].mxu0
        %1776 = vmatprep.mubr.bf16.mxu0 0
        %1777 = vmatmul.mubr.bf16.gmra.mrb[0].mxu0 %v1088
        %v1778 = vpop.f32.mrb[0].mxu0
        %v1779 = vpop.f32.mrb[0].mxu0
        %v1780 = vpop.f32.mrb[0].mxu0
        %v1781 = vpop.f32.mrb[0].mxu0
        %1782 = vmatprep.mubr.bf16.mxu0 0
        %1783 = vmatmul.mubr.bf16.gmra.mrb[0].mxu0 %v1089
        %v1784 = vpop.f32.mrb[0].mxu0
        %v1785 = vadd.f32 0.0, %v1784
        %v1786 = vpop.f32.mrb[0].mxu0
        %v1787 = vpop.f32.mrb[0].mxu0
        %v1788 = vadd.f32 0.0, %v1787
        %v1789 = vpop.f32.mrb[0].mxu0
        %1790 = vmatprep.mubr.bf16.mxu0 0
        %1791 = vmatmul.mubr.bf16.gmra.mrb[0].mxu0 %v1090
        %v1792 = vpop.f32.mrb[0].mxu0
        %v1793 = vpop.f32.mrb[0].mxu0
        %v1794 = vpop.f32.mrb[0].mxu0
        %v1795 = vpop.f32.mrb[0].mxu0
        %1796 = vmatprep.mubr.bf16.mxu0 0
        %1797 = vmatmul.mubr.bf16.gmra.mrb[0].mxu0 %v1091
        %v1798 = vpop.f32.mrb[0].mxu0
        %v1799 = vadd.f32 0.0, %v1798
        %v1800 = vpop.f32.mrb[0].mxu0
        %v1801 = vpop.f32.mrb[0].mxu0
        %v1802 = vadd.f32 0.0, %v1801
        %v1803 = vpop.f32.mrb[0].mxu0
        %1804 = vmatprep.mubr.bf16.mxu0 0
        %1805 = vmatmul.mubr.bf16.gmra.mrb[0].mxu0 %v1092
        %v1806 = vpop.f32.mrb[0].mxu0
        %v1807 = vpop.f32.mrb[0].mxu0
        %v1808 = vpop.f32.mrb[0].mxu0
        %v1809 = vpop.f32.mrb[0].mxu0
        %1810 = vmatprep.mubr.bf16.mxu0 0
        %1811 = vmatmul.mubr.bf16.gmra.mrb[0].mxu0 %v1093
        %v1812 = vpop.f32.mrb[0].mxu0
        %v1813 = vadd.f32 0.0, %v1812
        %v1814 = vpop.f32.mrb[0].mxu0
        %v1815 = vpop.f32.mrb[0].mxu0
        %v1816 = vadd.f32 0.0, %v1815
        %v1817 = vpop.f32.mrb[0].mxu0
        %1818 = vmatprep.mubr.bf16.mxu0 0
        %1819 = vmatmul.mubr.bf16.gmra.mrb[0].mxu0 %v1094
        %v1820 = vpop.f32.mrb[0].mxu0
        %v1821 = vpop.f32.mrb[0].mxu0
        %v1822 = vpop.f32.mrb[0].mxu0
        %v1823 = vpop.f32.mrb[0].mxu0
        %1824 = vmatprep.mubr.bf16.mxu0 0
        %1825 = vmatmul.mubr.bf16.gmra.mrb[0].mxu0 %v1095
        %v1826 = vpop.f32.mrb[0].mxu0
        %v1827 = vadd.f32 0.0, %v1826
        %v1828 = vpop.f32.mrb[0].mxu0
        %v1829 = vpop.f32.mrb[0].mxu0
        %v1830 = vadd.f32 0.0, %v1829
        %v1831 = vpop.f32.mrb[0].mxu0
        %1832 = vmatprep.mubr.bf16.mxu0 0
        %1833 = vmatmul.mubr.bf16.gmra.mrb[0].mxu0 %v1096
        %v1834 = vpop.f32.mrb[0].mxu0
        %v1835 = vpop.f32.mrb[0].mxu0
        %v1836 = vpop.f32.mrb[0].mxu0
        %v1837 = vpop.f32.mrb[0].mxu0
        %1838 = vdwg.mxu0
        %v1839 = vadd.f32 %v1516, %v1617
        %v1840 = vadd.f32 %v1515, %v1620
        %v1841 = vadd.f32 %v1514, %v1631
        %v1842 = vadd.f32 %v1513, %v1634
        %v1843 = vadd.f32 %v1512, %v1645
        %v1844 = vadd.f32 %v1511, %v1648
        %v1845 = vadd.f32 %v1510, %v1659
        %v1846 = vadd.f32 %v1509, %v1662
        %v1847 = vadd.f32 %v1508, %v1673
        %v1848 = vadd.f32 %v1507, %v1676
        %v1849 = vadd.f32 %v1506, %v1687
        %v1850 = vadd.f32 %v1505, %v1690
        %v1851 = vadd.f32 %v1504, %v1701
        %v1852 = vadd.f32 %v1503, %v1704
        %v1853 = vadd.f32 %v1502, %v1715
        %v1854 = vadd.f32 %v1501, %v1718
        %v1855 = vadd.f32 %v1500, %v1729
        %v1856 = vadd.f32 %v1499, %v1732
        %v1857 = vadd.f32 %v1498, %v1743
        %v1858 = vadd.f32 %v1497, %v1746
        %v1859 = vadd.f32 %v1496, %v1757
        %v1860 = vadd.f32 %v1495, %v1760
        %v1861 = vadd.f32 %v1494, %v1771
        %v1862 = vadd.f32 %v1493, %v1774
        %v1863 = vadd.f32 %v1492, %v1785
        %v1864 = vadd.f32 %v1491, %v1788
        %v1865 = vadd.f32 %v1490, %v1799
        %v1866 = vadd.f32 %v1489, %v1802
        %v1867 = vadd.f32 %v1488, %v1813
        %v1868 = vadd.f32 %v1487, %v1816
        %v1869 = vadd.f32 %v1486, %v1827
        %v1870 = vadd.f32 %v1485, %v1830
        %s1871 = scalar_lea.vmem %s3, 128
        %v1872 = vld [vmem:[%s1871] sm:$0xf]
        %v1873 = vld [vmem:[%s1871 + $0x4] sm:$0xf]
        %v1874 = vld [vmem:[%s1871 + $0x8] sm:$0xf]
        %v1875 = vld [vmem:[%s1871 + $0xc] sm:$0xf]
        %v1876 = vld [vmem:[%s1871 + $0x10] sm:$0xf]
        %v1877 = vld [vmem:[%s1871 + $0x14] sm:$0xf]
        %v1878 = vld [vmem:[%s1871 + $0x18] sm:$0xf]
        %v1879 = vld [vmem:[%s1871 + $0x1c] sm:$0xf]
        %v1880 = vld [vmem:[%s1871 + $0x20] sm:$0xf]
        %v1881 = vld [vmem:[%s1871 + $0x24] sm:$0xf]
        %v1882 = vld [vmem:[%s1871 + $0x28] sm:$0xf]
        %v1883 = vld [vmem:[%s1871 + $0x2c] sm:$0xf]
        %v1884 = vld [vmem:[%s1871 + $0x30] sm:$0xf]
        %v1885 = vld [vmem:[%s1871 + $0x34] sm:$0xf]
        %v1886 = vld [vmem:[%s1871 + $0x38] sm:$0xf]
        %v1887 = vld [vmem:[%s1871 + $0x3c] sm:$0xf]
        %v1904 = vunpack.c.l.b16 %v1872
        %v1905 = vunpack.c.l.b16 %v1873
        %v1906 = vunpack.c.l.b16 %v1874
        %v1907 = vunpack.c.l.b16 %v1875
        %v1908 = vunpack.c.l.b16 %v1876
        %v1909 = vunpack.c.l.b16 %v1877
        %v1910 = vunpack.c.l.b16 %v1878
        %v1911 = vunpack.c.l.b16 %v1879
        %v1912 = vunpack.c.l.b16 %v1880
        %v1913 = vunpack.c.l.b16 %v1881
        %v1914 = vunpack.c.l.b16 %v1882
        %v1915 = vunpack.c.l.b16 %v1883
        %v1916 = vunpack.c.l.b16 %v1884
        %v1917 = vunpack.c.l.b16 %v1885
        %v1918 = vunpack.c.l.b16 %v1886
        %v1919 = vunpack.c.l.b16 %v1887
        %v1920 = vpack.c.b16 %v1905, %v1904
        %v1921 = vpack.c.b16 %v1907, %v1906
        %v1922 = vpack.c.b16 %v1909, %v1908
        %v1923 = vpack.c.b16 %v1911, %v1910
        %v1924 = vpack.c.b16 %v1913, %v1912
        %v1925 = vpack.c.b16 %v1915, %v1914
        %v1926 = vpack.c.b16 %v1917, %v1916
        %v1927 = vpack.c.b16 %v1919, %v1918
        %1936 = vmatprep.subr.bf16.mxu0 0
        %1937 = vmatpush1.bf16.msra.mxu0 %v1920
        %1938 = vmatprep.subr.bf16.mxu0 0
        %1939 = vmatpush1.bf16.msra.mxu0 %v1921
        %1940 = vmatprep.subr.bf16.mxu0 0
        %1941 = vmatpush1.bf16.msra.mxu0 %v1922
        %1942 = vmatprep.subr.bf16.mxu0 0
        %1943 = vmatpush1.bf16.msra.mxu0 %v1923
        %1944 = vmatprep.subr.bf16.mxu0 0
        %1945 = vmatpush1.bf16.msra.mxu0 %v1924
        %1946 = vmatprep.subr.bf16.mxu0 0
        %1947 = vmatpush1.bf16.msra.mxu0 %v1925
        %1948 = vmatprep.subr.bf16.mxu0 0
        %1949 = vmatpush1.bf16.msra.mxu0 %v1926
        %1950 = vmatprep.subr.bf16.mxu0 0
        %1951 = vmatpush1.bf16.msra.mxu0 %v1927
        %1952 = vmatprep.subr.bf16.mxu0 0
        %1953 = vmatpush1.bf16.msra.mxu0 0
        %1954 = vmatprep.subr.bf16.mxu0 0
        %1955 = vmatpush1.bf16.msra.mxu0 0
        %1956 = vmatprep.subr.bf16.mxu0 0
        %1957 = vmatpush1.bf16.msra.mxu0 0
        %1958 = vmatprep.subr.bf16.mxu0 0
        %1959 = vmatpush1.bf16.msra.mxu0 0
        %1960 = vmatprep.subr.bf16.mxu0 0
        %1961 = vmatpush1.bf16.msra.mxu0 0
        %1962 = vmatprep.subr.bf16.mxu0 0
        %1963 = vmatpush1.bf16.msra.mxu0 0
        %1964 = vmatprep.subr.bf16.mxu0 0
        %1965 = vmatpush1.bf16.msra.mxu0 0
        %1966 = vmatprep.subr.bf16.mxu0 0
        %1967 = vmatpush1.bf16.msra.mxu0 0
        %1968 = vmatprep.mubr.bf16.mxu0 0
        %1969 = vmatmul.mubr.bf16.gmra.mrb[0].mxu0 %v1065
        %v1970 = vpop.f32.mrb[0].mxu0
        %v1971 = vadd.f32 0.0, %v1970
        %v1972 = vpop.f32.mrb[0].mxu0
        %v1973 = vpop.f32.mrb[0].mxu0
        %v1974 = vadd.f32 0.0, %v1973
        %v1975 = vpop.f32.mrb[0].mxu0
        %1976 = vmatprep.mubr.bf16.mxu0 0
        %1977 = vmatmul.mubr.bf16.gmra.mrb[0].mxu0 %v1066
        %v1978 = vpop.f32.mrb[0].mxu0
        %v1979 = vadd.f32 0.0, %v1978
        %v1980 = vpop.f32.mrb[0].mxu0
        %v1981 = vpop.f32.mrb[0].mxu0
        %v1982 = vpop.f32.mrb[0].mxu0
        %1983 = vmatprep.mubr.bf16.mxu0 0
        %1984 = vmatmul.mubr.bf16.gmra.mrb[0].mxu0 %v1067
        %v1985 = vpop.f32.mrb[0].mxu0
        %v1986 = vadd.f32 0.0, %v1985
        %v1987 = vpop.f32.mrb[0].mxu0
        %v1988 = vpop.f32.mrb[0].mxu0
        %v1989 = vadd.f32 0.0, %v1988
        %v1990 = vpop.f32.mrb[0].mxu0
        %1991 = vmatprep.mubr.bf16.mxu0 0
        %1992 = vmatmul.mubr.bf16.gmra.mrb[0].mxu0 %v1068
        %v1993 = vpop.f32.mrb[0].mxu0
        %v1994 = vadd.f32 0.0, %v1993
        %v1995 = vpop.f32.mrb[0].mxu0
        %v1996 = vpop.f32.mrb[0].mxu0
        %v1997 = vpop.f32.mrb[0].mxu0
        %1998 = vmatprep.mubr.bf16.mxu0 0
        %1999 = vmatmul.mubr.bf16.gmra.mrb[0].mxu0 %v1069
        %v2000 = vpop.f32.mrb[0].mxu0
        %v2001 = vadd.f32 0.0, %v2000
        %v2002 = vpop.f32.mrb[0].mxu0
        %v2003 = vpop.f32.mrb[0].mxu0
        %v2004 = vadd.f32 0.0, %v2003
        %v2005 = vpop.f32.mrb[0].mxu0
        %2006 = vmatprep.mubr.bf16.mxu0 0
        %2007 = vmatmul.mubr.bf16.gmra.mrb[0].mxu0 %v1070
        %v2008 = vpop.f32.mrb[0].mxu0
        %v2009 = vadd.f32 0.0, %v2008
        %v2010 = vpop.f32.mrb[0].mxu0
        %v2011 = vpop.f32.mrb[0].mxu0
        %v2012 = vpop.f32.mrb[0].mxu0
        %2013 = vmatprep.mubr.bf16.mxu0 0
        %2014 = vmatmul.mubr.bf16.gmra.mrb[0].mxu0 %v1071
        %v2015 = vpop.f32.mrb[0].mxu0
        %v2016 = vadd.f32 0.0, %v2015
        %v2017 = vpop.f32.mrb[0].mxu0
        %v2018 = vpop.f32.mrb[0].mxu0
        %v2019 = vadd.f32 0.0, %v2018
        %v2020 = vpop.f32.mrb[0].mxu0
        %2021 = vmatprep.mubr.bf16.mxu0 0
        %2022 = vmatmul.mubr.bf16.gmra.mrb[0].mxu0 %v1072
        %v2023 = vpop.f32.mrb[0].mxu0
        %v2024 = vadd.f32 0.0, %v2023
        %v2025 = vpop.f32.mrb[0].mxu0
        %v2026 = vpop.f32.mrb[0].mxu0
        %v2027 = vpop.f32.mrb[0].mxu0
        %2028 = vmatprep.mubr.bf16.mxu0 0
        %2029 = vmatmul.mubr.bf16.gmra.mrb[0].mxu0 %v1073
        %v2030 = vpop.f32.mrb[0].mxu0
        %v2031 = vadd.f32 0.0, %v2030
        %v2032 = vpop.f32.mrb[0].mxu0
        %v2033 = vpop.f32.mrb[0].mxu0
        %v2034 = vadd.f32 0.0, %v2033
        %v2035 = vpop.f32.mrb[0].mxu0
        %2036 = vmatprep.mubr.bf16.mxu0 0
        %2037 = vmatmul.mubr.bf16.gmra.mrb[0].mxu0 %v1074
        %v2038 = vpop.f32.mrb[0].mxu0
        %v2039 = vadd.f32 0.0, %v2038
        %v2040 = vpop.f32.mrb[0].mxu0
        %v2041 = vpop.f32.mrb[0].mxu0
        %v2042 = vpop.f32.mrb[0].mxu0
        %2043 = vmatprep.mubr.bf16.mxu0 0
        %2044 = vmatmul.mubr.bf16.gmra.mrb[0].mxu0 %v1075
        %v2045 = vpop.f32.mrb[0].mxu0
        %v2046 = vadd.f32 0.0, %v2045
        %v2047 = vpop.f32.mrb[0].mxu0
        %v2048 = vpop.f32.mrb[0].mxu0
        %v2049 = vadd.f32 0.0, %v2048
        %v2050 = vpop.f32.mrb[0].mxu0
        %2051 = vmatprep.mubr.bf16.mxu0 0
        %2052 = vmatmul.mubr.bf16.gmra.mrb[0].mxu0 %v1076
        %v2053 = vpop.f32.mrb[0].mxu0
        %v2054 = vadd.f32 0.0, %v2053
        %v2055 = vpop.f32.mrb[0].mxu0
        %v2056 = vpop.f32.mrb[0].mxu0
        %v2057 = vpop.f32.mrb[0].mxu0
        %2058 = vmatprep.mubr.bf16.mxu0 0
        %2059 = vmatmul.mubr.bf16.gmra.mrb[0].mxu0 %v1077
        %v2060 = vpop.f32.mrb[0].mxu0
        %v2061 = vadd.f32 0.0, %v2060
        %v2062 = vpop.f32.mrb[0].mxu0
        %v2063 = vpop.f32.mrb[0].mxu0
        %v2064 = vadd.f32 0.0, %v2063
        %v2065 = vpop.f32.mrb[0].mxu0
        %2066 = vmatprep.mubr.bf16.mxu0 0
        %2067 = vmatmul.mubr.bf16.gmra.mrb[0].mxu0 %v1078
        %v2068 = vpop.f32.mrb[0].mxu0
        %v2069 = vadd.f32 0.0, %v2068
        %v2070 = vpop.f32.mrb[0].mxu0
        %v2071 = vpop.f32.mrb[0].mxu0
        %v2072 = vpop.f32.mrb[0].mxu0
        %2073 = vmatprep.mubr.bf16.mxu0 0
        %2074 = vmatmul.mubr.bf16.gmra.mrb[0].mxu0 %v1079
        %v2075 = vpop.f32.mrb[0].mxu0
        %v2076 = vadd.f32 0.0, %v2075
        %v2077 = vpop.f32.mrb[0].mxu0
        %v2078 = vpop.f32.mrb[0].mxu0
        %v2079 = vadd.f32 0.0, %v2078
        %v2080 = vpop.f32.mrb[0].mxu0
        %2081 = vmatprep.mubr.bf16.mxu0 0
        %2082 = vmatmul.mubr.bf16.gmra.mrb[0].mxu0 %v1080
        %v2083 = vpop.f32.mrb[0].mxu0
        %v2084 = vadd.f32 0.0, %v2083
        %v2085 = vpop.f32.mrb[0].mxu0
        %v2086 = vpop.f32.mrb[0].mxu0
        %v2087 = vpop.f32.mrb[0].mxu0
        %2088 = vmatprep.mubr.bf16.mxu0 0
        %2089 = vmatmul.mubr.bf16.gmra.mrb[0].mxu0 %v1081
        %v2090 = vpop.f32.mrb[0].mxu0
        %v2091 = vadd.f32 0.0, %v2090
        %v2092 = vpop.f32.mrb[0].mxu0
        %v2093 = vpop.f32.mrb[0].mxu0
        %v2094 = vadd.f32 0.0, %v2093
        %v2095 = vpop.f32.mrb[0].mxu0
        %2096 = vmatprep.mubr.bf16.mxu0 0
        %2097 = vmatmul.mubr.bf16.gmra.mrb[0].mxu0 %v1082
        %v2098 = vpop.f32.mrb[0].mxu0
        %v2099 = vadd.f32 0.0, %v2098
        %v2100 = vpop.f32.mrb[0].mxu0
        %v2101 = vpop.f32.mrb[0].mxu0
        %v2102 = vpop.f32.mrb[0].mxu0
        %2103 = vmatprep.mubr.bf16.mxu0 0
        %2104 = vmatmul.mubr.bf16.gmra.mrb[0].mxu0 %v1083
        %v2105 = vpop.f32.mrb[0].mxu0
        %v2106 = vadd.f32 0.0, %v2105
        %v2107 = vpop.f32.mrb[0].mxu0
        %v2108 = vpop.f32.mrb[0].mxu0
        %v2109 = vadd.f32 0.0, %v2108
        %v2110 = vpop.f32.mrb[0].mxu0
        %2111 = vmatprep.mubr.bf16.mxu0 0
        %2112 = vmatmul.mubr.bf16.gmra.mrb[0].mxu0 %v1084
        %v2113 = vpop.f32.mrb[0].mxu0
        %v2114 = vadd.f32 0.0, %v2113
        %v2115 = vpop.f32.mrb[0].mxu0
        %v2116 = vpop.f32.mrb[0].mxu0
        %v2117 = vpop.f32.mrb[0].mxu0
        %2118 = vmatprep.mubr.bf16.mxu0 0
        %2119 = vmatmul.mubr.bf16.gmra.mrb[0].mxu0 %v1085
        %v2120 = vpop.f32.mrb[0].mxu0
        %v2121 = vadd.f32 0.0, %v2120
        %v2122 = vpop.f32.mrb[0].mxu0
        %v2123 = vpop.f32.mrb[0].mxu0
        %v2124 = vadd.f32 0.0, %v2123
        %v2125 = vpop.f32.mrb[0].mxu0
        %2126 = vmatprep.mubr.bf16.mxu0 0
        %2127 = vmatmul.mubr.bf16.gmra.mrb[0].mxu0 %v1086
        %v2128 = vpop.f32.mrb[0].mxu0
        %v2129 = vadd.f32 0.0, %v2128
        %v2130 = vpop.f32.mrb[0].mxu0
        %v2131 = vpop.f32.mrb[0].mxu0
        %v2132 = vpop.f32.mrb[0].mxu0
        %2133 = vmatprep.mubr.bf16.mxu0 0
        %2134 = vmatmul.mubr.bf16.gmra.mrb[0].mxu0 %v1087
        %v2135 = vpop.f32.mrb[0].mxu0
        %v2136 = vadd.f32 0.0, %v2135
        %v2137 = vpop.f32.mrb[0].mxu0
        %v2138 = vpop.f32.mrb[0].mxu0
        %v2139 = vadd.f32 0.0, %v2138
        %v2140 = vpop.f32.mrb[0].mxu0
        %2141 = vmatprep.mubr.bf16.mxu0 0
        %2142 = vmatmul.mubr.bf16.gmra.mrb[0].mxu0 %v1088
        %v2143 = vpop.f32.mrb[0].mxu0
        %v2144 = vadd.f32 0.0, %v2143
        %v2145 = vpop.f32.mrb[0].mxu0
        %v2146 = vpop.f32.mrb[0].mxu0
        %v2147 = vpop.f32.mrb[0].mxu0
        %2148 = vmatprep.mubr.bf16.mxu0 0
        %2149 = vmatmul.mubr.bf16.gmra.mrb[0].mxu0 %v1089
        %v2150 = vpop.f32.mrb[0].mxu0
        %v2151 = vadd.f32 0.0, %v2150
        %v2152 = vpop.f32.mrb[0].mxu0
        %v2153 = vpop.f32.mrb[0].mxu0
        %v2154 = vadd.f32 0.0, %v2153
        %v2155 = vpop.f32.mrb[0].mxu0
        %2156 = vmatprep.mubr.bf16.mxu0 0
        %2157 = vmatmul.mubr.bf16.gmra.mrb[0].mxu0 %v1090
        %v2158 = vpop.f32.mrb[0].mxu0
        %v2159 = vadd.f32 0.0, %v2158
        %v2160 = vpop.f32.mrb[0].mxu0
        %v2161 = vpop.f32.mrb[0].mxu0
        %v2162 = vpop.f32.mrb[0].mxu0
        %2163 = vmatprep.mubr.bf16.mxu0 0
        %2164 = vmatmul.mubr.bf16.gmra.mrb[0].mxu0 %v1091
        %v2165 = vpop.f32.mrb[0].mxu0
        %v2166 = vadd.f32 0.0, %v2165
        %v2167 = vpop.f32.mrb[0].mxu0
        %v2168 = vpop.f32.mrb[0].mxu0
        %v2169 = vadd.f32 0.0, %v2168
        %v2170 = vpop.f32.mrb[0].mxu0
        %2171 = vmatprep.mubr.bf16.mxu0 0
        %2172 = vmatmul.mubr.bf16.gmra.mrb[0].mxu0 %v1092
        %v2173 = vpop.f32.mrb[0].mxu0
        %v2174 = vadd.f32 0.0, %v2173
        %v2175 = vpop.f32.mrb[0].mxu0
        %v2176 = vpop.f32.mrb[0].mxu0
        %v2177 = vpop.f32.mrb[0].mxu0
        %2178 = vmatprep.mubr.bf16.mxu0 0
        %2179 = vmatmul.mubr.bf16.gmra.mrb[0].mxu0 %v1093
        %v2180 = vpop.f32.mrb[0].mxu0
        %v2181 = vadd.f32 0.0, %v2180
        %v2182 = vpop.f32.mrb[0].mxu0
        %v2183 = vpop.f32.mrb[0].mxu0
        %v2184 = vadd.f32 0.0, %v2183
        %v2185 = vpop.f32.mrb[0].mxu0
        %2186 = vmatprep.mubr.bf16.mxu0 0
        %2187 = vmatmul.mubr.bf16.gmra.mrb[0].mxu0 %v1094
        %v2188 = vpop.f32.mrb[0].mxu0
        %v2189 = vadd.f32 0.0, %v2188
        %v2190 = vpop.f32.mrb[0].mxu0
        %v2191 = vpop.f32.mrb[0].mxu0
        %v2192 = vpop.f32.mrb[0].mxu0
        %2193 = vmatprep.mubr.bf16.mxu0 0
        %2194 = vmatmul.mubr.bf16.gmra.mrb[0].mxu0 %v1095
        %v2195 = vpop.f32.mrb[0].mxu0
        %v2196 = vadd.f32 0.0, %v2195
        %v2197 = vpop.f32.mrb[0].mxu0
        %v2198 = vpop.f32.mrb[0].mxu0
        %v2199 = vadd.f32 0.0, %v2198
        %v2200 = vpop.f32.mrb[0].mxu0
        %2201 = vmatprep.mubr.bf16.mxu0 0
        %2202 = vmatmul.mubr.bf16.gmra.mrb[0].mxu0 %v1096
        %v2203 = vpop.f32.mrb[0].mxu0
        %v2204 = vadd.f32 0.0, %v2203
        %v2205 = vpop.f32.mrb[0].mxu0
        %v2206 = vpop.f32.mrb[0].mxu0
        %v2207 = vpop.f32.mrb[0].mxu0
        %2208 = vdwg.mxu0
        %v2209 = vrot.slane %v1971, 1
        %v2210 = vrot.slane %v1974, 1
        %v2211 = vrot.slane %v1979, 1
        %v2212 = vrot.slane %v1986, 1
        %v2213 = vrot.slane %v1989, 1
        %v2214 = vrot.slane %v1994, 1
        %v2215 = vrot.slane %v2001, 1
        %v2216 = vrot.slane %v2004, 1
        %v2217 = vrot.slane %v2009, 1
        %v2218 = vrot.slane %v2016, 1
        %v2219 = vrot.slane %v2019, 1
        %v2220 = vrot.slane %v2024, 1
        %v2221 = vrot.slane %v2031, 1
        %v2222 = vrot.slane %v2034, 1
        %v2223 = vrot.slane %v2039, 1
        %v2224 = vrot.slane %v2046, 1
        %v2225 = vrot.slane %v2049, 1
        %v2226 = vrot.slane %v2054, 1
        %v2227 = vrot.slane %v2061, 1
        %v2228 = vrot.slane %v2064, 1
        %v2229 = vrot.slane %v2069, 1
        %v2230 = vrot.slane %v2076, 1
        %v2231 = vrot.slane %v2079, 1
        %v2232 = vrot.slane %v2084, 1
        %v2233 = vrot.slane %v2091, 1
        %v2234 = vrot.slane %v2094, 1
        %v2235 = vrot.slane %v2099, 1
        %v2236 = vrot.slane %v2106, 1
        %v2237 = vrot.slane %v2109, 1
        %v2238 = vrot.slane %v2114, 1
        %v2239 = vrot.slane %v2121, 1
        %v2240 = vrot.slane %v2124, 1
        %v2241 = vrot.slane %v2129, 1
        %v2242 = vrot.slane %v2136, 1
        %v2243 = vrot.slane %v2139, 1
        %v2244 = vrot.slane %v2144, 1
        %v2245 = vrot.slane %v2151, 1
        %v2246 = vrot.slane %v2154, 1
        %v2247 = vrot.slane %v2159, 1
        %v2248 = vrot.slane %v2166, 1
        %v2249 = vrot.slane %v2169, 1
        %v2250 = vrot.slane %v2174, 1
        %v2251 = vrot.slane %v2181, 1
        %v2252 = vrot.slane %v2184, 1
        %v2253 = vrot.slane %v2189, 1
        %v2254 = vrot.slane %v2196, 1
        %v2255 = vrot.slane %v2199, 1
        %v2256 = vrot.slane %v2204, 1
        %vm2257 = vcmp.lt.s32.totalorder %v1483, 7
        %v2258 = vsel %vm2257, %v2255, %v2256
        %v2259 = vsel %vm2257, %v2254, %v2255
        %v2260 = vsel %vm2257, %v2252, %v2253
        %v2261 = vsel %vm2257, %v2251, %v2252
        %v2262 = vsel %vm2257, %v2249, %v2250
        %v2263 = vsel %vm2257, %v2248, %v2249
        %v2264 = vsel %vm2257, %v2246, %v2247
        %v2265 = vsel %vm2257, %v2245, %v2246
        %v2266 = vsel %vm2257, %v2243, %v2244
        %v2267 = vsel %vm2257, %v2242, %v2243
        %v2268 = vsel %vm2257, %v2240, %v2241
        %v2269 = vsel %vm2257, %v2239, %v2240
        %v2270 = vsel %vm2257, %v2237, %v2238
        %v2271 = vsel %vm2257, %v2236, %v2237
        %v2272 = vsel %vm2257, %v2234, %v2235
        %v2273 = vsel %vm2257, %v2233, %v2234
        %v2274 = vsel %vm2257, %v2231, %v2232
        %v2275 = vsel %vm2257, %v2230, %v2231
        %v2276 = vsel %vm2257, %v2228, %v2229
        %v2277 = vsel %vm2257, %v2227, %v2228
        %v2278 = vsel %vm2257, %v2225, %v2226
        %v2279 = vsel %vm2257, %v2224, %v2225
        %v2280 = vsel %vm2257, %v2222, %v2223
        %v2281 = vsel %vm2257, %v2221, %v2222
        %v2282 = vsel %vm2257, %v2219, %v2220
        %v2283 = vsel %vm2257, %v2218, %v2219
        %v2284 = vsel %vm2257, %v2216, %v2217
        %v2285 = vsel %vm2257, %v2215, %v2216
        %v2286 = vsel %vm2257, %v2213, %v2214
        %v2287 = vsel %vm2257, %v2212, %v2213
        %v2288 = vsel %vm2257, %v2210, %v2211
        %v2289 = vsel %vm2257, %v2209, %v2210
        %v2290 = vadd.f32 %v1839, %v2289
        %v2291 = vadd.f32 %v1840, %v2288
        %v2292 = vadd.f32 %v1841, %v2287
        %v2293 = vadd.f32 %v1842, %v2286
        %v2294 = vadd.f32 %v1843, %v2285
        %v2295 = vadd.f32 %v1844, %v2284
        %v2296 = vadd.f32 %v1845, %v2283
        %v2297 = vadd.f32 %v1846, %v2282
        %v2298 = vadd.f32 %v1847, %v2281
        %v2299 = vadd.f32 %v1848, %v2280
        %v2300 = vadd.f32 %v1849, %v2279
        %v2301 = vadd.f32 %v1850, %v2278
        %v2302 = vadd.f32 %v1851, %v2277
        %v2303 = vadd.f32 %v1852, %v2276
        %v2304 = vadd.f32 %v1853, %v2275
        %v2305 = vadd.f32 %v1854, %v2274
        %v2306 = vadd.f32 %v1855, %v2273
        %v2307 = vadd.f32 %v1856, %v2272
        %v2308 = vadd.f32 %v1857, %v2271
        %v2309 = vadd.f32 %v1858, %v2270
        %v2310 = vadd.f32 %v1859, %v2269
        %v2311 = vadd.f32 %v1860, %v2268
        %v2312 = vadd.f32 %v1861, %v2267
        %v2313 = vadd.f32 %v1862, %v2266
        %v2314 = vadd.f32 %v1863, %v2265
        %v2315 = vadd.f32 %v1864, %v2264
        %v2316 = vadd.f32 %v1865, %v2263
        %v2317 = vadd.f32 %v1866, %v2262
        %v2318 = vadd.f32 %v1867, %v2261
        %v2319 = vadd.f32 %v1868, %v2260
        %v2320 = vadd.f32 %v1869, %v2259
        %v2321 = vadd.f32 %v1870, %v2258
        %v2322 = vld [vmem:[%s1048] sm:$0xff]
        %v2323 = vld [vmem:[%s1048 + $0x8] sm:$0xff]
        %v2324 = vld [vmem:[%s1048 + $0x10] sm:$0xff]
        %v2325 = vld [vmem:[%s1048 + $0x18] sm:$0xff]
        %v2326 = vld [vmem:[%s1048 + $0x20] sm:$0xff]
        %v2327 = vld [vmem:[%s1048 + $0x28] sm:$0xff]
        %v2328 = vld [vmem:[%s1048 + $0x30] sm:$0xff]
        %v2329 = vld [vmem:[%s1048 + $0x38] sm:$0xff]
        %v2330 = vld [vmem:[%s1048 + $0x40] sm:$0xff]
        %v2331 = vld [vmem:[%s1048 + $0x48] sm:$0xff]
        %v2332 = vld [vmem:[%s1048 + $0x50] sm:$0xff]
        %v2333 = vld [vmem:[%s1048 + $0x58] sm:$0xff]
        %v2334 = vld [vmem:[%s1048 + $0x60] sm:$0xff]
        %v2335 = vld [vmem:[%s1048 + $0x68] sm:$0xff]
        %v2336 = vld [vmem:[%s1048 + $0x70] sm:$0xff]
        %v2337 = vld [vmem:[%s1048 + $0x78] sm:$0xff]
        %v2338 = vld [vmem:[%s1048 + $0x80] sm:$0xff]
        %v2339 = vld [vmem:[%s1048 + $0x88] sm:$0xff]
        %v2340 = vld [vmem:[%s1048 + $0x90] sm:$0xff]
        %v2341 = vld [vmem:[%s1048 + $0x98] sm:$0xff]
        %v2342 = vld [vmem:[%s1048 + $0xa0] sm:$0xff]
        %v2343 = vld [vmem:[%s1048 + $0xa8] sm:$0xff]
        %v2344 = vld [vmem:[%s1048 + $0xb0] sm:$0xff]
        %v2345 = vld [vmem:[%s1048 + $0xb8] sm:$0xff]
        %v2346 = vld [vmem:[%s1048 + $0xc0] sm:$0xff]
        %v2347 = vld [vmem:[%s1048 + $0xc8] sm:$0xff]
        %v2348 = vld [vmem:[%s1048 + $0xd0] sm:$0xff]
        %v2349 = vld [vmem:[%s1048 + $0xd8] sm:$0xff]
        %v2350 = vld [vmem:[%s1048 + $0xe0] sm:$0xff]
        %v2351 = vld [vmem:[%s1048 + $0xe8] sm:$0xff]
        %v2352 = vld [vmem:[%s1048 + $0xf0] sm:$0xff]
        %v2353 = vld [vmem:[%s1048 + $0xf8] sm:$0xff]
        %s2354 = scalar_lea.vmem %s3, 192
        %v2355 = vld [vmem:[%s2354] sm:$0xf]
        %v2356 = vld [vmem:[%s2354 + $0x4] sm:$0xf]
        %v2357 = vld [vmem:[%s2354 + $0x8] sm:$0xf]
        %v2358 = vld [vmem:[%s2354 + $0xc] sm:$0xf]
        %v2359 = vld [vmem:[%s2354 + $0x10] sm:$0xf]
        %v2360 = vld [vmem:[%s2354 + $0x14] sm:$0xf]
        %v2361 = vld [vmem:[%s2354 + $0x18] sm:$0xf]
        %v2362 = vld [vmem:[%s2354 + $0x1c] sm:$0xf]
        %v2363 = vld [vmem:[%s2354 + $0x20] sm:$0xf]
        %v2364 = vld [vmem:[%s2354 + $0x24] sm:$0xf]
        %v2365 = vld [vmem:[%s2354 + $0x28] sm:$0xf]
        %v2366 = vld [vmem:[%s2354 + $0x2c] sm:$0xf]
        %v2367 = vld [vmem:[%s2354 + $0x30] sm:$0xf]
        %v2368 = vld [vmem:[%s2354 + $0x34] sm:$0xf]
        %v2369 = vld [vmem:[%s2354 + $0x38] sm:$0xf]
        %v2370 = vld [vmem:[%s2354 + $0x3c] sm:$0xf]
        %v2387 = vunpack.c.l.b16 %v2355
        %v2388 = vunpack.c.l.b16 %v2356
        %v2389 = vunpack.c.l.b16 %v2357
        %v2390 = vunpack.c.l.b16 %v2358
        %v2391 = vunpack.c.l.b16 %v2359
        %v2392 = vunpack.c.l.b16 %v2360
        %v2393 = vunpack.c.l.b16 %v2361
        %v2394 = vunpack.c.l.b16 %v2362
        %v2395 = vunpack.c.l.b16 %v2363
        %v2396 = vunpack.c.l.b16 %v2364
        %v2397 = vunpack.c.l.b16 %v2365
        %v2398 = vunpack.c.l.b16 %v2366
        %v2399 = vunpack.c.l.b16 %v2367
        %v2400 = vunpack.c.l.b16 %v2368
        %v2401 = vunpack.c.l.b16 %v2369
        %v2402 = vunpack.c.l.b16 %v2370
        %v2403 = vpack.c.b16 %v2388, %v2387
        %v2404 = vpack.c.b16 %v2390, %v2389
        %v2405 = vpack.c.b16 %v2392, %v2391
        %v2406 = vpack.c.b16 %v2394, %v2393
        %v2407 = vpack.c.b16 %v2396, %v2395
        %v2408 = vpack.c.b16 %v2398, %v2397
        %v2409 = vpack.c.b16 %v2400, %v2399
        %v2410 = vpack.c.b16 %v2402, %v2401
        %2419 = vmatprep.subr.bf16.mxu0 0
        %2420 = vmatpush1.bf16.msra.mxu0 %v2403
        %2421 = vmatprep.subr.bf16.mxu0 0
        %2422 = vmatpush1.bf16.msra.mxu0 %v2404
        %2423 = vmatprep.subr.bf16.mxu0 0
        %2424 = vmatpush1.bf16.msra.mxu0 %v2405
        %2425 = vmatprep.subr.bf16.mxu0 0
        %2426 = vmatpush1.bf16.msra.mxu0 %v2406
        %2427 = vmatprep.subr.bf16.mxu0 0
        %2428 = vmatpush1.bf16.msra.mxu0 %v2407
        %2429 = vmatprep.subr.bf16.mxu0 0
        %2430 = vmatpush1.bf16.msra.mxu0 %v2408
        %2431 = vmatprep.subr.bf16.mxu0 0
        %2432 = vmatpush1.bf16.msra.mxu0 %v2409
        %2433 = vmatprep.subr.bf16.mxu0 0
        %2434 = vmatpush1.bf16.msra.mxu0 %v2410
        %2435 = vmatprep.subr.bf16.mxu0 0
        %2436 = vmatpush1.bf16.msra.mxu0 0
        %2437 = vmatprep.subr.bf16.mxu0 0
        %2438 = vmatpush1.bf16.msra.mxu0 0
        %2439 = vmatprep.subr.bf16.mxu0 0
        %2440 = vmatpush1.bf16.msra.mxu0 0
        %2441 = vmatprep.subr.bf16.mxu0 0
        %2442 = vmatpush1.bf16.msra.mxu0 0
        %2443 = vmatprep.subr.bf16.mxu0 0
        %2444 = vmatpush1.bf16.msra.mxu0 0
        %2445 = vmatprep.subr.bf16.mxu0 0
        %2446 = vmatpush1.bf16.msra.mxu0 0
        %2447 = vmatprep.subr.bf16.mxu0 0
        %2448 = vmatpush1.bf16.msra.mxu0 0
        %2449 = vmatprep.subr.bf16.mxu0 0
        %2450 = vmatpush1.bf16.msra.mxu0 0
        %2451 = vmatprep.mubr.bf16.mxu0 0
        %2452 = vmatmul.mubr.bf16.gmra.mrb[0].mxu0 %v2322
        %v2453 = vpop.f32.mrb[0].mxu0
        %v2454 = vadd.f32 0.0, %v2453
        %v2455 = vpop.f32.mrb[0].mxu0
        %v2456 = vpop.f32.mrb[0].mxu0
        %v2457 = vadd.f32 0.0, %v2456
        %v2458 = vpop.f32.mrb[0].mxu0
        %2459 = vmatprep.mubr.bf16.mxu0 0
        %2460 = vmatmul.mubr.bf16.gmra.mrb[0].mxu0 %v2323
        %v2461 = vpop.f32.mrb[0].mxu0
        %v2462 = vpop.f32.mrb[0].mxu0
        %v2463 = vpop.f32.mrb[0].mxu0
        %v2464 = vadd.f32 0.0, %v2463
        %v2465 = vpop.f32.mrb[0].mxu0
        %2466 = vmatprep.mubr.bf16.mxu0 0
        %2467 = vmatmul.mubr.bf16.gmra.mrb[0].mxu0 %v2324
        %v2468 = vpop.f32.mrb[0].mxu0
        %v2469 = vadd.f32 0.0, %v2468
        %v2470 = vpop.f32.mrb[0].mxu0
        %v2471 = vpop.f32.mrb[0].mxu0
        %v2472 = vadd.f32 0.0, %v2471
        %v2473 = vpop.f32.mrb[0].mxu0
        %2474 = vmatprep.mubr.bf16.mxu0 0
        %2475 = vmatmul.mubr.bf16.gmra.mrb[0].mxu0 %v2325
        %v2476 = vpop.f32.mrb[0].mxu0
        %v2477 = vpop.f32.mrb[0].mxu0
        %v2478 = vpop.f32.mrb[0].mxu0
        %v2479 = vadd.f32 0.0, %v2478
        %v2480 = vpop.f32.mrb[0].mxu0
        %2481 = vmatprep.mubr.bf16.mxu0 0
        %2482 = vmatmul.mubr.bf16.gmra.mrb[0].mxu0 %v2326
        %v2483 = vpop.f32.mrb[0].mxu0
        %v2484 = vadd.f32 0.0, %v2483
        %v2485 = vpop.f32.mrb[0].mxu0
        %v2486 = vpop.f32.mrb[0].mxu0
        %v2487 = vadd.f32 0.0, %v2486
        %v2488 = vpop.f32.mrb[0].mxu0
        %2489 = vmatprep.mubr.bf16.mxu0 0
        %2490 = vmatmul.mubr.bf16.gmra.mrb[0].mxu0 %v2327
        %v2491 = vpop.f32.mrb[0].mxu0
        %v2492 = vpop.f32.mrb[0].mxu0
        %v2493 = vpop.f32.mrb[0].mxu0
        %v2494 = vadd.f32 0.0, %v2493
        %v2495 = vpop.f32.mrb[0].mxu0
        %2496 = vmatprep.mubr.bf16.mxu0 0
        %2497 = vmatmul.mubr.bf16.gmra.mrb[0].mxu0 %v2328
        %v2498 = vpop.f32.mrb[0].mxu0
        %v2499 = vadd.f32 0.0, %v2498
        %v2500 = vpop.f32.mrb[0].mxu0
        %v2501 = vpop.f32.mrb[0].mxu0
        %v2502 = vadd.f32 0.0, %v2501
        %v2503 = vpop.f32.mrb[0].mxu0
        %2504 = vmatprep.mubr.bf16.mxu0 0
        %2505 = vmatmul.mubr.bf16.gmra.mrb[0].mxu0 %v2329
        %v2506 = vpop.f32.mrb[0].mxu0
        %v2507 = vpop.f32.mrb[0].mxu0
        %v2508 = vpop.f32.mrb[0].mxu0
        %v2509 = vadd.f32 0.0, %v2508
        %v2510 = vpop.f32.mrb[0].mxu0
        %2511 = vmatprep.mubr.bf16.mxu0 0
        %2512 = vmatmul.mubr.bf16.gmra.mrb[0].mxu0 %v2330
        %v2513 = vpop.f32.mrb[0].mxu0
        %v2514 = vadd.f32 0.0, %v2513
        %v2515 = vpop.f32.mrb[0].mxu0
        %v2516 = vpop.f32.mrb[0].mxu0
        %v2517 = vadd.f32 0.0, %v2516
        %v2518 = vpop.f32.mrb[0].mxu0
        %2519 = vmatprep.mubr.bf16.mxu0 0
        %2520 = vmatmul.mubr.bf16.gmra.mrb[0].mxu0 %v2331
        %v2521 = vpop.f32.mrb[0].mxu0
        %v2522 = vpop.f32.mrb[0].mxu0
        %v2523 = vpop.f32.mrb[0].mxu0
        %v2524 = vadd.f32 0.0, %v2523
        %v2525 = vpop.f32.mrb[0].mxu0
        %2526 = vmatprep.mubr.bf16.mxu0 0
        %2527 = vmatmul.mubr.bf16.gmra.mrb[0].mxu0 %v2332
        %v2528 = vpop.f32.mrb[0].mxu0
        %v2529 = vadd.f32 0.0, %v2528
        %v2530 = vpop.f32.mrb[0].mxu0
        %v2531 = vpop.f32.mrb[0].mxu0
        %v2532 = vadd.f32 0.0, %v2531
        %v2533 = vpop.f32.mrb[0].mxu0
        %2534 = vmatprep.mubr.bf16.mxu0 0
        %2535 = vmatmul.mubr.bf16.gmra.mrb[0].mxu0 %v2333
        %v2536 = vpop.f32.mrb[0].mxu0
        %v2537 = vpop.f32.mrb[0].mxu0
        %v2538 = vpop.f32.mrb[0].mxu0
        %v2539 = vadd.f32 0.0, %v2538
        %v2540 = vpop.f32.mrb[0].mxu0
        %2541 = vmatprep.mubr.bf16.mxu0 0
        %2542 = vmatmul.mubr.bf16.gmra.mrb[0].mxu0 %v2334
        %v2543 = vpop.f32.mrb[0].mxu0
        %v2544 = vadd.f32 0.0, %v2543
        %v2545 = vpop.f32.mrb[0].mxu0
        %v2546 = vpop.f32.mrb[0].mxu0
        %v2547 = vadd.f32 0.0, %v2546
        %v2548 = vpop.f32.mrb[0].mxu0
        %2549 = vmatprep.mubr.bf16.mxu0 0
        %2550 = vmatmul.mubr.bf16.gmra.mrb[0].mxu0 %v2335
        %v2551 = vpop.f32.mrb[0].mxu0
        %v2552 = vpop.f32.mrb[0].mxu0
        %v2553 = vpop.f32.mrb[0].mxu0
        %v2554 = vadd.f32 0.0, %v2553
        %v2555 = vpop.f32.mrb[0].mxu0
        %2556 = vmatprep.mubr.bf16.mxu0 0
        %2557 = vmatmul.mubr.bf16.gmra.mrb[0].mxu0 %v2336
        %v2558 = vpop.f32.mrb[0].mxu0
        %v2559 = vadd.f32 0.0, %v2558
        %v2560 = vpop.f32.mrb[0].mxu0
        %v2561 = vpop.f32.mrb[0].mxu0
        %v2562 = vadd.f32 0.0, %v2561
        %v2563 = vpop.f32.mrb[0].mxu0
        %2564 = vmatprep.mubr.bf16.mxu0 0
        %2565 = vmatmul.mubr.bf16.gmra.mrb[0].mxu0 %v2337
        %v2566 = vpop.f32.mrb[0].mxu0
        %v2567 = vpop.f32.mrb[0].mxu0
        %v2568 = vpop.f32.mrb[0].mxu0
        %v2569 = vadd.f32 0.0, %v2568
        %v2570 = vpop.f32.mrb[0].mxu0
        %2571 = vmatprep.mubr.bf16.mxu0 0
        %2572 = vmatmul.mubr.bf16.gmra.mrb[0].mxu0 %v2338
        %v2573 = vpop.f32.mrb[0].mxu0
        %v2574 = vadd.f32 0.0, %v2573
        %v2575 = vpop.f32.mrb[0].mxu0
        %v2576 = vpop.f32.mrb[0].mxu0
        %v2577 = vadd.f32 0.0, %v2576
        %v2578 = vpop.f32.mrb[0].mxu0
        %2579 = vmatprep.mubr.bf16.mxu0 0
        %2580 = vmatmul.mubr.bf16.gmra.mrb[0].mxu0 %v2339
        %v2581 = vpop.f32.mrb[0].mxu0
        %v2582 = vpop.f32.mrb[0].mxu0
        %v2583 = vpop.f32.mrb[0].mxu0
        %v2584 = vadd.f32 0.0, %v2583
        %v2585 = vpop.f32.mrb[0].mxu0
        %2586 = vmatprep.mubr.bf16.mxu0 0
        %2587 = vmatmul.mubr.bf16.gmra.mrb[0].mxu0 %v2340
        %v2588 = vpop.f32.mrb[0].mxu0
        %v2589 = vadd.f32 0.0, %v2588
        %v2590 = vpop.f32.mrb[0].mxu0
        %v2591 = vpop.f32.mrb[0].mxu0
        %v2592 = vadd.f32 0.0, %v2591
        %v2593 = vpop.f32.mrb[0].mxu0
        %2594 = vmatprep.mubr.bf16.mxu0 0
        %2595 = vmatmul.mubr.bf16.gmra.mrb[0].mxu0 %v2341
        %v2596 = vpop.f32.mrb[0].mxu0
        %v2597 = vpop.f32.mrb[0].mxu0
        %v2598 = vpop.f32.mrb[0].mxu0
        %v2599 = vadd.f32 0.0, %v2598
        %v2600 = vpop.f32.mrb[0].mxu0
        %2601 = vmatprep.mubr.bf16.mxu0 0
        %2602 = vmatmul.mubr.bf16.gmra.mrb[0].mxu0 %v2342
        %v2603 = vpop.f32.mrb[0].mxu0
        %v2604 = vadd.f32 0.0, %v2603
        %v2605 = vpop.f32.mrb[0].mxu0
        %v2606 = vpop.f32.mrb[0].mxu0
        %v2607 = vadd.f32 0.0, %v2606
        %v2608 = vpop.f32.mrb[0].mxu0
        %2609 = vmatprep.mubr.bf16.mxu0 0
        %2610 = vmatmul.mubr.bf16.gmra.mrb[0].mxu0 %v2343
        %v2611 = vpop.f32.mrb[0].mxu0
        %v2612 = vpop.f32.mrb[0].mxu0
        %v2613 = vpop.f32.mrb[0].mxu0
        %v2614 = vadd.f32 0.0, %v2613
        %v2615 = vpop.f32.mrb[0].mxu0
        %2616 = vmatprep.mubr.bf16.mxu0 0
        %2617 = vmatmul.mubr.bf16.gmra.mrb[0].mxu0 %v2344
        %v2618 = vpop.f32.mrb[0].mxu0
        %v2619 = vadd.f32 0.0, %v2618
        %v2620 = vpop.f32.mrb[0].mxu0
        %v2621 = vpop.f32.mrb[0].mxu0
        %v2622 = vadd.f32 0.0, %v2621
        %v2623 = vpop.f32.mrb[0].mxu0
        %2624 = vmatprep.mubr.bf16.mxu0 0
        %2625 = vmatmul.mubr.bf16.gmra.mrb[0].mxu0 %v2345
        %v2626 = vpop.f32.mrb[0].mxu0
        %v2627 = vpop.f32.mrb[0].mxu0
        %v2628 = vpop.f32.mrb[0].mxu0
        %v2629 = vadd.f32 0.0, %v2628
        %v2630 = vpop.f32.mrb[0].mxu0
        %2631 = vmatprep.mubr.bf16.mxu0 0
        %2632 = vmatmul.mubr.bf16.gmra.mrb[0].mxu0 %v2346
        %v2633 = vpop.f32.mrb[0].mxu0
        %v2634 = vadd.f32 0.0, %v2633
        %v2635 = vpop.f32.mrb[0].mxu0
        %v2636 = vpop.f32.mrb[0].mxu0
        %v2637 = vadd.f32 0.0, %v2636
        %v2638 = vpop.f32.mrb[0].mxu0
        %2639 = vmatprep.mubr.bf16.mxu0 0
        %2640 = vmatmul.mubr.bf16.gmra.mrb[0].mxu0 %v2347
        %v2641 = vpop.f32.mrb[0].mxu0
        %v2642 = vpop.f32.mrb[0].mxu0
        %v2643 = vpop.f32.mrb[0].mxu0
        %v2644 = vadd.f32 0.0, %v2643
        %v2645 = vpop.f32.mrb[0].mxu0
        %2646 = vmatprep.mubr.bf16.mxu0 0
        %2647 = vmatmul.mubr.bf16.gmra.mrb[0].mxu0 %v2348
        %v2648 = vpop.f32.mrb[0].mxu0
        %v2649 = vadd.f32 0.0, %v2648
        %v2650 = vpop.f32.mrb[0].mxu0
        %v2651 = vpop.f32.mrb[0].mxu0
        %v2652 = vadd.f32 0.0, %v2651
        %v2653 = vpop.f32.mrb[0].mxu0
        %2654 = vmatprep.mubr.bf16.mxu0 0
        %2655 = vmatmul.mubr.bf16.gmra.mrb[0].mxu0 %v2349
        %v2656 = vpop.f32.mrb[0].mxu0
        %v2657 = vpop.f32.mrb[0].mxu0
        %v2658 = vpop.f32.mrb[0].mxu0
        %v2659 = vadd.f32 0.0, %v2658
        %v2660 = vpop.f32.mrb[0].mxu0
        %2661 = vmatprep.mubr.bf16.mxu0 0
        %2662 = vmatmul.mubr.bf16.gmra.mrb[0].mxu0 %v2350
        %v2663 = vpop.f32.mrb[0].mxu0
        %v2664 = vadd.f32 0.0, %v2663
        %v2665 = vpop.f32.mrb[0].mxu0
        %v2666 = vpop.f32.mrb[0].mxu0
        %v2667 = vadd.f32 0.0, %v2666
        %v2668 = vpop.f32.mrb[0].mxu0
        %2669 = vmatprep.mubr.bf16.mxu0 0
        %2670 = vmatmul.mubr.bf16.gmra.mrb[0].mxu0 %v2351
        %v2671 = vpop.f32.mrb[0].mxu0
        %v2672 = vpop.f32.mrb[0].mxu0
        %v2673 = vpop.f32.mrb[0].mxu0
        %v2674 = vadd.f32 0.0, %v2673
        %v2675 = vpop.f32.mrb[0].mxu0
        %2676 = vmatprep.mubr.bf16.mxu0 0
        %2677 = vmatmul.mubr.bf16.gmra.mrb[0].mxu0 %v2352
        %v2678 = vpop.f32.mrb[0].mxu0
        %v2679 = vadd.f32 0.0, %v2678
        %v2680 = vpop.f32.mrb[0].mxu0
        %v2681 = vpop.f32.mrb[0].mxu0
        %v2682 = vadd.f32 0.0, %v2681
        %v2683 = vpop.f32.mrb[0].mxu0
        %2684 = vmatprep.mubr.bf16.mxu0 0
        %2685 = vmatmul.mubr.bf16.gmra.mrb[0].mxu0 %v2353
        %v2686 = vpop.f32.mrb[0].mxu0
        %v2687 = vpop.f32.mrb[0].mxu0
        %v2688 = vpop.f32.mrb[0].mxu0
        %v2689 = vadd.f32 0.0, %v2688
        %v2690 = vpop.f32.mrb[0].mxu0
        %2691 = vdwg.mxu0
        %v2692 = vrot.slane %v2454, 7
        %v2693 = vrot.slane %v2457, 7
        %v2694 = vrot.slane %v2464, 7
        %v2695 = vrot.slane %v2469, 7
        %v2696 = vrot.slane %v2472, 7
        %v2697 = vrot.slane %v2479, 7
        %v2698 = vrot.slane %v2484, 7
        %v2699 = vrot.slane %v2487, 7
        %v2700 = vrot.slane %v2494, 7
        %v2701 = vrot.slane %v2499, 7
        %v2702 = vrot.slane %v2502, 7
        %v2703 = vrot.slane %v2509, 7
        %v2704 = vrot.slane %v2514, 7
        %v2705 = vrot.slane %v2517, 7
        %v2706 = vrot.slane %v2524, 7
        %v2707 = vrot.slane %v2529, 7
        %v2708 = vrot.slane %v2532, 7
        %v2709 = vrot.slane %v2539, 7
        %v2710 = vrot.slane %v2544, 7
        %v2711 = vrot.slane %v2547, 7
        %v2712 = vrot.slane %v2554, 7
        %v2713 = vrot.slane %v2559, 7
        %v2714 = vrot.slane %v2562, 7
        %v2715 = vrot.slane %v2569, 7
        %v2716 = vrot.slane %v2574, 7
        %v2717 = vrot.slane %v2577, 7
        %v2718 = vrot.slane %v2584, 7
        %v2719 = vrot.slane %v2589, 7
        %v2720 = vrot.slane %v2592, 7
        %v2721 = vrot.slane %v2599, 7
        %v2722 = vrot.slane %v2604, 7
        %v2723 = vrot.slane %v2607, 7
        %v2724 = vrot.slane %v2614, 7
        %v2725 = vrot.slane %v2619, 7
        %v2726 = vrot.slane %v2622, 7
        %v2727 = vrot.slane %v2629, 7
        %v2728 = vrot.slane %v2634, 7
        %v2729 = vrot.slane %v2637, 7
        %v2730 = vrot.slane %v2644, 7
        %v2731 = vrot.slane %v2649, 7
        %v2732 = vrot.slane %v2652, 7
        %v2733 = vrot.slane %v2659, 7
        %v2734 = vrot.slane %v2664, 7
        %v2735 = vrot.slane %v2667, 7
        %v2736 = vrot.slane %v2674, 7
        %v2737 = vrot.slane %v2679, 7
        %v2738 = vrot.slane %v2682, 7
        %v2739 = vrot.slane %v2689, 7
        %v2740 = vsel %vm1484, %v2737, %v2738
        %v2741 = vsel %vm1484, %v2736, %v2737
        %v2742 = vsel %vm1484, %v2734, %v2735
        %v2743 = vsel %vm1484, %v2733, %v2734
        %v2744 = vsel %vm1484, %v2731, %v2732
        %v2745 = vsel %vm1484, %v2730, %v2731
        %v2746 = vsel %vm1484, %v2728, %v2729
        %v2747 = vsel %vm1484, %v2727, %v2728
        %v2748 = vsel %vm1484, %v2725, %v2726
        %v2749 = vsel %vm1484, %v2724, %v2725
        %v2750 = vsel %vm1484, %v2722, %v2723
        %v2751 = vsel %vm1484, %v2721, %v2722
        %v2752 = vsel %vm1484, %v2719, %v2720
        %v2753 = vsel %vm1484, %v2718, %v2719
        %v2754 = vsel %vm1484, %v2716, %v2717
        %v2755 = vsel %vm1484, %v2715, %v2716
        %v2756 = vsel %vm1484, %v2713, %v2714
        %v2757 = vsel %vm1484, %v2712, %v2713
        %v2758 = vsel %vm1484, %v2710, %v2711
        %v2759 = vsel %vm1484, %v2709, %v2710
        %v2760 = vsel %vm1484, %v2707, %v2708
        %v2761 = vsel %vm1484, %v2706, %v2707
        %v2762 = vsel %vm1484, %v2704, %v2705
        %v2763 = vsel %vm1484, %v2703, %v2704
        %v2764 = vsel %vm1484, %v2701, %v2702
        %v2765 = vsel %vm1484, %v2700, %v2701
        %v2766 = vsel %vm1484, %v2698, %v2699
        %v2767 = vsel %vm1484, %v2697, %v2698
        %v2768 = vsel %vm1484, %v2695, %v2696
        %v2769 = vsel %vm1484, %v2694, %v2695
        %v2770 = vsel %vm1484, %v2692, %v2693
        %v2771 = vsel %vm1484, %v2739, %v2692
        %v2772 = vadd.f32 %v2290, %v2771
        %v2773 = vadd.f32 %v2291, %v2770
        %v2774 = vadd.f32 %v2292, %v2769
        %v2775 = vadd.f32 %v2293, %v2768
        %v2776 = vadd.f32 %v2294, %v2767
        %v2777 = vadd.f32 %v2295, %v2766
        %v2778 = vadd.f32 %v2296, %v2765
        %v2779 = vadd.f32 %v2297, %v2764
        %v2780 = vadd.f32 %v2298, %v2763
        %v2781 = vadd.f32 %v2299, %v2762
        %v2782 = vadd.f32 %v2300, %v2761
        %v2783 = vadd.f32 %v2301, %v2760
        %v2784 = vadd.f32 %v2302, %v2759
        %v2785 = vadd.f32 %v2303, %v2758
        %v2786 = vadd.f32 %v2304, %v2757
        %v2787 = vadd.f32 %v2305, %v2756
        %v2788 = vadd.f32 %v2306, %v2755
        %v2789 = vadd.f32 %v2307, %v2754
        %v2790 = vadd.f32 %v2308, %v2753
        %v2791 = vadd.f32 %v2309, %v2752
        %v2792 = vadd.f32 %v2310, %v2751
        %v2793 = vadd.f32 %v2311, %v2750
        %v2794 = vadd.f32 %v2312, %v2749
        %v2795 = vadd.f32 %v2313, %v2748
        %v2796 = vadd.f32 %v2314, %v2747
        %v2797 = vadd.f32 %v2315, %v2746
        %v2798 = vadd.f32 %v2316, %v2745
        %v2799 = vadd.f32 %v2317, %v2744
        %v2800 = vadd.f32 %v2318, %v2743
        %v2801 = vadd.f32 %v2319, %v2742
        %v2802 = vadd.f32 %v2320, %v2741
        %v2803 = vadd.f32 %v2321, %v2740
        %s2804 = scalar_lea.vmem %s3, 256
        %v2805 = vld [vmem:[%s2804] sm:$0xf]
        %v2806 = vld [vmem:[%s2804 + $0x4] sm:$0xf]
        %v2807 = vld [vmem:[%s2804 + $0x8] sm:$0xf]
        %v2808 = vld [vmem:[%s2804 + $0xc] sm:$0xf]
        %v2809 = vld [vmem:[%s2804 + $0x10] sm:$0xf]
        %v2810 = vld [vmem:[%s2804 + $0x14] sm:$0xf]
        %v2811 = vld [vmem:[%s2804 + $0x18] sm:$0xf]
        %v2812 = vld [vmem:[%s2804 + $0x1c] sm:$0xf]
        %v2813 = vld [vmem:[%s2804 + $0x20] sm:$0xf]
        %v2814 = vld [vmem:[%s2804 + $0x24] sm:$0xf]
        %v2815 = vld [vmem:[%s2804 + $0x28] sm:$0xf]
        %v2816 = vld [vmem:[%s2804 + $0x2c] sm:$0xf]
        %v2817 = vld [vmem:[%s2804 + $0x30] sm:$0xf]
        %v2818 = vld [vmem:[%s2804 + $0x34] sm:$0xf]
        %v2819 = vld [vmem:[%s2804 + $0x38] sm:$0xf]
        %v2820 = vld [vmem:[%s2804 + $0x3c] sm:$0xf]
        %v2837 = vunpack.c.l.b16 %v2805
        %v2838 = vunpack.c.l.b16 %v2806
        %v2839 = vunpack.c.l.b16 %v2807
        %v2840 = vunpack.c.l.b16 %v2808
        %v2841 = vunpack.c.l.b16 %v2809
        %v2842 = vunpack.c.l.b16 %v2810
        %v2843 = vunpack.c.l.b16 %v2811
        %v2844 = vunpack.c.l.b16 %v2812
        %v2845 = vunpack.c.l.b16 %v2813
        %v2846 = vunpack.c.l.b16 %v2814
        %v2847 = vunpack.c.l.b16 %v2815
        %v2848 = vunpack.c.l.b16 %v2816
        %v2849 = vunpack.c.l.b16 %v2817
        %v2850 = vunpack.c.l.b16 %v2818
        %v2851 = vunpack.c.l.b16 %v2819
        %v2852 = vunpack.c.l.b16 %v2820
        %v2853 = vpack.c.b16 %v2838, %v2837
        %v2854 = vpack.c.b16 %v2840, %v2839
        %v2855 = vpack.c.b16 %v2842, %v2841
        %v2856 = vpack.c.b16 %v2844, %v2843
        %v2857 = vpack.c.b16 %v2846, %v2845
        %v2858 = vpack.c.b16 %v2848, %v2847
        %v2859 = vpack.c.b16 %v2850, %v2849
        %v2860 = vpack.c.b16 %v2852, %v2851
        %2869 = vmatprep.subr.bf16.mxu0 0
        %2870 = vmatpush1.bf16.msra.mxu0 %v2853
        %2871 = vmatprep.subr.bf16.mxu0 0
        %2872 = vmatpush1.bf16.msra.mxu0 %v2854
        %2873 = vmatprep.subr.bf16.mxu0 0
        %2874 = vmatpush1.bf16.msra.mxu0 %v2855
        %2875 = vmatprep.subr.bf16.mxu0 0
        %2876 = vmatpush1.bf16.msra.mxu0 %v2856
        %2877 = vmatprep.subr.bf16.mxu0 0
        %2878 = vmatpush1.bf16.msra.mxu0 %v2857
        %2879 = vmatprep.subr.bf16.mxu0 0
        %2880 = vmatpush1.bf16.msra.mxu0 %v2858
        %2881 = vmatprep.subr.bf16.mxu0 0
        %2882 = vmatpush1.bf16.msra.mxu0 %v2859
        %2883 = vmatprep.subr.bf16.mxu0 0
        %2884 = vmatpush1.bf16.msra.mxu0 %v2860
        %2885 = vmatprep.subr.bf16.mxu0 0
        %2886 = vmatpush1.bf16.msra.mxu0 0
        %2887 = vmatprep.subr.bf16.mxu0 0
        %2888 = vmatpush1.bf16.msra.mxu0 0
        %2889 = vmatprep.subr.bf16.mxu0 0
        %2890 = vmatpush1.bf16.msra.mxu0 0
        %2891 = vmatprep.subr.bf16.mxu0 0
        %2892 = vmatpush1.bf16.msra.mxu0 0
        %2893 = vmatprep.subr.bf16.mxu0 0
        %2894 = vmatpush1.bf16.msra.mxu0 0
        %2895 = vmatprep.subr.bf16.mxu0 0
        %2896 = vmatpush1.bf16.msra.mxu0 0
        %2897 = vmatprep.subr.bf16.mxu0 0
        %2898 = vmatpush1.bf16.msra.mxu0 0
        %2899 = vmatprep.subr.bf16.mxu0 0
        %2900 = vmatpush1.bf16.msra.mxu0 0
        %2901 = vmatprep.mubr.bf16.mxu0 0
        %2902 = vmatmul.mubr.bf16.gmra.mrb[0].mxu0 %v2322
        %v2903 = vpop.f32.mrb[0].mxu0
        %v2904 = vadd.f32 0.0, %v2903
        %v2905 = vpop.f32.mrb[0].mxu0
        %v2906 = vpop.f32.mrb[0].mxu0
        %v2907 = vadd.f32 0.0, %v2906
        %v2908 = vpop.f32.mrb[0].mxu0
        %2909 = vmatprep.mubr.bf16.mxu0 0
        %2910 = vmatmul.mubr.bf16.gmra.mrb[0].mxu0 %v2323
        %v2911 = vpop.f32.mrb[0].mxu0
        %v2912 = vpop.f32.mrb[0].mxu0
        %v2913 = vpop.f32.mrb[0].mxu0
        %v2914 = vpop.f32.mrb[0].mxu0
        %2915 = vmatprep.mubr.bf16.mxu0 0
        %2916 = vmatmul.mubr.bf16.gmra.mrb[0].mxu0 %v2324
        %v2917 = vpop.f32.mrb[0].mxu0
        %v2918 = vadd.f32 0.0, %v2917
        %v2919 = vpop.f32.mrb[0].mxu0
        %v2920 = vpop.f32.mrb[0].mxu0
        %v2921 = vadd.f32 0.0, %v2920
        %v2922 = vpop.f32.mrb[0].mxu0
        %2923 = vmatprep.mubr.bf16.mxu0 0
        %2924 = vmatmul.mubr.bf16.gmra.mrb[0].mxu0 %v2325
        %v2925 = vpop.f32.mrb[0].mxu0
        %v2926 = vpop.f32.mrb[0].mxu0
        %v2927 = vpop.f32.mrb[0].mxu0
        %v2928 = vpop.f32.mrb[0].mxu0
        %2929 = vmatprep.mubr.bf16.mxu0 0
        %2930 = vmatmul.mubr.bf16.gmra.mrb[0].mxu0 %v2326
        %v2931 = vpop.f32.mrb[0].mxu0
        %v2932 = vadd.f32 0.0, %v2931
        %v2933 = vpop.f32.mrb[0].mxu0
        %v2934 = vpop.f32.mrb[0].mxu0
        %v2935 = vadd.f32 0.0, %v2934
        %v2936 = vpop.f32.mrb[0].mxu0
        %2937 = vmatprep.mubr.bf16.mxu0 0
        %2938 = vmatmul.mubr.bf16.gmra.mrb[0].mxu0 %v2327
        %v2939 = vpop.f32.mrb[0].mxu0
        %v2940 = vpop.f32.mrb[0].mxu0
        %v2941 = vpop.f32.mrb[0].mxu0
        %v2942 = vpop.f32.mrb[0].mxu0
        %2943 = vmatprep.mubr.bf16.mxu0 0
        %2944 = vmatmul.mubr.bf16.gmra.mrb[0].mxu0 %v2328
        %v2945 = vpop.f32.mrb[0].mxu0
        %v2946 = vadd.f32 0.0, %v2945
        %v2947 = vpop.f32.mrb[0].mxu0
        %v2948 = vpop.f32.mrb[0].mxu0
        %v2949 = vadd.f32 0.0, %v2948
        %v2950 = vpop.f32.mrb[0].mxu0
        %2951 = vmatprep.mubr.bf16.mxu0 0
        %2952 = vmatmul.mubr.bf16.gmra.mrb[0].mxu0 %v2329
        %v2953 = vpop.f32.mrb[0].mxu0
        %v2954 = vpop.f32.mrb[0].mxu0
        %v2955 = vpop.f32.mrb[0].mxu0
        %v2956 = vpop.f32.mrb[0].mxu0
        %2957 = vmatprep.mubr.bf16.mxu0 0
        %2958 = vmatmul.mubr.bf16.gmra.mrb[0].mxu0 %v2330
        %v2959 = vpop.f32.mrb[0].mxu0
        %v2960 = vadd.f32 0.0, %v2959
        %v2961 = vpop.f32.mrb[0].mxu0
        %v2962 = vpop.f32.mrb[0].mxu0
        %v2963 = vadd.f32 0.0, %v2962
        %v2964 = vpop.f32.mrb[0].mxu0
        %2965 = vmatprep.mubr.bf16.mxu0 0
        %2966 = vmatmul.mubr.bf16.gmra.mrb[0].mxu0 %v2331
        %v2967 = vpop.f32.mrb[0].mxu0
        %v2968 = vpop.f32.mrb[0].mxu0
        %v2969 = vpop.f32.mrb[0].mxu0
        %v2970 = vpop.f32.mrb[0].mxu0
        %2971 = vmatprep.mubr.bf16.mxu0 0
        %2972 = vmatmul.mubr.bf16.gmra.mrb[0].mxu0 %v2332
        %v2973 = vpop.f32.mrb[0].mxu0
        %v2974 = vadd.f32 0.0, %v2973
        %v2975 = vpop.f32.mrb[0].mxu0
        %v2976 = vpop.f32.mrb[0].mxu0
        %v2977 = vadd.f32 0.0, %v2976
        %v2978 = vpop.f32.mrb[0].mxu0
        %2979 = vmatprep.mubr.bf16.mxu0 0
        %2980 = vmatmul.mubr.bf16.gmra.mrb[0].mxu0 %v2333
        %v2981 = vpop.f32.mrb[0].mxu0
        %v2982 = vpop.f32.mrb[0].mxu0
        %v2983 = vpop.f32.mrb[0].mxu0
        %v2984 = vpop.f32.mrb[0].mxu0
        %2985 = vmatprep.mubr.bf16.mxu0 0
        %2986 = vmatmul.mubr.bf16.gmra.mrb[0].mxu0 %v2334
        %v2987 = vpop.f32.mrb[0].mxu0
        %v2988 = vadd.f32 0.0, %v2987
        %v2989 = vpop.f32.mrb[0].mxu0
        %v2990 = vpop.f32.mrb[0].mxu0
        %v2991 = vadd.f32 0.0, %v2990
        %v2992 = vpop.f32.mrb[0].mxu0
        %2993 = vmatprep.mubr.bf16.mxu0 0
        %2994 = vmatmul.mubr.bf16.gmra.mrb[0].mxu0 %v2335
        %v2995 = vpop.f32.mrb[0].mxu0
        %v2996 = vpop.f32.mrb[0].mxu0
        %v2997 = vpop.f32.mrb[0].mxu0
        %v2998 = vpop.f32.mrb[0].mxu0
        %2999 = vmatprep.mubr.bf16.mxu0 0
        %3000 = vmatmul.mubr.bf16.gmra.mrb[0].mxu0 %v2336
        %v3001 = vpop.f32.mrb[0].mxu0
        %v3002 = vadd.f32 0.0, %v3001
        %v3003 = vpop.f32.mrb[0].mxu0
        %v3004 = vpop.f32.mrb[0].mxu0
        %v3005 = vadd.f32 0.0, %v3004
        %v3006 = vpop.f32.mrb[0].mxu0
        %3007 = vmatprep.mubr.bf16.mxu0 0
        %3008 = vmatmul.mubr.bf16.gmra.mrb[0].mxu0 %v2337
        %v3009 = vpop.f32.mrb[0].mxu0
        %v3010 = vpop.f32.mrb[0].mxu0
        %v3011 = vpop.f32.mrb[0].mxu0
        %v3012 = vpop.f32.mrb[0].mxu0
        %3013 = vmatprep.mubr.bf16.mxu0 0
        %3014 = vmatmul.mubr.bf16.gmra.mrb[0].mxu0 %v2338
        %v3015 = vpop.f32.mrb[0].mxu0
        %v3016 = vadd.f32 0.0, %v3015
        %v3017 = vpop.f32.mrb[0].mxu0
        %v3018 = vpop.f32.mrb[0].mxu0
        %v3019 = vadd.f32 0.0, %v3018
        %v3020 = vpop.f32.mrb[0].mxu0
        %3021 = vmatprep.mubr.bf16.mxu0 0
        %3022 = vmatmul.mubr.bf16.gmra.mrb[0].mxu0 %v2339
        %v3023 = vpop.f32.mrb[0].mxu0
        %v3024 = vpop.f32.mrb[0].mxu0
        %v3025 = vpop.f32.mrb[0].mxu0
        %v3026 = vpop.f32.mrb[0].mxu0
        %3027 = vmatprep.mubr.bf16.mxu0 0
        %3028 = vmatmul.mubr.bf16.gmra.mrb[0].mxu0 %v2340
        %v3029 = vpop.f32.mrb[0].mxu0
        %v3030 = vadd.f32 0.0, %v3029
        %v3031 = vpop.f32.mrb[0].mxu0
        %v3032 = vpop.f32.mrb[0].mxu0
        %v3033 = vadd.f32 0.0, %v3032
        %v3034 = vpop.f32.mrb[0].mxu0
        %3035 = vmatprep.mubr.bf16.mxu0 0
        %3036 = vmatmul.mubr.bf16.gmra.mrb[0].mxu0 %v2341
        %v3037 = vpop.f32.mrb[0].mxu0
        %v3038 = vpop.f32.mrb[0].mxu0
        %v3039 = vpop.f32.mrb[0].mxu0
        %v3040 = vpop.f32.mrb[0].mxu0
        %3041 = vmatprep.mubr.bf16.mxu0 0
        %3042 = vmatmul.mubr.bf16.gmra.mrb[0].mxu0 %v2342
        %v3043 = vpop.f32.mrb[0].mxu0
        %v3044 = vadd.f32 0.0, %v3043
        %v3045 = vpop.f32.mrb[0].mxu0
        %v3046 = vpop.f32.mrb[0].mxu0
        %v3047 = vadd.f32 0.0, %v3046
        %v3048 = vpop.f32.mrb[0].mxu0
        %3049 = vmatprep.mubr.bf16.mxu0 0
        %3050 = vmatmul.mubr.bf16.gmra.mrb[0].mxu0 %v2343
        %v3051 = vpop.f32.mrb[0].mxu0
        %v3052 = vpop.f32.mrb[0].mxu0
        %v3053 = vpop.f32.mrb[0].mxu0
        %v3054 = vpop.f32.mrb[0].mxu0
        %3055 = vmatprep.mubr.bf16.mxu0 0
        %3056 = vmatmul.mubr.bf16.gmra.mrb[0].mxu0 %v2344
        %v3057 = vpop.f32.mrb[0].mxu0
        %v3058 = vadd.f32 0.0, %v3057
        %v3059 = vpop.f32.mrb[0].mxu0
        %v3060 = vpop.f32.mrb[0].mxu0
        %v3061 = vadd.f32 0.0, %v3060
        %v3062 = vpop.f32.mrb[0].mxu0
        %3063 = vmatprep.mubr.bf16.mxu0 0
        %3064 = vmatmul.mubr.bf16.gmra.mrb[0].mxu0 %v2345
        %v3065 = vpop.f32.mrb[0].mxu0
        %v3066 = vpop.f32.mrb[0].mxu0
        %v3067 = vpop.f32.mrb[0].mxu0
        %v3068 = vpop.f32.mrb[0].mxu0
        %3069 = vmatprep.mubr.bf16.mxu0 0
        %3070 = vmatmul.mubr.bf16.gmra.mrb[0].mxu0 %v2346
        %v3071 = vpop.f32.mrb[0].mxu0
        %v3072 = vadd.f32 0.0, %v3071
        %v3073 = vpop.f32.mrb[0].mxu0
        %v3074 = vpop.f32.mrb[0].mxu0
        %v3075 = vadd.f32 0.0, %v3074
        %v3076 = vpop.f32.mrb[0].mxu0
        %3077 = vmatprep.mubr.bf16.mxu0 0
        %3078 = vmatmul.mubr.bf16.gmra.mrb[0].mxu0 %v2347
        %v3079 = vpop.f32.mrb[0].mxu0
        %v3080 = vpop.f32.mrb[0].mxu0
        %v3081 = vpop.f32.mrb[0].mxu0
        %v3082 = vpop.f32.mrb[0].mxu0
        %3083 = vmatprep.mubr.bf16.mxu0 0
        %3084 = vmatmul.mubr.bf16.gmra.mrb[0].mxu0 %v2348
        %v3085 = vpop.f32.mrb[0].mxu0
        %v3086 = vadd.f32 0.0, %v3085
        %v3087 = vpop.f32.mrb[0].mxu0
        %v3088 = vpop.f32.mrb[0].mxu0
        %v3089 = vadd.f32 0.0, %v3088
        %v3090 = vpop.f32.mrb[0].mxu0
        %3091 = vmatprep.mubr.bf16.mxu0 0
        %3092 = vmatmul.mubr.bf16.gmra.mrb[0].mxu0 %v2349
        %v3093 = vpop.f32.mrb[0].mxu0
        %v3094 = vpop.f32.mrb[0].mxu0
        %v3095 = vpop.f32.mrb[0].mxu0
        %v3096 = vpop.f32.mrb[0].mxu0
        %3097 = vmatprep.mubr.bf16.mxu0 0
        %3098 = vmatmul.mubr.bf16.gmra.mrb[0].mxu0 %v2350
        %v3099 = vpop.f32.mrb[0].mxu0
        %v3100 = vadd.f32 0.0, %v3099
        %v3101 = vpop.f32.mrb[0].mxu0
        %v3102 = vpop.f32.mrb[0].mxu0
        %v3103 = vadd.f32 0.0, %v3102
        %v3104 = vpop.f32.mrb[0].mxu0
        %3105 = vmatprep.mubr.bf16.mxu0 0
        %3106 = vmatmul.mubr.bf16.gmra.mrb[0].mxu0 %v2351
        %v3107 = vpop.f32.mrb[0].mxu0
        %v3108 = vpop.f32.mrb[0].mxu0
        %v3109 = vpop.f32.mrb[0].mxu0
        %v3110 = vpop.f32.mrb[0].mxu0
        %3111 = vmatprep.mubr.bf16.mxu0 0
        %3112 = vmatmul.mubr.bf16.gmra.mrb[0].mxu0 %v2352
        %v3113 = vpop.f32.mrb[0].mxu0
        %v3114 = vadd.f32 0.0, %v3113
        %v3115 = vpop.f32.mrb[0].mxu0
        %v3116 = vpop.f32.mrb[0].mxu0
        %v3117 = vadd.f32 0.0, %v3116
        %v3118 = vpop.f32.mrb[0].mxu0
        %3119 = vmatprep.mubr.bf16.mxu0 0
        %3120 = vmatmul.mubr.bf16.gmra.mrb[0].mxu0 %v2353
        %v3121 = vpop.f32.mrb[0].mxu0
        %v3122 = vpop.f32.mrb[0].mxu0
        %v3123 = vpop.f32.mrb[0].mxu0
        %v3124 = vpop.f32.mrb[0].mxu0
        %3125 = vdwg.mxu0
        %v3126 = vadd.f32 %v2772, %v2904
        %v3127 = vadd.f32 %v2773, %v2907
        %v3128 = vadd.f32 %v2774, %v2918
        %v3129 = vadd.f32 %v2775, %v2921
        %v3130 = vadd.f32 %v2776, %v2932
        %v3131 = vadd.f32 %v2777, %v2935
        %v3132 = vadd.f32 %v2778, %v2946
        %v3133 = vadd.f32 %v2779, %v2949
        %v3134 = vadd.f32 %v2780, %v2960
        %v3135 = vadd.f32 %v2781, %v2963
        %v3136 = vadd.f32 %v2782, %v2974
        %v3137 = vadd.f32 %v2783, %v2977
        %v3138 = vadd.f32 %v2784, %v2988
        %v3139 = vadd.f32 %v2785, %v2991
        %v3140 = vadd.f32 %v2786, %v3002
        %v3141 = vadd.f32 %v2787, %v3005
        %v3142 = vadd.f32 %v2788, %v3016
        %v3143 = vadd.f32 %v2789, %v3019
        %v3144 = vadd.f32 %v2790, %v3030
        %v3145 = vadd.f32 %v2791, %v3033
        %v3146 = vadd.f32 %v2792, %v3044
        %v3147 = vadd.f32 %v2793, %v3047
        %v3148 = vadd.f32 %v2794, %v3058
        %v3149 = vadd.f32 %v2795, %v3061
        %v3150 = vadd.f32 %v2796, %v3072
        %v3151 = vadd.f32 %v2797, %v3075
        %v3152 = vadd.f32 %v2798, %v3086
        %v3153 = vadd.f32 %v2799, %v3089
        %v3154 = vadd.f32 %v2800, %v3100
        %v3155 = vadd.f32 %v2801, %v3103
        %v3156 = vadd.f32 %v2802, %v3114
        %v3157 = vadd.f32 %v2803, %v3117
        %s3158 = scalar_lea.vmem %s3, 320
        %v3159 = vld [vmem:[%s3158] sm:$0xf]
        %v3160 = vld [vmem:[%s3158 + $0x4] sm:$0xf]
        %v3161 = vld [vmem:[%s3158 + $0x8] sm:$0xf]
        %v3162 = vld [vmem:[%s3158 + $0xc] sm:$0xf]
        %v3163 = vld [vmem:[%s3158 + $0x10] sm:$0xf]
        %v3164 = vld [vmem:[%s3158 + $0x14] sm:$0xf]
        %v3165 = vld [vmem:[%s3158 + $0x18] sm:$0xf]
        %v3166 = vld [vmem:[%s3158 + $0x1c] sm:$0xf]
        %v3167 = vld [vmem:[%s3158 + $0x20] sm:$0xf]
        %v3168 = vld [vmem:[%s3158 + $0x24] sm:$0xf]
        %v3169 = vld [vmem:[%s3158 + $0x28] sm:$0xf]
        %v3170 = vld [vmem:[%s3158 + $0x2c] sm:$0xf]
        %v3171 = vld [vmem:[%s3158 + $0x30] sm:$0xf]
        %v3172 = vld [vmem:[%s3158 + $0x34] sm:$0xf]
        %v3173 = vld [vmem:[%s3158 + $0x38] sm:$0xf]
        %v3174 = vld [vmem:[%s3158 + $0x3c] sm:$0xf]
        %v3191 = vunpack.c.l.b16 %v3159
        %v3192 = vunpack.c.l.b16 %v3160
        %v3193 = vunpack.c.l.b16 %v3161
        %v3194 = vunpack.c.l.b16 %v3162
        %v3195 = vunpack.c.l.b16 %v3163
        %v3196 = vunpack.c.l.b16 %v3164
        %v3197 = vunpack.c.l.b16 %v3165
        %v3198 = vunpack.c.l.b16 %v3166
        %v3199 = vunpack.c.l.b16 %v3167
        %v3200 = vunpack.c.l.b16 %v3168
        %v3201 = vunpack.c.l.b16 %v3169
        %v3202 = vunpack.c.l.b16 %v3170
        %v3203 = vunpack.c.l.b16 %v3171
        %v3204 = vunpack.c.l.b16 %v3172
        %v3205 = vunpack.c.l.b16 %v3173
        %v3206 = vunpack.c.l.b16 %v3174
        %v3207 = vpack.c.b16 %v3192, %v3191
        %v3208 = vpack.c.b16 %v3194, %v3193
        %v3209 = vpack.c.b16 %v3196, %v3195
        %v3210 = vpack.c.b16 %v3198, %v3197
        %v3211 = vpack.c.b16 %v3200, %v3199
        %v3212 = vpack.c.b16 %v3202, %v3201
        %v3213 = vpack.c.b16 %v3204, %v3203
        %v3214 = vpack.c.b16 %v3206, %v3205
        %3223 = vmatprep.subr.bf16.mxu0 0
        %3224 = vmatpush1.bf16.msra.mxu0 %v3207
        %3225 = vmatprep.subr.bf16.mxu0 0
        %3226 = vmatpush1.bf16.msra.mxu0 %v3208
        %3227 = vmatprep.subr.bf16.mxu0 0
        %3228 = vmatpush1.bf16.msra.mxu0 %v3209
        %3229 = vmatprep.subr.bf16.mxu0 0
        %3230 = vmatpush1.bf16.msra.mxu0 %v3210
        %3231 = vmatprep.subr.bf16.mxu0 0
        %3232 = vmatpush1.bf16.msra.mxu0 %v3211
        %3233 = vmatprep.subr.bf16.mxu0 0
        %3234 = vmatpush1.bf16.msra.mxu0 %v3212
        %3235 = vmatprep.subr.bf16.mxu0 0
        %3236 = vmatpush1.bf16.msra.mxu0 %v3213
        %3237 = vmatprep.subr.bf16.mxu0 0
        %3238 = vmatpush1.bf16.msra.mxu0 %v3214
        %3239 = vmatprep.subr.bf16.mxu0 0
        %3240 = vmatpush1.bf16.msra.mxu0 0
        %3241 = vmatprep.subr.bf16.mxu0 0
        %3242 = vmatpush1.bf16.msra.mxu0 0
        %3243 = vmatprep.subr.bf16.mxu0 0
        %3244 = vmatpush1.bf16.msra.mxu0 0
        %3245 = vmatprep.subr.bf16.mxu0 0
        %3246 = vmatpush1.bf16.msra.mxu0 0
        %3247 = vmatprep.subr.bf16.mxu0 0
        %3248 = vmatpush1.bf16.msra.mxu0 0
        %3249 = vmatprep.subr.bf16.mxu0 0
        %3250 = vmatpush1.bf16.msra.mxu0 0
        %3251 = vmatprep.subr.bf16.mxu0 0
        %3252 = vmatpush1.bf16.msra.mxu0 0
        %3253 = vmatprep.subr.bf16.mxu0 0
        %3254 = vmatpush1.bf16.msra.mxu0 0
        %3255 = vmatprep.mubr.bf16.mxu0 0
        %3256 = vmatmul.mubr.bf16.gmra.mrb[0].mxu0 %v2322
        %v3257 = vpop.f32.mrb[0].mxu0
        %v3258 = vadd.f32 0.0, %v3257
        %v3259 = vpop.f32.mrb[0].mxu0
        %v3260 = vpop.f32.mrb[0].mxu0
        %v3261 = vadd.f32 0.0, %v3260
        %v3262 = vpop.f32.mrb[0].mxu0
        %3263 = vmatprep.mubr.bf16.mxu0 0
        %3264 = vmatmul.mubr.bf16.gmra.mrb[0].mxu0 %v2323
        %v3265 = vpop.f32.mrb[0].mxu0
        %v3266 = vadd.f32 0.0, %v3265
        %v3267 = vpop.f32.mrb[0].mxu0
        %v3268 = vpop.f32.mrb[0].mxu0
        %v3269 = vpop.f32.mrb[0].mxu0
        %3270 = vmatprep.mubr.bf16.mxu0 0
        %3271 = vmatmul.mubr.bf16.gmra.mrb[0].mxu0 %v2324
        %v3272 = vpop.f32.mrb[0].mxu0
        %v3273 = vadd.f32 0.0, %v3272
        %v3274 = vpop.f32.mrb[0].mxu0
        %v3275 = vpop.f32.mrb[0].mxu0
        %v3276 = vadd.f32 0.0, %v3275
        %v3277 = vpop.f32.mrb[0].mxu0
        %3278 = vmatprep.mubr.bf16.mxu0 0
        %3279 = vmatmul.mubr.bf16.gmra.mrb[0].mxu0 %v2325
        %v3280 = vpop.f32.mrb[0].mxu0
        %v3281 = vadd.f32 0.0, %v3280
        %v3282 = vpop.f32.mrb[0].mxu0
        %v3283 = vpop.f32.mrb[0].mxu0
        %v3284 = vpop.f32.mrb[0].mxu0
        %3285 = vmatprep.mubr.bf16.mxu0 0
        %3286 = vmatmul.mubr.bf16.gmra.mrb[0].mxu0 %v2326
        %v3287 = vpop.f32.mrb[0].mxu0
        %v3288 = vadd.f32 0.0, %v3287
        %v3289 = vpop.f32.mrb[0].mxu0
        %v3290 = vpop.f32.mrb[0].mxu0
        %v3291 = vadd.f32 0.0, %v3290
        %v3292 = vpop.f32.mrb[0].mxu0
        %3293 = vmatprep.mubr.bf16.mxu0 0
        %3294 = vmatmul.mubr.bf16.gmra.mrb[0].mxu0 %v2327
        %v3295 = vpop.f32.mrb[0].mxu0
        %v3296 = vadd.f32 0.0, %v3295
        %v3297 = vpop.f32.mrb[0].mxu0
        %v3298 = vpop.f32.mrb[0].mxu0
        %v3299 = vpop.f32.mrb[0].mxu0
        %3300 = vmatprep.mubr.bf16.mxu0 0
        %3301 = vmatmul.mubr.bf16.gmra.mrb[0].mxu0 %v2328
        %v3302 = vpop.f32.mrb[0].mxu0
        %v3303 = vadd.f32 0.0, %v3302
        %v3304 = vpop.f32.mrb[0].mxu0
        %v3305 = vpop.f32.mrb[0].mxu0
        %v3306 = vadd.f32 0.0, %v3305
        %v3307 = vpop.f32.mrb[0].mxu0
        %3308 = vmatprep.mubr.bf16.mxu0 0
        %3309 = vmatmul.mubr.bf16.gmra.mrb[0].mxu0 %v2329
        %v3310 = vpop.f32.mrb[0].mxu0
        %v3311 = vadd.f32 0.0, %v3310
        %v3312 = vpop.f32.mrb[0].mxu0
        %v3313 = vpop.f32.mrb[0].mxu0
        %v3314 = vpop.f32.mrb[0].mxu0
        %3315 = vmatprep.mubr.bf16.mxu0 0
        %3316 = vmatmul.mubr.bf16.gmra.mrb[0].mxu0 %v2330
        %v3317 = vpop.f32.mrb[0].mxu0
        %v3318 = vadd.f32 0.0, %v3317
        %v3319 = vpop.f32.mrb[0].mxu0
        %v3320 = vpop.f32.mrb[0].mxu0
        %v3321 = vadd.f32 0.0, %v3320
        %v3322 = vpop.f32.mrb[0].mxu0
        %3323 = vmatprep.mubr.bf16.mxu0 0
        %3324 = vmatmul.mubr.bf16.gmra.mrb[0].mxu0 %v2331
        %v3325 = vpop.f32.mrb[0].mxu0
        %v3326 = vadd.f32 0.0, %v3325
        %v3327 = vpop.f32.mrb[0].mxu0
        %v3328 = vpop.f32.mrb[0].mxu0
        %v3329 = vpop.f32.mrb[0].mxu0
        %3330 = vmatprep.mubr.bf16.mxu0 0
        %3331 = vmatmul.mubr.bf16.gmra.mrb[0].mxu0 %v2332
        %v3332 = vpop.f32.mrb[0].mxu0
        %v3333 = vadd.f32 0.0, %v3332
        %v3334 = vpop.f32.mrb[0].mxu0
        %v3335 = vpop.f32.mrb[0].mxu0
        %v3336 = vadd.f32 0.0, %v3335
        %v3337 = vpop.f32.mrb[0].mxu0
        %3338 = vmatprep.mubr.bf16.mxu0 0
        %3339 = vmatmul.mubr.bf16.gmra.mrb[0].mxu0 %v2333
        %v3340 = vpop.f32.mrb[0].mxu0
        %v3341 = vadd.f32 0.0, %v3340
        %v3342 = vpop.f32.mrb[0].mxu0
        %v3343 = vpop.f32.mrb[0].mxu0
        %v3344 = vpop.f32.mrb[0].mxu0
        %3345 = vmatprep.mubr.bf16.mxu0 0
        %3346 = vmatmul.mubr.bf16.gmra.mrb[0].mxu0 %v2334
        %v3347 = vpop.f32.mrb[0].mxu0
        %v3348 = vadd.f32 0.0, %v3347
        %v3349 = vpop.f32.mrb[0].mxu0
        %v3350 = vpop.f32.mrb[0].mxu0
        %v3351 = vadd.f32 0.0, %v3350
        %v3352 = vpop.f32.mrb[0].mxu0
        %3353 = vmatprep.mubr.bf16.mxu0 0
        %3354 = vmatmul.mubr.bf16.gmra.mrb[0].mxu0 %v2335
        %v3355 = vpop.f32.mrb[0].mxu0
        %v3356 = vadd.f32 0.0, %v3355
        %v3357 = vpop.f32.mrb[0].mxu0
        %v3358 = vpop.f32.mrb[0].mxu0
        %v3359 = vpop.f32.mrb[0].mxu0
        %3360 = vmatprep.mubr.bf16.mxu0 0
        %3361 = vmatmul.mubr.bf16.gmra.mrb[0].mxu0 %v2336
        %v3362 = vpop.f32.mrb[0].mxu0
        %v3363 = vadd.f32 0.0, %v3362
        %v3364 = vpop.f32.mrb[0].mxu0
        %v3365 = vpop.f32.mrb[0].mxu0
        %v3366 = vadd.f32 0.0, %v3365
        %v3367 = vpop.f32.mrb[0].mxu0
        %3368 = vmatprep.mubr.bf16.mxu0 0
        %3369 = vmatmul.mubr.bf16.gmra.mrb[0].mxu0 %v2337
        %v3370 = vpop.f32.mrb[0].mxu0
        %v3371 = vadd.f32 0.0, %v3370
        %v3372 = vpop.f32.mrb[0].mxu0
        %v3373 = vpop.f32.mrb[0].mxu0
        %v3374 = vpop.f32.mrb[0].mxu0
        %3375 = vmatprep.mubr.bf16.mxu0 0
        %3376 = vmatmul.mubr.bf16.gmra.mrb[0].mxu0 %v2338
        %v3377 = vpop.f32.mrb[0].mxu0
        %v3378 = vadd.f32 0.0, %v3377
        %v3379 = vpop.f32.mrb[0].mxu0
        %v3380 = vpop.f32.mrb[0].mxu0
        %v3381 = vadd.f32 0.0, %v3380
        %v3382 = vpop.f32.mrb[0].mxu0
        %3383 = vmatprep.mubr.bf16.mxu0 0
        %3384 = vmatmul.mubr.bf16.gmra.mrb[0].mxu0 %v2339
        %v3385 = vpop.f32.mrb[0].mxu0
        %v3386 = vadd.f32 0.0, %v3385
        %v3387 = vpop.f32.mrb[0].mxu0
        %v3388 = vpop.f32.mrb[0].mxu0
        %v3389 = vpop.f32.mrb[0].mxu0
        %3390 = vmatprep.mubr.bf16.mxu0 0
        %3391 = vmatmul.mubr.bf16.gmra.mrb[0].mxu0 %v2340
        %v3392 = vpop.f32.mrb[0].mxu0
        %v3393 = vadd.f32 0.0, %v3392
        %v3394 = vpop.f32.mrb[0].mxu0
        %v3395 = vpop.f32.mrb[0].mxu0
        %v3396 = vadd.f32 0.0, %v3395
        %v3397 = vpop.f32.mrb[0].mxu0
        %3398 = vmatprep.mubr.bf16.mxu0 0
        %3399 = vmatmul.mubr.bf16.gmra.mrb[0].mxu0 %v2341
        %v3400 = vpop.f32.mrb[0].mxu0
        %v3401 = vadd.f32 0.0, %v3400
        %v3402 = vpop.f32.mrb[0].mxu0
        %v3403 = vpop.f32.mrb[0].mxu0
        %v3404 = vpop.f32.mrb[0].mxu0
        %3405 = vmatprep.mubr.bf16.mxu0 0
        %3406 = vmatmul.mubr.bf16.gmra.mrb[0].mxu0 %v2342
        %v3407 = vpop.f32.mrb[0].mxu0
        %v3408 = vadd.f32 0.0, %v3407
        %v3409 = vpop.f32.mrb[0].mxu0
        %v3410 = vpop.f32.mrb[0].mxu0
        %v3411 = vadd.f32 0.0, %v3410
        %v3412 = vpop.f32.mrb[0].mxu0
        %3413 = vmatprep.mubr.bf16.mxu0 0
        %3414 = vmatmul.mubr.bf16.gmra.mrb[0].mxu0 %v2343
        %v3415 = vpop.f32.mrb[0].mxu0
        %v3416 = vadd.f32 0.0, %v3415
        %v3417 = vpop.f32.mrb[0].mxu0
        %v3418 = vpop.f32.mrb[0].mxu0
        %v3419 = vpop.f32.mrb[0].mxu0
        %3420 = vmatprep.mubr.bf16.mxu0 0
        %3421 = vmatmul.mubr.bf16.gmra.mrb[0].mxu0 %v2344
        %v3422 = vpop.f32.mrb[0].mxu0
        %v3423 = vadd.f32 0.0, %v3422
        %v3424 = vpop.f32.mrb[0].mxu0
        %v3425 = vpop.f32.mrb[0].mxu0
        %v3426 = vadd.f32 0.0, %v3425
        %v3427 = vpop.f32.mrb[0].mxu0
        %3428 = vmatprep.mubr.bf16.mxu0 0
        %3429 = vmatmul.mubr.bf16.gmra.mrb[0].mxu0 %v2345
        %v3430 = vpop.f32.mrb[0].mxu0
        %v3431 = vadd.f32 0.0, %v3430
        %v3432 = vpop.f32.mrb[0].mxu0
        %v3433 = vpop.f32.mrb[0].mxu0
        %v3434 = vpop.f32.mrb[0].mxu0
        %3435 = vmatprep.mubr.bf16.mxu0 0
        %3436 = vmatmul.mubr.bf16.gmra.mrb[0].mxu0 %v2346
        %v3437 = vpop.f32.mrb[0].mxu0
        %v3438 = vadd.f32 0.0, %v3437
        %v3439 = vpop.f32.mrb[0].mxu0
        %v3440 = vpop.f32.mrb[0].mxu0
        %v3441 = vadd.f32 0.0, %v3440
        %v3442 = vpop.f32.mrb[0].mxu0
        %3443 = vmatprep.mubr.bf16.mxu0 0
        %3444 = vmatmul.mubr.bf16.gmra.mrb[0].mxu0 %v2347
        %v3445 = vpop.f32.mrb[0].mxu0
        %v3446 = vadd.f32 0.0, %v3445
        %v3447 = vpop.f32.mrb[0].mxu0
        %v3448 = vpop.f32.mrb[0].mxu0
        %v3449 = vpop.f32.mrb[0].mxu0
        %3450 = vmatprep.mubr.bf16.mxu0 0
        %3451 = vmatmul.mubr.bf16.gmra.mrb[0].mxu0 %v2348
        %v3452 = vpop.f32.mrb[0].mxu0
        %v3453 = vadd.f32 0.0, %v3452
        %v3454 = vpop.f32.mrb[0].mxu0
        %v3455 = vpop.f32.mrb[0].mxu0
        %v3456 = vadd.f32 0.0, %v3455
        %v3457 = vpop.f32.mrb[0].mxu0
        %3458 = vmatprep.mubr.bf16.mxu0 0
        %3459 = vmatmul.mubr.bf16.gmra.mrb[0].mxu0 %v2349
        %v3460 = vpop.f32.mrb[0].mxu0
        %v3461 = vadd.f32 0.0, %v3460
        %v3462 = vpop.f32.mrb[0].mxu0
        %v3463 = vpop.f32.mrb[0].mxu0
        %v3464 = vpop.f32.mrb[0].mxu0
        %3465 = vmatprep.mubr.bf16.mxu0 0
        %3466 = vmatmul.mubr.bf16.gmra.mrb[0].mxu0 %v2350
        %v3467 = vpop.f32.mrb[0].mxu0
        %v3468 = vadd.f32 0.0, %v3467
        %v3469 = vpop.f32.mrb[0].mxu0
        %v3470 = vpop.f32.mrb[0].mxu0
        %v3471 = vadd.f32 0.0, %v3470
        %v3472 = vpop.f32.mrb[0].mxu0
        %3473 = vmatprep.mubr.bf16.mxu0 0
        %3474 = vmatmul.mubr.bf16.gmra.mrb[0].mxu0 %v2351
        %v3475 = vpop.f32.mrb[0].mxu0
        %v3476 = vadd.f32 0.0, %v3475
        %v3477 = vpop.f32.mrb[0].mxu0
        %v3478 = vpop.f32.mrb[0].mxu0
        %v3479 = vpop.f32.mrb[0].mxu0
        %3480 = vmatprep.mubr.bf16.mxu0 0
        %3481 = vmatmul.mubr.bf16.gmra.mrb[0].mxu0 %v2352
        %v3482 = vpop.f32.mrb[0].mxu0
        %v3483 = vadd.f32 0.0, %v3482
        %v3484 = vpop.f32.mrb[0].mxu0
        %v3485 = vpop.f32.mrb[0].mxu0
        %v3486 = vadd.f32 0.0, %v3485
        %v3487 = vpop.f32.mrb[0].mxu0
        %3488 = vmatprep.mubr.bf16.mxu0 0
        %3489 = vmatmul.mubr.bf16.gmra.mrb[0].mxu0 %v2353
        %v3490 = vpop.f32.mrb[0].mxu0
        %v3491 = vadd.f32 0.0, %v3490
        %v3492 = vpop.f32.mrb[0].mxu0
        %v3493 = vpop.f32.mrb[0].mxu0
        %v3494 = vpop.f32.mrb[0].mxu0
        %3495 = vdwg.mxu0
        %v3496 = vrot.slane %v3258, 1
        %v3497 = vrot.slane %v3261, 1
        %v3498 = vrot.slane %v3266, 1
        %v3499 = vrot.slane %v3273, 1
        %v3500 = vrot.slane %v3276, 1
        %v3501 = vrot.slane %v3281, 1
        %v3502 = vrot.slane %v3288, 1
        %v3503 = vrot.slane %v3291, 1
        %v3504 = vrot.slane %v3296, 1
        %v3505 = vrot.slane %v3303, 1
        %v3506 = vrot.slane %v3306, 1
        %v3507 = vrot.slane %v3311, 1
        %v3508 = vrot.slane %v3318, 1
        %v3509 = vrot.slane %v3321, 1
        %v3510 = vrot.slane %v3326, 1
        %v3511 = vrot.slane %v3333, 1
        %v3512 = vrot.slane %v3336, 1
        %v3513 = vrot.slane %v3341, 1
        %v3514 = vrot.slane %v3348, 1
        %v3515 = vrot.slane %v3351, 1
        %v3516 = vrot.slane %v3356, 1
        %v3517 = vrot.slane %v3363, 1
        %v3518 = vrot.slane %v3366, 1
        %v3519 = vrot.slane %v3371, 1
        %v3520 = vrot.slane %v3378, 1
        %v3521 = vrot.slane %v3381, 1
        %v3522 = vrot.slane %v3386, 1
        %v3523 = vrot.slane %v3393, 1
        %v3524 = vrot.slane %v3396, 1
        %v3525 = vrot.slane %v3401, 1
        %v3526 = vrot.slane %v3408, 1
        %v3527 = vrot.slane %v3411, 1
        %v3528 = vrot.slane %v3416, 1
        %v3529 = vrot.slane %v3423, 1
        %v3530 = vrot.slane %v3426, 1
        %v3531 = vrot.slane %v3431, 1
        %v3532 = vrot.slane %v3438, 1
        %v3533 = vrot.slane %v3441, 1
        %v3534 = vrot.slane %v3446, 1
        %v3535 = vrot.slane %v3453, 1
        %v3536 = vrot.slane %v3456, 1
        %v3537 = vrot.slane %v3461, 1
        %v3538 = vrot.slane %v3468, 1
        %v3539 = vrot.slane %v3471, 1
        %v3540 = vrot.slane %v3476, 1
        %v3541 = vrot.slane %v3483, 1
        %v3542 = vrot.slane %v3486, 1
        %v3543 = vrot.slane %v3491, 1
        %v3544 = vsel %vm2257, %v3542, %v3543
        %v3545 = vsel %vm2257, %v3541, %v3542
        %v3546 = vsel %vm2257, %v3539, %v3540
        %v3547 = vsel %vm2257, %v3538, %v3539
        %v3548 = vsel %vm2257, %v3536, %v3537
        %v3549 = vsel %vm2257, %v3535, %v3536
        %v3550 = vsel %vm2257, %v3533, %v3534
        %v3551 = vsel %vm2257, %v3532, %v3533
        %v3552 = vsel %vm2257, %v3530, %v3531
        %v3553 = vsel %vm2257, %v3529, %v3530
        %v3554 = vsel %vm2257, %v3527, %v3528
        %v3555 = vsel %vm2257, %v3526, %v3527
        %v3556 = vsel %vm2257, %v3524, %v3525
        %v3557 = vsel %vm2257, %v3523, %v3524
        %v3558 = vsel %vm2257, %v3521, %v3522
        %v3559 = vsel %vm2257, %v3520, %v3521
        %v3560 = vsel %vm2257, %v3518, %v3519
        %v3561 = vsel %vm2257, %v3517, %v3518
        %v3562 = vsel %vm2257, %v3515, %v3516
        %v3563 = vsel %vm2257, %v3514, %v3515
        %v3564 = vsel %vm2257, %v3512, %v3513
        %v3565 = vsel %vm2257, %v3511, %v3512
        %v3566 = vsel %vm2257, %v3509, %v3510
        %v3567 = vsel %vm2257, %v3508, %v3509
        %v3568 = vsel %vm2257, %v3506, %v3507
        %v3569 = vsel %vm2257, %v3505, %v3506
        %v3570 = vsel %vm2257, %v3503, %v3504
        %v3571 = vsel %vm2257, %v3502, %v3503
        %v3572 = vsel %vm2257, %v3500, %v3501
        %v3573 = vsel %vm2257, %v3499, %v3500
        %v3574 = vsel %vm2257, %v3497, %v3498
        %v3575 = vsel %vm2257, %v3496, %v3497
        %v3576 = vadd.f32 %v3126, %v3575
        %v3577 = vadd.f32 %v3127, %v3574
        %v3578 = vadd.f32 %v3128, %v3573
        %v3579 = vadd.f32 %v3129, %v3572
        %v3580 = vadd.f32 %v3130, %v3571
        %v3581 = vadd.f32 %v3131, %v3570
        %v3582 = vadd.f32 %v3132, %v3569
        %v3583 = vadd.f32 %v3133, %v3568
        %v3584 = vadd.f32 %v3134, %v3567
        %v3585 = vadd.f32 %v3135, %v3566
        %v3586 = vadd.f32 %v3136, %v3565
        %v3587 = vadd.f32 %v3137, %v3564
        %v3588 = vadd.f32 %v3138, %v3563
        %v3589 = vadd.f32 %v3139, %v3562
        %v3590 = vadd.f32 %v3140, %v3561
        %v3591 = vadd.f32 %v3141, %v3560
        %v3592 = vadd.f32 %v3142, %v3559
        %v3593 = vadd.f32 %v3143, %v3558
        %v3594 = vadd.f32 %v3144, %v3557
        %v3595 = vadd.f32 %v3145, %v3556
        %v3596 = vadd.f32 %v3146, %v3555
        %v3597 = vadd.f32 %v3147, %v3554
        %v3598 = vadd.f32 %v3148, %v3553
        %v3599 = vadd.f32 %v3149, %v3552
        %v3600 = vadd.f32 %v3150, %v3551
        %v3601 = vadd.f32 %v3151, %v3550
        %v3602 = vadd.f32 %v3152, %v3549
        %v3603 = vadd.f32 %v3153, %v3548
        %v3604 = vadd.f32 %v3154, %v3547
        %v3605 = vadd.f32 %v3155, %v3546
        %v3606 = vadd.f32 %v3156, %v3545
        %v3607 = vadd.f32 %v3157, %v3544
        %s3608 = scalar_lea.vmem [#allocation2], 32
        %v3609 = vld [vmem:[%s3608] sm:$0xff]
        %v3610 = vld [vmem:[%s3608 + $0x8] sm:$0xff]
        %v3611 = vld [vmem:[%s3608 + $0x10] sm:$0xff]
        %v3612 = vld [vmem:[%s3608 + $0x18] sm:$0xff]
        %v3613 = vld [vmem:[%s3608 + $0x20] sm:$0xff]
        %v3614 = vld [vmem:[%s3608 + $0x28] sm:$0xff]
        %v3615 = vld [vmem:[%s3608 + $0x30] sm:$0xff]
        %v3616 = vld [vmem:[%s3608 + $0x38] sm:$0xff]
        %v3617 = vld [vmem:[%s3608 + $0x40] sm:$0xff]
        %v3618 = vld [vmem:[%s3608 + $0x48] sm:$0xff]
        %v3619 = vld [vmem:[%s3608 + $0x50] sm:$0xff]
        %v3620 = vld [vmem:[%s3608 + $0x58] sm:$0xff]
        %v3621 = vld [vmem:[%s3608 + $0x60] sm:$0xff]
        %v3622 = vld [vmem:[%s3608 + $0x68] sm:$0xff]
        %v3623 = vld [vmem:[%s3608 + $0x70] sm:$0xff]
        %v3624 = vld [vmem:[%s3608 + $0x78] sm:$0xff]
        %v3625 = vld [vmem:[%s3608 + $0x80] sm:$0xff]
        %v3626 = vld [vmem:[%s3608 + $0x88] sm:$0xff]
        %v3627 = vld [vmem:[%s3608 + $0x90] sm:$0xff]
        %v3628 = vld [vmem:[%s3608 + $0x98] sm:$0xff]
        %v3629 = vld [vmem:[%s3608 + $0xa0] sm:$0xff]
        %v3630 = vld [vmem:[%s3608 + $0xa8] sm:$0xff]
        %v3631 = vld [vmem:[%s3608 + $0xb0] sm:$0xff]
        %v3632 = vld [vmem:[%s3608 + $0xb8] sm:$0xff]
        %v3633 = vld [vmem:[%s3608 + $0xc0] sm:$0xff]
        %v3634 = vld [vmem:[%s3608 + $0xc8] sm:$0xff]
        %v3635 = vld [vmem:[%s3608 + $0xd0] sm:$0xff]
        %v3636 = vld [vmem:[%s3608 + $0xd8] sm:$0xff]
        %v3637 = vld [vmem:[%s3608 + $0xe0] sm:$0xff]
        %v3638 = vld [vmem:[%s3608 + $0xe8] sm:$0xff]
        %v3639 = vld [vmem:[%s3608 + $0xf0] sm:$0xff]
        %v3640 = vld [vmem:[%s3608 + $0xf8] sm:$0xff]
        %s3641 = scalar_lea.vmem %s3, 384
        %v3642 = vld [vmem:[%s3641] sm:$0xf]
        %v3643 = vld [vmem:[%s3641 + $0x4] sm:$0xf]
        %v3644 = vld [vmem:[%s3641 + $0x8] sm:$0xf]
        %v3645 = vld [vmem:[%s3641 + $0xc] sm:$0xf]
        %v3646 = vld [vmem:[%s3641 + $0x10] sm:$0xf]
        %v3647 = vld [vmem:[%s3641 + $0x14] sm:$0xf]
        %v3648 = vld [vmem:[%s3641 + $0x18] sm:$0xf]
        %v3649 = vld [vmem:[%s3641 + $0x1c] sm:$0xf]
        %v3650 = vld [vmem:[%s3641 + $0x20] sm:$0xf]
        %v3651 = vld [vmem:[%s3641 + $0x24] sm:$0xf]
        %v3652 = vld [vmem:[%s3641 + $0x28] sm:$0xf]
        %v3653 = vld [vmem:[%s3641 + $0x2c] sm:$0xf]
        %v3654 = vld [vmem:[%s3641 + $0x30] sm:$0xf]
        %v3655 = vld [vmem:[%s3641 + $0x34] sm:$0xf]
        %v3656 = vld [vmem:[%s3641 + $0x38] sm:$0xf]
        %v3657 = vld [vmem:[%s3641 + $0x3c] sm:$0xf]
        %v3674 = vunpack.c.l.b16 %v3642
        %v3675 = vunpack.c.l.b16 %v3643
        %v3676 = vunpack.c.l.b16 %v3644
        %v3677 = vunpack.c.l.b16 %v3645
        %v3678 = vunpack.c.l.b16 %v3646
        %v3679 = vunpack.c.l.b16 %v3647
        %v3680 = vunpack.c.l.b16 %v3648
        %v3681 = vunpack.c.l.b16 %v3649
        %v3682 = vunpack.c.l.b16 %v3650
        %v3683 = vunpack.c.l.b16 %v3651
        %v3684 = vunpack.c.l.b16 %v3652
        %v3685 = vunpack.c.l.b16 %v3653
        %v3686 = vunpack.c.l.b16 %v3654
        %v3687 = vunpack.c.l.b16 %v3655
        %v3688 = vunpack.c.l.b16 %v3656
        %v3689 = vunpack.c.l.b16 %v3657
        %v3690 = vpack.c.b16 %v3675, %v3674
        %v3691 = vpack.c.b16 %v3677, %v3676
        %v3692 = vpack.c.b16 %v3679, %v3678
        %v3693 = vpack.c.b16 %v3681, %v3680
        %v3694 = vpack.c.b16 %v3683, %v3682
        %v3695 = vpack.c.b16 %v3685, %v3684
        %v3696 = vpack.c.b16 %v3687, %v3686
        %v3697 = vpack.c.b16 %v3689, %v3688
        %3706 = vmatprep.subr.bf16.mxu0 0
        %3707 = vmatpush1.bf16.msra.mxu0 %v3690
        %3708 = vmatprep.subr.bf16.mxu0 0
        %3709 = vmatpush1.bf16.msra.mxu0 %v3691
        %3710 = vmatprep.subr.bf16.mxu0 0
        %3711 = vmatpush1.bf16.msra.mxu0 %v3692
        %3712 = vmatprep.subr.bf16.mxu0 0
        %3713 = vmatpush1.bf16.msra.mxu0 %v3693
        %3714 = vmatprep.subr.bf16.mxu0 0
        %3715 = vmatpush1.bf16.msra.mxu0 %v3694
        %3716 = vmatprep.subr.bf16.mxu0 0
        %3717 = vmatpush1.bf16.msra.mxu0 %v3695
        %3718 = vmatprep.subr.bf16.mxu0 0
        %3719 = vmatpush1.bf16.msra.mxu0 %v3696
        %3720 = vmatprep.subr.bf16.mxu0 0
        %3721 = vmatpush1.bf16.msra.mxu0 %v3697
        %3722 = vmatprep.subr.bf16.mxu0 0
        %3723 = vmatpush1.bf16.msra.mxu0 0
        %3724 = vmatprep.subr.bf16.mxu0 0
        %3725 = vmatpush1.bf16.msra.mxu0 0
        %3726 = vmatprep.subr.bf16.mxu0 0
        %3727 = vmatpush1.bf16.msra.mxu0 0
        %3728 = vmatprep.subr.bf16.mxu0 0
        %3729 = vmatpush1.bf16.msra.mxu0 0
        %3730 = vmatprep.subr.bf16.mxu0 0
        %3731 = vmatpush1.bf16.msra.mxu0 0
        %3732 = vmatprep.subr.bf16.mxu0 0
        %3733 = vmatpush1.bf16.msra.mxu0 0
        %3734 = vmatprep.subr.bf16.mxu0 0
        %3735 = vmatpush1.bf16.msra.mxu0 0
        %3736 = vmatprep.subr.bf16.mxu0 0
        %3737 = vmatpush1.bf16.msra.mxu0 0
        %3738 = vmatprep.mubr.bf16.mxu0 0
        %3739 = vmatmul.mubr.bf16.gmra.mrb[0].mxu0 %v3609
        %v3740 = vpop.f32.mrb[0].mxu0
        %v3741 = vadd.f32 0.0, %v3740
        %v3742 = vpop.f32.mrb[0].mxu0
        %v3743 = vpop.f32.mrb[0].mxu0
        %v3744 = vadd.f32 0.0, %v3743
        %v3745 = vpop.f32.mrb[0].mxu0
        %3746 = vmatprep.mubr.bf16.mxu0 0
        %3747 = vmatmul.mubr.bf16.gmra.mrb[0].mxu0 %v3610
        %v3748 = vpop.f32.mrb[0].mxu0
        %v3749 = vpop.f32.mrb[0].mxu0
        %v3750 = vpop.f32.mrb[0].mxu0
        %v3751 = vadd.f32 0.0, %v3750
        %v3752 = vpop.f32.mrb[0].mxu0
        %3753 = vmatprep.mubr.bf16.mxu0 0
        %3754 = vmatmul.mubr.bf16.gmra.mrb[0].mxu0 %v3611
        %v3755 = vpop.f32.mrb[0].mxu0
        %v3756 = vadd.f32 0.0, %v3755
        %v3757 = vpop.f32.mrb[0].mxu0
        %v3758 = vpop.f32.mrb[0].mxu0
        %v3759 = vadd.f32 0.0, %v3758
        %v3760 = vpop.f32.mrb[0].mxu0
        %3761 = vmatprep.mubr.bf16.mxu0 0
        %3762 = vmatmul.mubr.bf16.gmra.mrb[0].mxu0 %v3612
        %v3763 = vpop.f32.mrb[0].mxu0
        %v3764 = vpop.f32.mrb[0].mxu0
        %v3765 = vpop.f32.mrb[0].mxu0
        %v3766 = vadd.f32 0.0, %v3765
        %v3767 = vpop.f32.mrb[0].mxu0
        %3768 = vmatprep.mubr.bf16.mxu0 0
        %3769 = vmatmul.mubr.bf16.gmra.mrb[0].mxu0 %v3613
        %v3770 = vpop.f32.mrb[0].mxu0
        %v3771 = vadd.f32 0.0, %v3770
        %v3772 = vpop.f32.mrb[0].mxu0
        %v3773 = vpop.f32.mrb[0].mxu0
        %v3774 = vadd.f32 0.0, %v3773
        %v3775 = vpop.f32.mrb[0].mxu0
        %3776 = vmatprep.mubr.bf16.mxu0 0
        %3777 = vmatmul.mubr.bf16.gmra.mrb[0].mxu0 %v3614
        %v3778 = vpop.f32.mrb[0].mxu0
        %v3779 = vpop.f32.mrb[0].mxu0
        %v3780 = vpop.f32.mrb[0].mxu0
        %v3781 = vadd.f32 0.0, %v3780
        %v3782 = vpop.f32.mrb[0].mxu0
        %3783 = vmatprep.mubr.bf16.mxu0 0
        %3784 = vmatmul.mubr.bf16.gmra.mrb[0].mxu0 %v3615
        %v3785 = vpop.f32.mrb[0].mxu0
        %v3786 = vadd.f32 0.0, %v3785
        %v3787 = vpop.f32.mrb[0].mxu0
        %v3788 = vpop.f32.mrb[0].mxu0
        %v3789 = vadd.f32 0.0, %v3788
        %v3790 = vpop.f32.mrb[0].mxu0
        %3791 = vmatprep.mubr.bf16.mxu0 0
        %3792 = vmatmul.mubr.bf16.gmra.mrb[0].mxu0 %v3616
        %v3793 = vpop.f32.mrb[0].mxu0
        %v3794 = vpop.f32.mrb[0].mxu0
        %v3795 = vpop.f32.mrb[0].mxu0
        %v3796 = vadd.f32 0.0, %v3795
        %v3797 = vpop.f32.mrb[0].mxu0
        %3798 = vmatprep.mubr.bf16.mxu0 0
        %3799 = vmatmul.mubr.bf16.gmra.mrb[0].mxu0 %v3617
        %v3800 = vpop.f32.mrb[0].mxu0
        %v3801 = vadd.f32 0.0, %v3800
        %v3802 = vpop.f32.mrb[0].mxu0
        %v3803 = vpop.f32.mrb[0].mxu0
        %v3804 = vadd.f32 0.0, %v3803
        %v3805 = vpop.f32.mrb[0].mxu0
        %3806 = vmatprep.mubr.bf16.mxu0 0
        %3807 = vmatmul.mubr.bf16.gmra.mrb[0].mxu0 %v3618
        %v3808 = vpop.f32.mrb[0].mxu0
        %v3809 = vpop.f32.mrb[0].mxu0
        %v3810 = vpop.f32.mrb[0].mxu0
        %v3811 = vadd.f32 0.0, %v3810
        %v3812 = vpop.f32.mrb[0].mxu0
        %3813 = vmatprep.mubr.bf16.mxu0 0
        %3814 = vmatmul.mubr.bf16.gmra.mrb[0].mxu0 %v3619
        %v3815 = vpop.f32.mrb[0].mxu0
        %v3816 = vadd.f32 0.0, %v3815
        %v3817 = vpop.f32.mrb[0].mxu0
        %v3818 = vpop.f32.mrb[0].mxu0
        %v3819 = vadd.f32 0.0, %v3818
        %v3820 = vpop.f32.mrb[0].mxu0
        %3821 = vmatprep.mubr.bf16.mxu0 0
        %3822 = vmatmul.mubr.bf16.gmra.mrb[0].mxu0 %v3620
        %v3823 = vpop.f32.mrb[0].mxu0
        %v3824 = vpop.f32.mrb[0].mxu0
        %v3825 = vpop.f32.mrb[0].mxu0
        %v3826 = vadd.f32 0.0, %v3825
        %v3827 = vpop.f32.mrb[0].mxu0
        %3828 = vmatprep.mubr.bf16.mxu0 0
        %3829 = vmatmul.mubr.bf16.gmra.mrb[0].mxu0 %v3621
        %v3830 = vpop.f32.mrb[0].mxu0
        %v3831 = vadd.f32 0.0, %v3830
        %v3832 = vpop.f32.mrb[0].mxu0
        %v3833 = vpop.f32.mrb[0].mxu0
        %v3834 = vadd.f32 0.0, %v3833
        %v3835 = vpop.f32.mrb[0].mxu0
        %3836 = vmatprep.mubr.bf16.mxu0 0
        %3837 = vmatmul.mubr.bf16.gmra.mrb[0].mxu0 %v3622
        %v3838 = vpop.f32.mrb[0].mxu0
        %v3839 = vpop.f32.mrb[0].mxu0
        %v3840 = vpop.f32.mrb[0].mxu0
        %v3841 = vadd.f32 0.0, %v3840
        %v3842 = vpop.f32.mrb[0].mxu0
        %3843 = vmatprep.mubr.bf16.mxu0 0
        %3844 = vmatmul.mubr.bf16.gmra.mrb[0].mxu0 %v3623
        %v3845 = vpop.f32.mrb[0].mxu0
        %v3846 = vadd.f32 0.0, %v3845
        %v3847 = vpop.f32.mrb[0].mxu0
        %v3848 = vpop.f32.mrb[0].mxu0
        %v3849 = vadd.f32 0.0, %v3848
        %v3850 = vpop.f32.mrb[0].mxu0
        %3851 = vmatprep.mubr.bf16.mxu0 0
        %3852 = vmatmul.mubr.bf16.gmra.mrb[0].mxu0 %v3624
        %v3853 = vpop.f32.mrb[0].mxu0
        %v3854 = vpop.f32.mrb[0].mxu0
        %v3855 = vpop.f32.mrb[0].mxu0
        %v3856 = vadd.f32 0.0, %v3855
        %v3857 = vpop.f32.mrb[0].mxu0
        %3858 = vmatprep.mubr.bf16.mxu0 0
        %3859 = vmatmul.mubr.bf16.gmra.mrb[0].mxu0 %v3625
        %v3860 = vpop.f32.mrb[0].mxu0
        %v3861 = vadd.f32 0.0, %v3860
        %v3862 = vpop.f32.mrb[0].mxu0
        %v3863 = vpop.f32.mrb[0].mxu0
        %v3864 = vadd.f32 0.0, %v3863
        %v3865 = vpop.f32.mrb[0].mxu0
        %3866 = vmatprep.mubr.bf16.mxu0 0
        %3867 = vmatmul.mubr.bf16.gmra.mrb[0].mxu0 %v3626
        %v3868 = vpop.f32.mrb[0].mxu0
        %v3869 = vpop.f32.mrb[0].mxu0
        %v3870 = vpop.f32.mrb[0].mxu0
        %v3871 = vadd.f32 0.0, %v3870
        %v3872 = vpop.f32.mrb[0].mxu0
        %3873 = vmatprep.mubr.bf16.mxu0 0
        %3874 = vmatmul.mubr.bf16.gmra.mrb[0].mxu0 %v3627
        %v3875 = vpop.f32.mrb[0].mxu0
        %v3876 = vadd.f32 0.0, %v3875
        %v3877 = vpop.f32.mrb[0].mxu0
        %v3878 = vpop.f32.mrb[0].mxu0
        %v3879 = vadd.f32 0.0, %v3878
        %v3880 = vpop.f32.mrb[0].mxu0
        %3881 = vmatprep.mubr.bf16.mxu0 0
        %3882 = vmatmul.mubr.bf16.gmra.mrb[0].mxu0 %v3628
        %v3883 = vpop.f32.mrb[0].mxu0
        %v3884 = vpop.f32.mrb[0].mxu0
        %v3885 = vpop.f32.mrb[0].mxu0
        %v3886 = vadd.f32 0.0, %v3885
        %v3887 = vpop.f32.mrb[0].mxu0
        %3888 = vmatprep.mubr.bf16.mxu0 0
        %3889 = vmatmul.mubr.bf16.gmra.mrb[0].mxu0 %v3629
        %v3890 = vpop.f32.mrb[0].mxu0
        %v3891 = vadd.f32 0.0, %v3890
        %v3892 = vpop.f32.mrb[0].mxu0
        %v3893 = vpop.f32.mrb[0].mxu0
        %v3894 = vadd.f32 0.0, %v3893
        %v3895 = vpop.f32.mrb[0].mxu0
        %3896 = vmatprep.mubr.bf16.mxu0 0
        %3897 = vmatmul.mubr.bf16.gmra.mrb[0].mxu0 %v3630
        %v3898 = vpop.f32.mrb[0].mxu0
        %v3899 = vpop.f32.mrb[0].mxu0
        %v3900 = vpop.f32.mrb[0].mxu0
        %v3901 = vadd.f32 0.0, %v3900
        %v3902 = vpop.f32.mrb[0].mxu0
        %3903 = vmatprep.mubr.bf16.mxu0 0
        %3904 = vmatmul.mubr.bf16.gmra.mrb[0].mxu0 %v3631
        %v3905 = vpop.f32.mrb[0].mxu0
        %v3906 = vadd.f32 0.0, %v3905
        %v3907 = vpop.f32.mrb[0].mxu0
        %v3908 = vpop.f32.mrb[0].mxu0
        %v3909 = vadd.f32 0.0, %v3908
        %v3910 = vpop.f32.mrb[0].mxu0
        %3911 = vmatprep.mubr.bf16.mxu0 0
        %3912 = vmatmul.mubr.bf16.gmra.mrb[0].mxu0 %v3632
        %v3913 = vpop.f32.mrb[0].mxu0
        %v3914 = vpop.f32.mrb[0].mxu0
        %v3915 = vpop.f32.mrb[0].mxu0
        %v3916 = vadd.f32 0.0, %v3915
        %v3917 = vpop.f32.mrb[0].mxu0
        %3918 = vmatprep.mubr.bf16.mxu0 0
        %3919 = vmatmul.mubr.bf16.gmra.mrb[0].mxu0 %v3633
        %v3920 = vpop.f32.mrb[0].mxu0
        %v3921 = vadd.f32 0.0, %v3920
        %v3922 = vpop.f32.mrb[0].mxu0
        %v3923 = vpop.f32.mrb[0].mxu0
        %v3924 = vadd.f32 0.0, %v3923
        %v3925 = vpop.f32.mrb[0].mxu0
        %3926 = vmatprep.mubr.bf16.mxu0 0
        %3927 = vmatmul.mubr.bf16.gmra.mrb[0].mxu0 %v3634
        %v3928 = vpop.f32.mrb[0].mxu0
        %v3929 = vpop.f32.mrb[0].mxu0
        %v3930 = vpop.f32.mrb[0].mxu0
        %v3931 = vadd.f32 0.0, %v3930
        %v3932 = vpop.f32.mrb[0].mxu0
        %3933 = vmatprep.mubr.bf16.mxu0 0
        %3934 = vmatmul.mubr.bf16.gmra.mrb[0].mxu0 %v3635
        %v3935 = vpop.f32.mrb[0].mxu0
        %v3936 = vadd.f32 0.0, %v3935
        %v3937 = vpop.f32.mrb[0].mxu0
        %v3938 = vpop.f32.mrb[0].mxu0
        %v3939 = vadd.f32 0.0, %v3938
        %v3940 = vpop.f32.mrb[0].mxu0
        %3941 = vmatprep.mubr.bf16.mxu0 0
        %3942 = vmatmul.mubr.bf16.gmra.mrb[0].mxu0 %v3636
        %v3943 = vpop.f32.mrb[0].mxu0
        %v3944 = vpop.f32.mrb[0].mxu0
        %v3945 = vpop.f32.mrb[0].mxu0
        %v3946 = vadd.f32 0.0, %v3945
        %v3947 = vpop.f32.mrb[0].mxu0
        %3948 = vmatprep.mubr.bf16.mxu0 0
        %3949 = vmatmul.mubr.bf16.gmra.mrb[0].mxu0 %v3637
        %v3950 = vpop.f32.mrb[0].mxu0
        %v3951 = vadd.f32 0.0, %v3950
        %v3952 = vpop.f32.mrb[0].mxu0
        %v3953 = vpop.f32.mrb[0].mxu0
        %v3954 = vadd.f32 0.0, %v3953
        %v3955 = vpop.f32.mrb[0].mxu0
        %3956 = vmatprep.mubr.bf16.mxu0 0
        %3957 = vmatmul.mubr.bf16.gmra.mrb[0].mxu0 %v3638
        %v3958 = vpop.f32.mrb[0].mxu0
        %v3959 = vpop.f32.mrb[0].mxu0
        %v3960 = vpop.f32.mrb[0].mxu0
        %v3961 = vadd.f32 0.0, %v3960
        %v3962 = vpop.f32.mrb[0].mxu0
        %3963 = vmatprep.mubr.bf16.mxu0 0
        %3964 = vmatmul.mubr.bf16.gmra.mrb[0].mxu0 %v3639
        %v3965 = vpop.f32.mrb[0].mxu0
        %v3966 = vadd.f32 0.0, %v3965
        %v3967 = vpop.f32.mrb[0].mxu0
        %v3968 = vpop.f32.mrb[0].mxu0
        %v3969 = vadd.f32 0.0, %v3968
        %v3970 = vpop.f32.mrb[0].mxu0
        %3971 = vmatprep.mubr.bf16.mxu0 0
        %3972 = vmatmul.mubr.bf16.gmra.mrb[0].mxu0 %v3640
        %v3973 = vpop.f32.mrb[0].mxu0
        %v3974 = vpop.f32.mrb[0].mxu0
        %v3975 = vpop.f32.mrb[0].mxu0
        %v3976 = vadd.f32 0.0, %v3975
        %v3977 = vpop.f32.mrb[0].mxu0
        %3978 = vdwg.mxu0
        %v3979 = vrot.slane %v3741, 7
        %v3980 = vrot.slane %v3744, 7
        %v3981 = vrot.slane %v3751, 7
        %v3982 = vrot.slane %v3756, 7
        %v3983 = vrot.slane %v3759, 7
        %v3984 = vrot.slane %v3766, 7
        %v3985 = vrot.slane %v3771, 7
        %v3986 = vrot.slane %v3774, 7
        %v3987 = vrot.slane %v3781, 7
        %v3988 = vrot.slane %v3786, 7
        %v3989 = vrot.slane %v3789, 7
        %v3990 = vrot.slane %v3796, 7
        %v3991 = vrot.slane %v3801, 7
        %v3992 = vrot.slane %v3804, 7
        %v3993 = vrot.slane %v3811, 7
        %v3994 = vrot.slane %v3816, 7
        %v3995 = vrot.slane %v3819, 7
        %v3996 = vrot.slane %v3826, 7
        %v3997 = vrot.slane %v3831, 7
        %v3998 = vrot.slane %v3834, 7
        %v3999 = vrot.slane %v3841, 7
        %v4000 = vrot.slane %v3846, 7
        %v4001 = vrot.slane %v3849, 7
        %v4002 = vrot.slane %v3856, 7
        %v4003 = vrot.slane %v3861, 7
        %v4004 = vrot.slane %v3864, 7
        %v4005 = vrot.slane %v3871, 7
        %v4006 = vrot.slane %v3876, 7
        %v4007 = vrot.slane %v3879, 7
        %v4008 = vrot.slane %v3886, 7
        %v4009 = vrot.slane %v3891, 7
        %v4010 = vrot.slane %v3894, 7
        %v4011 = vrot.slane %v3901, 7
        %v4012 = vrot.slane %v3906, 7
        %v4013 = vrot.slane %v3909, 7
        %v4014 = vrot.slane %v3916, 7
        %v4015 = vrot.slane %v3921, 7
        %v4016 = vrot.slane %v3924, 7
        %v4017 = vrot.slane %v3931, 7
        %v4018 = vrot.slane %v3936, 7
        %v4019 = vrot.slane %v3939, 7
        %v4020 = vrot.slane %v3946, 7
        %v4021 = vrot.slane %v3951, 7
        %v4022 = vrot.slane %v3954, 7
        %v4023 = vrot.slane %v3961, 7
        %v4024 = vrot.slane %v3966, 7
        %v4025 = vrot.slane %v3969, 7
        %v4026 = vrot.slane %v3976, 7
        %v4027 = vsel %vm1484, %v4024, %v4025
        %v4028 = vsel %vm1484, %v4023, %v4024
        %v4029 = vsel %vm1484, %v4021, %v4022
        %v4030 = vsel %vm1484, %v4020, %v4021
        %v4031 = vsel %vm1484, %v4018, %v4019
        %v4032 = vsel %vm1484, %v4017, %v4018
        %v4033 = vsel %vm1484, %v4015, %v4016
        %v4034 = vsel %vm1484, %v4014, %v4015
        %v4035 = vsel %vm1484, %v4012, %v4013
        %v4036 = vsel %vm1484, %v4011, %v4012
        %v4037 = vsel %vm1484, %v4009, %v4010
        %v4038 = vsel %vm1484, %v4008, %v4009
        %v4039 = vsel %vm1484, %v4006, %v4007
        %v4040 = vsel %vm1484, %v4005, %v4006
        %v4041 = vsel %vm1484, %v4003, %v4004
        %v4042 = vsel %vm1484, %v4002, %v4003
        %v4043 = vsel %vm1484, %v4000, %v4001
        %v4044 = vsel %vm1484, %v3999, %v4000
        %v4045 = vsel %vm1484, %v3997, %v3998
        %v4046 = vsel %vm1484, %v3996, %v3997
        %v4047 = vsel %vm1484, %v3994, %v3995
        %v4048 = vsel %vm1484, %v3993, %v3994
        %v4049 = vsel %vm1484, %v3991, %v3992
        %v4050 = vsel %vm1484, %v3990, %v3991
        %v4051 = vsel %vm1484, %v3988, %v3989
        %v4052 = vsel %vm1484, %v3987, %v3988
        %v4053 = vsel %vm1484, %v3985, %v3986
        %v4054 = vsel %vm1484, %v3984, %v3985
        %v4055 = vsel %vm1484, %v3982, %v3983
        %v4056 = vsel %vm1484, %v3981, %v3982
        %v4057 = vsel %vm1484, %v3979, %v3980
        %v4058 = vsel %vm1484, %v4026, %v3979
        %v4059 = vadd.f32 %v3576, %v4058
        %v4060 = vadd.f32 %v3577, %v4057
        %v4061 = vadd.f32 %v3578, %v4056
        %v4062 = vadd.f32 %v3579, %v4055
        %v4063 = vadd.f32 %v3580, %v4054
        %v4064 = vadd.f32 %v3581, %v4053
        %v4065 = vadd.f32 %v3582, %v4052
        %v4066 = vadd.f32 %v3583, %v4051
        %v4067 = vadd.f32 %v3584, %v4050
        %v4068 = vadd.f32 %v3585, %v4049
        %v4069 = vadd.f32 %v3586, %v4048
        %v4070 = vadd.f32 %v3587, %v4047
        %v4071 = vadd.f32 %v3588, %v4046
        %v4072 = vadd.f32 %v3589, %v4045
        %v4073 = vadd.f32 %v3590, %v4044
        %v4074 = vadd.f32 %v3591, %v4043
        %v4075 = vadd.f32 %v3592, %v4042
        %v4076 = vadd.f32 %v3593, %v4041
        %v4077 = vadd.f32 %v3594, %v4040
        %v4078 = vadd.f32 %v3595, %v4039
        %v4079 = vadd.f32 %v3596, %v4038
        %v4080 = vadd.f32 %v3597, %v4037
        %v4081 = vadd.f32 %v3598, %v4036
        %v4082 = vadd.f32 %v3599, %v4035
        %v4083 = vadd.f32 %v3600, %v4034
        %v4084 = vadd.f32 %v3601, %v4033
        %v4085 = vadd.f32 %v3602, %v4032
        %v4086 = vadd.f32 %v3603, %v4031
        %v4087 = vadd.f32 %v3604, %v4030
        %v4088 = vadd.f32 %v3605, %v4029
        %v4089 = vadd.f32 %v3606, %v4028
        %v4090 = vadd.f32 %v3607, %v4027
        %s4091 = scalar_lea.vmem %s3, 448
        %v4092 = vld [vmem:[%s4091] sm:$0xf]
        %v4093 = vld [vmem:[%s4091 + $0x4] sm:$0xf]
        %v4094 = vld [vmem:[%s4091 + $0x8] sm:$0xf]
        %v4095 = vld [vmem:[%s4091 + $0xc] sm:$0xf]
        %v4096 = vld [vmem:[%s4091 + $0x10] sm:$0xf]
        %v4097 = vld [vmem:[%s4091 + $0x14] sm:$0xf]
        %v4098 = vld [vmem:[%s4091 + $0x18] sm:$0xf]
        %v4099 = vld [vmem:[%s4091 + $0x1c] sm:$0xf]
        %v4100 = vld [vmem:[%s4091 + $0x20] sm:$0xf]
        %v4101 = vld [vmem:[%s4091 + $0x24] sm:$0xf]
        %v4102 = vld [vmem:[%s4091 + $0x28] sm:$0xf]
        %v4103 = vld [vmem:[%s4091 + $0x2c] sm:$0xf]
        %v4104 = vld [vmem:[%s4091 + $0x30] sm:$0xf]
        %v4105 = vld [vmem:[%s4091 + $0x34] sm:$0xf]
        %v4106 = vld [vmem:[%s4091 + $0x38] sm:$0xf]
        %v4107 = vld [vmem:[%s4091 + $0x3c] sm:$0xf]
        %v4124 = vunpack.c.l.b16 %v4092
        %v4125 = vunpack.c.l.b16 %v4093
        %v4126 = vunpack.c.l.b16 %v4094
        %v4127 = vunpack.c.l.b16 %v4095
        %v4128 = vunpack.c.l.b16 %v4096
        %v4129 = vunpack.c.l.b16 %v4097
        %v4130 = vunpack.c.l.b16 %v4098
        %v4131 = vunpack.c.l.b16 %v4099
        %v4132 = vunpack.c.l.b16 %v4100
        %v4133 = vunpack.c.l.b16 %v4101
        %v4134 = vunpack.c.l.b16 %v4102
        %v4135 = vunpack.c.l.b16 %v4103
        %v4136 = vunpack.c.l.b16 %v4104
        %v4137 = vunpack.c.l.b16 %v4105
        %v4138 = vunpack.c.l.b16 %v4106
        %v4139 = vunpack.c.l.b16 %v4107
        %v4140 = vpack.c.b16 %v4125, %v4124
        %v4141 = vpack.c.b16 %v4127, %v4126
        %v4142 = vpack.c.b16 %v4129, %v4128
        %v4143 = vpack.c.b16 %v4131, %v4130
        %v4144 = vpack.c.b16 %v4133, %v4132
        %v4145 = vpack.c.b16 %v4135, %v4134
        %v4146 = vpack.c.b16 %v4137, %v4136
        %v4147 = vpack.c.b16 %v4139, %v4138
        %4156 = vmatprep.subr.bf16.mxu0 0
        %4157 = vmatpush1.bf16.msra.mxu0 %v4140
        %4158 = vmatprep.subr.bf16.mxu0 0
        %4159 = vmatpush1.bf16.msra.mxu0 %v4141
        %4160 = vmatprep.subr.bf16.mxu0 0
        %4161 = vmatpush1.bf16.msra.mxu0 %v4142
        %4162 = vmatprep.subr.bf16.mxu0 0
        %4163 = vmatpush1.bf16.msra.mxu0 %v4143
        %4164 = vmatprep.subr.bf16.mxu0 0
        %4165 = vmatpush1.bf16.msra.mxu0 %v4144
        %4166 = vmatprep.subr.bf16.mxu0 0
        %4167 = vmatpush1.bf16.msra.mxu0 %v4145
        %4168 = vmatprep.subr.bf16.mxu0 0
        %4169 = vmatpush1.bf16.msra.mxu0 %v4146
        %4170 = vmatprep.subr.bf16.mxu0 0
        %4171 = vmatpush1.bf16.msra.mxu0 %v4147
        %4172 = vmatprep.subr.bf16.mxu0 0
        %4173 = vmatpush1.bf16.msra.mxu0 0
        %4174 = vmatprep.subr.bf16.mxu0 0
        %4175 = vmatpush1.bf16.msra.mxu0 0
        %4176 = vmatprep.subr.bf16.mxu0 0
        %4177 = vmatpush1.bf16.msra.mxu0 0
        %4178 = vmatprep.subr.bf16.mxu0 0
        %4179 = vmatpush1.bf16.msra.mxu0 0
        %4180 = vmatprep.subr.bf16.mxu0 0
        %4181 = vmatpush1.bf16.msra.mxu0 0
        %4182 = vmatprep.subr.bf16.mxu0 0
        %4183 = vmatpush1.bf16.msra.mxu0 0
        %4184 = vmatprep.subr.bf16.mxu0 0
        %4185 = vmatpush1.bf16.msra.mxu0 0
        %4186 = vmatprep.subr.bf16.mxu0 0
        %4187 = vmatpush1.bf16.msra.mxu0 0
        %4188 = vmatprep.mubr.bf16.mxu0 0
        %4189 = vmatmul.mubr.bf16.gmra.mrb[0].mxu0 %v3609
        %v4190 = vpop.f32.mrb[0].mxu0
        %v4191 = vadd.f32 0.0, %v4190
        %v4192 = vpop.f32.mrb[0].mxu0
        %v4193 = vpop.f32.mrb[0].mxu0
        %v4194 = vadd.f32 0.0, %v4193
        %v4195 = vpop.f32.mrb[0].mxu0
        %4196 = vmatprep.mubr.bf16.mxu0 0
        %4197 = vmatmul.mubr.bf16.gmra.mrb[0].mxu0 %v3610
        %v4198 = vpop.f32.mrb[0].mxu0
        %v4199 = vpop.f32.mrb[0].mxu0
        %v4200 = vpop.f32.mrb[0].mxu0
        %v4201 = vpop.f32.mrb[0].mxu0
        %4202 = vmatprep.mubr.bf16.mxu0 0
        %4203 = vmatmul.mubr.bf16.gmra.mrb[0].mxu0 %v3611
        %v4204 = vpop.f32.mrb[0].mxu0
        %v4205 = vadd.f32 0.0, %v4204
        %v4206 = vpop.f32.mrb[0].mxu0
        %v4207 = vpop.f32.mrb[0].mxu0
        %v4208 = vadd.f32 0.0, %v4207
        %v4209 = vpop.f32.mrb[0].mxu0
        %4210 = vmatprep.mubr.bf16.mxu0 0
        %4211 = vmatmul.mubr.bf16.gmra.mrb[0].mxu0 %v3612
        %v4212 = vpop.f32.mrb[0].mxu0
        %v4213 = vpop.f32.mrb[0].mxu0
        %v4214 = vpop.f32.mrb[0].mxu0
        %v4215 = vpop.f32.mrb[0].mxu0
        %4216 = vmatprep.mubr.bf16.mxu0 0
        %4217 = vmatmul.mubr.bf16.gmra.mrb[0].mxu0 %v3613
        %v4218 = vpop.f32.mrb[0].mxu0
        %v4219 = vadd.f32 0.0, %v4218
        %v4220 = vpop.f32.mrb[0].mxu0
        %v4221 = vpop.f32.mrb[0].mxu0
        %v4222 = vadd.f32 0.0, %v4221
        %v4223 = vpop.f32.mrb[0].mxu0
        %4224 = vmatprep.mubr.bf16.mxu0 0
        %4225 = vmatmul.mubr.bf16.gmra.mrb[0].mxu0 %v3614
        %v4226 = vpop.f32.mrb[0].mxu0
        %v4227 = vpop.f32.mrb[0].mxu0
        %v4228 = vpop.f32.mrb[0].mxu0
        %v4229 = vpop.f32.mrb[0].mxu0
        %4230 = vmatprep.mubr.bf16.mxu0 0
        %4231 = vmatmul.mubr.bf16.gmra.mrb[0].mxu0 %v3615
        %v4232 = vpop.f32.mrb[0].mxu0
        %v4233 = vadd.f32 0.0, %v4232
        %v4234 = vpop.f32.mrb[0].mxu0
        %v4235 = vpop.f32.mrb[0].mxu0
        %v4236 = vadd.f32 0.0, %v4235
        %v4237 = vpop.f32.mrb[0].mxu0
        %4238 = vmatprep.mubr.bf16.mxu0 0
        %4239 = vmatmul.mubr.bf16.gmra.mrb[0].mxu0 %v3616
        %v4240 = vpop.f32.mrb[0].mxu0
        %v4241 = vpop.f32.mrb[0].mxu0
        %v4242 = vpop.f32.mrb[0].mxu0
        %v4243 = vpop.f32.mrb[0].mxu0
        %4244 = vmatprep.mubr.bf16.mxu0 0
        %4245 = vmatmul.mubr.bf16.gmra.mrb[0].mxu0 %v3617
        %v4246 = vpop.f32.mrb[0].mxu0
        %v4247 = vadd.f32 0.0, %v4246
        %v4248 = vpop.f32.mrb[0].mxu0
        %v4249 = vpop.f32.mrb[0].mxu0
        %v4250 = vadd.f32 0.0, %v4249
        %v4251 = vpop.f32.mrb[0].mxu0
        %4252 = vmatprep.mubr.bf16.mxu0 0
        %4253 = vmatmul.mubr.bf16.gmra.mrb[0].mxu0 %v3618
        %v4254 = vpop.f32.mrb[0].mxu0
        %v4255 = vpop.f32.mrb[0].mxu0
        %v4256 = vpop.f32.mrb[0].mxu0
        %v4257 = vpop.f32.mrb[0].mxu0
        %4258 = vmatprep.mubr.bf16.mxu0 0
        %4259 = vmatmul.mubr.bf16.gmra.mrb[0].mxu0 %v3619
        %v4260 = vpop.f32.mrb[0].mxu0
        %v4261 = vadd.f32 0.0, %v4260
        %v4262 = vpop.f32.mrb[0].mxu0
        %v4263 = vpop.f32.mrb[0].mxu0
        %v4264 = vadd.f32 0.0, %v4263
        %v4265 = vpop.f32.mrb[0].mxu0
        %4266 = vmatprep.mubr.bf16.mxu0 0
        %4267 = vmatmul.mubr.bf16.gmra.mrb[0].mxu0 %v3620
        %v4268 = vpop.f32.mrb[0].mxu0
        %v4269 = vpop.f32.mrb[0].mxu0
        %v4270 = vpop.f32.mrb[0].mxu0
        %v4271 = vpop.f32.mrb[0].mxu0
        %4272 = vmatprep.mubr.bf16.mxu0 0
        %4273 = vmatmul.mubr.bf16.gmra.mrb[0].mxu0 %v3621
        %v4274 = vpop.f32.mrb[0].mxu0
        %v4275 = vadd.f32 0.0, %v4274
        %v4276 = vpop.f32.mrb[0].mxu0
        %v4277 = vpop.f32.mrb[0].mxu0
        %v4278 = vadd.f32 0.0, %v4277
        %v4279 = vpop.f32.mrb[0].mxu0
        %4280 = vmatprep.mubr.bf16.mxu0 0
        %4281 = vmatmul.mubr.bf16.gmra.mrb[0].mxu0 %v3622
        %v4282 = vpop.f32.mrb[0].mxu0
        %v4283 = vpop.f32.mrb[0].mxu0
        %v4284 = vpop.f32.mrb[0].mxu0
        %v4285 = vpop.f32.mrb[0].mxu0
        %4286 = vmatprep.mubr.bf16.mxu0 0
        %4287 = vmatmul.mubr.bf16.gmra.mrb[0].mxu0 %v3623
        %v4288 = vpop.f32.mrb[0].mxu0
        %v4289 = vadd.f32 0.0, %v4288
        %v4290 = vpop.f32.mrb[0].mxu0
        %v4291 = vpop.f32.mrb[0].mxu0
        %v4292 = vadd.f32 0.0, %v4291
        %v4293 = vpop.f32.mrb[0].mxu0
        %4294 = vmatprep.mubr.bf16.mxu0 0
        %4295 = vmatmul.mubr.bf16.gmra.mrb[0].mxu0 %v3624
        %v4296 = vpop.f32.mrb[0].mxu0
        %v4297 = vpop.f32.mrb[0].mxu0
        %v4298 = vpop.f32.mrb[0].mxu0
        %v4299 = vpop.f32.mrb[0].mxu0
        %4300 = vmatprep.mubr.bf16.mxu0 0
        %4301 = vmatmul.mubr.bf16.gmra.mrb[0].mxu0 %v3625
        %v4302 = vpop.f32.mrb[0].mxu0
        %v4303 = vadd.f32 0.0, %v4302
        %v4304 = vpop.f32.mrb[0].mxu0
        %v4305 = vpop.f32.mrb[0].mxu0
        %v4306 = vadd.f32 0.0, %v4305
        %v4307 = vpop.f32.mrb[0].mxu0
        %4308 = vmatprep.mubr.bf16.mxu0 0
        %4309 = vmatmul.mubr.bf16.gmra.mrb[0].mxu0 %v3626
        %v4310 = vpop.f32.mrb[0].mxu0
        %v4311 = vpop.f32.mrb[0].mxu0
        %v4312 = vpop.f32.mrb[0].mxu0
        %v4313 = vpop.f32.mrb[0].mxu0
        %4314 = vmatprep.mubr.bf16.mxu0 0
        %4315 = vmatmul.mubr.bf16.gmra.mrb[0].mxu0 %v3627
        %v4316 = vpop.f32.mrb[0].mxu0
        %v4317 = vadd.f32 0.0, %v4316
        %v4318 = vpop.f32.mrb[0].mxu0
        %v4319 = vpop.f32.mrb[0].mxu0
        %v4320 = vadd.f32 0.0, %v4319
        %v4321 = vpop.f32.mrb[0].mxu0
        %4322 = vmatprep.mubr.bf16.mxu0 0
        %4323 = vmatmul.mubr.bf16.gmra.mrb[0].mxu0 %v3628
        %v4324 = vpop.f32.mrb[0].mxu0
        %v4325 = vpop.f32.mrb[0].mxu0
        %v4326 = vpop.f32.mrb[0].mxu0
        %v4327 = vpop.f32.mrb[0].mxu0
        %4328 = vmatprep.mubr.bf16.mxu0 0
        %4329 = vmatmul.mubr.bf16.gmra.mrb[0].mxu0 %v3629
        %v4330 = vpop.f32.mrb[0].mxu0
        %v4331 = vadd.f32 0.0, %v4330
        %v4332 = vpop.f32.mrb[0].mxu0
        %v4333 = vpop.f32.mrb[0].mxu0
        %v4334 = vadd.f32 0.0, %v4333
        %v4335 = vpop.f32.mrb[0].mxu0
        %4336 = vmatprep.mubr.bf16.mxu0 0
        %4337 = vmatmul.mubr.bf16.gmra.mrb[0].mxu0 %v3630
        %v4338 = vpop.f32.mrb[0].mxu0
        %v4339 = vpop.f32.mrb[0].mxu0
        %v4340 = vpop.f32.mrb[0].mxu0
        %v4341 = vpop.f32.mrb[0].mxu0
        %4342 = vmatprep.mubr.bf16.mxu0 0
        %4343 = vmatmul.mubr.bf16.gmra.mrb[0].mxu0 %v3631
        %v4344 = vpop.f32.mrb[0].mxu0
        %v4345 = vadd.f32 0.0, %v4344
        %v4346 = vpop.f32.mrb[0].mxu0
        %v4347 = vpop.f32.mrb[0].mxu0
        %v4348 = vadd.f32 0.0, %v4347
        %v4349 = vpop.f32.mrb[0].mxu0
        %4350 = vmatprep.mubr.bf16.mxu0 0
        %4351 = vmatmul.mubr.bf16.gmra.mrb[0].mxu0 %v3632
        %v4352 = vpop.f32.mrb[0].mxu0
        %v4353 = vpop.f32.mrb[0].mxu0
        %v4354 = vpop.f32.mrb[0].mxu0
        %v4355 = vpop.f32.mrb[0].mxu0
        %4356 = vmatprep.mubr.bf16.mxu0 0
        %4357 = vmatmul.mubr.bf16.gmra.mrb[0].mxu0 %v3633
        %v4358 = vpop.f32.mrb[0].mxu0
        %v4359 = vadd.f32 0.0, %v4358
        %v4360 = vpop.f32.mrb[0].mxu0
        %v4361 = vpop.f32.mrb[0].mxu0
        %v4362 = vadd.f32 0.0, %v4361
        %v4363 = vpop.f32.mrb[0].mxu0
        %4364 = vmatprep.mubr.bf16.mxu0 0
        %4365 = vmatmul.mubr.bf16.gmra.mrb[0].mxu0 %v3634
        %v4366 = vpop.f32.mrb[0].mxu0
        %v4367 = vpop.f32.mrb[0].mxu0
        %v4368 = vpop.f32.mrb[0].mxu0
        %v4369 = vpop.f32.mrb[0].mxu0
        %4370 = vmatprep.mubr.bf16.mxu0 0
        %4371 = vmatmul.mubr.bf16.gmra.mrb[0].mxu0 %v3635
        %v4372 = vpop.f32.mrb[0].mxu0
        %v4373 = vadd.f32 0.0, %v4372
        %v4374 = vpop.f32.mrb[0].mxu0
        %v4375 = vpop.f32.mrb[0].mxu0
        %v4376 = vadd.f32 0.0, %v4375
        %v4377 = vpop.f32.mrb[0].mxu0
        %4378 = vmatprep.mubr.bf16.mxu0 0
        %4379 = vmatmul.mubr.bf16.gmra.mrb[0].mxu0 %v3636
        %v4380 = vpop.f32.mrb[0].mxu0
        %v4381 = vpop.f32.mrb[0].mxu0
        %v4382 = vpop.f32.mrb[0].mxu0
        %v4383 = vpop.f32.mrb[0].mxu0
        %4384 = vmatprep.mubr.bf16.mxu0 0
        %4385 = vmatmul.mubr.bf16.gmra.mrb[0].mxu0 %v3637
        %v4386 = vpop.f32.mrb[0].mxu0
        %v4387 = vadd.f32 0.0, %v4386
        %v4388 = vpop.f32.mrb[0].mxu0
        %v4389 = vpop.f32.mrb[0].mxu0
        %v4390 = vadd.f32 0.0, %v4389
        %v4391 = vpop.f32.mrb[0].mxu0
        %4392 = vmatprep.mubr.bf16.mxu0 0
        %4393 = vmatmul.mubr.bf16.gmra.mrb[0].mxu0 %v3638
        %v4394 = vpop.f32.mrb[0].mxu0
        %v4395 = vpop.f32.mrb[0].mxu0
        %v4396 = vpop.f32.mrb[0].mxu0
        %v4397 = vpop.f32.mrb[0].mxu0
        %4398 = vmatprep.mubr.bf16.mxu0 0
        %4399 = vmatmul.mubr.bf16.gmra.mrb[0].mxu0 %v3639
        %v4400 = vpop.f32.mrb[0].mxu0
        %v4401 = vadd.f32 0.0, %v4400
        %v4402 = vpop.f32.mrb[0].mxu0
        %v4403 = vpop.f32.mrb[0].mxu0
        %v4404 = vadd.f32 0.0, %v4403
        %v4405 = vpop.f32.mrb[0].mxu0
        %4406 = vmatprep.mubr.bf16.mxu0 0
        %4407 = vmatmul.mubr.bf16.gmra.mrb[0].mxu0 %v3640
        %v4408 = vpop.f32.mrb[0].mxu0
        %v4409 = vpop.f32.mrb[0].mxu0
        %v4410 = vpop.f32.mrb[0].mxu0
        %v4411 = vpop.f32.mrb[0].mxu0
        %4412 = vdwg.mxu0
        %v4413 = vadd.f32 %v4059, %v4191
        %v4414 = vadd.f32 %v4060, %v4194
        %v4415 = vadd.f32 %v4061, %v4205
        %v4416 = vadd.f32 %v4062, %v4208
        %v4417 = vadd.f32 %v4063, %v4219
        %v4418 = vadd.f32 %v4064, %v4222
        %v4419 = vadd.f32 %v4065, %v4233
        %v4420 = vadd.f32 %v4066, %v4236
        %v4421 = vadd.f32 %v4067, %v4247
        %v4422 = vadd.f32 %v4068, %v4250
        %v4423 = vadd.f32 %v4069, %v4261
        %v4424 = vadd.f32 %v4070, %v4264
        %v4425 = vadd.f32 %v4071, %v4275
        %v4426 = vadd.f32 %v4072, %v4278
        %v4427 = vadd.f32 %v4073, %v4289
        %v4428 = vadd.f32 %v4074, %v4292
        %v4429 = vadd.f32 %v4075, %v4303
        %v4430 = vadd.f32 %v4076, %v4306
        %v4431 = vadd.f32 %v4077, %v4317
        %v4432 = vadd.f32 %v4078, %v4320
        %v4433 = vadd.f32 %v4079, %v4331
        %v4434 = vadd.f32 %v4080, %v4334
        %v4435 = vadd.f32 %v4081, %v4345
        %v4436 = vadd.f32 %v4082, %v4348
        %v4437 = vadd.f32 %v4083, %v4359
        %v4438 = vadd.f32 %v4084, %v4362
        %v4439 = vadd.f32 %v4085, %v4373
        %v4440 = vadd.f32 %v4086, %v4376
        %v4441 = vadd.f32 %v4087, %v4387
        %v4442 = vadd.f32 %v4088, %v4390
        %v4443 = vadd.f32 %v4089, %v4401
        %v4444 = vadd.f32 %v4090, %v4404
        %s4445 = scalar_lea.vmem %s3, 512
        %v4446 = vld [vmem:[%s4445] sm:$0xf]
        %v4447 = vld [vmem:[%s4445 + $0x4] sm:$0xf]
        %v4448 = vld [vmem:[%s4445 + $0x8] sm:$0xf]
        %v4449 = vld [vmem:[%s4445 + $0xc] sm:$0xf]
        %v4450 = vld [vmem:[%s4445 + $0x10] sm:$0xf]
        %v4451 = vld [vmem:[%s4445 + $0x14] sm:$0xf]
        %v4452 = vld [vmem:[%s4445 + $0x18] sm:$0xf]
        %v4453 = vld [vmem:[%s4445 + $0x1c] sm:$0xf]
        %v4454 = vld [vmem:[%s4445 + $0x20] sm:$0xf]
        %v4455 = vld [vmem:[%s4445 + $0x24] sm:$0xf]
        %v4456 = vld [vmem:[%s4445 + $0x28] sm:$0xf]
        %v4457 = vld [vmem:[%s4445 + $0x2c] sm:$0xf]
        %v4458 = vld [vmem:[%s4445 + $0x30] sm:$0xf]
        %v4459 = vld [vmem:[%s4445 + $0x34] sm:$0xf]
        %v4460 = vld [vmem:[%s4445 + $0x38] sm:$0xf]
        %v4461 = vld [vmem:[%s4445 + $0x3c] sm:$0xf]
        %v4478 = vunpack.c.l.b16 %v4446
        %v4479 = vunpack.c.l.b16 %v4447
        %v4480 = vunpack.c.l.b16 %v4448
        %v4481 = vunpack.c.l.b16 %v4449
        %v4482 = vunpack.c.l.b16 %v4450
        %v4483 = vunpack.c.l.b16 %v4451
        %v4484 = vunpack.c.l.b16 %v4452
        %v4485 = vunpack.c.l.b16 %v4453
        %v4486 = vunpack.c.l.b16 %v4454
        %v4487 = vunpack.c.l.b16 %v4455
        %v4488 = vunpack.c.l.b16 %v4456
        %v4489 = vunpack.c.l.b16 %v4457
        %v4490 = vunpack.c.l.b16 %v4458
        %v4491 = vunpack.c.l.b16 %v4459
        %v4492 = vunpack.c.l.b16 %v4460
        %v4493 = vunpack.c.l.b16 %v4461
        %v4494 = vpack.c.b16 %v4479, %v4478
        %v4495 = vpack.c.b16 %v4481, %v4480
        %v4496 = vpack.c.b16 %v4483, %v4482
        %v4497 = vpack.c.b16 %v4485, %v4484
        %v4498 = vpack.c.b16 %v4487, %v4486
        %v4499 = vpack.c.b16 %v4489, %v4488
        %v4500 = vpack.c.b16 %v4491, %v4490
        %v4501 = vpack.c.b16 %v4493, %v4492
        %4510 = vmatprep.subr.bf16.mxu0 0
        %4511 = vmatpush1.bf16.msra.mxu0 %v4494
        %4512 = vmatprep.subr.bf16.mxu0 0
        %4513 = vmatpush1.bf16.msra.mxu0 %v4495
        %4514 = vmatprep.subr.bf16.mxu0 0
        %4515 = vmatpush1.bf16.msra.mxu0 %v4496
        %4516 = vmatprep.subr.bf16.mxu0 0
        %4517 = vmatpush1.bf16.msra.mxu0 %v4497
        %4518 = vmatprep.subr.bf16.mxu0 0
        %4519 = vmatpush1.bf16.msra.mxu0 %v4498
        %4520 = vmatprep.subr.bf16.mxu0 0
        %4521 = vmatpush1.bf16.msra.mxu0 %v4499
        %4522 = vmatprep.subr.bf16.mxu0 0
        %4523 = vmatpush1.bf16.msra.mxu0 %v4500
        %4524 = vmatprep.subr.bf16.mxu0 0
        %4525 = vmatpush1.bf16.msra.mxu0 %v4501
        %4526 = vmatprep.subr.bf16.mxu0 0
        %4527 = vmatpush1.bf16.msra.mxu0 0
        %4528 = vmatprep.subr.bf16.mxu0 0
        %4529 = vmatpush1.bf16.msra.mxu0 0
        %4530 = vmatprep.subr.bf16.mxu0 0
        %4531 = vmatpush1.bf16.msra.mxu0 0
        %4532 = vmatprep.subr.bf16.mxu0 0
        %4533 = vmatpush1.bf16.msra.mxu0 0
        %4534 = vmatprep.subr.bf16.mxu0 0
        %4535 = vmatpush1.bf16.msra.mxu0 0
        %4536 = vmatprep.subr.bf16.mxu0 0
        %4537 = vmatpush1.bf16.msra.mxu0 0
        %4538 = vmatprep.subr.bf16.mxu0 0
        %4539 = vmatpush1.bf16.msra.mxu0 0
        %4540 = vmatprep.subr.bf16.mxu0 0
        %4541 = vmatpush1.bf16.msra.mxu0 0
        %4542 = vmatprep.mubr.bf16.mxu0 0
        %4543 = vmatmul.mubr.bf16.gmra.mrb[0].mxu0 %v3609
        %v4544 = vpop.f32.mrb[0].mxu0
        %v4545 = vadd.f32 0.0, %v4544
        %v4546 = vpop.f32.mrb[0].mxu0
        %v4547 = vpop.f32.mrb[0].mxu0
        %v4548 = vadd.f32 0.0, %v4547
        %v4549 = vpop.f32.mrb[0].mxu0
        %4550 = vmatprep.mubr.bf16.mxu0 0
        %4551 = vmatmul.mubr.bf16.gmra.mrb[0].mxu0 %v3610
        %v4552 = vpop.f32.mrb[0].mxu0
        %v4553 = vadd.f32 0.0, %v4552
        %v4554 = vpop.f32.mrb[0].mxu0
        %v4555 = vpop.f32.mrb[0].mxu0
        %v4556 = vpop.f32.mrb[0].mxu0
        %4557 = vmatprep.mubr.bf16.mxu0 0
        %4558 = vmatmul.mubr.bf16.gmra.mrb[0].mxu0 %v3611
        %v4559 = vpop.f32.mrb[0].mxu0
        %v4560 = vadd.f32 0.0, %v4559
        %v4561 = vpop.f32.mrb[0].mxu0
        %v4562 = vpop.f32.mrb[0].mxu0
        %v4563 = vadd.f32 0.0, %v4562
        %v4564 = vpop.f32.mrb[0].mxu0
        %4565 = vmatprep.mubr.bf16.mxu0 0
        %4566 = vmatmul.mubr.bf16.gmra.mrb[0].mxu0 %v3612
        %v4567 = vpop.f32.mrb[0].mxu0
        %v4568 = vadd.f32 0.0, %v4567
        %v4569 = vpop.f32.mrb[0].mxu0
        %v4570 = vpop.f32.mrb[0].mxu0
        %v4571 = vpop.f32.mrb[0].mxu0
        %4572 = vmatprep.mubr.bf16.mxu0 0
        %4573 = vmatmul.mubr.bf16.gmra.mrb[0].mxu0 %v3613
        %v4574 = vpop.f32.mrb[0].mxu0
        %v4575 = vadd.f32 0.0, %v4574
        %v4576 = vpop.f32.mrb[0].mxu0
        %v4577 = vpop.f32.mrb[0].mxu0
        %v4578 = vadd.f32 0.0, %v4577
        %v4579 = vpop.f32.mrb[0].mxu0
        %4580 = vmatprep.mubr.bf16.mxu0 0
        %4581 = vmatmul.mubr.bf16.gmra.mrb[0].mxu0 %v3614
        %v4582 = vpop.f32.mrb[0].mxu0
        %v4583 = vadd.f32 0.0, %v4582
        %v4584 = vpop.f32.mrb[0].mxu0
        %v4585 = vpop.f32.mrb[0].mxu0
        %v4586 = vpop.f32.mrb[0].mxu0
        %4587 = vmatprep.mubr.bf16.mxu0 0
        %4588 = vmatmul.mubr.bf16.gmra.mrb[0].mxu0 %v3615
        %v4589 = vpop.f32.mrb[0].mxu0
        %v4590 = vadd.f32 0.0, %v4589
        %v4591 = vpop.f32.mrb[0].mxu0
        %v4592 = vpop.f32.mrb[0].mxu0
        %v4593 = vadd.f32 0.0, %v4592
        %v4594 = vpop.f32.mrb[0].mxu0
        %4595 = vmatprep.mubr.bf16.mxu0 0
        %4596 = vmatmul.mubr.bf16.gmra.mrb[0].mxu0 %v3616
        %v4597 = vpop.f32.mrb[0].mxu0
        %v4598 = vadd.f32 0.0, %v4597
        %v4599 = vpop.f32.mrb[0].mxu0
        %v4600 = vpop.f32.mrb[0].mxu0
        %v4601 = vpop.f32.mrb[0].mxu0
        %4602 = vmatprep.mubr.bf16.mxu0 0
        %4603 = vmatmul.mubr.bf16.gmra.mrb[0].mxu0 %v3617
        %v4604 = vpop.f32.mrb[0].mxu0
        %v4605 = vadd.f32 0.0, %v4604
        %v4606 = vpop.f32.mrb[0].mxu0
        %v4607 = vpop.f32.mrb[0].mxu0
        %v4608 = vadd.f32 0.0, %v4607
        %v4609 = vpop.f32.mrb[0].mxu0
        %4610 = vmatprep.mubr.bf16.mxu0 0
        %4611 = vmatmul.mubr.bf16.gmra.mrb[0].mxu0 %v3618
        %v4612 = vpop.f32.mrb[0].mxu0
        %v4613 = vadd.f32 0.0, %v4612
        %v4614 = vpop.f32.mrb[0].mxu0
        %v4615 = vpop.f32.mrb[0].mxu0
        %v4616 = vpop.f32.mrb[0].mxu0
        %4617 = vmatprep.mubr.bf16.mxu0 0
        %4618 = vmatmul.mubr.bf16.gmra.mrb[0].mxu0 %v3619
        %v4619 = vpop.f32.mrb[0].mxu0
        %v4620 = vadd.f32 0.0, %v4619
        %v4621 = vpop.f32.mrb[0].mxu0
        %v4622 = vpop.f32.mrb[0].mxu0
        %v4623 = vadd.f32 0.0, %v4622
        %v4624 = vpop.f32.mrb[0].mxu0
        %4625 = vmatprep.mubr.bf16.mxu0 0
        %4626 = vmatmul.mubr.bf16.gmra.mrb[0].mxu0 %v3620
        %v4627 = vpop.f32.mrb[0].mxu0
        %v4628 = vadd.f32 0.0, %v4627
        %v4629 = vpop.f32.mrb[0].mxu0
        %v4630 = vpop.f32.mrb[0].mxu0
        %v4631 = vpop.f32.mrb[0].mxu0
        %4632 = vmatprep.mubr.bf16.mxu0 0
        %4633 = vmatmul.mubr.bf16.gmra.mrb[0].mxu0 %v3621
        %v4634 = vpop.f32.mrb[0].mxu0
        %v4635 = vadd.f32 0.0, %v4634
        %v4636 = vpop.f32.mrb[0].mxu0
        %v4637 = vpop.f32.mrb[0].mxu0
        %v4638 = vadd.f32 0.0, %v4637
        %v4639 = vpop.f32.mrb[0].mxu0
        %4640 = vmatprep.mubr.bf16.mxu0 0
        %4641 = vmatmul.mubr.bf16.gmra.mrb[0].mxu0 %v3622
        %v4642 = vpop.f32.mrb[0].mxu0
        %v4643 = vadd.f32 0.0, %v4642
        %v4644 = vpop.f32.mrb[0].mxu0
        %v4645 = vpop.f32.mrb[0].mxu0
        %v4646 = vpop.f32.mrb[0].mxu0
        %4647 = vmatprep.mubr.bf16.mxu0 0
        %4648 = vmatmul.mubr.bf16.gmra.mrb[0].mxu0 %v3623
        %v4649 = vpop.f32.mrb[0].mxu0
        %v4650 = vadd.f32 0.0, %v4649
        %v4651 = vpop.f32.mrb[0].mxu0
        %v4652 = vpop.f32.mrb[0].mxu0
        %v4653 = vadd.f32 0.0, %v4652
        %v4654 = vpop.f32.mrb[0].mxu0
        %4655 = vmatprep.mubr.bf16.mxu0 0
        %4656 = vmatmul.mubr.bf16.gmra.mrb[0].mxu0 %v3624
        %v4657 = vpop.f32.mrb[0].mxu0
        %v4658 = vadd.f32 0.0, %v4657
        %v4659 = vpop.f32.mrb[0].mxu0
        %v4660 = vpop.f32.mrb[0].mxu0
        %v4661 = vpop.f32.mrb[0].mxu0
        %4662 = vmatprep.mubr.bf16.mxu0 0
        %4663 = vmatmul.mubr.bf16.gmra.mrb[0].mxu0 %v3625
        %v4664 = vpop.f32.mrb[0].mxu0
        %v4665 = vadd.f32 0.0, %v4664
        %v4666 = vpop.f32.mrb[0].mxu0
        %v4667 = vpop.f32.mrb[0].mxu0
        %v4668 = vadd.f32 0.0, %v4667
        %v4669 = vpop.f32.mrb[0].mxu0
        %4670 = vmatprep.mubr.bf16.mxu0 0
        %4671 = vmatmul.mubr.bf16.gmra.mrb[0].mxu0 %v3626
        %v4672 = vpop.f32.mrb[0].mxu0
        %v4673 = vadd.f32 0.0, %v4672
        %v4674 = vpop.f32.mrb[0].mxu0
        %v4675 = vpop.f32.mrb[0].mxu0
        %v4676 = vpop.f32.mrb[0].mxu0
        %4677 = vmatprep.mubr.bf16.mxu0 0
        %4678 = vmatmul.mubr.bf16.gmra.mrb[0].mxu0 %v3627
        %v4679 = vpop.f32.mrb[0].mxu0
        %v4680 = vadd.f32 0.0, %v4679
        %v4681 = vpop.f32.mrb[0].mxu0
        %v4682 = vpop.f32.mrb[0].mxu0
        %v4683 = vadd.f32 0.0, %v4682
        %v4684 = vpop.f32.mrb[0].mxu0
        %4685 = vmatprep.mubr.bf16.mxu0 0
        %4686 = vmatmul.mubr.bf16.gmra.mrb[0].mxu0 %v3628
        %v4687 = vpop.f32.mrb[0].mxu0
        %v4688 = vadd.f32 0.0, %v4687
        %v4689 = vpop.f32.mrb[0].mxu0
        %v4690 = vpop.f32.mrb[0].mxu0
        %v4691 = vpop.f32.mrb[0].mxu0
        %4692 = vmatprep.mubr.bf16.mxu0 0
        %4693 = vmatmul.mubr.bf16.gmra.mrb[0].mxu0 %v3629
        %v4694 = vpop.f32.mrb[0].mxu0
        %v4695 = vadd.f32 0.0, %v4694
        %v4696 = vpop.f32.mrb[0].mxu0
        %v4697 = vpop.f32.mrb[0].mxu0
        %v4698 = vadd.f32 0.0, %v4697
        %v4699 = vpop.f32.mrb[0].mxu0
        %4700 = vmatprep.mubr.bf16.mxu0 0
        %4701 = vmatmul.mubr.bf16.gmra.mrb[0].mxu0 %v3630
        %v4702 = vpop.f32.mrb[0].mxu0
        %v4703 = vadd.f32 0.0, %v4702
        %v4704 = vpop.f32.mrb[0].mxu0
        %v4705 = vpop.f32.mrb[0].mxu0
        %v4706 = vpop.f32.mrb[0].mxu0
        %4707 = vmatprep.mubr.bf16.mxu0 0
        %4708 = vmatmul.mubr.bf16.gmra.mrb[0].mxu0 %v3631
        %v4709 = vpop.f32.mrb[0].mxu0
        %v4710 = vadd.f32 0.0, %v4709
        %v4711 = vpop.f32.mrb[0].mxu0
        %v4712 = vpop.f32.mrb[0].mxu0
        %v4713 = vadd.f32 0.0, %v4712
        %v4714 = vpop.f32.mrb[0].mxu0
        %4715 = vmatprep.mubr.bf16.mxu0 0
        %4716 = vmatmul.mubr.bf16.gmra.mrb[0].mxu0 %v3632
        %v4717 = vpop.f32.mrb[0].mxu0
        %v4718 = vadd.f32 0.0, %v4717
        %v4719 = vpop.f32.mrb[0].mxu0
        %v4720 = vpop.f32.mrb[0].mxu0
        %v4721 = vpop.f32.mrb[0].mxu0
        %4722 = vmatprep.mubr.bf16.mxu0 0
        %4723 = vmatmul.mubr.bf16.gmra.mrb[0].mxu0 %v3633
        %v4724 = vpop.f32.mrb[0].mxu0
        %v4725 = vadd.f32 0.0, %v4724
        %v4726 = vpop.f32.mrb[0].mxu0
        %v4727 = vpop.f32.mrb[0].mxu0
        %v4728 = vadd.f32 0.0, %v4727
        %v4729 = vpop.f32.mrb[0].mxu0
        %4730 = vmatprep.mubr.bf16.mxu0 0
        %4731 = vmatmul.mubr.bf16.gmra.mrb[0].mxu0 %v3634
        %v4732 = vpop.f32.mrb[0].mxu0
        %v4733 = vadd.f32 0.0, %v4732
        %v4734 = vpop.f32.mrb[0].mxu0
        %v4735 = vpop.f32.mrb[0].mxu0
        %v4736 = vpop.f32.mrb[0].mxu0
        %4737 = vmatprep.mubr.bf16.mxu0 0
        %4738 = vmatmul.mubr.bf16.gmra.mrb[0].mxu0 %v3635
        %v4739 = vpop.f32.mrb[0].mxu0
        %v4740 = vadd.f32 0.0, %v4739
        %v4741 = vpop.f32.mrb[0].mxu0
        %v4742 = vpop.f32.mrb[0].mxu0
        %v4743 = vadd.f32 0.0, %v4742
        %v4744 = vpop.f32.mrb[0].mxu0
        %4745 = vmatprep.mubr.bf16.mxu0 0
        %4746 = vmatmul.mubr.bf16.gmra.mrb[0].mxu0 %v3636
        %v4747 = vpop.f32.mrb[0].mxu0
        %v4748 = vadd.f32 0.0, %v4747
        %v4749 = vpop.f32.mrb[0].mxu0
        %v4750 = vpop.f32.mrb[0].mxu0
        %v4751 = vpop.f32.mrb[0].mxu0
        %4752 = vmatprep.mubr.bf16.mxu0 0
        %4753 = vmatmul.mubr.bf16.gmra.mrb[0].mxu0 %v3637
        %v4754 = vpop.f32.mrb[0].mxu0
        %v4755 = vadd.f32 0.0, %v4754
        %v4756 = vpop.f32.mrb[0].mxu0
        %v4757 = vpop.f32.mrb[0].mxu0
        %v4758 = vadd.f32 0.0, %v4757
        %v4759 = vpop.f32.mrb[0].mxu0
        %4760 = vmatprep.mubr.bf16.mxu0 0
        %4761 = vmatmul.mubr.bf16.gmra.mrb[0].mxu0 %v3638
        %v4762 = vpop.f32.mrb[0].mxu0
        %v4763 = vadd.f32 0.0, %v4762
        %v4764 = vpop.f32.mrb[0].mxu0
        %v4765 = vpop.f32.mrb[0].mxu0
        %v4766 = vpop.f32.mrb[0].mxu0
        %4767 = vmatprep.mubr.bf16.mxu0 0
        %4768 = vmatmul.mubr.bf16.gmra.mrb[0].mxu0 %v3639
        %v4769 = vpop.f32.mrb[0].mxu0
        %v4770 = vadd.f32 0.0, %v4769
        %v4771 = vpop.f32.mrb[0].mxu0
        %v4772 = vpop.f32.mrb[0].mxu0
        %v4773 = vadd.f32 0.0, %v4772
        %v4774 = vpop.f32.mrb[0].mxu0
        %4775 = vmatprep.mubr.bf16.mxu0 0
        %4776 = vmatmul.mubr.bf16.gmra.mrb[0].mxu0 %v3640
        %v4777 = vpop.f32.mrb[0].mxu0
        %v4778 = vadd.f32 0.0, %v4777
        %v4779 = vpop.f32.mrb[0].mxu0
        %v4780 = vpop.f32.mrb[0].mxu0
        %v4781 = vpop.f32.mrb[0].mxu0
        %4782 = vdwg.mxu0
        %v4783 = vrot.slane %v4545, 1
        %v4784 = vrot.slane %v4548, 1
        %v4785 = vrot.slane %v4553, 1
        %v4786 = vrot.slane %v4560, 1
        %v4787 = vrot.slane %v4563, 1
        %v4788 = vrot.slane %v4568, 1
        %v4789 = vrot.slane %v4575, 1
        %v4790 = vrot.slane %v4578, 1
        %v4791 = vrot.slane %v4583, 1
        %v4792 = vrot.slane %v4590, 1
        %v4793 = vrot.slane %v4593, 1
        %v4794 = vrot.slane %v4598, 1
        %v4795 = vrot.slane %v4605, 1
        %v4796 = vrot.slane %v4608, 1
        %v4797 = vrot.slane %v4613, 1
        %v4798 = vrot.slane %v4620, 1
        %v4799 = vrot.slane %v4623, 1
        %v4800 = vrot.slane %v4628, 1
        %v4801 = vrot.slane %v4635, 1
        %v4802 = vrot.slane %v4638, 1
        %v4803 = vrot.slane %v4643, 1
        %v4804 = vrot.slane %v4650, 1
        %v4805 = vrot.slane %v4653, 1
        %v4806 = vrot.slane %v4658, 1
        %v4807 = vrot.slane %v4665, 1
        %v4808 = vrot.slane %v4668, 1
        %v4809 = vrot.slane %v4673, 1
        %v4810 = vrot.slane %v4680, 1
        %v4811 = vrot.slane %v4683, 1
        %v4812 = vrot.slane %v4688, 1
        %v4813 = vrot.slane %v4695, 1
        %v4814 = vrot.slane %v4698, 1
        %v4815 = vrot.slane %v4703, 1
        %v4816 = vrot.slane %v4710, 1
        %v4817 = vrot.slane %v4713, 1
        %v4818 = vrot.slane %v4718, 1
        %v4819 = vrot.slane %v4725, 1
        %v4820 = vrot.slane %v4728, 1
        %v4821 = vrot.slane %v4733, 1
        %v4822 = vrot.slane %v4740, 1
        %v4823 = vrot.slane %v4743, 1
        %v4824 = vrot.slane %v4748, 1
        %v4825 = vrot.slane %v4755, 1
        %v4826 = vrot.slane %v4758, 1
        %v4827 = vrot.slane %v4763, 1
        %v4828 = vrot.slane %v4770, 1
        %v4829 = vrot.slane %v4773, 1
        %v4830 = vrot.slane %v4778, 1
        %v4831 = vsel %vm2257, %v4829, %v4830
        %v4832 = vsel %vm2257, %v4828, %v4829
        %v4833 = vsel %vm2257, %v4826, %v4827
        %v4834 = vsel %vm2257, %v4825, %v4826
        %v4835 = vsel %vm2257, %v4823, %v4824
        %v4836 = vsel %vm2257, %v4822, %v4823
        %v4837 = vsel %vm2257, %v4820, %v4821
        %v4838 = vsel %vm2257, %v4819, %v4820
        %v4839 = vsel %vm2257, %v4817, %v4818
        %v4840 = vsel %vm2257, %v4816, %v4817
        %v4841 = vsel %vm2257, %v4814, %v4815
        %v4842 = vsel %vm2257, %v4813, %v4814
        %v4843 = vsel %vm2257, %v4811, %v4812
        %v4844 = vsel %vm2257, %v4810, %v4811
        %v4845 = vsel %vm2257, %v4808, %v4809
        %v4846 = vsel %vm2257, %v4807, %v4808
        %v4847 = vsel %vm2257, %v4805, %v4806
        %v4848 = vsel %vm2257, %v4804, %v4805
        %v4849 = vsel %vm2257, %v4802, %v4803
        %v4850 = vsel %vm2257, %v4801, %v4802
        %v4851 = vsel %vm2257, %v4799, %v4800
        %v4852 = vsel %vm2257, %v4798, %v4799
        %v4853 = vsel %vm2257, %v4796, %v4797
        %v4854 = vsel %vm2257, %v4795, %v4796
        %v4855 = vsel %vm2257, %v4793, %v4794
        %v4856 = vsel %vm2257, %v4792, %v4793
        %v4857 = vsel %vm2257, %v4790, %v4791
        %v4858 = vsel %vm2257, %v4789, %v4790
        %v4859 = vsel %vm2257, %v4787, %v4788
        %v4860 = vsel %vm2257, %v4786, %v4787
        %v4861 = vsel %vm2257, %v4784, %v4785
        %v4862 = vsel %vm2257, %v4783, %v4784
        %v4863 = vadd.f32 %v4413, %v4862
        %v4864 = vadd.f32 %v4414, %v4861
        %v4865 = vadd.f32 %v4415, %v4860
        %v4866 = vadd.f32 %v4416, %v4859
        %v4867 = vadd.f32 %v4417, %v4858
        %v4868 = vadd.f32 %v4418, %v4857
        %v4869 = vadd.f32 %v4419, %v4856
        %v4870 = vadd.f32 %v4420, %v4855
        %v4871 = vadd.f32 %v4421, %v4854
        %v4872 = vadd.f32 %v4422, %v4853
        %v4873 = vadd.f32 %v4423, %v4852
        %v4874 = vadd.f32 %v4424, %v4851
        %v4875 = vadd.f32 %v4425, %v4850
        %v4876 = vadd.f32 %v4426, %v4849
        %v4877 = vadd.f32 %v4427, %v4848
        %v4878 = vadd.f32 %v4428, %v4847
        %v4879 = vadd.f32 %v4429, %v4846
        %v4880 = vadd.f32 %v4430, %v4845
        %v4881 = vadd.f32 %v4431, %v4844
        %v4882 = vadd.f32 %v4432, %v4843
        %v4883 = vadd.f32 %v4433, %v4842
        %v4884 = vadd.f32 %v4434, %v4841
        %v4885 = vadd.f32 %v4435, %v4840
        %v4886 = vadd.f32 %v4436, %v4839
        %v4887 = vadd.f32 %v4437, %v4838
        %v4888 = vadd.f32 %v4438, %v4837
        %v4889 = vadd.f32 %v4439, %v4836
        %v4890 = vadd.f32 %v4440, %v4835
        %v4891 = vadd.f32 %v4441, %v4834
        %v4892 = vadd.f32 %v4442, %v4833
        %v4893 = vadd.f32 %v4443, %v4832
        %v4894 = vadd.f32 %v4444, %v4831
        %v4895 = vld [vmem:[%s4] sm:$0x1]
        %v4897 = vlaneseq
        %v4898 = vshrl.u32 %v4897, 7
        %v4899 = vsub.s32 0, %v4898
        %v4900 = vrot.slane %v4895, %v4899
        %v4902 = vmul.f32 %v4863, %v4900
        %v4903 = vmul.f32 %v4864, %v4900
        %v4904 = vmul.f32 %v4865, %v4900
        %v4905 = vmul.f32 %v4866, %v4900
        %v4906 = vmul.f32 %v4867, %v4900
        %v4907 = vmul.f32 %v4868, %v4900
        %v4908 = vmul.f32 %v4869, %v4900
        %v4909 = vmul.f32 %v4870, %v4900
        %v4910 = vmul.f32 %v4871, %v4900
        %v4911 = vmul.f32 %v4872, %v4900
        %v4912 = vmul.f32 %v4873, %v4900
        %v4913 = vmul.f32 %v4874, %v4900
        %v4914 = vmul.f32 %v4875, %v4900
        %v4915 = vmul.f32 %v4876, %v4900
        %v4916 = vmul.f32 %v4877, %v4900
        %v4917 = vmul.f32 %v4878, %v4900
        %v4918 = vmul.f32 %v4879, %v4900
        %v4919 = vmul.f32 %v4880, %v4900
        %v4920 = vmul.f32 %v4881, %v4900
        %v4921 = vmul.f32 %v4882, %v4900
        %v4922 = vmul.f32 %v4883, %v4900
        %v4923 = vmul.f32 %v4884, %v4900
        %v4924 = vmul.f32 %v4885, %v4900
        %v4925 = vmul.f32 %v4886, %v4900
        %v4926 = vmul.f32 %v4887, %v4900
        %v4927 = vmul.f32 %v4888, %v4900
        %v4928 = vmul.f32 %v4889, %v4900
        %v4929 = vmul.f32 %v4890, %v4900
        %v4930 = vmul.f32 %v4891, %v4900
        %v4931 = vmul.f32 %v4892, %v4900
        %v4932 = vmul.f32 %v4893, %v4900
        %v4933 = vmul.f32 %v4894, %v4900
        %v4934 = vld [vmem:[%s5] sm:$0x1]
        %v4936 = vlaneseq
        %v4937 = vshrl.u32 %v4936, 7
        %v4938 = vsub.s32 0, %v4937
        %v4939 = vrot.slane %v4934, %v4938
        %v4941 = vadd.f32 %v4902, %v4939
        %v4942 = vadd.f32 %v4903, %v4939
        %v4943 = vadd.f32 %v4904, %v4939
        %v4944 = vadd.f32 %v4905, %v4939
        %v4945 = vadd.f32 %v4906, %v4939
        %v4946 = vadd.f32 %v4907, %v4939
        %v4947 = vadd.f32 %v4908, %v4939
        %v4948 = vadd.f32 %v4909, %v4939
        %v4949 = vadd.f32 %v4910, %v4939
        %v4950 = vadd.f32 %v4911, %v4939
        %v4951 = vadd.f32 %v4912, %v4939
        %v4952 = vadd.f32 %v4913, %v4939
        %v4953 = vadd.f32 %v4914, %v4939
        %v4954 = vadd.f32 %v4915, %v4939
        %v4955 = vadd.f32 %v4916, %v4939
        %v4956 = vadd.f32 %v4917, %v4939
        %v4957 = vadd.f32 %v4918, %v4939
        %v4958 = vadd.f32 %v4919, %v4939
        %v4959 = vadd.f32 %v4920, %v4939
        %v4960 = vadd.f32 %v4921, %v4939
        %v4961 = vadd.f32 %v4922, %v4939
        %v4962 = vadd.f32 %v4923, %v4939
        %v4963 = vadd.f32 %v4924, %v4939
        %v4964 = vadd.f32 %v4925, %v4939
        %v4965 = vadd.f32 %v4926, %v4939
        %v4966 = vadd.f32 %v4927, %v4939
        %v4967 = vadd.f32 %v4928, %v4939
        %v4968 = vadd.f32 %v4929, %v4939
        %v4969 = vadd.f32 %v4930, %v4939
        %v4970 = vadd.f32 %v4931, %v4939
        %v4971 = vadd.f32 %v4932, %v4939
        %v4972 = vadd.f32 %v4933, %v4939
        %v4973 = vmax.f32 %v4941, 0.0
        %v4974 = vmax.f32 %v4942, 0.0
        %v4975 = vmax.f32 %v4943, 0.0
        %v4976 = vmax.f32 %v4944, 0.0
        %v4977 = vmax.f32 %v4945, 0.0
        %v4978 = vmax.f32 %v4946, 0.0
        %v4979 = vmax.f32 %v4947, 0.0
        %v4980 = vmax.f32 %v4948, 0.0
        %v4981 = vmax.f32 %v4949, 0.0
        %v4982 = vmax.f32 %v4950, 0.0
        %v4983 = vmax.f32 %v4951, 0.0
        %v4984 = vmax.f32 %v4952, 0.0
        %v4985 = vmax.f32 %v4953, 0.0
        %v4986 = vmax.f32 %v4954, 0.0
        %v4987 = vmax.f32 %v4955, 0.0
        %v4988 = vmax.f32 %v4956, 0.0
        %v4989 = vmax.f32 %v4957, 0.0
        %v4990 = vmax.f32 %v4958, 0.0
        %v4991 = vmax.f32 %v4959, 0.0
        %v4992 = vmax.f32 %v4960, 0.0
        %v4993 = vmax.f32 %v4961, 0.0
        %v4994 = vmax.f32 %v4962, 0.0
        %v4995 = vmax.f32 %v4963, 0.0
        %v4996 = vmax.f32 %v4964, 0.0
        %v4997 = vmax.f32 %v4965, 0.0
        %v4998 = vmax.f32 %v4966, 0.0
        %v4999 = vmax.f32 %v4967, 0.0
        %v5000 = vmax.f32 %v4968, 0.0
        %v5001 = vmax.f32 %v4969, 0.0
        %v5002 = vmax.f32 %v4970, 0.0
        %v5003 = vmax.f32 %v4971, 0.0
        %v5004 = vmax.f32 %v4972, 0.0
        %v5005 = vpack.c.bf16 %v4974, %v4973
        %v5006 = vpack.c.bf16 %v4976, %v4975
        %v5007 = vpack.c.bf16 %v4978, %v4977
        %v5008 = vpack.c.bf16 %v4980, %v4979
        %v5009 = vpack.c.bf16 %v4982, %v4981
        %v5010 = vpack.c.bf16 %v4984, %v4983
        %v5011 = vpack.c.bf16 %v4986, %v4985
        %v5012 = vpack.c.bf16 %v4988, %v4987
        %v5013 = vpack.c.bf16 %v4990, %v4989
        %v5014 = vpack.c.bf16 %v4992, %v4991
        %v5015 = vpack.c.bf16 %v4994, %v4993
        %v5016 = vpack.c.bf16 %v4996, %v4995
        %v5017 = vpack.c.bf16 %v4998, %v4997
        %v5018 = vpack.c.bf16 %v5000, %v4999
        %v5019 = vpack.c.bf16 %v5002, %v5001
        %v5020 = vpack.c.bf16 %v5004, %v5003
        %s5021 = scalar_lea.vmem [#allocation3], 32
        %5022 = vst [vmem:[%s5021] sm:$0xff] %v5005
        %5023 = vst [vmem:[%s5021 + $0x10] sm:$0xff] %v5006
        %5024 = vst [vmem:[%s5021 + $0x20] sm:$0xff] %v5007
        %5025 = vst [vmem:[%s5021 + $0x30] sm:$0xff] %v5008
        %5026 = vst [vmem:[%s5021 + $0x40] sm:$0xff] %v5009
        %5027 = vst [vmem:[%s5021 + $0x50] sm:$0xff] %v5010
        %5028 = vst [vmem:[%s5021 + $0x60] sm:$0xff] %v5011
        %5029 = vst [vmem:[%s5021 + $0x70] sm:$0xff] %v5012
        %5030 = vst [vmem:[%s5021 + $0x80] sm:$0xff] %v5013
        %5031 = vst [vmem:[%s5021 + $0x90] sm:$0xff] %v5014
        %5032 = vst [vmem:[%s5021 + $0xa0] sm:$0xff] %v5015
        %5033 = vst [vmem:[%s5021 + $0xb0] sm:$0xff] %v5016
        %5034 = vst [vmem:[%s5021 + $0xc0] sm:$0xff] %v5017
        %5035 = vst [vmem:[%s5021 + $0xd0] sm:$0xff] %v5018
        %5036 = vst [vmem:[%s5021 + $0xe0] sm:$0xff] %v5019
        %5037 = vst [vmem:[%s5021 + $0xf0] sm:$0xff] %v5020
        %v5038 = vld [vmem:[#allocation3] sm:$0xff]
        %v5039 = vld [vmem:[#allocation3 + $0x8] sm:$0xff]
        %v5040 = vld [vmem:[#allocation3 + $0x10] sm:$0xff]
        %v5041 = vld [vmem:[#allocation3 + $0x18] sm:$0xff]
        %v5042 = vld [vmem:[#allocation3 + $0x20] sm:$0xff]
        %v5043 = vld [vmem:[#allocation3 + $0x28] sm:$0xff]
        %v5044 = vld [vmem:[#allocation3 + $0x30] sm:$0xff]
        %v5045 = vld [vmem:[#allocation3 + $0x38] sm:$0xff]
        %v5046 = vld [vmem:[#allocation3 + $0x40] sm:$0xff]
        %v5047 = vld [vmem:[#allocation3 + $0x48] sm:$0xff]
        %v5048 = vld [vmem:[#allocation3 + $0x50] sm:$0xff]
        %v5049 = vld [vmem:[#allocation3 + $0x58] sm:$0xff]
        %v5050 = vld [vmem:[#allocation3 + $0x60] sm:$0xff]
        %v5051 = vld [vmem:[#allocation3 + $0x68] sm:$0xff]
        %v5052 = vld [vmem:[#allocation3 + $0x70] sm:$0xff]
        %v5053 = vld [vmem:[#allocation3 + $0x78] sm:$0xff]
        %v5054 = vld [vmem:[#allocation3 + $0x80] sm:$0xff]
        %v5055 = vld [vmem:[#allocation3 + $0x88] sm:$0xff]
        %v5056 = vld [vmem:[#allocation3 + $0x90] sm:$0xff]
        %v5057 = vld [vmem:[#allocation3 + $0x98] sm:$0xff]
        %v5058 = vld [vmem:[#allocation3 + $0xa0] sm:$0xff]
        %v5059 = vld [vmem:[#allocation3 + $0xa8] sm:$0xff]
        %v5060 = vld [vmem:[#allocation3 + $0xb0] sm:$0xff]
        %v5061 = vld [vmem:[#allocation3 + $0xb8] sm:$0xff]
        %v5062 = vld [vmem:[#allocation3 + $0xc0] sm:$0xff]
        %v5063 = vld [vmem:[#allocation3 + $0xc8] sm:$0xff]
        %v5064 = vld [vmem:[#allocation3 + $0xd0] sm:$0xff]
        %v5065 = vld [vmem:[#allocation3 + $0xd8] sm:$0xff]
        %v5066 = vld [vmem:[#allocation3 + $0xe0] sm:$0xff]
        %v5067 = vld [vmem:[#allocation3 + $0xe8] sm:$0xff]
        %v5068 = vld [vmem:[#allocation3 + $0xf0] sm:$0xff]
        %v5069 = vld [vmem:[#allocation3 + $0xf8] sm:$0xff]
        %v5070 = vld [vmem:[%s6] sm:$0xf]
        %v5071 = vld [vmem:[%s6 + $0x4] sm:$0xf]
        %v5072 = vld [vmem:[%s6 + $0x8] sm:$0xf]
        %v5073 = vld [vmem:[%s6 + $0xc] sm:$0xf]
        %v5074 = vld [vmem:[%s6 + $0x10] sm:$0xf]
        %v5075 = vld [vmem:[%s6 + $0x14] sm:$0xf]
        %v5076 = vld [vmem:[%s6 + $0x18] sm:$0xf]
        %v5077 = vld [vmem:[%s6 + $0x1c] sm:$0xf]
        %v5078 = vld [vmem:[%s6 + $0x20] sm:$0xf]
        %v5079 = vld [vmem:[%s6 + $0x24] sm:$0xf]
        %v5080 = vld [vmem:[%s6 + $0x28] sm:$0xf]
        %v5081 = vld [vmem:[%s6 + $0x2c] sm:$0xf]
        %v5082 = vld [vmem:[%s6 + $0x30] sm:$0xf]
        %v5083 = vld [vmem:[%s6 + $0x34] sm:$0xf]
        %v5084 = vld [vmem:[%s6 + $0x38] sm:$0xf]
        %v5085 = vld [vmem:[%s6 + $0x3c] sm:$0xf]
        %v5102 = vunpack.c.l.b16 %v5070
        %v5103 = vunpack.c.l.b16 %v5071
        %v5104 = vunpack.c.l.b16 %v5072
        %v5105 = vunpack.c.l.b16 %v5073
        %v5106 = vunpack.c.l.b16 %v5074
        %v5107 = vunpack.c.l.b16 %v5075
        %v5108 = vunpack.c.l.b16 %v5076
        %v5109 = vunpack.c.l.b16 %v5077
        %v5110 = vunpack.c.l.b16 %v5078
        %v5111 = vunpack.c.l.b16 %v5079
        %v5112 = vunpack.c.l.b16 %v5080
        %v5113 = vunpack.c.l.b16 %v5081
        %v5114 = vunpack.c.l.b16 %v5082
        %v5115 = vunpack.c.l.b16 %v5083
        %v5116 = vunpack.c.l.b16 %v5084
        %v5117 = vunpack.c.l.b16 %v5085
        %v5118 = vpack.c.b16 %v5103, %v5102
        %v5119 = vpack.c.b16 %v5105, %v5104
        %v5120 = vpack.c.b16 %v5107, %v5106
        %v5121 = vpack.c.b16 %v5109, %v5108
        %v5122 = vpack.c.b16 %v5111, %v5110
        %v5123 = vpack.c.b16 %v5113, %v5112
        %v5124 = vpack.c.b16 %v5115, %v5114
        %v5125 = vpack.c.b16 %v5117, %v5116
        %5134 = vmatprep.subr.bf16.mxu0 0
        %5135 = vmatpush1.bf16.msra.mxu0 %v5118
        %5136 = vmatprep.subr.bf16.mxu0 0
        %5137 = vmatpush1.bf16.msra.mxu0 %v5119
        %5138 = vmatprep.subr.bf16.mxu0 0
        %5139 = vmatpush1.bf16.msra.mxu0 %v5120
        %5140 = vmatprep.subr.bf16.mxu0 0
        %5141 = vmatpush1.bf16.msra.mxu0 %v5121
        %5142 = vmatprep.subr.bf16.mxu0 0
        %5143 = vmatpush1.bf16.msra.mxu0 %v5122
        %5144 = vmatprep.subr.bf16.mxu0 0
        %5145 = vmatpush1.bf16.msra.mxu0 %v5123
        %5146 = vmatprep.subr.bf16.mxu0 0
        %5147 = vmatpush1.bf16.msra.mxu0 %v5124
        %5148 = vmatprep.subr.bf16.mxu0 0
        %5149 = vmatpush1.bf16.msra.mxu0 %v5125
        %5150 = vmatprep.subr.bf16.mxu0 0
        %5151 = vmatpush1.bf16.msra.mxu0 0
        %5152 = vmatprep.subr.bf16.mxu0 0
        %5153 = vmatpush1.bf16.msra.mxu0 0
        %5154 = vmatprep.subr.bf16.mxu0 0
        %5155 = vmatpush1.bf16.msra.mxu0 0
        %5156 = vmatprep.subr.bf16.mxu0 0
        %5157 = vmatpush1.bf16.msra.mxu0 0
        %5158 = vmatprep.subr.bf16.mxu0 0
        %5159 = vmatpush1.bf16.msra.mxu0 0
        %5160 = vmatprep.subr.bf16.mxu0 0
        %5161 = vmatpush1.bf16.msra.mxu0 0
        %5162 = vmatprep.subr.bf16.mxu0 0
        %5163 = vmatpush1.bf16.msra.mxu0 0
        %5164 = vmatprep.subr.bf16.mxu0 0
        %5165 = vmatpush1.bf16.msra.mxu0 0
        %5166 = vmatprep.mubr.bf16.mxu0 0
        %5167 = vmatmul.mubr.bf16.gmra.mrb[0].mxu0 %v5038
        %v5168 = vpop.f32.mrb[0].mxu0
        %v5169 = vadd.f32 0.0, %v5168
        %v5170 = vpop.f32.mrb[0].mxu0
        %v5171 = vpop.f32.mrb[0].mxu0
        %v5172 = vadd.f32 0.0, %v5171
        %v5173 = vpop.f32.mrb[0].mxu0
        %5174 = vmatprep.mubr.bf16.mxu0 0
        %5175 = vmatmul.mubr.bf16.gmra.mrb[0].mxu0 %v5039
        %v5176 = vpop.f32.mrb[0].mxu0
        %v5177 = vadd.f32 0.0, %v5176
        %v5178 = vpop.f32.mrb[0].mxu0
        %v5179 = vpop.f32.mrb[0].mxu0
        %v5180 = vadd.f32 0.0, %v5179
        %v5181 = vpop.f32.mrb[0].mxu0
        %5182 = vmatprep.mubr.bf16.mxu0 0
        %5183 = vmatmul.mubr.bf16.gmra.mrb[0].mxu0 %v5040
        %v5184 = vpop.f32.mrb[0].mxu0
        %v5185 = vadd.f32 0.0, %v5184
        %v5186 = vpop.f32.mrb[0].mxu0
        %v5187 = vpop.f32.mrb[0].mxu0
        %v5188 = vadd.f32 0.0, %v5187
        %v5189 = vpop.f32.mrb[0].mxu0
        %5190 = vmatprep.mubr.bf16.mxu0 0
        %5191 = vmatmul.mubr.bf16.gmra.mrb[0].mxu0 %v5041
        %v5192 = vpop.f32.mrb[0].mxu0
        %v5193 = vadd.f32 0.0, %v5192
        %v5194 = vpop.f32.mrb[0].mxu0
        %v5195 = vpop.f32.mrb[0].mxu0
        %v5196 = vadd.f32 0.0, %v5195
        %v5197 = vpop.f32.mrb[0].mxu0
        %5198 = vmatprep.mubr.bf16.mxu0 0
        %5199 = vmatmul.mubr.bf16.gmra.mrb[0].mxu0 %v5042
        %v5200 = vpop.f32.mrb[0].mxu0
        %v5201 = vadd.f32 0.0, %v5200
        %v5202 = vpop.f32.mrb[0].mxu0
        %v5203 = vpop.f32.mrb[0].mxu0
        %v5204 = vadd.f32 0.0, %v5203
        %v5205 = vpop.f32.mrb[0].mxu0
        %5206 = vmatprep.mubr.bf16.mxu0 0
        %5207 = vmatmul.mubr.bf16.gmra.mrb[0].mxu0 %v5043
        %v5208 = vpop.f32.mrb[0].mxu0
        %v5209 = vadd.f32 0.0, %v5208
        %v5210 = vpop.f32.mrb[0].mxu0
        %v5211 = vpop.f32.mrb[0].mxu0
        %v5212 = vadd.f32 0.0, %v5211
        %v5213 = vpop.f32.mrb[0].mxu0
        %5214 = vmatprep.mubr.bf16.mxu0 0
        %5215 = vmatmul.mubr.bf16.gmra.mrb[0].mxu0 %v5044
        %v5216 = vpop.f32.mrb[0].mxu0
        %v5217 = vadd.f32 0.0, %v5216
        %v5218 = vpop.f32.mrb[0].mxu0
        %v5219 = vpop.f32.mrb[0].mxu0
        %v5220 = vadd.f32 0.0, %v5219
        %v5221 = vpop.f32.mrb[0].mxu0
        %5222 = vmatprep.mubr.bf16.mxu0 0
        %5223 = vmatmul.mubr.bf16.gmra.mrb[0].mxu0 %v5045
        %v5224 = vpop.f32.mrb[0].mxu0
        %v5225 = vadd.f32 0.0, %v5224
        %v5226 = vpop.f32.mrb[0].mxu0
        %v5227 = vpop.f32.mrb[0].mxu0
        %v5228 = vadd.f32 0.0, %v5227
        %v5229 = vpop.f32.mrb[0].mxu0
        %5230 = vmatprep.mubr.bf16.mxu0 0
        %5231 = vmatmul.mubr.bf16.gmra.mrb[0].mxu0 %v5046
        %v5232 = vpop.f32.mrb[0].mxu0
        %v5233 = vadd.f32 0.0, %v5232
        %v5234 = vpop.f32.mrb[0].mxu0
        %v5235 = vpop.f32.mrb[0].mxu0
        %v5236 = vadd.f32 0.0, %v5235
        %v5237 = vpop.f32.mrb[0].mxu0
        %5238 = vmatprep.mubr.bf16.mxu0 0
        %5239 = vmatmul.mubr.bf16.gmra.mrb[0].mxu0 %v5047
        %v5240 = vpop.f32.mrb[0].mxu0
        %v5241 = vadd.f32 0.0, %v5240
        %v5242 = vpop.f32.mrb[0].mxu0
        %v5243 = vpop.f32.mrb[0].mxu0
        %v5244 = vadd.f32 0.0, %v5243
        %v5245 = vpop.f32.mrb[0].mxu0
        %5246 = vmatprep.mubr.bf16.mxu0 0
        %5247 = vmatmul.mubr.bf16.gmra.mrb[0].mxu0 %v5048
        %v5248 = vpop.f32.mrb[0].mxu0
        %v5249 = vadd.f32 0.0, %v5248
        %v5250 = vpop.f32.mrb[0].mxu0
        %v5251 = vpop.f32.mrb[0].mxu0
        %v5252 = vadd.f32 0.0, %v5251
        %v5253 = vpop.f32.mrb[0].mxu0
        %5254 = vmatprep.mubr.bf16.mxu0 0
        %5255 = vmatmul.mubr.bf16.gmra.mrb[0].mxu0 %v5049
        %v5256 = vpop.f32.mrb[0].mxu0
        %v5257 = vadd.f32 0.0, %v5256
        %v5258 = vpop.f32.mrb[0].mxu0
        %v5259 = vpop.f32.mrb[0].mxu0
        %v5260 = vadd.f32 0.0, %v5259
        %v5261 = vpop.f32.mrb[0].mxu0
        %5262 = vmatprep.mubr.bf16.mxu0 0
        %5263 = vmatmul.mubr.bf16.gmra.mrb[0].mxu0 %v5050
        %v5264 = vpop.f32.mrb[0].mxu0
        %v5265 = vadd.f32 0.0, %v5264
        %v5266 = vpop.f32.mrb[0].mxu0
        %v5267 = vpop.f32.mrb[0].mxu0
        %v5268 = vadd.f32 0.0, %v5267
        %v5269 = vpop.f32.mrb[0].mxu0
        %5270 = vmatprep.mubr.bf16.mxu0 0
        %5271 = vmatmul.mubr.bf16.gmra.mrb[0].mxu0 %v5051
        %v5272 = vpop.f32.mrb[0].mxu0
        %v5273 = vadd.f32 0.0, %v5272
        %v5274 = vpop.f32.mrb[0].mxu0
        %v5275 = vpop.f32.mrb[0].mxu0
        %v5276 = vadd.f32 0.0, %v5275
        %v5277 = vpop.f32.mrb[0].mxu0
        %5278 = vmatprep.mubr.bf16.mxu0 0
        %5279 = vmatmul.mubr.bf16.gmra.mrb[0].mxu0 %v5052
        %v5280 = vpop.f32.mrb[0].mxu0
        %v5281 = vadd.f32 0.0, %v5280
        %v5282 = vpop.f32.mrb[0].mxu0
        %v5283 = vpop.f32.mrb[0].mxu0
        %v5284 = vadd.f32 0.0, %v5283
        %v5285 = vpop.f32.mrb[0].mxu0
        %5286 = vmatprep.mubr.bf16.mxu0 0
        %5287 = vmatmul.mubr.bf16.gmra.mrb[0].mxu0 %v5053
        %v5288 = vpop.f32.mrb[0].mxu0
        %v5289 = vadd.f32 0.0, %v5288
        %v5290 = vpop.f32.mrb[0].mxu0
        %v5291 = vpop.f32.mrb[0].mxu0
        %v5292 = vadd.f32 0.0, %v5291
        %v5293 = vpop.f32.mrb[0].mxu0
        %5294 = vmatprep.mubr.bf16.mxu0 0
        %5295 = vmatmul.mubr.bf16.gmra.mrb[0].mxu0 %v5054
        %v5296 = vpop.f32.mrb[0].mxu0
        %v5297 = vadd.f32 0.0, %v5296
        %v5298 = vpop.f32.mrb[0].mxu0
        %v5299 = vpop.f32.mrb[0].mxu0
        %v5300 = vadd.f32 0.0, %v5299
        %v5301 = vpop.f32.mrb[0].mxu0
        %5302 = vmatprep.mubr.bf16.mxu0 0
        %5303 = vmatmul.mubr.bf16.gmra.mrb[0].mxu0 %v5055
        %v5304 = vpop.f32.mrb[0].mxu0
        %v5305 = vadd.f32 0.0, %v5304
        %v5306 = vpop.f32.mrb[0].mxu0
        %v5307 = vpop.f32.mrb[0].mxu0
        %v5308 = vadd.f32 0.0, %v5307
        %v5309 = vpop.f32.mrb[0].mxu0
        %5310 = vmatprep.mubr.bf16.mxu0 0
        %5311 = vmatmul.mubr.bf16.gmra.mrb[0].mxu0 %v5056
        %v5312 = vpop.f32.mrb[0].mxu0
        %v5313 = vadd.f32 0.0, %v5312
        %v5314 = vpop.f32.mrb[0].mxu0
        %v5315 = vpop.f32.mrb[0].mxu0
        %v5316 = vadd.f32 0.0, %v5315
        %v5317 = vpop.f32.mrb[0].mxu0
        %5318 = vmatprep.mubr.bf16.mxu0 0
        %5319 = vmatmul.mubr.bf16.gmra.mrb[0].mxu0 %v5057
        %v5320 = vpop.f32.mrb[0].mxu0
        %v5321 = vadd.f32 0.0, %v5320
        %v5322 = vpop.f32.mrb[0].mxu0
        %v5323 = vpop.f32.mrb[0].mxu0
        %v5324 = vadd.f32 0.0, %v5323
        %v5325 = vpop.f32.mrb[0].mxu0
        %5326 = vmatprep.mubr.bf16.mxu0 0
        %5327 = vmatmul.mubr.bf16.gmra.mrb[0].mxu0 %v5058
        %v5328 = vpop.f32.mrb[0].mxu0
        %v5329 = vadd.f32 0.0, %v5328
        %v5330 = vpop.f32.mrb[0].mxu0
        %v5331 = vpop.f32.mrb[0].mxu0
        %v5332 = vadd.f32 0.0, %v5331
        %v5333 = vpop.f32.mrb[0].mxu0
        %5334 = vmatprep.mubr.bf16.mxu0 0
        %5335 = vmatmul.mubr.bf16.gmra.mrb[0].mxu0 %v5059
        %v5336 = vpop.f32.mrb[0].mxu0
        %v5337 = vadd.f32 0.0, %v5336
        %v5338 = vpop.f32.mrb[0].mxu0
        %v5339 = vpop.f32.mrb[0].mxu0
        %v5340 = vadd.f32 0.0, %v5339
        %v5341 = vpop.f32.mrb[0].mxu0
        %5342 = vmatprep.mubr.bf16.mxu0 0
        %5343 = vmatmul.mubr.bf16.gmra.mrb[0].mxu0 %v5060
        %v5344 = vpop.f32.mrb[0].mxu0
        %v5345 = vadd.f32 0.0, %v5344
        %v5346 = vpop.f32.mrb[0].mxu0
        %v5347 = vpop.f32.mrb[0].mxu0
        %v5348 = vadd.f32 0.0, %v5347
        %v5349 = vpop.f32.mrb[0].mxu0
        %5350 = vmatprep.mubr.bf16.mxu0 0
        %5351 = vmatmul.mubr.bf16.gmra.mrb[0].mxu0 %v5061
        %v5352 = vpop.f32.mrb[0].mxu0
        %v5353 = vadd.f32 0.0, %v5352
        %v5354 = vpop.f32.mrb[0].mxu0
        %v5355 = vpop.f32.mrb[0].mxu0
        %v5356 = vadd.f32 0.0, %v5355
        %v5357 = vpop.f32.mrb[0].mxu0
        %5358 = vmatprep.mubr.bf16.mxu0 0
        %5359 = vmatmul.mubr.bf16.gmra.mrb[0].mxu0 %v5062
        %v5360 = vpop.f32.mrb[0].mxu0
        %v5361 = vadd.f32 0.0, %v5360
        %v5362 = vpop.f32.mrb[0].mxu0
        %v5363 = vpop.f32.mrb[0].mxu0
        %v5364 = vadd.f32 0.0, %v5363
        %v5365 = vpop.f32.mrb[0].mxu0
        %5366 = vmatprep.mubr.bf16.mxu0 0
        %5367 = vmatmul.mubr.bf16.gmra.mrb[0].mxu0 %v5063
        %v5368 = vpop.f32.mrb[0].mxu0
        %v5369 = vadd.f32 0.0, %v5368
        %v5370 = vpop.f32.mrb[0].mxu0
        %v5371 = vpop.f32.mrb[0].mxu0
        %v5372 = vadd.f32 0.0, %v5371
        %v5373 = vpop.f32.mrb[0].mxu0
        %5374 = vmatprep.mubr.bf16.mxu0 0
        %5375 = vmatmul.mubr.bf16.gmra.mrb[0].mxu0 %v5064
        %v5376 = vpop.f32.mrb[0].mxu0
        %v5377 = vadd.f32 0.0, %v5376
        %v5378 = vpop.f32.mrb[0].mxu0
        %v5379 = vpop.f32.mrb[0].mxu0
        %v5380 = vadd.f32 0.0, %v5379
        %v5381 = vpop.f32.mrb[0].mxu0
        %5382 = vmatprep.mubr.bf16.mxu0 0
        %5383 = vmatmul.mubr.bf16.gmra.mrb[0].mxu0 %v5065
        %v5384 = vpop.f32.mrb[0].mxu0
        %v5385 = vadd.f32 0.0, %v5384
        %v5386 = vpop.f32.mrb[0].mxu0
        %v5387 = vpop.f32.mrb[0].mxu0
        %v5388 = vadd.f32 0.0, %v5387
        %v5389 = vpop.f32.mrb[0].mxu0
        %5390 = vmatprep.mubr.bf16.mxu0 0
        %5391 = vmatmul.mubr.bf16.gmra.mrb[0].mxu0 %v5066
        %v5392 = vpop.f32.mrb[0].mxu0
        %v5393 = vadd.f32 0.0, %v5392
        %v5394 = vpop.f32.mrb[0].mxu0
        %v5395 = vpop.f32.mrb[0].mxu0
        %v5396 = vadd.f32 0.0, %v5395
        %v5397 = vpop.f32.mrb[0].mxu0
        %5398 = vmatprep.mubr.bf16.mxu0 0
        %5399 = vmatmul.mubr.bf16.gmra.mrb[0].mxu0 %v5067
        %v5400 = vpop.f32.mrb[0].mxu0
        %v5401 = vadd.f32 0.0, %v5400
        %v5402 = vpop.f32.mrb[0].mxu0
        %v5403 = vpop.f32.mrb[0].mxu0
        %v5404 = vadd.f32 0.0, %v5403
        %v5405 = vpop.f32.mrb[0].mxu0
        %5406 = vmatprep.mubr.bf16.mxu0 0
        %5407 = vmatmul.mubr.bf16.gmra.mrb[0].mxu0 %v5068
        %v5408 = vpop.f32.mrb[0].mxu0
        %v5409 = vadd.f32 0.0, %v5408
        %v5410 = vpop.f32.mrb[0].mxu0
        %v5411 = vpop.f32.mrb[0].mxu0
        %v5412 = vadd.f32 0.0, %v5411
        %v5413 = vpop.f32.mrb[0].mxu0
        %5414 = vmatprep.mubr.bf16.mxu0 0
        %5415 = vmatmul.mubr.bf16.gmra.mrb[0].mxu0 %v5069
        %v5416 = vpop.f32.mrb[0].mxu0
        %v5417 = vadd.f32 0.0, %v5416
        %v5418 = vpop.f32.mrb[0].mxu0
        %v5419 = vpop.f32.mrb[0].mxu0
        %v5420 = vadd.f32 0.0, %v5419
        %v5421 = vpop.f32.mrb[0].mxu0
        %5422 = vdwg.mxu0
        %v5423 = vrot.slane %v5169, 6
        %v5424 = vrot.slane %v5172, 6
        %v5425 = vrot.slane %v5177, 6
        %v5426 = vrot.slane %v5180, 6
        %v5427 = vrot.slane %v5185, 6
        %v5428 = vrot.slane %v5188, 6
        %v5429 = vrot.slane %v5193, 6
        %v5430 = vrot.slane %v5196, 6
        %v5431 = vrot.slane %v5201, 6
        %v5432 = vrot.slane %v5204, 6
        %v5433 = vrot.slane %v5209, 6
        %v5434 = vrot.slane %v5212, 6
        %v5435 = vrot.slane %v5217, 6
        %v5436 = vrot.slane %v5220, 6
        %v5437 = vrot.slane %v5225, 6
        %v5438 = vrot.slane %v5228, 6
        %v5439 = vrot.slane %v5233, 6
        %v5440 = vrot.slane %v5236, 6
        %v5441 = vrot.slane %v5241, 6
        %v5442 = vrot.slane %v5244, 6
        %v5443 = vrot.slane %v5249, 6
        %v5444 = vrot.slane %v5252, 6
        %v5445 = vrot.slane %v5257, 6
        %v5446 = vrot.slane %v5260, 6
        %v5447 = vrot.slane %v5265, 6
        %v5448 = vrot.slane %v5268, 6
        %v5449 = vrot.slane %v5273, 6
        %v5450 = vrot.slane %v5276, 6
        %v5451 = vrot.slane %v5281, 6
        %v5452 = vrot.slane %v5284, 6
        %v5453 = vrot.slane %v5289, 6
        %v5454 = vrot.slane %v5292, 6
        %v5455 = vrot.slane %v5297, 6
        %v5456 = vrot.slane %v5300, 6
        %v5457 = vrot.slane %v5305, 6
        %v5458 = vrot.slane %v5308, 6
        %v5459 = vrot.slane %v5313, 6
        %v5460 = vrot.slane %v5316, 6
        %v5461 = vrot.slane %v5321, 6
        %v5462 = vrot.slane %v5324, 6
        %v5463 = vrot.slane %v5329, 6
        %v5464 = vrot.slane %v5332, 6
        %v5465 = vrot.slane %v5337, 6
        %v5466 = vrot.slane %v5340, 6
        %v5467 = vrot.slane %v5345, 6
        %v5468 = vrot.slane %v5348, 6
        %v5469 = vrot.slane %v5353, 6
        %v5470 = vrot.slane %v5356, 6
        %v5471 = vrot.slane %v5361, 6
        %v5472 = vrot.slane %v5364, 6
        %v5473 = vrot.slane %v5369, 6
        %v5474 = vrot.slane %v5372, 6
        %v5475 = vrot.slane %v5377, 6
        %v5476 = vrot.slane %v5380, 6
        %v5477 = vrot.slane %v5385, 6
        %v5478 = vrot.slane %v5388, 6
        %v5479 = vrot.slane %v5393, 6
        %v5480 = vrot.slane %v5396, 6
        %v5481 = vrot.slane %v5401, 6
        %v5482 = vrot.slane %v5404, 6
        %v5483 = vrot.slane %v5409, 6
        %v5484 = vrot.slane %v5412, 6
        %v5485 = vrot.slane %v5417, 6
        %v5486 = vrot.slane %v5420, 6
        %vm5487 = vcmp.lt.s32.totalorder %v1483, 2
        %v5488 = vsel %vm5487, %v5485, %v5486
        %v5489 = vsel %vm5487, %v5484, %v5485
        %v5490 = vsel %vm5487, %v5483, %v5484
        %v5491 = vsel %vm5487, %v5482, %v5483
        %v5492 = vsel %vm5487, %v5481, %v5482
        %v5493 = vsel %vm5487, %v5480, %v5481
        %v5494 = vsel %vm5487, %v5479, %v5480
        %v5495 = vsel %vm5487, %v5478, %v5479
        %v5496 = vsel %vm5487, %v5477, %v5478
        %v5497 = vsel %vm5487, %v5476, %v5477
        %v5498 = vsel %vm5487, %v5475, %v5476
        %v5499 = vsel %vm5487, %v5474, %v5475
        %v5500 = vsel %vm5487, %v5473, %v5474
        %v5501 = vsel %vm5487, %v5472, %v5473
        %v5502 = vsel %vm5487, %v5471, %v5472
        %v5503 = vsel %vm5487, %v5470, %v5471
        %v5504 = vsel %vm5487, %v5469, %v5470
        %v5505 = vsel %vm5487, %v5468, %v5469
        %v5506 = vsel %vm5487, %v5467, %v5468
        %v5507 = vsel %vm5487, %v5466, %v5467
        %v5508 = vsel %vm5487, %v5465, %v5466
        %v5509 = vsel %vm5487, %v5464, %v5465
        %v5510 = vsel %vm5487, %v5463, %v5464
        %v5511 = vsel %vm5487, %v5462, %v5463
        %v5512 = vsel %vm5487, %v5461, %v5462
        %v5513 = vsel %vm5487, %v5460, %v5461
        %v5514 = vsel %vm5487, %v5459, %v5460
        %v5515 = vsel %vm5487, %v5458, %v5459
        %v5516 = vsel %vm5487, %v5457, %v5458
        %v5517 = vsel %vm5487, %v5456, %v5457
        %v5518 = vsel %vm5487, %v5455, %v5456
        %v5519 = vsel %vm5487, %v5454, %v5455
        %v5520 = vsel %vm5487, %v5453, %v5454
        %v5521 = vsel %vm5487, %v5452, %v5453
        %v5522 = vsel %vm5487, %v5451, %v5452
        %v5523 = vsel %vm5487, %v5450, %v5451
        %v5524 = vsel %vm5487, %v5449, %v5450
        %v5525 = vsel %vm5487, %v5448, %v5449
        %v5526 = vsel %vm5487, %v5447, %v5448
        %v5527 = vsel %vm5487, %v5446, %v5447
        %v5528 = vsel %vm5487, %v5445, %v5446
        %v5529 = vsel %vm5487, %v5444, %v5445
        %v5530 = vsel %vm5487, %v5443, %v5444
        %v5531 = vsel %vm5487, %v5442, %v5443
        %v5532 = vsel %vm5487, %v5441, %v5442
        %v5533 = vsel %vm5487, %v5440, %v5441
        %v5534 = vsel %vm5487, %v5439, %v5440
        %v5535 = vsel %vm5487, %v5438, %v5439
        %v5536 = vsel %vm5487, %v5437, %v5438
        %v5537 = vsel %vm5487, %v5436, %v5437
        %v5538 = vsel %vm5487, %v5435, %v5436
        %v5539 = vsel %vm5487, %v5434, %v5435
        %v5540 = vsel %vm5487, %v5433, %v5434
        %v5541 = vsel %vm5487, %v5432, %v5433
        %v5542 = vsel %vm5487, %v5431, %v5432
        %v5543 = vsel %vm5487, %v5430, %v5431
        %v5544 = vsel %vm5487, %v5429, %v5430
        %v5545 = vsel %vm5487, %v5428, %v5429
        %v5546 = vsel %vm5487, %v5427, %v5428
        %v5547 = vsel %vm5487, %v5426, %v5427
        %v5548 = vsel %vm5487, %v5425, %v5426
        %v5549 = vsel %vm5487, %v5424, %v5425
        %v5550 = vsel %vm5487, %v5423, %v5424
        %v5551 = vsel %vm5487, %v5486, %v5423
        %s5552 = scalar_lea.vmem %s6, 64
        %v5553 = vld [vmem:[%s5552] sm:$0xf]
        %v5554 = vld [vmem:[%s5552 + $0x4] sm:$0xf]
        %v5555 = vld [vmem:[%s5552 + $0x8] sm:$0xf]
        %v5556 = vld [vmem:[%s5552 + $0xc] sm:$0xf]
        %v5557 = vld [vmem:[%s5552 + $0x10] sm:$0xf]
        %v5558 = vld [vmem:[%s5552 + $0x14] sm:$0xf]
        %v5559 = vld [vmem:[%s5552 + $0x18] sm:$0xf]
        %v5560 = vld [vmem:[%s5552 + $0x1c] sm:$0xf]
        %v5561 = vld [vmem:[%s5552 + $0x20] sm:$0xf]
        %v5562 = vld [vmem:[%s5552 + $0x24] sm:$0xf]
        %v5563 = vld [vmem:[%s5552 + $0x28] sm:$0xf]
        %v5564 = vld [vmem:[%s5552 + $0x2c] sm:$0xf]
        %v5565 = vld [vmem:[%s5552 + $0x30] sm:$0xf]
        %v5566 = vld [vmem:[%s5552 + $0x34] sm:$0xf]
        %v5567 = vld [vmem:[%s5552 + $0x38] sm:$0xf]
        %v5568 = vld [vmem:[%s5552 + $0x3c] sm:$0xf]
        %v5585 = vunpack.c.l.b16 %v5553
        %v5586 = vunpack.c.l.b16 %v5554
        %v5587 = vunpack.c.l.b16 %v5555
        %v5588 = vunpack.c.l.b16 %v5556
        %v5589 = vunpack.c.l.b16 %v5557
        %v5590 = vunpack.c.l.b16 %v5558
        %v5591 = vunpack.c.l.b16 %v5559
        %v5592 = vunpack.c.l.b16 %v5560
        %v5593 = vunpack.c.l.b16 %v5561
        %v5594 = vunpack.c.l.b16 %v5562
        %v5595 = vunpack.c.l.b16 %v5563
        %v5596 = vunpack.c.l.b16 %v5564
        %v5597 = vunpack.c.l.b16 %v5565
        %v5598 = vunpack.c.l.b16 %v5566
        %v5599 = vunpack.c.l.b16 %v5567
        %v5600 = vunpack.c.l.b16 %v5568
        %v5601 = vpack.c.b16 %v5586, %v5585
        %v5602 = vpack.c.b16 %v5588, %v5587
        %v5603 = vpack.c.b16 %v5590, %v5589
        %v5604 = vpack.c.b16 %v5592, %v5591
        %v5605 = vpack.c.b16 %v5594, %v5593
        %v5606 = vpack.c.b16 %v5596, %v5595
        %v5607 = vpack.c.b16 %v5598, %v5597
        %v5608 = vpack.c.b16 %v5600, %v5599
        %5617 = vmatprep.subr.bf16.mxu0 0
        %5618 = vmatpush1.bf16.msra.mxu0 %v5601
        %5619 = vmatprep.subr.bf16.mxu0 0
        %5620 = vmatpush1.bf16.msra.mxu0 %v5602
        %5621 = vmatprep.subr.bf16.mxu0 0
        %5622 = vmatpush1.bf16.msra.mxu0 %v5603
        %5623 = vmatprep.subr.bf16.mxu0 0
        %5624 = vmatpush1.bf16.msra.mxu0 %v5604
        %5625 = vmatprep.subr.bf16.mxu0 0
        %5626 = vmatpush1.bf16.msra.mxu0 %v5605
        %5627 = vmatprep.subr.bf16.mxu0 0
        %5628 = vmatpush1.bf16.msra.mxu0 %v5606
        %5629 = vmatprep.subr.bf16.mxu0 0
        %5630 = vmatpush1.bf16.msra.mxu0 %v5607
        %5631 = vmatprep.subr.bf16.mxu0 0
        %5632 = vmatpush1.bf16.msra.mxu0 %v5608
        %5633 = vmatprep.subr.bf16.mxu0 0
        %5634 = vmatpush1.bf16.msra.mxu0 0
        %5635 = vmatprep.subr.bf16.mxu0 0
        %5636 = vmatpush1.bf16.msra.mxu0 0
        %5637 = vmatprep.subr.bf16.mxu0 0
        %5638 = vmatpush1.bf16.msra.mxu0 0
        %5639 = vmatprep.subr.bf16.mxu0 0
        %5640 = vmatpush1.bf16.msra.mxu0 0
        %5641 = vmatprep.subr.bf16.mxu0 0
        %5642 = vmatpush1.bf16.msra.mxu0 0
        %5643 = vmatprep.subr.bf16.mxu0 0
        %5644 = vmatpush1.bf16.msra.mxu0 0
        %5645 = vmatprep.subr.bf16.mxu0 0
        %5646 = vmatpush1.bf16.msra.mxu0 0
        %5647 = vmatprep.subr.bf16.mxu0 0
        %5648 = vmatpush1.bf16.msra.mxu0 0
        %5649 = vmatprep.mubr.bf16.mxu0 0
        %5650 = vmatmul.mubr.bf16.gmra.mrb[0].mxu0 %v5038
        %v5651 = vpop.f32.mrb[0].mxu0
        %v5652 = vadd.f32 0.0, %v5651
        %v5653 = vpop.f32.mrb[0].mxu0
        %v5654 = vpop.f32.mrb[0].mxu0
        %v5655 = vadd.f32 0.0, %v5654
        %v5656 = vpop.f32.mrb[0].mxu0
        %5657 = vmatprep.mubr.bf16.mxu0 0
        %5658 = vmatmul.mubr.bf16.gmra.mrb[0].mxu0 %v5039
        %v5659 = vpop.f32.mrb[0].mxu0
        %v5660 = vadd.f32 0.0, %v5659
        %v5661 = vpop.f32.mrb[0].mxu0
        %v5662 = vpop.f32.mrb[0].mxu0
        %v5663 = vadd.f32 0.0, %v5662
        %v5664 = vpop.f32.mrb[0].mxu0
        %5665 = vmatprep.mubr.bf16.mxu0 0
        %5666 = vmatmul.mubr.bf16.gmra.mrb[0].mxu0 %v5040
        %v5667 = vpop.f32.mrb[0].mxu0
        %v5668 = vadd.f32 0.0, %v5667
        %v5669 = vpop.f32.mrb[0].mxu0
        %v5670 = vpop.f32.mrb[0].mxu0
        %v5671 = vadd.f32 0.0, %v5670
        %v5672 = vpop.f32.mrb[0].mxu0
        %5673 = vmatprep.mubr.bf16.mxu0 0
        %5674 = vmatmul.mubr.bf16.gmra.mrb[0].mxu0 %v5041
        %v5675 = vpop.f32.mrb[0].mxu0
        %v5676 = vadd.f32 0.0, %v5675
        %v5677 = vpop.f32.mrb[0].mxu0
        %v5678 = vpop.f32.mrb[0].mxu0
        %v5679 = vadd.f32 0.0, %v5678
        %v5680 = vpop.f32.mrb[0].mxu0
        %5681 = vmatprep.mubr.bf16.mxu0 0
        %5682 = vmatmul.mubr.bf16.gmra.mrb[0].mxu0 %v5042
        %v5683 = vpop.f32.mrb[0].mxu0
        %v5684 = vadd.f32 0.0, %v5683
        %v5685 = vpop.f32.mrb[0].mxu0
        %v5686 = vpop.f32.mrb[0].mxu0
        %v5687 = vadd.f32 0.0, %v5686
        %v5688 = vpop.f32.mrb[0].mxu0
        %5689 = vmatprep.mubr.bf16.mxu0 0
        %5690 = vmatmul.mubr.bf16.gmra.mrb[0].mxu0 %v5043
        %v5691 = vpop.f32.mrb[0].mxu0
        %v5692 = vadd.f32 0.0, %v5691
        %v5693 = vpop.f32.mrb[0].mxu0
        %v5694 = vpop.f32.mrb[0].mxu0
        %v5695 = vadd.f32 0.0, %v5694
        %v5696 = vpop.f32.mrb[0].mxu0
        %5697 = vmatprep.mubr.bf16.mxu0 0
        %5698 = vmatmul.mubr.bf16.gmra.mrb[0].mxu0 %v5044
        %v5699 = vpop.f32.mrb[0].mxu0
        %v5700 = vadd.f32 0.0, %v5699
        %v5701 = vpop.f32.mrb[0].mxu0
        %v5702 = vpop.f32.mrb[0].mxu0
        %v5703 = vadd.f32 0.0, %v5702
        %v5704 = vpop.f32.mrb[0].mxu0
        %5705 = vmatprep.mubr.bf16.mxu0 0
        %5706 = vmatmul.mubr.bf16.gmra.mrb[0].mxu0 %v5045
        %v5707 = vpop.f32.mrb[0].mxu0
        %v5708 = vadd.f32 0.0, %v5707
        %v5709 = vpop.f32.mrb[0].mxu0
        %v5710 = vpop.f32.mrb[0].mxu0
        %v5711 = vadd.f32 0.0, %v5710
        %v5712 = vpop.f32.mrb[0].mxu0
        %5713 = vmatprep.mubr.bf16.mxu0 0
        %5714 = vmatmul.mubr.bf16.gmra.mrb[0].mxu0 %v5046
        %v5715 = vpop.f32.mrb[0].mxu0
        %v5716 = vadd.f32 0.0, %v5715
        %v5717 = vpop.f32.mrb[0].mxu0
        %v5718 = vpop.f32.mrb[0].mxu0
        %v5719 = vadd.f32 0.0, %v5718
        %v5720 = vpop.f32.mrb[0].mxu0
        %5721 = vmatprep.mubr.bf16.mxu0 0
        %5722 = vmatmul.mubr.bf16.gmra.mrb[0].mxu0 %v5047
        %v5723 = vpop.f32.mrb[0].mxu0
        %v5724 = vadd.f32 0.0, %v5723
        %v5725 = vpop.f32.mrb[0].mxu0
        %v5726 = vpop.f32.mrb[0].mxu0
        %v5727 = vadd.f32 0.0, %v5726
        %v5728 = vpop.f32.mrb[0].mxu0
        %5729 = vmatprep.mubr.bf16.mxu0 0
        %5730 = vmatmul.mubr.bf16.gmra.mrb[0].mxu0 %v5048
        %v5731 = vpop.f32.mrb[0].mxu0
        %v5732 = vadd.f32 0.0, %v5731
        %v5733 = vpop.f32.mrb[0].mxu0
        %v5734 = vpop.f32.mrb[0].mxu0
        %v5735 = vadd.f32 0.0, %v5734
        %v5736 = vpop.f32.mrb[0].mxu0
        %5737 = vmatprep.mubr.bf16.mxu0 0
        %5738 = vmatmul.mubr.bf16.gmra.mrb[0].mxu0 %v5049
        %v5739 = vpop.f32.mrb[0].mxu0
        %v5740 = vadd.f32 0.0, %v5739
        %v5741 = vpop.f32.mrb[0].mxu0
        %v5742 = vpop.f32.mrb[0].mxu0
        %v5743 = vadd.f32 0.0, %v5742
        %v5744 = vpop.f32.mrb[0].mxu0
        %5745 = vmatprep.mubr.bf16.mxu0 0
        %5746 = vmatmul.mubr.bf16.gmra.mrb[0].mxu0 %v5050
        %v5747 = vpop.f32.mrb[0].mxu0
        %v5748 = vadd.f32 0.0, %v5747
        %v5749 = vpop.f32.mrb[0].mxu0
        %v5750 = vpop.f32.mrb[0].mxu0
        %v5751 = vadd.f32 0.0, %v5750
        %v5752 = vpop.f32.mrb[0].mxu0
        %5753 = vmatprep.mubr.bf16.mxu0 0
        %5754 = vmatmul.mubr.bf16.gmra.mrb[0].mxu0 %v5051
        %v5755 = vpop.f32.mrb[0].mxu0
        %v5756 = vadd.f32 0.0, %v5755
        %v5757 = vpop.f32.mrb[0].mxu0
        %v5758 = vpop.f32.mrb[0].mxu0
        %v5759 = vadd.f32 0.0, %v5758
        %v5760 = vpop.f32.mrb[0].mxu0
        %5761 = vmatprep.mubr.bf16.mxu0 0
        %5762 = vmatmul.mubr.bf16.gmra.mrb[0].mxu0 %v5052
        %v5763 = vpop.f32.mrb[0].mxu0
        %v5764 = vadd.f32 0.0, %v5763
        %v5765 = vpop.f32.mrb[0].mxu0
        %v5766 = vpop.f32.mrb[0].mxu0
        %v5767 = vadd.f32 0.0, %v5766
        %v5768 = vpop.f32.mrb[0].mxu0
        %5769 = vmatprep.mubr.bf16.mxu0 0
        %5770 = vmatmul.mubr.bf16.gmra.mrb[0].mxu0 %v5053
        %v5771 = vpop.f32.mrb[0].mxu0
        %v5772 = vadd.f32 0.0, %v5771
        %v5773 = vpop.f32.mrb[0].mxu0
        %v5774 = vpop.f32.mrb[0].mxu0
        %v5775 = vadd.f32 0.0, %v5774
        %v5776 = vpop.f32.mrb[0].mxu0
        %5777 = vmatprep.mubr.bf16.mxu0 0
        %5778 = vmatmul.mubr.bf16.gmra.mrb[0].mxu0 %v5054
        %v5779 = vpop.f32.mrb[0].mxu0
        %v5780 = vadd.f32 0.0, %v5779
        %v5781 = vpop.f32.mrb[0].mxu0
        %v5782 = vpop.f32.mrb[0].mxu0
        %v5783 = vadd.f32 0.0, %v5782
        %v5784 = vpop.f32.mrb[0].mxu0
        %5785 = vmatprep.mubr.bf16.mxu0 0
        %5786 = vmatmul.mubr.bf16.gmra.mrb[0].mxu0 %v5055
        %v5787 = vpop.f32.mrb[0].mxu0
        %v5788 = vadd.f32 0.0, %v5787
        %v5789 = vpop.f32.mrb[0].mxu0
        %v5790 = vpop.f32.mrb[0].mxu0
        %v5791 = vadd.f32 0.0, %v5790
        %v5792 = vpop.f32.mrb[0].mxu0
        %5793 = vmatprep.mubr.bf16.mxu0 0
        %5794 = vmatmul.mubr.bf16.gmra.mrb[0].mxu0 %v5056
        %v5795 = vpop.f32.mrb[0].mxu0
        %v5796 = vadd.f32 0.0, %v5795
        %v5797 = vpop.f32.mrb[0].mxu0
        %v5798 = vpop.f32.mrb[0].mxu0
        %v5799 = vadd.f32 0.0, %v5798
        %v5800 = vpop.f32.mrb[0].mxu0
        %5801 = vmatprep.mubr.bf16.mxu0 0
        %5802 = vmatmul.mubr.bf16.gmra.mrb[0].mxu0 %v5057
        %v5803 = vpop.f32.mrb[0].mxu0
        %v5804 = vadd.f32 0.0, %v5803
        %v5805 = vpop.f32.mrb[0].mxu0
        %v5806 = vpop.f32.mrb[0].mxu0
        %v5807 = vadd.f32 0.0, %v5806
        %v5808 = vpop.f32.mrb[0].mxu0
        %5809 = vmatprep.mubr.bf16.mxu0 0
        %5810 = vmatmul.mubr.bf16.gmra.mrb[0].mxu0 %v5058
        %v5811 = vpop.f32.mrb[0].mxu0
        %v5812 = vadd.f32 0.0, %v5811
        %v5813 = vpop.f32.mrb[0].mxu0
        %v5814 = vpop.f32.mrb[0].mxu0
        %v5815 = vadd.f32 0.0, %v5814
        %v5816 = vpop.f32.mrb[0].mxu0
        %5817 = vmatprep.mubr.bf16.mxu0 0
        %5818 = vmatmul.mubr.bf16.gmra.mrb[0].mxu0 %v5059
        %v5819 = vpop.f32.mrb[0].mxu0
        %v5820 = vadd.f32 0.0, %v5819
        %v5821 = vpop.f32.mrb[0].mxu0
        %v5822 = vpop.f32.mrb[0].mxu0
        %v5823 = vadd.f32 0.0, %v5822
        %v5824 = vpop.f32.mrb[0].mxu0
        %5825 = vmatprep.mubr.bf16.mxu0 0
        %5826 = vmatmul.mubr.bf16.gmra.mrb[0].mxu0 %v5060
        %v5827 = vpop.f32.mrb[0].mxu0
        %v5828 = vadd.f32 0.0, %v5827
        %v5829 = vpop.f32.mrb[0].mxu0
        %v5830 = vpop.f32.mrb[0].mxu0
        %v5831 = vadd.f32 0.0, %v5830
        %v5832 = vpop.f32.mrb[0].mxu0
        %5833 = vmatprep.mubr.bf16.mxu0 0
        %5834 = vmatmul.mubr.bf16.gmra.mrb[0].mxu0 %v5061
        %v5835 = vpop.f32.mrb[0].mxu0
        %v5836 = vadd.f32 0.0, %v5835
        %v5837 = vpop.f32.mrb[0].mxu0
        %v5838 = vpop.f32.mrb[0].mxu0
        %v5839 = vadd.f32 0.0, %v5838
        %v5840 = vpop.f32.mrb[0].mxu0
        %5841 = vmatprep.mubr.bf16.mxu0 0
        %5842 = vmatmul.mubr.bf16.gmra.mrb[0].mxu0 %v5062
        %v5843 = vpop.f32.mrb[0].mxu0
        %v5844 = vadd.f32 0.0, %v5843
        %v5845 = vpop.f32.mrb[0].mxu0
        %v5846 = vpop.f32.mrb[0].mxu0
        %v5847 = vadd.f32 0.0, %v5846
        %v5848 = vpop.f32.mrb[0].mxu0
        %5849 = vmatprep.mubr.bf16.mxu0 0
        %5850 = vmatmul.mubr.bf16.gmra.mrb[0].mxu0 %v5063
        %v5851 = vpop.f32.mrb[0].mxu0
        %v5852 = vadd.f32 0.0, %v5851
        %v5853 = vpop.f32.mrb[0].mxu0
        %v5854 = vpop.f32.mrb[0].mxu0
        %v5855 = vadd.f32 0.0, %v5854
        %v5856 = vpop.f32.mrb[0].mxu0
        %5857 = vmatprep.mubr.bf16.mxu0 0
        %5858 = vmatmul.mubr.bf16.gmra.mrb[0].mxu0 %v5064
        %v5859 = vpop.f32.mrb[0].mxu0
        %v5860 = vadd.f32 0.0, %v5859
        %v5861 = vpop.f32.mrb[0].mxu0
        %v5862 = vpop.f32.mrb[0].mxu0
        %v5863 = vadd.f32 0.0, %v5862
        %v5864 = vpop.f32.mrb[0].mxu0
        %5865 = vmatprep.mubr.bf16.mxu0 0
        %5866 = vmatmul.mubr.bf16.gmra.mrb[0].mxu0 %v5065
        %v5867 = vpop.f32.mrb[0].mxu0
        %v5868 = vadd.f32 0.0, %v5867
        %v5869 = vpop.f32.mrb[0].mxu0
        %v5870 = vpop.f32.mrb[0].mxu0
        %v5871 = vadd.f32 0.0, %v5870
        %v5872 = vpop.f32.mrb[0].mxu0
        %5873 = vmatprep.mubr.bf16.mxu0 0
        %5874 = vmatmul.mubr.bf16.gmra.mrb[0].mxu0 %v5066
        %v5875 = vpop.f32.mrb[0].mxu0
        %v5876 = vadd.f32 0.0, %v5875
        %v5877 = vpop.f32.mrb[0].mxu0
        %v5878 = vpop.f32.mrb[0].mxu0
        %v5879 = vadd.f32 0.0, %v5878
        %v5880 = vpop.f32.mrb[0].mxu0
        %5881 = vmatprep.mubr.bf16.mxu0 0
        %5882 = vmatmul.mubr.bf16.gmra.mrb[0].mxu0 %v5067
        %v5883 = vpop.f32.mrb[0].mxu0
        %v5884 = vadd.f32 0.0, %v5883
        %v5885 = vpop.f32.mrb[0].mxu0
        %v5886 = vpop.f32.mrb[0].mxu0
        %v5887 = vadd.f32 0.0, %v5886
        %v5888 = vpop.f32.mrb[0].mxu0
        %5889 = vmatprep.mubr.bf16.mxu0 0
        %5890 = vmatmul.mubr.bf16.gmra.mrb[0].mxu0 %v5068
        %v5891 = vpop.f32.mrb[0].mxu0
        %v5892 = vadd.f32 0.0, %v5891
        %v5893 = vpop.f32.mrb[0].mxu0
        %v5894 = vpop.f32.mrb[0].mxu0
        %v5895 = vadd.f32 0.0, %v5894
        %v5896 = vpop.f32.mrb[0].mxu0
        %5897 = vmatprep.mubr.bf16.mxu0 0
        %5898 = vmatmul.mubr.bf16.gmra.mrb[0].mxu0 %v5069
        %v5899 = vpop.f32.mrb[0].mxu0
        %v5900 = vadd.f32 0.0, %v5899
        %v5901 = vpop.f32.mrb[0].mxu0
        %v5902 = vpop.f32.mrb[0].mxu0
        %v5903 = vadd.f32 0.0, %v5902
        %v5904 = vpop.f32.mrb[0].mxu0
        %5905 = vdwg.mxu0
        %v5906 = vadd.f32 %v5551, %v5652
        %v5907 = vadd.f32 %v5550, %v5655
        %v5908 = vadd.f32 %v5549, %v5660
        %v5909 = vadd.f32 %v5548, %v5663
        %v5910 = vadd.f32 %v5547, %v5668
        %v5911 = vadd.f32 %v5546, %v5671
        %v5912 = vadd.f32 %v5545, %v5676
        %v5913 = vadd.f32 %v5544, %v5679
        %v5914 = vadd.f32 %v5543, %v5684
        %v5915 = vadd.f32 %v5542, %v5687
        %v5916 = vadd.f32 %v5541, %v5692
        %v5917 = vadd.f32 %v5540, %v5695
        %v5918 = vadd.f32 %v5539, %v5700
        %v5919 = vadd.f32 %v5538, %v5703
        %v5920 = vadd.f32 %v5537, %v5708
        %v5921 = vadd.f32 %v5536, %v5711
        %v5922 = vadd.f32 %v5535, %v5716
        %v5923 = vadd.f32 %v5534, %v5719
        %v5924 = vadd.f32 %v5533, %v5724
        %v5925 = vadd.f32 %v5532, %v5727
        %v5926 = vadd.f32 %v5531, %v5732
        %v5927 = vadd.f32 %v5530, %v5735
        %v5928 = vadd.f32 %v5529, %v5740
        %v5929 = vadd.f32 %v5528, %v5743
        %v5930 = vadd.f32 %v5527, %v5748
        %v5931 = vadd.f32 %v5526, %v5751
        %v5932 = vadd.f32 %v5525, %v5756
        %v5933 = vadd.f32 %v5524, %v5759
        %v5934 = vadd.f32 %v5523, %v5764
        %v5935 = vadd.f32 %v5522, %v5767
        %v5936 = vadd.f32 %v5521, %v5772
        %v5937 = vadd.f32 %v5520, %v5775
        %v5938 = vadd.f32 %v5519, %v5780
        %v5939 = vadd.f32 %v5518, %v5783
        %v5940 = vadd.f32 %v5517, %v5788
        %v5941 = vadd.f32 %v5516, %v5791
        %v5942 = vadd.f32 %v5515, %v5796
        %v5943 = vadd.f32 %v5514, %v5799
        %v5944 = vadd.f32 %v5513, %v5804
        %v5945 = vadd.f32 %v5512, %v5807
        %v5946 = vadd.f32 %v5511, %v5812
        %v5947 = vadd.f32 %v5510, %v5815
        %v5948 = vadd.f32 %v5509, %v5820
        %v5949 = vadd.f32 %v5508, %v5823
        %v5950 = vadd.f32 %v5507, %v5828
        %v5951 = vadd.f32 %v5506, %v5831
        %v5952 = vadd.f32 %v5505, %v5836
        %v5953 = vadd.f32 %v5504, %v5839
        %v5954 = vadd.f32 %v5503, %v5844
        %v5955 = vadd.f32 %v5502, %v5847
        %v5956 = vadd.f32 %v5501, %v5852
        %v5957 = vadd.f32 %v5500, %v5855
        %v5958 = vadd.f32 %v5499, %v5860
        %v5959 = vadd.f32 %v5498, %v5863
        %v5960 = vadd.f32 %v5497, %v5868
        %v5961 = vadd.f32 %v5496, %v5871
        %v5962 = vadd.f32 %v5495, %v5876
        %v5963 = vadd.f32 %v5494, %v5879
        %v5964 = vadd.f32 %v5493, %v5884
        %v5965 = vadd.f32 %v5492, %v5887
        %v5966 = vadd.f32 %v5491, %v5892
        %v5967 = vadd.f32 %v5490, %v5895
        %v5968 = vadd.f32 %v5489, %v5900
        %v5969 = vadd.f32 %v5488, %v5903
        %s5970 = scalar_lea.vmem %s6, 128
        %v5971 = vld [vmem:[%s5970] sm:$0xf]
        %v5972 = vld [vmem:[%s5970 + $0x4] sm:$0xf]
        %v5973 = vld [vmem:[%s5970 + $0x8] sm:$0xf]
        %v5974 = vld [vmem:[%s5970 + $0xc] sm:$0xf]
        %v5975 = vld [vmem:[%s5970 + $0x10] sm:$0xf]
        %v5976 = vld [vmem:[%s5970 + $0x14] sm:$0xf]
        %v5977 = vld [vmem:[%s5970 + $0x18] sm:$0xf]
        %v5978 = vld [vmem:[%s5970 + $0x1c] sm:$0xf]
        %v5979 = vld [vmem:[%s5970 + $0x20] sm:$0xf]
        %v5980 = vld [vmem:[%s5970 + $0x24] sm:$0xf]
        %v5981 = vld [vmem:[%s5970 + $0x28] sm:$0xf]
        %v5982 = vld [vmem:[%s5970 + $0x2c] sm:$0xf]
        %v5983 = vld [vmem:[%s5970 + $0x30] sm:$0xf]
        %v5984 = vld [vmem:[%s5970 + $0x34] sm:$0xf]
        %v5985 = vld [vmem:[%s5970 + $0x38] sm:$0xf]
        %v5986 = vld [vmem:[%s5970 + $0x3c] sm:$0xf]
        %v6003 = vunpack.c.l.b16 %v5971
        %v6004 = vunpack.c.l.b16 %v5972
        %v6005 = vunpack.c.l.b16 %v5973
        %v6006 = vunpack.c.l.b16 %v5974
        %v6007 = vunpack.c.l.b16 %v5975
        %v6008 = vunpack.c.l.b16 %v5976
        %v6009 = vunpack.c.l.b16 %v5977
        %v6010 = vunpack.c.l.b16 %v5978
        %v6011 = vunpack.c.l.b16 %v5979
        %v6012 = vunpack.c.l.b16 %v5980
        %v6013 = vunpack.c.l.b16 %v5981
        %v6014 = vunpack.c.l.b16 %v5982
        %v6015 = vunpack.c.l.b16 %v5983
        %v6016 = vunpack.c.l.b16 %v5984
        %v6017 = vunpack.c.l.b16 %v5985
        %v6018 = vunpack.c.l.b16 %v5986
        %v6019 = vpack.c.b16 %v6004, %v6003
        %v6020 = vpack.c.b16 %v6006, %v6005
        %v6021 = vpack.c.b16 %v6008, %v6007
        %v6022 = vpack.c.b16 %v6010, %v6009
        %v6023 = vpack.c.b16 %v6012, %v6011
        %v6024 = vpack.c.b16 %v6014, %v6013
        %v6025 = vpack.c.b16 %v6016, %v6015
        %v6026 = vpack.c.b16 %v6018, %v6017
        %6035 = vmatprep.subr.bf16.mxu0 0
        %6036 = vmatpush1.bf16.msra.mxu0 %v6019
        %6037 = vmatprep.subr.bf16.mxu0 0
        %6038 = vmatpush1.bf16.msra.mxu0 %v6020
        %6039 = vmatprep.subr.bf16.mxu0 0
        %6040 = vmatpush1.bf16.msra.mxu0 %v6021
        %6041 = vmatprep.subr.bf16.mxu0 0
        %6042 = vmatpush1.bf16.msra.mxu0 %v6022
        %6043 = vmatprep.subr.bf16.mxu0 0
        %6044 = vmatpush1.bf16.msra.mxu0 %v6023
        %6045 = vmatprep.subr.bf16.mxu0 0
        %6046 = vmatpush1.bf16.msra.mxu0 %v6024
        %6047 = vmatprep.subr.bf16.mxu0 0
        %6048 = vmatpush1.bf16.msra.mxu0 %v6025
        %6049 = vmatprep.subr.bf16.mxu0 0
        %6050 = vmatpush1.bf16.msra.mxu0 %v6026
        %6051 = vmatprep.subr.bf16.mxu0 0
        %6052 = vmatpush1.bf16.msra.mxu0 0
        %6053 = vmatprep.subr.bf16.mxu0 0
        %6054 = vmatpush1.bf16.msra.mxu0 0
        %6055 = vmatprep.subr.bf16.mxu0 0
        %6056 = vmatpush1.bf16.msra.mxu0 0
        %6057 = vmatprep.subr.bf16.mxu0 0
        %6058 = vmatpush1.bf16.msra.mxu0 0
        %6059 = vmatprep.subr.bf16.mxu0 0
        %6060 = vmatpush1.bf16.msra.mxu0 0
        %6061 = vmatprep.subr.bf16.mxu0 0
        %6062 = vmatpush1.bf16.msra.mxu0 0
        %6063 = vmatprep.subr.bf16.mxu0 0
        %6064 = vmatpush1.bf16.msra.mxu0 0
        %6065 = vmatprep.subr.bf16.mxu0 0
        %6066 = vmatpush1.bf16.msra.mxu0 0
        %6067 = vmatprep.mubr.bf16.mxu0 0
        %6068 = vmatmul.mubr.bf16.gmra.mrb[0].mxu0 %v5038
        %v6069 = vpop.f32.mrb[0].mxu0
        %v6070 = vadd.f32 0.0, %v6069
        %v6071 = vpop.f32.mrb[0].mxu0
        %v6072 = vpop.f32.mrb[0].mxu0
        %v6073 = vadd.f32 0.0, %v6072
        %v6074 = vpop.f32.mrb[0].mxu0
        %6075 = vmatprep.mubr.bf16.mxu0 0
        %6076 = vmatmul.mubr.bf16.gmra.mrb[0].mxu0 %v5039
        %v6077 = vpop.f32.mrb[0].mxu0
        %v6078 = vadd.f32 0.0, %v6077
        %v6079 = vpop.f32.mrb[0].mxu0
        %v6080 = vpop.f32.mrb[0].mxu0
        %v6081 = vadd.f32 0.0, %v6080
        %v6082 = vpop.f32.mrb[0].mxu0
        %6083 = vmatprep.mubr.bf16.mxu0 0
        %6084 = vmatmul.mubr.bf16.gmra.mrb[0].mxu0 %v5040
        %v6085 = vpop.f32.mrb[0].mxu0
        %v6086 = vadd.f32 0.0, %v6085
        %v6087 = vpop.f32.mrb[0].mxu0
        %v6088 = vpop.f32.mrb[0].mxu0
        %v6089 = vadd.f32 0.0, %v6088
        %v6090 = vpop.f32.mrb[0].mxu0
        %6091 = vmatprep.mubr.bf16.mxu0 0
        %6092 = vmatmul.mubr.bf16.gmra.mrb[0].mxu0 %v5041
        %v6093 = vpop.f32.mrb[0].mxu0
        %v6094 = vadd.f32 0.0, %v6093
        %v6095 = vpop.f32.mrb[0].mxu0
        %v6096 = vpop.f32.mrb[0].mxu0
        %v6097 = vadd.f32 0.0, %v6096
        %v6098 = vpop.f32.mrb[0].mxu0
        %6099 = vmatprep.mubr.bf16.mxu0 0
        %6100 = vmatmul.mubr.bf16.gmra.mrb[0].mxu0 %v5042
        %v6101 = vpop.f32.mrb[0].mxu0
        %v6102 = vadd.f32 0.0, %v6101
        %v6103 = vpop.f32.mrb[0].mxu0
        %v6104 = vpop.f32.mrb[0].mxu0
        %v6105 = vadd.f32 0.0, %v6104
        %v6106 = vpop.f32.mrb[0].mxu0
        %6107 = vmatprep.mubr.bf16.mxu0 0
        %6108 = vmatmul.mubr.bf16.gmra.mrb[0].mxu0 %v5043
        %v6109 = vpop.f32.mrb[0].mxu0
        %v6110 = vadd.f32 0.0, %v6109
        %v6111 = vpop.f32.mrb[0].mxu0
        %v6112 = vpop.f32.mrb[0].mxu0
        %v6113 = vadd.f32 0.0, %v6112
        %v6114 = vpop.f32.mrb[0].mxu0
        %6115 = vmatprep.mubr.bf16.mxu0 0
        %6116 = vmatmul.mubr.bf16.gmra.mrb[0].mxu0 %v5044
        %v6117 = vpop.f32.mrb[0].mxu0
        %v6118 = vadd.f32 0.0, %v6117
        %v6119 = vpop.f32.mrb[0].mxu0
        %v6120 = vpop.f32.mrb[0].mxu0
        %v6121 = vadd.f32 0.0, %v6120
        %v6122 = vpop.f32.mrb[0].mxu0
        %6123 = vmatprep.mubr.bf16.mxu0 0
        %6124 = vmatmul.mubr.bf16.gmra.mrb[0].mxu0 %v5045
        %v6125 = vpop.f32.mrb[0].mxu0
        %v6126 = vadd.f32 0.0, %v6125
        %v6127 = vpop.f32.mrb[0].mxu0
        %v6128 = vpop.f32.mrb[0].mxu0
        %v6129 = vadd.f32 0.0, %v6128
        %v6130 = vpop.f32.mrb[0].mxu0
        %6131 = vmatprep.mubr.bf16.mxu0 0
        %6132 = vmatmul.mubr.bf16.gmra.mrb[0].mxu0 %v5046
        %v6133 = vpop.f32.mrb[0].mxu0
        %v6134 = vadd.f32 0.0, %v6133
        %v6135 = vpop.f32.mrb[0].mxu0
        %v6136 = vpop.f32.mrb[0].mxu0
        %v6137 = vadd.f32 0.0, %v6136
        %v6138 = vpop.f32.mrb[0].mxu0
        %6139 = vmatprep.mubr.bf16.mxu0 0
        %6140 = vmatmul.mubr.bf16.gmra.mrb[0].mxu0 %v5047
        %v6141 = vpop.f32.mrb[0].mxu0
        %v6142 = vadd.f32 0.0, %v6141
        %v6143 = vpop.f32.mrb[0].mxu0
        %v6144 = vpop.f32.mrb[0].mxu0
        %v6145 = vadd.f32 0.0, %v6144
        %v6146 = vpop.f32.mrb[0].mxu0
        %6147 = vmatprep.mubr.bf16.mxu0 0
        %6148 = vmatmul.mubr.bf16.gmra.mrb[0].mxu0 %v5048
        %v6149 = vpop.f32.mrb[0].mxu0
        %v6150 = vadd.f32 0.0, %v6149
        %v6151 = vpop.f32.mrb[0].mxu0
        %v6152 = vpop.f32.mrb[0].mxu0
        %v6153 = vadd.f32 0.0, %v6152
        %v6154 = vpop.f32.mrb[0].mxu0
        %6155 = vmatprep.mubr.bf16.mxu0 0
        %6156 = vmatmul.mubr.bf16.gmra.mrb[0].mxu0 %v5049
        %v6157 = vpop.f32.mrb[0].mxu0
        %v6158 = vadd.f32 0.0, %v6157
        %v6159 = vpop.f32.mrb[0].mxu0
        %v6160 = vpop.f32.mrb[0].mxu0
        %v6161 = vadd.f32 0.0, %v6160
        %v6162 = vpop.f32.mrb[0].mxu0
        %6163 = vmatprep.mubr.bf16.mxu0 0
        %6164 = vmatmul.mubr.bf16.gmra.mrb[0].mxu0 %v5050
        %v6165 = vpop.f32.mrb[0].mxu0
        %v6166 = vadd.f32 0.0, %v6165
        %v6167 = vpop.f32.mrb[0].mxu0
        %v6168 = vpop.f32.mrb[0].mxu0
        %v6169 = vadd.f32 0.0, %v6168
        %v6170 = vpop.f32.mrb[0].mxu0
        %6171 = vmatprep.mubr.bf16.mxu0 0
        %6172 = vmatmul.mubr.bf16.gmra.mrb[0].mxu0 %v5051
        %v6173 = vpop.f32.mrb[0].mxu0
        %v6174 = vadd.f32 0.0, %v6173
        %v6175 = vpop.f32.mrb[0].mxu0
        %v6176 = vpop.f32.mrb[0].mxu0
        %v6177 = vadd.f32 0.0, %v6176
        %v6178 = vpop.f32.mrb[0].mxu0
        %6179 = vmatprep.mubr.bf16.mxu0 0
        %6180 = vmatmul.mubr.bf16.gmra.mrb[0].mxu0 %v5052
        %v6181 = vpop.f32.mrb[0].mxu0
        %v6182 = vadd.f32 0.0, %v6181
        %v6183 = vpop.f32.mrb[0].mxu0
        %v6184 = vpop.f32.mrb[0].mxu0
        %v6185 = vadd.f32 0.0, %v6184
        %v6186 = vpop.f32.mrb[0].mxu0
        %6187 = vmatprep.mubr.bf16.mxu0 0
        %6188 = vmatmul.mubr.bf16.gmra.mrb[0].mxu0 %v5053
        %v6189 = vpop.f32.mrb[0].mxu0
        %v6190 = vadd.f32 0.0, %v6189
        %v6191 = vpop.f32.mrb[0].mxu0
        %v6192 = vpop.f32.mrb[0].mxu0
        %v6193 = vadd.f32 0.0, %v6192
        %v6194 = vpop.f32.mrb[0].mxu0
        %6195 = vmatprep.mubr.bf16.mxu0 0
        %6196 = vmatmul.mubr.bf16.gmra.mrb[0].mxu0 %v5054
        %v6197 = vpop.f32.mrb[0].mxu0
        %v6198 = vadd.f32 0.0, %v6197
        %v6199 = vpop.f32.mrb[0].mxu0
        %v6200 = vpop.f32.mrb[0].mxu0
        %v6201 = vadd.f32 0.0, %v6200
        %v6202 = vpop.f32.mrb[0].mxu0
        %6203 = vmatprep.mubr.bf16.mxu0 0
        %6204 = vmatmul.mubr.bf16.gmra.mrb[0].mxu0 %v5055
        %v6205 = vpop.f32.mrb[0].mxu0
        %v6206 = vadd.f32 0.0, %v6205
        %v6207 = vpop.f32.mrb[0].mxu0
        %v6208 = vpop.f32.mrb[0].mxu0
        %v6209 = vadd.f32 0.0, %v6208
        %v6210 = vpop.f32.mrb[0].mxu0
        %6211 = vmatprep.mubr.bf16.mxu0 0
        %6212 = vmatmul.mubr.bf16.gmra.mrb[0].mxu0 %v5056
        %v6213 = vpop.f32.mrb[0].mxu0
        %v6214 = vadd.f32 0.0, %v6213
        %v6215 = vpop.f32.mrb[0].mxu0
        %v6216 = vpop.f32.mrb[0].mxu0
        %v6217 = vadd.f32 0.0, %v6216
        %v6218 = vpop.f32.mrb[0].mxu0
        %6219 = vmatprep.mubr.bf16.mxu0 0
        %6220 = vmatmul.mubr.bf16.gmra.mrb[0].mxu0 %v5057
        %v6221 = vpop.f32.mrb[0].mxu0
        %v6222 = vadd.f32 0.0, %v6221
        %v6223 = vpop.f32.mrb[0].mxu0
        %v6224 = vpop.f32.mrb[0].mxu0
        %v6225 = vadd.f32 0.0, %v6224
        %v6226 = vpop.f32.mrb[0].mxu0
        %6227 = vmatprep.mubr.bf16.mxu0 0
        %6228 = vmatmul.mubr.bf16.gmra.mrb[0].mxu0 %v5058
        %v6229 = vpop.f32.mrb[0].mxu0
        %v6230 = vadd.f32 0.0, %v6229
        %v6231 = vpop.f32.mrb[0].mxu0
        %v6232 = vpop.f32.mrb[0].mxu0
        %v6233 = vadd.f32 0.0, %v6232
        %v6234 = vpop.f32.mrb[0].mxu0
        %6235 = vmatprep.mubr.bf16.mxu0 0
        %6236 = vmatmul.mubr.bf16.gmra.mrb[0].mxu0 %v5059
        %v6237 = vpop.f32.mrb[0].mxu0
        %v6238 = vadd.f32 0.0, %v6237
        %v6239 = vpop.f32.mrb[0].mxu0
        %v6240 = vpop.f32.mrb[0].mxu0
        %v6241 = vadd.f32 0.0, %v6240
        %v6242 = vpop.f32.mrb[0].mxu0
        %6243 = vmatprep.mubr.bf16.mxu0 0
        %6244 = vmatmul.mubr.bf16.gmra.mrb[0].mxu0 %v5060
        %v6245 = vpop.f32.mrb[0].mxu0
        %v6246 = vadd.f32 0.0, %v6245
        %v6247 = vpop.f32.mrb[0].mxu0
        %v6248 = vpop.f32.mrb[0].mxu0
        %v6249 = vadd.f32 0.0, %v6248
        %v6250 = vpop.f32.mrb[0].mxu0
        %6251 = vmatprep.mubr.bf16.mxu0 0
        %6252 = vmatmul.mubr.bf16.gmra.mrb[0].mxu0 %v5061
        %v6253 = vpop.f32.mrb[0].mxu0
        %v6254 = vadd.f32 0.0, %v6253
        %v6255 = vpop.f32.mrb[0].mxu0
        %v6256 = vpop.f32.mrb[0].mxu0
        %v6257 = vadd.f32 0.0, %v6256
        %v6258 = vpop.f32.mrb[0].mxu0
        %6259 = vmatprep.mubr.bf16.mxu0 0
        %6260 = vmatmul.mubr.bf16.gmra.mrb[0].mxu0 %v5062
        %v6261 = vpop.f32.mrb[0].mxu0
        %v6262 = vadd.f32 0.0, %v6261
        %v6263 = vpop.f32.mrb[0].mxu0
        %v6264 = vpop.f32.mrb[0].mxu0
        %v6265 = vadd.f32 0.0, %v6264
        %v6266 = vpop.f32.mrb[0].mxu0
        %6267 = vmatprep.mubr.bf16.mxu0 0
        %6268 = vmatmul.mubr.bf16.gmra.mrb[0].mxu0 %v5063
        %v6269 = vpop.f32.mrb[0].mxu0
        %v6270 = vadd.f32 0.0, %v6269
        %v6271 = vpop.f32.mrb[0].mxu0
        %v6272 = vpop.f32.mrb[0].mxu0
        %v6273 = vadd.f32 0.0, %v6272
        %v6274 = vpop.f32.mrb[0].mxu0
        %6275 = vmatprep.mubr.bf16.mxu0 0
        %6276 = vmatmul.mubr.bf16.gmra.mrb[0].mxu0 %v5064
        %v6277 = vpop.f32.mrb[0].mxu0
        %v6278 = vadd.f32 0.0, %v6277
        %v6279 = vpop.f32.mrb[0].mxu0
        %v6280 = vpop.f32.mrb[0].mxu0
        %v6281 = vadd.f32 0.0, %v6280
        %v6282 = vpop.f32.mrb[0].mxu0
        %6283 = vmatprep.mubr.bf16.mxu0 0
        %6284 = vmatmul.mubr.bf16.gmra.mrb[0].mxu0 %v5065
        %v6285 = vpop.f32.mrb[0].mxu0
        %v6286 = vadd.f32 0.0, %v6285
        %v6287 = vpop.f32.mrb[0].mxu0
        %v6288 = vpop.f32.mrb[0].mxu0
        %v6289 = vadd.f32 0.0, %v6288
        %v6290 = vpop.f32.mrb[0].mxu0
        %6291 = vmatprep.mubr.bf16.mxu0 0
        %6292 = vmatmul.mubr.bf16.gmra.mrb[0].mxu0 %v5066
        %v6293 = vpop.f32.mrb[0].mxu0
        %v6294 = vadd.f32 0.0, %v6293
        %v6295 = vpop.f32.mrb[0].mxu0
        %v6296 = vpop.f32.mrb[0].mxu0
        %v6297 = vadd.f32 0.0, %v6296
        %v6298 = vpop.f32.mrb[0].mxu0
        %6299 = vmatprep.mubr.bf16.mxu0 0
        %6300 = vmatmul.mubr.bf16.gmra.mrb[0].mxu0 %v5067
        %v6301 = vpop.f32.mrb[0].mxu0
        %v6302 = vadd.f32 0.0, %v6301
        %v6303 = vpop.f32.mrb[0].mxu0
        %v6304 = vpop.f32.mrb[0].mxu0
        %v6305 = vadd.f32 0.0, %v6304
        %v6306 = vpop.f32.mrb[0].mxu0
        %6307 = vmatprep.mubr.bf16.mxu0 0
        %6308 = vmatmul.mubr.bf16.gmra.mrb[0].mxu0 %v5068
        %v6309 = vpop.f32.mrb[0].mxu0
        %v6310 = vadd.f32 0.0, %v6309
        %v6311 = vpop.f32.mrb[0].mxu0
        %v6312 = vpop.f32.mrb[0].mxu0
        %v6313 = vadd.f32 0.0, %v6312
        %v6314 = vpop.f32.mrb[0].mxu0
        %6315 = vmatprep.mubr.bf16.mxu0 0
        %6316 = vmatmul.mubr.bf16.gmra.mrb[0].mxu0 %v5069
        %v6317 = vpop.f32.mrb[0].mxu0
        %v6318 = vadd.f32 0.0, %v6317
        %v6319 = vpop.f32.mrb[0].mxu0
        %v6320 = vpop.f32.mrb[0].mxu0
        %v6321 = vadd.f32 0.0, %v6320
        %v6322 = vpop.f32.mrb[0].mxu0
        %6323 = vdwg.mxu0
        %v6324 = vrot.slane %v6070, 2
        %v6325 = vrot.slane %v6073, 2
        %v6326 = vrot.slane %v6078, 2
        %v6327 = vrot.slane %v6081, 2
        %v6328 = vrot.slane %v6086, 2
        %v6329 = vrot.slane %v6089, 2
        %v6330 = vrot.slane %v6094, 2
        %v6331 = vrot.slane %v6097, 2
        %v6332 = vrot.slane %v6102, 2
        %v6333 = vrot.slane %v6105, 2
        %v6334 = vrot.slane %v6110, 2
        %v6335 = vrot.slane %v6113, 2
        %v6336 = vrot.slane %v6118, 2
        %v6337 = vrot.slane %v6121, 2
        %v6338 = vrot.slane %v6126, 2
        %v6339 = vrot.slane %v6129, 2
        %v6340 = vrot.slane %v6134, 2
        %v6341 = vrot.slane %v6137, 2
        %v6342 = vrot.slane %v6142, 2
        %v6343 = vrot.slane %v6145, 2
        %v6344 = vrot.slane %v6150, 2
        %v6345 = vrot.slane %v6153, 2
        %v6346 = vrot.slane %v6158, 2
        %v6347 = vrot.slane %v6161, 2
        %v6348 = vrot.slane %v6166, 2
        %v6349 = vrot.slane %v6169, 2
        %v6350 = vrot.slane %v6174, 2
        %v6351 = vrot.slane %v6177, 2
        %v6352 = vrot.slane %v6182, 2
        %v6353 = vrot.slane %v6185, 2
        %v6354 = vrot.slane %v6190, 2
        %v6355 = vrot.slane %v6193, 2
        %v6356 = vrot.slane %v6198, 2
        %v6357 = vrot.slane %v6201, 2
        %v6358 = vrot.slane %v6206, 2
        %v6359 = vrot.slane %v6209, 2
        %v6360 = vrot.slane %v6214, 2
        %v6361 = vrot.slane %v6217, 2
        %v6362 = vrot.slane %v6222, 2
        %v6363 = vrot.slane %v6225, 2
        %v6364 = vrot.slane %v6230, 2
        %v6365 = vrot.slane %v6233, 2
        %v6366 = vrot.slane %v6238, 2
        %v6367 = vrot.slane %v6241, 2
        %v6368 = vrot.slane %v6246, 2
        %v6369 = vrot.slane %v6249, 2
        %v6370 = vrot.slane %v6254, 2
        %v6371 = vrot.slane %v6257, 2
        %v6372 = vrot.slane %v6262, 2
        %v6373 = vrot.slane %v6265, 2
        %v6374 = vrot.slane %v6270, 2
        %v6375 = vrot.slane %v6273, 2
        %v6376 = vrot.slane %v6278, 2
        %v6377 = vrot.slane %v6281, 2
        %v6378 = vrot.slane %v6286, 2
        %v6379 = vrot.slane %v6289, 2
        %v6380 = vrot.slane %v6294, 2
        %v6381 = vrot.slane %v6297, 2
        %v6382 = vrot.slane %v6302, 2
        %v6383 = vrot.slane %v6305, 2
        %v6384 = vrot.slane %v6310, 2
        %v6385 = vrot.slane %v6313, 2
        %v6386 = vrot.slane %v6318, 2
        %v6387 = vrot.slane %v6321, 2
        %vm6388 = vcmp.lt.s32.totalorder %v1483, 6
        %v6389 = vsel %vm6388, %v6386, %v6387
        %v6390 = vsel %vm6388, %v6385, %v6386
        %v6391 = vsel %vm6388, %v6384, %v6385
        %v6392 = vsel %vm6388, %v6383, %v6384
        %v6393 = vsel %vm6388, %v6382, %v6383
        %v6394 = vsel %vm6388, %v6381, %v6382
        %v6395 = vsel %vm6388, %v6380, %v6381
        %v6396 = vsel %vm6388, %v6379, %v6380
        %v6397 = vsel %vm6388, %v6378, %v6379
        %v6398 = vsel %vm6388, %v6377, %v6378
        %v6399 = vsel %vm6388, %v6376, %v6377
        %v6400 = vsel %vm6388, %v6375, %v6376
        %v6401 = vsel %vm6388, %v6374, %v6375
        %v6402 = vsel %vm6388, %v6373, %v6374
        %v6403 = vsel %vm6388, %v6372, %v6373
        %v6404 = vsel %vm6388, %v6371, %v6372
        %v6405 = vsel %vm6388, %v6370, %v6371
        %v6406 = vsel %vm6388, %v6369, %v6370
        %v6407 = vsel %vm6388, %v6368, %v6369
        %v6408 = vsel %vm6388, %v6367, %v6368
        %v6409 = vsel %vm6388, %v6366, %v6367
        %v6410 = vsel %vm6388, %v6365, %v6366
        %v6411 = vsel %vm6388, %v6364, %v6365
        %v6412 = vsel %vm6388, %v6363, %v6364
        %v6413 = vsel %vm6388, %v6362, %v6363
        %v6414 = vsel %vm6388, %v6361, %v6362
        %v6415 = vsel %vm6388, %v6360, %v6361
        %v6416 = vsel %vm6388, %v6359, %v6360
        %v6417 = vsel %vm6388, %v6358, %v6359
        %v6418 = vsel %vm6388, %v6357, %v6358
        %v6419 = vsel %vm6388, %v6356, %v6357
        %v6420 = vsel %vm6388, %v6355, %v6356
        %v6421 = vsel %vm6388, %v6354, %v6355
        %v6422 = vsel %vm6388, %v6353, %v6354
        %v6423 = vsel %vm6388, %v6352, %v6353
        %v6424 = vsel %vm6388, %v6351, %v6352
        %v6425 = vsel %vm6388, %v6350, %v6351
        %v6426 = vsel %vm6388, %v6349, %v6350
        %v6427 = vsel %vm6388, %v6348, %v6349
        %v6428 = vsel %vm6388, %v6347, %v6348
        %v6429 = vsel %vm6388, %v6346, %v6347
        %v6430 = vsel %vm6388, %v6345, %v6346
        %v6431 = vsel %vm6388, %v6344, %v6345
        %v6432 = vsel %vm6388, %v6343, %v6344
        %v6433 = vsel %vm6388, %v6342, %v6343
        %v6434 = vsel %vm6388, %v6341, %v6342
        %v6435 = vsel %vm6388, %v6340, %v6341
        %v6436 = vsel %vm6388, %v6339, %v6340
        %v6437 = vsel %vm6388, %v6338, %v6339
        %v6438 = vsel %vm6388, %v6337, %v6338
        %v6439 = vsel %vm6388, %v6336, %v6337
        %v6440 = vsel %vm6388, %v6335, %v6336
        %v6441 = vsel %vm6388, %v6334, %v6335
        %v6442 = vsel %vm6388, %v6333, %v6334
        %v6443 = vsel %vm6388, %v6332, %v6333
        %v6444 = vsel %vm6388, %v6331, %v6332
        %v6445 = vsel %vm6388, %v6330, %v6331
        %v6446 = vsel %vm6388, %v6329, %v6330
        %v6447 = vsel %vm6388, %v6328, %v6329
        %v6448 = vsel %vm6388, %v6327, %v6328
        %v6449 = vsel %vm6388, %v6326, %v6327
        %v6450 = vsel %vm6388, %v6325, %v6326
        %v6451 = vsel %vm6388, %v6324, %v6325
        %v6452 = vsel %vm6388, %v6387, %v6324
        %v6453 = vadd.f32 %v5906, %v6451
        %v6454 = vadd.f32 %v5907, %v6450
        %v6455 = vadd.f32 %v5908, %v6449
        %v6456 = vadd.f32 %v5909, %v6448
        %v6457 = vadd.f32 %v5910, %v6447
        %v6458 = vadd.f32 %v5911, %v6446
        %v6459 = vadd.f32 %v5912, %v6445
        %v6460 = vadd.f32 %v5913, %v6444
        %v6461 = vadd.f32 %v5914, %v6443
        %v6462 = vadd.f32 %v5915, %v6442
        %v6463 = vadd.f32 %v5916, %v6441
        %v6464 = vadd.f32 %v5917, %v6440
        %v6465 = vadd.f32 %v5918, %v6439
        %v6466 = vadd.f32 %v5919, %v6438
        %v6467 = vadd.f32 %v5920, %v6437
        %v6468 = vadd.f32 %v5921, %v6436
        %v6469 = vadd.f32 %v5922, %v6435
        %v6470 = vadd.f32 %v5923, %v6434
        %v6471 = vadd.f32 %v5924, %v6433
        %v6472 = vadd.f32 %v5925, %v6432
        %v6473 = vadd.f32 %v5926, %v6431
        %v6474 = vadd.f32 %v5927, %v6430
        %v6475 = vadd.f32 %v5928, %v6429
        %v6476 = vadd.f32 %v5929, %v6428
        %v6477 = vadd.f32 %v5930, %v6427
        %v6478 = vadd.f32 %v5931, %v6426
        %v6479 = vadd.f32 %v5932, %v6425
        %v6480 = vadd.f32 %v5933, %v6424
        %v6481 = vadd.f32 %v5934, %v6423
        %v6482 = vadd.f32 %v5935, %v6422
        %v6483 = vadd.f32 %v5936, %v6421
        %v6484 = vadd.f32 %v5937, %v6420
        %v6485 = vadd.f32 %v5938, %v6419
        %v6486 = vadd.f32 %v5939, %v6418
        %v6487 = vadd.f32 %v5940, %v6417
        %v6488 = vadd.f32 %v5941, %v6416
        %v6489 = vadd.f32 %v5942, %v6415
        %v6490 = vadd.f32 %v5943, %v6414
        %v6491 = vadd.f32 %v5944, %v6413
        %v6492 = vadd.f32 %v5945, %v6412
        %v6493 = vadd.f32 %v5946, %v6411
        %v6494 = vadd.f32 %v5947, %v6410
        %v6495 = vadd.f32 %v5948, %v6409
        %v6496 = vadd.f32 %v5949, %v6408
        %v6497 = vadd.f32 %v5950, %v6407
        %v6498 = vadd.f32 %v5951, %v6406
        %v6499 = vadd.f32 %v5952, %v6405
        %v6500 = vadd.f32 %v5953, %v6404
        %v6501 = vadd.f32 %v5954, %v6403
        %v6502 = vadd.f32 %v5955, %v6402
        %v6503 = vadd.f32 %v5956, %v6401
        %v6504 = vadd.f32 %v5957, %v6400
        %v6505 = vadd.f32 %v5958, %v6399
        %v6506 = vadd.f32 %v5959, %v6398
        %v6507 = vadd.f32 %v5960, %v6397
        %v6508 = vadd.f32 %v5961, %v6396
        %v6509 = vadd.f32 %v5962, %v6395
        %v6510 = vadd.f32 %v5963, %v6394
        %v6511 = vadd.f32 %v5964, %v6393
        %v6512 = vadd.f32 %v5965, %v6392
        %v6513 = vadd.f32 %v5966, %v6391
        %v6514 = vadd.f32 %v5967, %v6390
        %v6515 = vadd.f32 %v5968, %v6389
        %v6516 = vadd.f32 %v5969, %v6452
        %v6517 = vld [vmem:[%s5021] sm:$0xff]
        %v6518 = vld [vmem:[%s5021 + $0x8] sm:$0xff]
        %v6519 = vld [vmem:[%s5021 + $0x10] sm:$0xff]
        %v6520 = vld [vmem:[%s5021 + $0x18] sm:$0xff]
        %v6521 = vld [vmem:[%s5021 + $0x20] sm:$0xff]
        %v6522 = vld [vmem:[%s5021 + $0x28] sm:$0xff]
        %v6523 = vld [vmem:[%s5021 + $0x30] sm:$0xff]
        %v6524 = vld [vmem:[%s5021 + $0x38] sm:$0xff]
        %v6525 = vld [vmem:[%s5021 + $0x40] sm:$0xff]
        %v6526 = vld [vmem:[%s5021 + $0x48] sm:$0xff]
        %v6527 = vld [vmem:[%s5021 + $0x50] sm:$0xff]
        %v6528 = vld [vmem:[%s5021 + $0x58] sm:$0xff]
        %v6529 = vld [vmem:[%s5021 + $0x60] sm:$0xff]
        %v6530 = vld [vmem:[%s5021 + $0x68] sm:$0xff]
        %v6531 = vld [vmem:[%s5021 + $0x70] sm:$0xff]
        %v6532 = vld [vmem:[%s5021 + $0x78] sm:$0xff]
        %v6533 = vld [vmem:[%s5021 + $0x80] sm:$0xff]
        %v6534 = vld [vmem:[%s5021 + $0x88] sm:$0xff]
        %v6535 = vld [vmem:[%s5021 + $0x90] sm:$0xff]
        %v6536 = vld [vmem:[%s5021 + $0x98] sm:$0xff]
        %v6537 = vld [vmem:[%s5021 + $0xa0] sm:$0xff]
        %v6538 = vld [vmem:[%s5021 + $0xa8] sm:$0xff]
        %v6539 = vld [vmem:[%s5021 + $0xb0] sm:$0xff]
        %v6540 = vld [vmem:[%s5021 + $0xb8] sm:$0xff]
        %v6541 = vld [vmem:[%s5021 + $0xc0] sm:$0xff]
        %v6542 = vld [vmem:[%s5021 + $0xc8] sm:$0xff]
        %v6543 = vld [vmem:[%s5021 + $0xd0] sm:$0xff]
        %v6544 = vld [vmem:[%s5021 + $0xd8] sm:$0xff]
        %v6545 = vld [vmem:[%s5021 + $0xe0] sm:$0xff]
        %v6546 = vld [vmem:[%s5021 + $0xe8] sm:$0xff]
        %v6547 = vld [vmem:[%s5021 + $0xf0] sm:$0xff]
        %v6548 = vld [vmem:[%s5021 + $0xf8] sm:$0xff]
        %s6549 = scalar_lea.vmem %s6, 192
        %v6550 = vld [vmem:[%s6549] sm:$0xf]
        %v6551 = vld [vmem:[%s6549 + $0x4] sm:$0xf]
        %v6552 = vld [vmem:[%s6549 + $0x8] sm:$0xf]
        %v6553 = vld [vmem:[%s6549 + $0xc] sm:$0xf]
        %v6554 = vld [vmem:[%s6549 + $0x10] sm:$0xf]
        %v6555 = vld [vmem:[%s6549 + $0x14] sm:$0xf]
        %v6556 = vld [vmem:[%s6549 + $0x18] sm:$0xf]
        %v6557 = vld [vmem:[%s6549 + $0x1c] sm:$0xf]
        %v6558 = vld [vmem:[%s6549 + $0x20] sm:$0xf]
        %v6559 = vld [vmem:[%s6549 + $0x24] sm:$0xf]
        %v6560 = vld [vmem:[%s6549 + $0x28] sm:$0xf]
        %v6561 = vld [vmem:[%s6549 + $0x2c] sm:$0xf]
        %v6562 = vld [vmem:[%s6549 + $0x30] sm:$0xf]
        %v6563 = vld [vmem:[%s6549 + $0x34] sm:$0xf]
        %v6564 = vld [vmem:[%s6549 + $0x38] sm:$0xf]
        %v6565 = vld [vmem:[%s6549 + $0x3c] sm:$0xf]
        %v6582 = vunpack.c.l.b16 %v6550
        %v6583 = vunpack.c.l.b16 %v6551
        %v6584 = vunpack.c.l.b16 %v6552
        %v6585 = vunpack.c.l.b16 %v6553
        %v6586 = vunpack.c.l.b16 %v6554
        %v6587 = vunpack.c.l.b16 %v6555
        %v6588 = vunpack.c.l.b16 %v6556
        %v6589 = vunpack.c.l.b16 %v6557
        %v6590 = vunpack.c.l.b16 %v6558
        %v6591 = vunpack.c.l.b16 %v6559
        %v6592 = vunpack.c.l.b16 %v6560
        %v6593 = vunpack.c.l.b16 %v6561
        %v6594 = vunpack.c.l.b16 %v6562
        %v6595 = vunpack.c.l.b16 %v6563
        %v6596 = vunpack.c.l.b16 %v6564
        %v6597 = vunpack.c.l.b16 %v6565
        %v6598 = vpack.c.b16 %v6583, %v6582
        %v6599 = vpack.c.b16 %v6585, %v6584
        %v6600 = vpack.c.b16 %v6587, %v6586
        %v6601 = vpack.c.b16 %v6589, %v6588
        %v6602 = vpack.c.b16 %v6591, %v6590
        %v6603 = vpack.c.b16 %v6593, %v6592
        %v6604 = vpack.c.b16 %v6595, %v6594
        %v6605 = vpack.c.b16 %v6597, %v6596
        %6614 = vmatprep.subr.bf16.mxu0 0
        %6615 = vmatpush1.bf16.msra.mxu0 %v6598
        %6616 = vmatprep.subr.bf16.mxu0 0
        %6617 = vmatpush1.bf16.msra.mxu0 %v6599
        %6618 = vmatprep.subr.bf16.mxu0 0
        %6619 = vmatpush1.bf16.msra.mxu0 %v6600
        %6620 = vmatprep.subr.bf16.mxu0 0
        %6621 = vmatpush1.bf16.msra.mxu0 %v6601
        %6622 = vmatprep.subr.bf16.mxu0 0
        %6623 = vmatpush1.bf16.msra.mxu0 %v6602
        %6624 = vmatprep.subr.bf16.mxu0 0
        %6625 = vmatpush1.bf16.msra.mxu0 %v6603
        %6626 = vmatprep.subr.bf16.mxu0 0
        %6627 = vmatpush1.bf16.msra.mxu0 %v6604
        %6628 = vmatprep.subr.bf16.mxu0 0
        %6629 = vmatpush1.bf16.msra.mxu0 %v6605
        %6630 = vmatprep.subr.bf16.mxu0 0
        %6631 = vmatpush1.bf16.msra.mxu0 0
        %6632 = vmatprep.subr.bf16.mxu0 0
        %6633 = vmatpush1.bf16.msra.mxu0 0
        %6634 = vmatprep.subr.bf16.mxu0 0
        %6635 = vmatpush1.bf16.msra.mxu0 0
        %6636 = vmatprep.subr.bf16.mxu0 0
        %6637 = vmatpush1.bf16.msra.mxu0 0
        %6638 = vmatprep.subr.bf16.mxu0 0
        %6639 = vmatpush1.bf16.msra.mxu0 0
        %6640 = vmatprep.subr.bf16.mxu0 0
        %6641 = vmatpush1.bf16.msra.mxu0 0
        %6642 = vmatprep.subr.bf16.mxu0 0
        %6643 = vmatpush1.bf16.msra.mxu0 0
        %6644 = vmatprep.subr.bf16.mxu0 0
        %6645 = vmatpush1.bf16.msra.mxu0 0
        %6646 = vmatprep.mubr.bf16.mxu0 0
        %6647 = vmatmul.mubr.bf16.gmra.mrb[0].mxu0 %v6517
        %v6648 = vpop.f32.mrb[0].mxu0
        %v6649 = vadd.f32 0.0, %v6648
        %v6650 = vpop.f32.mrb[0].mxu0
        %v6651 = vpop.f32.mrb[0].mxu0
        %v6652 = vadd.f32 0.0, %v6651
        %v6653 = vpop.f32.mrb[0].mxu0
        %6654 = vmatprep.mubr.bf16.mxu0 0
        %6655 = vmatmul.mubr.bf16.gmra.mrb[0].mxu0 %v6518
        %v6656 = vpop.f32.mrb[0].mxu0
        %v6657 = vadd.f32 0.0, %v6656
        %v6658 = vpop.f32.mrb[0].mxu0
        %v6659 = vpop.f32.mrb[0].mxu0
        %v6660 = vadd.f32 0.0, %v6659
        %v6661 = vpop.f32.mrb[0].mxu0
        %6662 = vmatprep.mubr.bf16.mxu0 0
        %6663 = vmatmul.mubr.bf16.gmra.mrb[0].mxu0 %v6519
        %v6664 = vpop.f32.mrb[0].mxu0
        %v6665 = vadd.f32 0.0, %v6664
        %v6666 = vpop.f32.mrb[0].mxu0
        %v6667 = vpop.f32.mrb[0].mxu0
        %v6668 = vadd.f32 0.0, %v6667
        %v6669 = vpop.f32.mrb[0].mxu0
        %6670 = vmatprep.mubr.bf16.mxu0 0
        %6671 = vmatmul.mubr.bf16.gmra.mrb[0].mxu0 %v6520
        %v6672 = vpop.f32.mrb[0].mxu0
        %v6673 = vadd.f32 0.0, %v6672
        %v6674 = vpop.f32.mrb[0].mxu0
        %v6675 = vpop.f32.mrb[0].mxu0
        %v6676 = vadd.f32 0.0, %v6675
        %v6677 = vpop.f32.mrb[0].mxu0
        %6678 = vmatprep.mubr.bf16.mxu0 0
        %6679 = vmatmul.mubr.bf16.gmra.mrb[0].mxu0 %v6521
        %v6680 = vpop.f32.mrb[0].mxu0
        %v6681 = vadd.f32 0.0, %v6680
        %v6682 = vpop.f32.mrb[0].mxu0
        %v6683 = vpop.f32.mrb[0].mxu0
        %v6684 = vadd.f32 0.0, %v6683
        %v6685 = vpop.f32.mrb[0].mxu0
        %6686 = vmatprep.mubr.bf16.mxu0 0
        %6687 = vmatmul.mubr.bf16.gmra.mrb[0].mxu0 %v6522
        %v6688 = vpop.f32.mrb[0].mxu0
        %v6689 = vadd.f32 0.0, %v6688
        %v6690 = vpop.f32.mrb[0].mxu0
        %v6691 = vpop.f32.mrb[0].mxu0
        %v6692 = vadd.f32 0.0, %v6691
        %v6693 = vpop.f32.mrb[0].mxu0
        %6694 = vmatprep.mubr.bf16.mxu0 0
        %6695 = vmatmul.mubr.bf16.gmra.mrb[0].mxu0 %v6523
        %v6696 = vpop.f32.mrb[0].mxu0
        %v6697 = vadd.f32 0.0, %v6696
        %v6698 = vpop.f32.mrb[0].mxu0
        %v6699 = vpop.f32.mrb[0].mxu0
        %v6700 = vadd.f32 0.0, %v6699
        %v6701 = vpop.f32.mrb[0].mxu0
        %6702 = vmatprep.mubr.bf16.mxu0 0
        %6703 = vmatmul.mubr.bf16.gmra.mrb[0].mxu0 %v6524
        %v6704 = vpop.f32.mrb[0].mxu0
        %v6705 = vadd.f32 0.0, %v6704
        %v6706 = vpop.f32.mrb[0].mxu0
        %v6707 = vpop.f32.mrb[0].mxu0
        %v6708 = vadd.f32 0.0, %v6707
        %v6709 = vpop.f32.mrb[0].mxu0
        %6710 = vmatprep.mubr.bf16.mxu0 0
        %6711 = vmatmul.mubr.bf16.gmra.mrb[0].mxu0 %v6525
        %v6712 = vpop.f32.mrb[0].mxu0
        %v6713 = vadd.f32 0.0, %v6712
        %v6714 = vpop.f32.mrb[0].mxu0
        %v6715 = vpop.f32.mrb[0].mxu0
        %v6716 = vadd.f32 0.0, %v6715
        %v6717 = vpop.f32.mrb[0].mxu0
        %6718 = vmatprep.mubr.bf16.mxu0 0
        %6719 = vmatmul.mubr.bf16.gmra.mrb[0].mxu0 %v6526
        %v6720 = vpop.f32.mrb[0].mxu0
        %v6721 = vadd.f32 0.0, %v6720
        %v6722 = vpop.f32.mrb[0].mxu0
        %v6723 = vpop.f32.mrb[0].mxu0
        %v6724 = vadd.f32 0.0, %v6723
        %v6725 = vpop.f32.mrb[0].mxu0
        %6726 = vmatprep.mubr.bf16.mxu0 0
        %6727 = vmatmul.mubr.bf16.gmra.mrb[0].mxu0 %v6527
        %v6728 = vpop.f32.mrb[0].mxu0
        %v6729 = vadd.f32 0.0, %v6728
        %v6730 = vpop.f32.mrb[0].mxu0
        %v6731 = vpop.f32.mrb[0].mxu0
        %v6732 = vadd.f32 0.0, %v6731
        %v6733 = vpop.f32.mrb[0].mxu0
        %6734 = vmatprep.mubr.bf16.mxu0 0
        %6735 = vmatmul.mubr.bf16.gmra.mrb[0].mxu0 %v6528
        %v6736 = vpop.f32.mrb[0].mxu0
        %v6737 = vadd.f32 0.0, %v6736
        %v6738 = vpop.f32.mrb[0].mxu0
        %v6739 = vpop.f32.mrb[0].mxu0
        %v6740 = vadd.f32 0.0, %v6739
        %v6741 = vpop.f32.mrb[0].mxu0
        %6742 = vmatprep.mubr.bf16.mxu0 0
        %6743 = vmatmul.mubr.bf16.gmra.mrb[0].mxu0 %v6529
        %v6744 = vpop.f32.mrb[0].mxu0
        %v6745 = vadd.f32 0.0, %v6744
        %v6746 = vpop.f32.mrb[0].mxu0
        %v6747 = vpop.f32.mrb[0].mxu0
        %v6748 = vadd.f32 0.0, %v6747
        %v6749 = vpop.f32.mrb[0].mxu0
        %6750 = vmatprep.mubr.bf16.mxu0 0
        %6751 = vmatmul.mubr.bf16.gmra.mrb[0].mxu0 %v6530
        %v6752 = vpop.f32.mrb[0].mxu0
        %v6753 = vadd.f32 0.0, %v6752
        %v6754 = vpop.f32.mrb[0].mxu0
        %v6755 = vpop.f32.mrb[0].mxu0
        %v6756 = vadd.f32 0.0, %v6755
        %v6757 = vpop.f32.mrb[0].mxu0
        %6758 = vmatprep.mubr.bf16.mxu0 0
        %6759 = vmatmul.mubr.bf16.gmra.mrb[0].mxu0 %v6531
        %v6760 = vpop.f32.mrb[0].mxu0
        %v6761 = vadd.f32 0.0, %v6760
        %v6762 = vpop.f32.mrb[0].mxu0
        %v6763 = vpop.f32.mrb[0].mxu0
        %v6764 = vadd.f32 0.0, %v6763
        %v6765 = vpop.f32.mrb[0].mxu0
        %6766 = vmatprep.mubr.bf16.mxu0 0
        %6767 = vmatmul.mubr.bf16.gmra.mrb[0].mxu0 %v6532
        %v6768 = vpop.f32.mrb[0].mxu0
        %v6769 = vadd.f32 0.0, %v6768
        %v6770 = vpop.f32.mrb[0].mxu0
        %v6771 = vpop.f32.mrb[0].mxu0
        %v6772 = vadd.f32 0.0, %v6771
        %v6773 = vpop.f32.mrb[0].mxu0
        %6774 = vmatprep.mubr.bf16.mxu0 0
        %6775 = vmatmul.mubr.bf16.gmra.mrb[0].mxu0 %v6533
        %v6776 = vpop.f32.mrb[0].mxu0
        %v6777 = vadd.f32 0.0, %v6776
        %v6778 = vpop.f32.mrb[0].mxu0
        %v6779 = vpop.f32.mrb[0].mxu0
        %v6780 = vadd.f32 0.0, %v6779
        %v6781 = vpop.f32.mrb[0].mxu0
        %6782 = vmatprep.mubr.bf16.mxu0 0
        %6783 = vmatmul.mubr.bf16.gmra.mrb[0].mxu0 %v6534
        %v6784 = vpop.f32.mrb[0].mxu0
        %v6785 = vadd.f32 0.0, %v6784
        %v6786 = vpop.f32.mrb[0].mxu0
        %v6787 = vpop.f32.mrb[0].mxu0
        %v6788 = vadd.f32 0.0, %v6787
        %v6789 = vpop.f32.mrb[0].mxu0
        %6790 = vmatprep.mubr.bf16.mxu0 0
        %6791 = vmatmul.mubr.bf16.gmra.mrb[0].mxu0 %v6535
        %v6792 = vpop.f32.mrb[0].mxu0
        %v6793 = vadd.f32 0.0, %v6792
        %v6794 = vpop.f32.mrb[0].mxu0
        %v6795 = vpop.f32.mrb[0].mxu0
        %v6796 = vadd.f32 0.0, %v6795
        %v6797 = vpop.f32.mrb[0].mxu0
        %6798 = vmatprep.mubr.bf16.mxu0 0
        %6799 = vmatmul.mubr.bf16.gmra.mrb[0].mxu0 %v6536
        %v6800 = vpop.f32.mrb[0].mxu0
        %v6801 = vadd.f32 0.0, %v6800
        %v6802 = vpop.f32.mrb[0].mxu0
        %v6803 = vpop.f32.mrb[0].mxu0
        %v6804 = vadd.f32 0.0, %v6803
        %v6805 = vpop.f32.mrb[0].mxu0
        %6806 = vmatprep.mubr.bf16.mxu0 0
        %6807 = vmatmul.mubr.bf16.gmra.mrb[0].mxu0 %v6537
        %v6808 = vpop.f32.mrb[0].mxu0
        %v6809 = vadd.f32 0.0, %v6808
        %v6810 = vpop.f32.mrb[0].mxu0
        %v6811 = vpop.f32.mrb[0].mxu0
        %v6812 = vadd.f32 0.0, %v6811
        %v6813 = vpop.f32.mrb[0].mxu0
        %6814 = vmatprep.mubr.bf16.mxu0 0
        %6815 = vmatmul.mubr.bf16.gmra.mrb[0].mxu0 %v6538
        %v6816 = vpop.f32.mrb[0].mxu0
        %v6817 = vadd.f32 0.0, %v6816
        %v6818 = vpop.f32.mrb[0].mxu0
        %v6819 = vpop.f32.mrb[0].mxu0
        %v6820 = vadd.f32 0.0, %v6819
        %v6821 = vpop.f32.mrb[0].mxu0
        %6822 = vmatprep.mubr.bf16.mxu0 0
        %6823 = vmatmul.mubr.bf16.gmra.mrb[0].mxu0 %v6539
        %v6824 = vpop.f32.mrb[0].mxu0
        %v6825 = vadd.f32 0.0, %v6824
        %v6826 = vpop.f32.mrb[0].mxu0
        %v6827 = vpop.f32.mrb[0].mxu0
        %v6828 = vadd.f32 0.0, %v6827
        %v6829 = vpop.f32.mrb[0].mxu0
        %6830 = vmatprep.mubr.bf16.mxu0 0
        %6831 = vmatmul.mubr.bf16.gmra.mrb[0].mxu0 %v6540
        %v6832 = vpop.f32.mrb[0].mxu0
        %v6833 = vadd.f32 0.0, %v6832
        %v6834 = vpop.f32.mrb[0].mxu0
        %v6835 = vpop.f32.mrb[0].mxu0
        %v6836 = vadd.f32 0.0, %v6835
        %v6837 = vpop.f32.mrb[0].mxu0
        %6838 = vmatprep.mubr.bf16.mxu0 0
        %6839 = vmatmul.mubr.bf16.gmra.mrb[0].mxu0 %v6541
        %v6840 = vpop.f32.mrb[0].mxu0
        %v6841 = vadd.f32 0.0, %v6840
        %v6842 = vpop.f32.mrb[0].mxu0
        %v6843 = vpop.f32.mrb[0].mxu0
        %v6844 = vadd.f32 0.0, %v6843
        %v6845 = vpop.f32.mrb[0].mxu0
        %6846 = vmatprep.mubr.bf16.mxu0 0
        %6847 = vmatmul.mubr.bf16.gmra.mrb[0].mxu0 %v6542
        %v6848 = vpop.f32.mrb[0].mxu0
        %v6849 = vadd.f32 0.0, %v6848
        %v6850 = vpop.f32.mrb[0].mxu0
        %v6851 = vpop.f32.mrb[0].mxu0
        %v6852 = vadd.f32 0.0, %v6851
        %v6853 = vpop.f32.mrb[0].mxu0
        %6854 = vmatprep.mubr.bf16.mxu0 0
        %6855 = vmatmul.mubr.bf16.gmra.mrb[0].mxu0 %v6543
        %v6856 = vpop.f32.mrb[0].mxu0
        %v6857 = vadd.f32 0.0, %v6856
        %v6858 = vpop.f32.mrb[0].mxu0
        %v6859 = vpop.f32.mrb[0].mxu0
        %v6860 = vadd.f32 0.0, %v6859
        %v6861 = vpop.f32.mrb[0].mxu0
        %6862 = vmatprep.mubr.bf16.mxu0 0
        %6863 = vmatmul.mubr.bf16.gmra.mrb[0].mxu0 %v6544
        %v6864 = vpop.f32.mrb[0].mxu0
        %v6865 = vadd.f32 0.0, %v6864
        %v6866 = vpop.f32.mrb[0].mxu0
        %v6867 = vpop.f32.mrb[0].mxu0
        %v6868 = vadd.f32 0.0, %v6867
        %v6869 = vpop.f32.mrb[0].mxu0
        %6870 = vmatprep.mubr.bf16.mxu0 0
        %6871 = vmatmul.mubr.bf16.gmra.mrb[0].mxu0 %v6545
        %v6872 = vpop.f32.mrb[0].mxu0
        %v6873 = vadd.f32 0.0, %v6872
        %v6874 = vpop.f32.mrb[0].mxu0
        %v6875 = vpop.f32.mrb[0].mxu0
        %v6876 = vadd.f32 0.0, %v6875
        %v6877 = vpop.f32.mrb[0].mxu0
        %6878 = vmatprep.mubr.bf16.mxu0 0
        %6879 = vmatmul.mubr.bf16.gmra.mrb[0].mxu0 %v6546
        %v6880 = vpop.f32.mrb[0].mxu0
        %v6881 = vadd.f32 0.0, %v6880
        %v6882 = vpop.f32.mrb[0].mxu0
        %v6883 = vpop.f32.mrb[0].mxu0
        %v6884 = vadd.f32 0.0, %v6883
        %v6885 = vpop.f32.mrb[0].mxu0
        %6886 = vmatprep.mubr.bf16.mxu0 0
        %6887 = vmatmul.mubr.bf16.gmra.mrb[0].mxu0 %v6547
        %v6888 = vpop.f32.mrb[0].mxu0
        %v6889 = vadd.f32 0.0, %v6888
        %v6890 = vpop.f32.mrb[0].mxu0
        %v6891 = vpop.f32.mrb[0].mxu0
        %v6892 = vadd.f32 0.0, %v6891
        %v6893 = vpop.f32.mrb[0].mxu0
        %6894 = vmatprep.mubr.bf16.mxu0 0
        %6895 = vmatmul.mubr.bf16.gmra.mrb[0].mxu0 %v6548
        %v6896 = vpop.f32.mrb[0].mxu0
        %v6897 = vadd.f32 0.0, %v6896
        %v6898 = vpop.f32.mrb[0].mxu0
        %v6899 = vpop.f32.mrb[0].mxu0
        %v6900 = vadd.f32 0.0, %v6899
        %v6901 = vpop.f32.mrb[0].mxu0
        %6902 = vdwg.mxu0
        %v6903 = vrot.slane %v6649, 6
        %v6904 = vrot.slane %v6652, 6
        %v6905 = vrot.slane %v6657, 6
        %v6906 = vrot.slane %v6660, 6
        %v6907 = vrot.slane %v6665, 6
        %v6908 = vrot.slane %v6668, 6
        %v6909 = vrot.slane %v6673, 6
        %v6910 = vrot.slane %v6676, 6
        %v6911 = vrot.slane %v6681, 6
        %v6912 = vrot.slane %v6684, 6
        %v6913 = vrot.slane %v6689, 6
        %v6914 = vrot.slane %v6692, 6
        %v6915 = vrot.slane %v6697, 6
        %v6916 = vrot.slane %v6700, 6
        %v6917 = vrot.slane %v6705, 6
        %v6918 = vrot.slane %v6708, 6
        %v6919 = vrot.slane %v6713, 6
        %v6920 = vrot.slane %v6716, 6
        %v6921 = vrot.slane %v6721, 6
        %v6922 = vrot.slane %v6724, 6
        %v6923 = vrot.slane %v6729, 6
        %v6924 = vrot.slane %v6732, 6
        %v6925 = vrot.slane %v6737, 6
        %v6926 = vrot.slane %v6740, 6
        %v6927 = vrot.slane %v6745, 6
        %v6928 = vrot.slane %v6748, 6
        %v6929 = vrot.slane %v6753, 6
        %v6930 = vrot.slane %v6756, 6
        %v6931 = vrot.slane %v6761, 6
        %v6932 = vrot.slane %v6764, 6
        %v6933 = vrot.slane %v6769, 6
        %v6934 = vrot.slane %v6772, 6
        %v6935 = vrot.slane %v6777, 6
        %v6936 = vrot.slane %v6780, 6
        %v6937 = vrot.slane %v6785, 6
        %v6938 = vrot.slane %v6788, 6
        %v6939 = vrot.slane %v6793, 6
        %v6940 = vrot.slane %v6796, 6
        %v6941 = vrot.slane %v6801, 6
        %v6942 = vrot.slane %v6804, 6
        %v6943 = vrot.slane %v6809, 6
        %v6944 = vrot.slane %v6812, 6
        %v6945 = vrot.slane %v6817, 6
        %v6946 = vrot.slane %v6820, 6
        %v6947 = vrot.slane %v6825, 6
        %v6948 = vrot.slane %v6828, 6
        %v6949 = vrot.slane %v6833, 6
        %v6950 = vrot.slane %v6836, 6
        %v6951 = vrot.slane %v6841, 6
        %v6952 = vrot.slane %v6844, 6
        %v6953 = vrot.slane %v6849, 6
        %v6954 = vrot.slane %v6852, 6
        %v6955 = vrot.slane %v6857, 6
        %v6956 = vrot.slane %v6860, 6
        %v6957 = vrot.slane %v6865, 6
        %v6958 = vrot.slane %v6868, 6
        %v6959 = vrot.slane %v6873, 6
        %v6960 = vrot.slane %v6876, 6
        %v6961 = vrot.slane %v6881, 6
        %v6962 = vrot.slane %v6884, 6
        %v6963 = vrot.slane %v6889, 6
        %v6964 = vrot.slane %v6892, 6
        %v6965 = vrot.slane %v6897, 6
        %v6966 = vrot.slane %v6900, 6
        %v6967 = vsel %vm5487, %v6965, %v6966
        %v6968 = vsel %vm5487, %v6964, %v6965
        %v6969 = vsel %vm5487, %v6963, %v6964
        %v6970 = vsel %vm5487, %v6962, %v6963
        %v6971 = vsel %vm5487, %v6961, %v6962
        %v6972 = vsel %vm5487, %v6960, %v6961
        %v6973 = vsel %vm5487, %v6959, %v6960
        %v6974 = vsel %vm5487, %v6958, %v6959
        %v6975 = vsel %vm5487, %v6957, %v6958
        %v6976 = vsel %vm5487, %v6956, %v6957
        %v6977 = vsel %vm5487, %v6955, %v6956
        %v6978 = vsel %vm5487, %v6954, %v6955
        %v6979 = vsel %vm5487, %v6953, %v6954
        %v6980 = vsel %vm5487, %v6952, %v6953
        %v6981 = vsel %vm5487, %v6951, %v6952
        %v6982 = vsel %vm5487, %v6950, %v6951
        %v6983 = vsel %vm5487, %v6949, %v6950
        %v6984 = vsel %vm5487, %v6948, %v6949
        %v6985 = vsel %vm5487, %v6947, %v6948
        %v6986 = vsel %vm5487, %v6946, %v6947
        %v6987 = vsel %vm5487, %v6945, %v6946
        %v6988 = vsel %vm5487, %v6944, %v6945
        %v6989 = vsel %vm5487, %v6943, %v6944
        %v6990 = vsel %vm5487, %v6942, %v6943
        %v6991 = vsel %vm5487, %v6941, %v6942
        %v6992 = vsel %vm5487, %v6940, %v6941
        %v6993 = vsel %vm5487, %v6939, %v6940
        %v6994 = vsel %vm5487, %v6938, %v6939
        %v6995 = vsel %vm5487, %v6937, %v6938
        %v6996 = vsel %vm5487, %v6936, %v6937
        %v6997 = vsel %vm5487, %v6935, %v6936
        %v6998 = vsel %vm5487, %v6934, %v6935
        %v6999 = vsel %vm5487, %v6933, %v6934
        %v7000 = vsel %vm5487, %v6932, %v6933
        %v7001 = vsel %vm5487, %v6931, %v6932
        %v7002 = vsel %vm5487, %v6930, %v6931
        %v7003 = vsel %vm5487, %v6929, %v6930
        %v7004 = vsel %vm5487, %v6928, %v6929
        %v7005 = vsel %vm5487, %v6927, %v6928
        %v7006 = vsel %vm5487, %v6926, %v6927
        %v7007 = vsel %vm5487, %v6925, %v6926
        %v7008 = vsel %vm5487, %v6924, %v6925
        %v7009 = vsel %vm5487, %v6923, %v6924
        %v7010 = vsel %vm5487, %v6922, %v6923
        %v7011 = vsel %vm5487, %v6921, %v6922
        %v7012 = vsel %vm5487, %v6920, %v6921
        %v7013 = vsel %vm5487, %v6919, %v6920
        %v7014 = vsel %vm5487, %v6918, %v6919
        %v7015 = vsel %vm5487, %v6917, %v6918
        %v7016 = vsel %vm5487, %v6916, %v6917
        %v7017 = vsel %vm5487, %v6915, %v6916
        %v7018 = vsel %vm5487, %v6914, %v6915
        %v7019 = vsel %vm5487, %v6913, %v6914
        %v7020 = vsel %vm5487, %v6912, %v6913
        %v7021 = vsel %vm5487, %v6911, %v6912
        %v7022 = vsel %vm5487, %v6910, %v6911
        %v7023 = vsel %vm5487, %v6909, %v6910
        %v7024 = vsel %vm5487, %v6908, %v6909
        %v7025 = vsel %vm5487, %v6907, %v6908
        %v7026 = vsel %vm5487, %v6906, %v6907
        %v7027 = vsel %vm5487, %v6905, %v6906
        %v7028 = vsel %vm5487, %v6904, %v6905
        %v7029 = vsel %vm5487, %v6903, %v6904
        %v7030 = vsel %vm5487, %v6966, %v6903
        %v7031 = vadd.f32 %v6453, %v7030
        %v7032 = vadd.f32 %v6454, %v7029
        %v7033 = vadd.f32 %v6455, %v7028
        %v7034 = vadd.f32 %v6456, %v7027
        %v7035 = vadd.f32 %v6457, %v7026
        %v7036 = vadd.f32 %v6458, %v7025
        %v7037 = vadd.f32 %v6459, %v7024
        %v7038 = vadd.f32 %v6460, %v7023
        %v7039 = vadd.f32 %v6461, %v7022
        %v7040 = vadd.f32 %v6462, %v7021
        %v7041 = vadd.f32 %v6463, %v7020
        %v7042 = vadd.f32 %v6464, %v7019
        %v7043 = vadd.f32 %v6465, %v7018
        %v7044 = vadd.f32 %v6466, %v7017
        %v7045 = vadd.f32 %v6467, %v7016
        %v7046 = vadd.f32 %v6468, %v7015
        %v7047 = vadd.f32 %v6469, %v7014
        %v7048 = vadd.f32 %v6470, %v7013
        %v7049 = vadd.f32 %v6471, %v7012
        %v7050 = vadd.f32 %v6472, %v7011
        %v7051 = vadd.f32 %v6473, %v7010
        %v7052 = vadd.f32 %v6474, %v7009
        %v7053 = vadd.f32 %v6475, %v7008
        %v7054 = vadd.f32 %v6476, %v7007
        %v7055 = vadd.f32 %v6477, %v7006
        %v7056 = vadd.f32 %v6478, %v7005
        %v7057 = vadd.f32 %v6479, %v7004
        %v7058 = vadd.f32 %v6480, %v7003
        %v7059 = vadd.f32 %v6481, %v7002
        %v7060 = vadd.f32 %v6482, %v7001
        %v7061 = vadd.f32 %v6483, %v7000
        %v7062 = vadd.f32 %v6484, %v6999
        %v7063 = vadd.f32 %v6485, %v6998
        %v7064 = vadd.f32 %v6486, %v6997
        %v7065 = vadd.f32 %v6487, %v6996
        %v7066 = vadd.f32 %v6488, %v6995
        %v7067 = vadd.f32 %v6489, %v6994
        %v7068 = vadd.f32 %v6490, %v6993
        %v7069 = vadd.f32 %v6491, %v6992
        %v7070 = vadd.f32 %v6492, %v6991
        %v7071 = vadd.f32 %v6493, %v6990
        %v7072 = vadd.f32 %v6494, %v6989
        %v7073 = vadd.f32 %v6495, %v6988
        %v7074 = vadd.f32 %v6496, %v6987
        %v7075 = vadd.f32 %v6497, %v6986
        %v7076 = vadd.f32 %v6498, %v6985
        %v7077 = vadd.f32 %v6499, %v6984
        %v7078 = vadd.f32 %v6500, %v6983
        %v7079 = vadd.f32 %v6501, %v6982
        %v7080 = vadd.f32 %v6502, %v6981
        %v7081 = vadd.f32 %v6503, %v6980
        %v7082 = vadd.f32 %v6504, %v6979
        %v7083 = vadd.f32 %v6505, %v6978
        %v7084 = vadd.f32 %v6506, %v6977
        %v7085 = vadd.f32 %v6507, %v6976
        %v7086 = vadd.f32 %v6508, %v6975
        %v7087 = vadd.f32 %v6509, %v6974
        %v7088 = vadd.f32 %v6510, %v6973
        %v7089 = vadd.f32 %v6511, %v6972
        %v7090 = vadd.f32 %v6512, %v6971
        %v7091 = vadd.f32 %v6513, %v6970
        %v7092 = vadd.f32 %v6514, %v6969
        %v7093 = vadd.f32 %v6515, %v6968
        %v7094 = vadd.f32 %v6516, %v6967
        %s7095 = scalar_lea.vmem %s6, 256
        %v7096 = vld [vmem:[%s7095] sm:$0xf]
        %v7097 = vld [vmem:[%s7095 + $0x4] sm:$0xf]
        %v7098 = vld [vmem:[%s7095 + $0x8] sm:$0xf]
        %v7099 = vld [vmem:[%s7095 + $0xc] sm:$0xf]
        %v7100 = vld [vmem:[%s7095 + $0x10] sm:$0xf]
        %v7101 = vld [vmem:[%s7095 + $0x14] sm:$0xf]
        %v7102 = vld [vmem:[%s7095 + $0x18] sm:$0xf]
        %v7103 = vld [vmem:[%s7095 + $0x1c] sm:$0xf]
        %v7104 = vld [vmem:[%s7095 + $0x20] sm:$0xf]
        %v7105 = vld [vmem:[%s7095 + $0x24] sm:$0xf]
        %v7106 = vld [vmem:[%s7095 + $0x28] sm:$0xf]
        %v7107 = vld [vmem:[%s7095 + $0x2c] sm:$0xf]
        %v7108 = vld [vmem:[%s7095 + $0x30] sm:$0xf]
        %v7109 = vld [vmem:[%s7095 + $0x34] sm:$0xf]
        %v7110 = vld [vmem:[%s7095 + $0x38] sm:$0xf]
        %v7111 = vld [vmem:[%s7095 + $0x3c] sm:$0xf]
        %v7128 = vunpack.c.l.b16 %v7096
        %v7129 = vunpack.c.l.b16 %v7097
        %v7130 = vunpack.c.l.b16 %v7098
        %v7131 = vunpack.c.l.b16 %v7099
        %v7132 = vunpack.c.l.b16 %v7100
        %v7133 = vunpack.c.l.b16 %v7101
        %v7134 = vunpack.c.l.b16 %v7102
        %v7135 = vunpack.c.l.b16 %v7103
        %v7136 = vunpack.c.l.b16 %v7104
        %v7137 = vunpack.c.l.b16 %v7105
        %v7138 = vunpack.c.l.b16 %v7106
        %v7139 = vunpack.c.l.b16 %v7107
        %v7140 = vunpack.c.l.b16 %v7108
        %v7141 = vunpack.c.l.b16 %v7109
        %v7142 = vunpack.c.l.b16 %v7110
        %v7143 = vunpack.c.l.b16 %v7111
        %v7144 = vpack.c.b16 %v7129, %v7128
        %v7145 = vpack.c.b16 %v7131, %v7130
        %v7146 = vpack.c.b16 %v7133, %v7132
        %v7147 = vpack.c.b16 %v7135, %v7134
        %v7148 = vpack.c.b16 %v7137, %v7136
        %v7149 = vpack.c.b16 %v7139, %v7138
        %v7150 = vpack.c.b16 %v7141, %v7140
        %v7151 = vpack.c.b16 %v7143, %v7142
        %7160 = vmatprep.subr.bf16.mxu0 0
        %7161 = vmatpush1.bf16.msra.mxu0 %v7144
        %7162 = vmatprep.subr.bf16.mxu0 0
        %7163 = vmatpush1.bf16.msra.mxu0 %v7145
        %7164 = vmatprep.subr.bf16.mxu0 0
        %7165 = vmatpush1.bf16.msra.mxu0 %v7146
        %7166 = vmatprep.subr.bf16.mxu0 0
        %7167 = vmatpush1.bf16.msra.mxu0 %v7147
        %7168 = vmatprep.subr.bf16.mxu0 0
        %7169 = vmatpush1.bf16.msra.mxu0 %v7148
        %7170 = vmatprep.subr.bf16.mxu0 0
        %7171 = vmatpush1.bf16.msra.mxu0 %v7149
        %7172 = vmatprep.subr.bf16.mxu0 0
        %7173 = vmatpush1.bf16.msra.mxu0 %v7150
        %7174 = vmatprep.subr.bf16.mxu0 0
        %7175 = vmatpush1.bf16.msra.mxu0 %v7151
        %7176 = vmatprep.subr.bf16.mxu0 0
        %7177 = vmatpush1.bf16.msra.mxu0 0
        %7178 = vmatprep.subr.bf16.mxu0 0
        %7179 = vmatpush1.bf16.msra.mxu0 0
        %7180 = vmatprep.subr.bf16.mxu0 0
        %7181 = vmatpush1.bf16.msra.mxu0 0
        %7182 = vmatprep.subr.bf16.mxu0 0
        %7183 = vmatpush1.bf16.msra.mxu0 0
        %7184 = vmatprep.subr.bf16.mxu0 0
        %7185 = vmatpush1.bf16.msra.mxu0 0
        %7186 = vmatprep.subr.bf16.mxu0 0
        %7187 = vmatpush1.bf16.msra.mxu0 0
        %7188 = vmatprep.subr.bf16.mxu0 0
        %7189 = vmatpush1.bf16.msra.mxu0 0
        %7190 = vmatprep.subr.bf16.mxu0 0
        %7191 = vmatpush1.bf16.msra.mxu0 0
        %7192 = vmatprep.mubr.bf16.mxu0 0
        %7193 = vmatmul.mubr.bf16.gmra.mrb[0].mxu0 %v6517
        %v7194 = vpop.f32.mrb[0].mxu0
        %v7195 = vadd.f32 0.0, %v7194
        %v7196 = vpop.f32.mrb[0].mxu0
        %v7197 = vpop.f32.mrb[0].mxu0
        %v7198 = vadd.f32 0.0, %v7197
        %v7199 = vpop.f32.mrb[0].mxu0
        %7200 = vmatprep.mubr.bf16.mxu0 0
        %7201 = vmatmul.mubr.bf16.gmra.mrb[0].mxu0 %v6518
        %v7202 = vpop.f32.mrb[0].mxu0
        %v7203 = vadd.f32 0.0, %v7202
        %v7204 = vpop.f32.mrb[0].mxu0
        %v7205 = vpop.f32.mrb[0].mxu0
        %v7206 = vadd.f32 0.0, %v7205
        %v7207 = vpop.f32.mrb[0].mxu0
        %7208 = vmatprep.mubr.bf16.mxu0 0
        %7209 = vmatmul.mubr.bf16.gmra.mrb[0].mxu0 %v6519
        %v7210 = vpop.f32.mrb[0].mxu0
        %v7211 = vadd.f32 0.0, %v7210
        %v7212 = vpop.f32.mrb[0].mxu0
        %v7213 = vpop.f32.mrb[0].mxu0
        %v7214 = vadd.f32 0.0, %v7213
        %v7215 = vpop.f32.mrb[0].mxu0
        %7216 = vmatprep.mubr.bf16.mxu0 0
        %7217 = vmatmul.mubr.bf16.gmra.mrb[0].mxu0 %v6520
        %v7218 = vpop.f32.mrb[0].mxu0
        %v7219 = vadd.f32 0.0, %v7218
        %v7220 = vpop.f32.mrb[0].mxu0
        %v7221 = vpop.f32.mrb[0].mxu0
        %v7222 = vadd.f32 0.0, %v7221
        %v7223 = vpop.f32.mrb[0].mxu0
        %7224 = vmatprep.mubr.bf16.mxu0 0
        %7225 = vmatmul.mubr.bf16.gmra.mrb[0].mxu0 %v6521
        %v7226 = vpop.f32.mrb[0].mxu0
        %v7227 = vadd.f32 0.0, %v7226
        %v7228 = vpop.f32.mrb[0].mxu0
        %v7229 = vpop.f32.mrb[0].mxu0
        %v7230 = vadd.f32 0.0, %v7229
        %v7231 = vpop.f32.mrb[0].mxu0
        %7232 = vmatprep.mubr.bf16.mxu0 0
        %7233 = vmatmul.mubr.bf16.gmra.mrb[0].mxu0 %v6522
        %v7234 = vpop.f32.mrb[0].mxu0
        %v7235 = vadd.f32 0.0, %v7234
        %v7236 = vpop.f32.mrb[0].mxu0
        %v7237 = vpop.f32.mrb[0].mxu0
        %v7238 = vadd.f32 0.0, %v7237
        %v7239 = vpop.f32.mrb[0].mxu0
        %7240 = vmatprep.mubr.bf16.mxu0 0
        %7241 = vmatmul.mubr.bf16.gmra.mrb[0].mxu0 %v6523
        %v7242 = vpop.f32.mrb[0].mxu0
        %v7243 = vadd.f32 0.0, %v7242
        %v7244 = vpop.f32.mrb[0].mxu0
        %v7245 = vpop.f32.mrb[0].mxu0
        %v7246 = vadd.f32 0.0, %v7245
        %v7247 = vpop.f32.mrb[0].mxu0
        %7248 = vmatprep.mubr.bf16.mxu0 0
        %7249 = vmatmul.mubr.bf16.gmra.mrb[0].mxu0 %v6524
        %v7250 = vpop.f32.mrb[0].mxu0
        %v7251 = vadd.f32 0.0, %v7250
        %v7252 = vpop.f32.mrb[0].mxu0
        %v7253 = vpop.f32.mrb[0].mxu0
        %v7254 = vadd.f32 0.0, %v7253
        %v7255 = vpop.f32.mrb[0].mxu0
        %7256 = vmatprep.mubr.bf16.mxu0 0
        %7257 = vmatmul.mubr.bf16.gmra.mrb[0].mxu0 %v6525
        %v7258 = vpop.f32.mrb[0].mxu0
        %v7259 = vadd.f32 0.0, %v7258
        %v7260 = vpop.f32.mrb[0].mxu0
        %v7261 = vpop.f32.mrb[0].mxu0
        %v7262 = vadd.f32 0.0, %v7261
        %v7263 = vpop.f32.mrb[0].mxu0
        %7264 = vmatprep.mubr.bf16.mxu0 0
        %7265 = vmatmul.mubr.bf16.gmra.mrb[0].mxu0 %v6526
        %v7266 = vpop.f32.mrb[0].mxu0
        %v7267 = vadd.f32 0.0, %v7266
        %v7268 = vpop.f32.mrb[0].mxu0
        %v7269 = vpop.f32.mrb[0].mxu0
        %v7270 = vadd.f32 0.0, %v7269
        %v7271 = vpop.f32.mrb[0].mxu0
        %7272 = vmatprep.mubr.bf16.mxu0 0
        %7273 = vmatmul.mubr.bf16.gmra.mrb[0].mxu0 %v6527
        %v7274 = vpop.f32.mrb[0].mxu0
        %v7275 = vadd.f32 0.0, %v7274
        %v7276 = vpop.f32.mrb[0].mxu0
        %v7277 = vpop.f32.mrb[0].mxu0
        %v7278 = vadd.f32 0.0, %v7277
        %v7279 = vpop.f32.mrb[0].mxu0
        %7280 = vmatprep.mubr.bf16.mxu0 0
        %7281 = vmatmul.mubr.bf16.gmra.mrb[0].mxu0 %v6528
        %v7282 = vpop.f32.mrb[0].mxu0
        %v7283 = vadd.f32 0.0, %v7282
        %v7284 = vpop.f32.mrb[0].mxu0
        %v7285 = vpop.f32.mrb[0].mxu0
        %v7286 = vadd.f32 0.0, %v7285
        %v7287 = vpop.f32.mrb[0].mxu0
        %7288 = vmatprep.mubr.bf16.mxu0 0
        %7289 = vmatmul.mubr.bf16.gmra.mrb[0].mxu0 %v6529
        %v7290 = vpop.f32.mrb[0].mxu0
        %v7291 = vadd.f32 0.0, %v7290
        %v7292 = vpop.f32.mrb[0].mxu0
        %v7293 = vpop.f32.mrb[0].mxu0
        %v7294 = vadd.f32 0.0, %v7293
        %v7295 = vpop.f32.mrb[0].mxu0
        %7296 = vmatprep.mubr.bf16.mxu0 0
        %7297 = vmatmul.mubr.bf16.gmra.mrb[0].mxu0 %v6530
        %v7298 = vpop.f32.mrb[0].mxu0
        %v7299 = vadd.f32 0.0, %v7298
        %v7300 = vpop.f32.mrb[0].mxu0
        %v7301 = vpop.f32.mrb[0].mxu0
        %v7302 = vadd.f32 0.0, %v7301
        %v7303 = vpop.f32.mrb[0].mxu0
        %7304 = vmatprep.mubr.bf16.mxu0 0
        %7305 = vmatmul.mubr.bf16.gmra.mrb[0].mxu0 %v6531
        %v7306 = vpop.f32.mrb[0].mxu0
        %v7307 = vadd.f32 0.0, %v7306
        %v7308 = vpop.f32.mrb[0].mxu0
        %v7309 = vpop.f32.mrb[0].mxu0
        %v7310 = vadd.f32 0.0, %v7309
        %v7311 = vpop.f32.mrb[0].mxu0
        %7312 = vmatprep.mubr.bf16.mxu0 0
        %7313 = vmatmul.mubr.bf16.gmra.mrb[0].mxu0 %v6532
        %v7314 = vpop.f32.mrb[0].mxu0
        %v7315 = vadd.f32 0.0, %v7314
        %v7316 = vpop.f32.mrb[0].mxu0
        %v7317 = vpop.f32.mrb[0].mxu0
        %v7318 = vadd.f32 0.0, %v7317
        %v7319 = vpop.f32.mrb[0].mxu0
        %7320 = vmatprep.mubr.bf16.mxu0 0
        %7321 = vmatmul.mubr.bf16.gmra.mrb[0].mxu0 %v6533
        %v7322 = vpop.f32.mrb[0].mxu0
        %v7323 = vadd.f32 0.0, %v7322
        %v7324 = vpop.f32.mrb[0].mxu0
        %v7325 = vpop.f32.mrb[0].mxu0
        %v7326 = vadd.f32 0.0, %v7325
        %v7327 = vpop.f32.mrb[0].mxu0
        %7328 = vmatprep.mubr.bf16.mxu0 0
        %7329 = vmatmul.mubr.bf16.gmra.mrb[0].mxu0 %v6534
        %v7330 = vpop.f32.mrb[0].mxu0
        %v7331 = vadd.f32 0.0, %v7330
        %v7332 = vpop.f32.mrb[0].mxu0
        %v7333 = vpop.f32.mrb[0].mxu0
        %v7334 = vadd.f32 0.0, %v7333
        %v7335 = vpop.f32.mrb[0].mxu0
        %7336 = vmatprep.mubr.bf16.mxu0 0
        %7337 = vmatmul.mubr.bf16.gmra.mrb[0].mxu0 %v6535
        %v7338 = vpop.f32.mrb[0].mxu0
        %v7339 = vadd.f32 0.0, %v7338
        %v7340 = vpop.f32.mrb[0].mxu0
        %v7341 = vpop.f32.mrb[0].mxu0
        %v7342 = vadd.f32 0.0, %v7341
        %v7343 = vpop.f32.mrb[0].mxu0
        %7344 = vmatprep.mubr.bf16.mxu0 0
        %7345 = vmatmul.mubr.bf16.gmra.mrb[0].mxu0 %v6536
        %v7346 = vpop.f32.mrb[0].mxu0
        %v7347 = vadd.f32 0.0, %v7346
        %v7348 = vpop.f32.mrb[0].mxu0
        %v7349 = vpop.f32.mrb[0].mxu0
        %v7350 = vadd.f32 0.0, %v7349
        %v7351 = vpop.f32.mrb[0].mxu0
        %7352 = vmatprep.mubr.bf16.mxu0 0
        %7353 = vmatmul.mubr.bf16.gmra.mrb[0].mxu0 %v6537
        %v7354 = vpop.f32.mrb[0].mxu0
        %v7355 = vadd.f32 0.0, %v7354
        %v7356 = vpop.f32.mrb[0].mxu0
        %v7357 = vpop.f32.mrb[0].mxu0
        %v7358 = vadd.f32 0.0, %v7357
        %v7359 = vpop.f32.mrb[0].mxu0
        %7360 = vmatprep.mubr.bf16.mxu0 0
        %7361 = vmatmul.mubr.bf16.gmra.mrb[0].mxu0 %v6538
        %v7362 = vpop.f32.mrb[0].mxu0
        %v7363 = vadd.f32 0.0, %v7362
        %v7364 = vpop.f32.mrb[0].mxu0
        %v7365 = vpop.f32.mrb[0].mxu0
        %v7366 = vadd.f32 0.0, %v7365
        %v7367 = vpop.f32.mrb[0].mxu0
        %7368 = vmatprep.mubr.bf16.mxu0 0
        %7369 = vmatmul.mubr.bf16.gmra.mrb[0].mxu0 %v6539
        %v7370 = vpop.f32.mrb[0].mxu0
        %v7371 = vadd.f32 0.0, %v7370
        %v7372 = vpop.f32.mrb[0].mxu0
        %v7373 = vpop.f32.mrb[0].mxu0
        %v7374 = vadd.f32 0.0, %v7373
        %v7375 = vpop.f32.mrb[0].mxu0
        %7376 = vmatprep.mubr.bf16.mxu0 0
        %7377 = vmatmul.mubr.bf16.gmra.mrb[0].mxu0 %v6540
        %v7378 = vpop.f32.mrb[0].mxu0
        %v7379 = vadd.f32 0.0, %v7378
        %v7380 = vpop.f32.mrb[0].mxu0
        %v7381 = vpop.f32.mrb[0].mxu0
        %v7382 = vadd.f32 0.0, %v7381
        %v7383 = vpop.f32.mrb[0].mxu0
        %7384 = vmatprep.mubr.bf16.mxu0 0
        %7385 = vmatmul.mubr.bf16.gmra.mrb[0].mxu0 %v6541
        %v7386 = vpop.f32.mrb[0].mxu0
        %v7387 = vadd.f32 0.0, %v7386
        %v7388 = vpop.f32.mrb[0].mxu0
        %v7389 = vpop.f32.mrb[0].mxu0
        %v7390 = vadd.f32 0.0, %v7389
        %v7391 = vpop.f32.mrb[0].mxu0
        %7392 = vmatprep.mubr.bf16.mxu0 0
        %7393 = vmatmul.mubr.bf16.gmra.mrb[0].mxu0 %v6542
        %v7394 = vpop.f32.mrb[0].mxu0
        %v7395 = vadd.f32 0.0, %v7394
        %v7396 = vpop.f32.mrb[0].mxu0
        %v7397 = vpop.f32.mrb[0].mxu0
        %v7398 = vadd.f32 0.0, %v7397
        %v7399 = vpop.f32.mrb[0].mxu0
        %7400 = vmatprep.mubr.bf16.mxu0 0
        %7401 = vmatmul.mubr.bf16.gmra.mrb[0].mxu0 %v6543
        %v7402 = vpop.f32.mrb[0].mxu0
        %v7403 = vadd.f32 0.0, %v7402
        %v7404 = vpop.f32.mrb[0].mxu0
        %v7405 = vpop.f32.mrb[0].mxu0
        %v7406 = vadd.f32 0.0, %v7405
        %v7407 = vpop.f32.mrb[0].mxu0
        %7408 = vmatprep.mubr.bf16.mxu0 0
        %7409 = vmatmul.mubr.bf16.gmra.mrb[0].mxu0 %v6544
        %v7410 = vpop.f32.mrb[0].mxu0
        %v7411 = vadd.f32 0.0, %v7410
        %v7412 = vpop.f32.mrb[0].mxu0
        %v7413 = vpop.f32.mrb[0].mxu0
        %v7414 = vadd.f32 0.0, %v7413
        %v7415 = vpop.f32.mrb[0].mxu0
        %7416 = vmatprep.mubr.bf16.mxu0 0
        %7417 = vmatmul.mubr.bf16.gmra.mrb[0].mxu0 %v6545
        %v7418 = vpop.f32.mrb[0].mxu0
        %v7419 = vadd.f32 0.0, %v7418
        %v7420 = vpop.f32.mrb[0].mxu0
        %v7421 = vpop.f32.mrb[0].mxu0
        %v7422 = vadd.f32 0.0, %v7421
        %v7423 = vpop.f32.mrb[0].mxu0
        %7424 = vmatprep.mubr.bf16.mxu0 0
        %7425 = vmatmul.mubr.bf16.gmra.mrb[0].mxu0 %v6546
        %v7426 = vpop.f32.mrb[0].mxu0
        %v7427 = vadd.f32 0.0, %v7426
        %v7428 = vpop.f32.mrb[0].mxu0
        %v7429 = vpop.f32.mrb[0].mxu0
        %v7430 = vadd.f32 0.0, %v7429
        %v7431 = vpop.f32.mrb[0].mxu0
        %7432 = vmatprep.mubr.bf16.mxu0 0
        %7433 = vmatmul.mubr.bf16.gmra.mrb[0].mxu0 %v6547
        %v7434 = vpop.f32.mrb[0].mxu0
        %v7435 = vadd.f32 0.0, %v7434
        %v7436 = vpop.f32.mrb[0].mxu0
        %v7437 = vpop.f32.mrb[0].mxu0
        %v7438 = vadd.f32 0.0, %v7437
        %v7439 = vpop.f32.mrb[0].mxu0
        %7440 = vmatprep.mubr.bf16.mxu0 0
        %7441 = vmatmul.mubr.bf16.gmra.mrb[0].mxu0 %v6548
        %v7442 = vpop.f32.mrb[0].mxu0
        %v7443 = vadd.f32 0.0, %v7442
        %v7444 = vpop.f32.mrb[0].mxu0
        %v7445 = vpop.f32.mrb[0].mxu0
        %v7446 = vadd.f32 0.0, %v7445
        %v7447 = vpop.f32.mrb[0].mxu0
        %7448 = vdwg.mxu0
        %v7449 = vadd.f32 %v7031, %v7195
        %v7450 = vadd.f32 %v7032, %v7198
        %v7451 = vadd.f32 %v7033, %v7203
        %v7452 = vadd.f32 %v7034, %v7206
        %v7453 = vadd.f32 %v7035, %v7211
        %v7454 = vadd.f32 %v7036, %v7214
        %v7455 = vadd.f32 %v7037, %v7219
        %v7456 = vadd.f32 %v7038, %v7222
        %v7457 = vadd.f32 %v7039, %v7227
        %v7458 = vadd.f32 %v7040, %v7230
        %v7459 = vadd.f32 %v7041, %v7235
        %v7460 = vadd.f32 %v7042, %v7238
        %v7461 = vadd.f32 %v7043, %v7243
        %v7462 = vadd.f32 %v7044, %v7246
        %v7463 = vadd.f32 %v7045, %v7251
        %v7464 = vadd.f32 %v7046, %v7254
        %v7465 = vadd.f32 %v7047, %v7259
        %v7466 = vadd.f32 %v7048, %v7262
        %v7467 = vadd.f32 %v7049, %v7267
        %v7468 = vadd.f32 %v7050, %v7270
        %v7469 = vadd.f32 %v7051, %v7275
        %v7470 = vadd.f32 %v7052, %v7278
        %v7471 = vadd.f32 %v7053, %v7283
        %v7472 = vadd.f32 %v7054, %v7286
        %v7473 = vadd.f32 %v7055, %v7291
        %v7474 = vadd.f32 %v7056, %v7294
        %v7475 = vadd.f32 %v7057, %v7299
        %v7476 = vadd.f32 %v7058, %v7302
        %v7477 = vadd.f32 %v7059, %v7307
        %v7478 = vadd.f32 %v7060, %v7310
        %v7479 = vadd.f32 %v7061, %v7315
        %v7480 = vadd.f32 %v7062, %v7318
        %v7481 = vadd.f32 %v7063, %v7323
        %v7482 = vadd.f32 %v7064, %v7326
        %v7483 = vadd.f32 %v7065, %v7331
        %v7484 = vadd.f32 %v7066, %v7334
        %v7485 = vadd.f32 %v7067, %v7339
        %v7486 = vadd.f32 %v7068, %v7342
        %v7487 = vadd.f32 %v7069, %v7347
        %v7488 = vadd.f32 %v7070, %v7350
        %v7489 = vadd.f32 %v7071, %v7355
        %v7490 = vadd.f32 %v7072, %v7358
        %v7491 = vadd.f32 %v7073, %v7363
        %v7492 = vadd.f32 %v7074, %v7366
        %v7493 = vadd.f32 %v7075, %v7371
        %v7494 = vadd.f32 %v7076, %v7374
        %v7495 = vadd.f32 %v7077, %v7379
        %v7496 = vadd.f32 %v7078, %v7382
        %v7497 = vadd.f32 %v7079, %v7387
        %v7498 = vadd.f32 %v7080, %v7390
        %v7499 = vadd.f32 %v7081, %v7395
        %v7500 = vadd.f32 %v7082, %v7398
        %v7501 = vadd.f32 %v7083, %v7403
        %v7502 = vadd.f32 %v7084, %v7406
        %v7503 = vadd.f32 %v7085, %v7411
        %v7504 = vadd.f32 %v7086, %v7414
        %v7505 = vadd.f32 %v7087, %v7419
        %v7506 = vadd.f32 %v7088, %v7422
        %v7507 = vadd.f32 %v7089, %v7427
        %v7508 = vadd.f32 %v7090, %v7430
        %v7509 = vadd.f32 %v7091, %v7435
        %v7510 = vadd.f32 %v7092, %v7438
        %v7511 = vadd.f32 %v7093, %v7443
        %v7512 = vadd.f32 %v7094, %v7446
        %s7513 = scalar_lea.vmem %s6, 320
        %v7514 = vld [vmem:[%s7513] sm:$0xf]
        %v7515 = vld [vmem:[%s7513 + $0x4] sm:$0xf]
        %v7516 = vld [vmem:[%s7513 + $0x8] sm:$0xf]
        %v7517 = vld [vmem:[%s7513 + $0xc] sm:$0xf]
        %v7518 = vld [vmem:[%s7513 + $0x10] sm:$0xf]
        %v7519 = vld [vmem:[%s7513 + $0x14] sm:$0xf]
        %v7520 = vld [vmem:[%s7513 + $0x18] sm:$0xf]
        %v7521 = vld [vmem:[%s7513 + $0x1c] sm:$0xf]
        %v7522 = vld [vmem:[%s7513 + $0x20] sm:$0xf]
        %v7523 = vld [vmem:[%s7513 + $0x24] sm:$0xf]
        %v7524 = vld [vmem:[%s7513 + $0x28] sm:$0xf]
        %v7525 = vld [vmem:[%s7513 + $0x2c] sm:$0xf]
        %v7526 = vld [vmem:[%s7513 + $0x30] sm:$0xf]
        %v7527 = vld [vmem:[%s7513 + $0x34] sm:$0xf]
        %v7528 = vld [vmem:[%s7513 + $0x38] sm:$0xf]
        %v7529 = vld [vmem:[%s7513 + $0x3c] sm:$0xf]
        %v7546 = vunpack.c.l.b16 %v7514
        %v7547 = vunpack.c.l.b16 %v7515
        %v7548 = vunpack.c.l.b16 %v7516
        %v7549 = vunpack.c.l.b16 %v7517
        %v7550 = vunpack.c.l.b16 %v7518
        %v7551 = vunpack.c.l.b16 %v7519
        %v7552 = vunpack.c.l.b16 %v7520
        %v7553 = vunpack.c.l.b16 %v7521
        %v7554 = vunpack.c.l.b16 %v7522
        %v7555 = vunpack.c.l.b16 %v7523
        %v7556 = vunpack.c.l.b16 %v7524
        %v7557 = vunpack.c.l.b16 %v7525
        %v7558 = vunpack.c.l.b16 %v7526
        %v7559 = vunpack.c.l.b16 %v7527
        %v7560 = vunpack.c.l.b16 %v7528
        %v7561 = vunpack.c.l.b16 %v7529
        %v7562 = vpack.c.b16 %v7547, %v7546
        %v7563 = vpack.c.b16 %v7549, %v7548
        %v7564 = vpack.c.b16 %v7551, %v7550
        %v7565 = vpack.c.b16 %v7553, %v7552
        %v7566 = vpack.c.b16 %v7555, %v7554
        %v7567 = vpack.c.b16 %v7557, %v7556
        %v7568 = vpack.c.b16 %v7559, %v7558
        %v7569 = vpack.c.b16 %v7561, %v7560
        %7578 = vmatprep.subr.bf16.mxu0 0
        %7579 = vmatpush1.bf16.msra.mxu0 %v7562
        %7580 = vmatprep.subr.bf16.mxu0 0
        %7581 = vmatpush1.bf16.msra.mxu0 %v7563
        %7582 = vmatprep.subr.bf16.mxu0 0
        %7583 = vmatpush1.bf16.msra.mxu0 %v7564
        %7584 = vmatprep.subr.bf16.mxu0 0
        %7585 = vmatpush1.bf16.msra.mxu0 %v7565
        %7586 = vmatprep.subr.bf16.mxu0 0
        %7587 = vmatpush1.bf16.msra.mxu0 %v7566
        %7588 = vmatprep.subr.bf16.mxu0 0
        %7589 = vmatpush1.bf16.msra.mxu0 %v7567
        %7590 = vmatprep.subr.bf16.mxu0 0
        %7591 = vmatpush1.bf16.msra.mxu0 %v7568
        %7592 = vmatprep.subr.bf16.mxu0 0
        %7593 = vmatpush1.bf16.msra.mxu0 %v7569
        %7594 = vmatprep.subr.bf16.mxu0 0
        %7595 = vmatpush1.bf16.msra.mxu0 0
        %7596 = vmatprep.subr.bf16.mxu0 0
        %7597 = vmatpush1.bf16.msra.mxu0 0
        %7598 = vmatprep.subr.bf16.mxu0 0
        %7599 = vmatpush1.bf16.msra.mxu0 0
        %7600 = vmatprep.subr.bf16.mxu0 0
        %7601 = vmatpush1.bf16.msra.mxu0 0
        %7602 = vmatprep.subr.bf16.mxu0 0
        %7603 = vmatpush1.bf16.msra.mxu0 0
        %7604 = vmatprep.subr.bf16.mxu0 0
        %7605 = vmatpush1.bf16.msra.mxu0 0
        %7606 = vmatprep.subr.bf16.mxu0 0
        %7607 = vmatpush1.bf16.msra.mxu0 0
        %7608 = vmatprep.subr.bf16.mxu0 0
        %7609 = vmatpush1.bf16.msra.mxu0 0
        %7610 = vmatprep.mubr.bf16.mxu0 0
        %7611 = vmatmul.mubr.bf16.gmra.mrb[0].mxu0 %v6517
        %v7612 = vpop.f32.mrb[0].mxu0
        %v7613 = vadd.f32 0.0, %v7612
        %v7614 = vpop.f32.mrb[0].mxu0
        %v7615 = vpop.f32.mrb[0].mxu0
        %v7616 = vadd.f32 0.0, %v7615
        %v7617 = vpop.f32.mrb[0].mxu0
        %7618 = vmatprep.mubr.bf16.mxu0 0
        %7619 = vmatmul.mubr.bf16.gmra.mrb[0].mxu0 %v6518
        %v7620 = vpop.f32.mrb[0].mxu0
        %v7621 = vadd.f32 0.0, %v7620
        %v7622 = vpop.f32.mrb[0].mxu0
        %v7623 = vpop.f32.mrb[0].mxu0
        %v7624 = vadd.f32 0.0, %v7623
        %v7625 = vpop.f32.mrb[0].mxu0
        %7626 = vmatprep.mubr.bf16.mxu0 0
        %7627 = vmatmul.mubr.bf16.gmra.mrb[0].mxu0 %v6519
        %v7628 = vpop.f32.mrb[0].mxu0
        %v7629 = vadd.f32 0.0, %v7628
        %v7630 = vpop.f32.mrb[0].mxu0
        %v7631 = vpop.f32.mrb[0].mxu0
        %v7632 = vadd.f32 0.0, %v7631
        %v7633 = vpop.f32.mrb[0].mxu0
        %7634 = vmatprep.mubr.bf16.mxu0 0
        %7635 = vmatmul.mubr.bf16.gmra.mrb[0].mxu0 %v6520
        %v7636 = vpop.f32.mrb[0].mxu0
        %v7637 = vadd.f32 0.0, %v7636
        %v7638 = vpop.f32.mrb[0].mxu0
        %v7639 = vpop.f32.mrb[0].mxu0
        %v7640 = vadd.f32 0.0, %v7639
        %v7641 = vpop.f32.mrb[0].mxu0
        %7642 = vmatprep.mubr.bf16.mxu0 0
        %7643 = vmatmul.mubr.bf16.gmra.mrb[0].mxu0 %v6521
        %v7644 = vpop.f32.mrb[0].mxu0
        %v7645 = vadd.f32 0.0, %v7644
        %v7646 = vpop.f32.mrb[0].mxu0
        %v7647 = vpop.f32.mrb[0].mxu0
        %v7648 = vadd.f32 0.0, %v7647
        %v7649 = vpop.f32.mrb[0].mxu0
        %7650 = vmatprep.mubr.bf16.mxu0 0
        %7651 = vmatmul.mubr.bf16.gmra.mrb[0].mxu0 %v6522
        %v7652 = vpop.f32.mrb[0].mxu0
        %v7653 = vadd.f32 0.0, %v7652
        %v7654 = vpop.f32.mrb[0].mxu0
        %v7655 = vpop.f32.mrb[0].mxu0
        %v7656 = vadd.f32 0.0, %v7655
        %v7657 = vpop.f32.mrb[0].mxu0
        %7658 = vmatprep.mubr.bf16.mxu0 0
        %7659 = vmatmul.mubr.bf16.gmra.mrb[0].mxu0 %v6523
        %v7660 = vpop.f32.mrb[0].mxu0
        %v7661 = vadd.f32 0.0, %v7660
        %v7662 = vpop.f32.mrb[0].mxu0
        %v7663 = vpop.f32.mrb[0].mxu0
        %v7664 = vadd.f32 0.0, %v7663
        %v7665 = vpop.f32.mrb[0].mxu0
        %7666 = vmatprep.mubr.bf16.mxu0 0
        %7667 = vmatmul.mubr.bf16.gmra.mrb[0].mxu0 %v6524
        %v7668 = vpop.f32.mrb[0].mxu0
        %v7669 = vadd.f32 0.0, %v7668
        %v7670 = vpop.f32.mrb[0].mxu0
        %v7671 = vpop.f32.mrb[0].mxu0
        %v7672 = vadd.f32 0.0, %v7671
        %v7673 = vpop.f32.mrb[0].mxu0
        %7674 = vmatprep.mubr.bf16.mxu0 0
        %7675 = vmatmul.mubr.bf16.gmra.mrb[0].mxu0 %v6525
        %v7676 = vpop.f32.mrb[0].mxu0
        %v7677 = vadd.f32 0.0, %v7676
        %v7678 = vpop.f32.mrb[0].mxu0
        %v7679 = vpop.f32.mrb[0].mxu0
        %v7680 = vadd.f32 0.0, %v7679
        %v7681 = vpop.f32.mrb[0].mxu0
        %7682 = vmatprep.mubr.bf16.mxu0 0
        %7683 = vmatmul.mubr.bf16.gmra.mrb[0].mxu0 %v6526
        %v7684 = vpop.f32.mrb[0].mxu0
        %v7685 = vadd.f32 0.0, %v7684
        %v7686 = vpop.f32.mrb[0].mxu0
        %v7687 = vpop.f32.mrb[0].mxu0
        %v7688 = vadd.f32 0.0, %v7687
        %v7689 = vpop.f32.mrb[0].mxu0
        %7690 = vmatprep.mubr.bf16.mxu0 0
        %7691 = vmatmul.mubr.bf16.gmra.mrb[0].mxu0 %v6527
        %v7692 = vpop.f32.mrb[0].mxu0
        %v7693 = vadd.f32 0.0, %v7692
        %v7694 = vpop.f32.mrb[0].mxu0
        %v7695 = vpop.f32.mrb[0].mxu0
        %v7696 = vadd.f32 0.0, %v7695
        %v7697 = vpop.f32.mrb[0].mxu0
        %7698 = vmatprep.mubr.bf16.mxu0 0
        %7699 = vmatmul.mubr.bf16.gmra.mrb[0].mxu0 %v6528
        %v7700 = vpop.f32.mrb[0].mxu0
        %v7701 = vadd.f32 0.0, %v7700
        %v7702 = vpop.f32.mrb[0].mxu0
        %v7703 = vpop.f32.mrb[0].mxu0
        %v7704 = vadd.f32 0.0, %v7703
        %v7705 = vpop.f32.mrb[0].mxu0
        %7706 = vmatprep.mubr.bf16.mxu0 0
        %7707 = vmatmul.mubr.bf16.gmra.mrb[0].mxu0 %v6529
        %v7708 = vpop.f32.mrb[0].mxu0
        %v7709 = vadd.f32 0.0, %v7708
        %v7710 = vpop.f32.mrb[0].mxu0
        %v7711 = vpop.f32.mrb[0].mxu0
        %v7712 = vadd.f32 0.0, %v7711
        %v7713 = vpop.f32.mrb[0].mxu0
        %7714 = vmatprep.mubr.bf16.mxu0 0
        %7715 = vmatmul.mubr.bf16.gmra.mrb[0].mxu0 %v6530
        %v7716 = vpop.f32.mrb[0].mxu0
        %v7717 = vadd.f32 0.0, %v7716
        %v7718 = vpop.f32.mrb[0].mxu0
        %v7719 = vpop.f32.mrb[0].mxu0
        %v7720 = vadd.f32 0.0, %v7719
        %v7721 = vpop.f32.mrb[0].mxu0
        %7722 = vmatprep.mubr.bf16.mxu0 0
        %7723 = vmatmul.mubr.bf16.gmra.mrb[0].mxu0 %v6531
        %v7724 = vpop.f32.mrb[0].mxu0
        %v7725 = vadd.f32 0.0, %v7724
        %v7726 = vpop.f32.mrb[0].mxu0
        %v7727 = vpop.f32.mrb[0].mxu0
        %v7728 = vadd.f32 0.0, %v7727
        %v7729 = vpop.f32.mrb[0].mxu0
        %7730 = vmatprep.mubr.bf16.mxu0 0
        %7731 = vmatmul.mubr.bf16.gmra.mrb[0].mxu0 %v6532
        %v7732 = vpop.f32.mrb[0].mxu0
        %v7733 = vadd.f32 0.0, %v7732
        %v7734 = vpop.f32.mrb[0].mxu0
        %v7735 = vpop.f32.mrb[0].mxu0
        %v7736 = vadd.f32 0.0, %v7735
        %v7737 = vpop.f32.mrb[0].mxu0
        %7738 = vmatprep.mubr.bf16.mxu0 0
        %7739 = vmatmul.mubr.bf16.gmra.mrb[0].mxu0 %v6533
        %v7740 = vpop.f32.mrb[0].mxu0
        %v7741 = vadd.f32 0.0, %v7740
        %v7742 = vpop.f32.mrb[0].mxu0
        %v7743 = vpop.f32.mrb[0].mxu0
        %v7744 = vadd.f32 0.0, %v7743
        %v7745 = vpop.f32.mrb[0].mxu0
        %7746 = vmatprep.mubr.bf16.mxu0 0
        %7747 = vmatmul.mubr.bf16.gmra.mrb[0].mxu0 %v6534
        %v7748 = vpop.f32.mrb[0].mxu0
        %v7749 = vadd.f32 0.0, %v7748
        %v7750 = vpop.f32.mrb[0].mxu0
        %v7751 = vpop.f32.mrb[0].mxu0
        %v7752 = vadd.f32 0.0, %v7751
        %v7753 = vpop.f32.mrb[0].mxu0
        %7754 = vmatprep.mubr.bf16.mxu0 0
        %7755 = vmatmul.mubr.bf16.gmra.mrb[0].mxu0 %v6535
        %v7756 = vpop.f32.mrb[0].mxu0
        %v7757 = vadd.f32 0.0, %v7756
        %v7758 = vpop.f32.mrb[0].mxu0
        %v7759 = vpop.f32.mrb[0].mxu0
        %v7760 = vadd.f32 0.0, %v7759
        %v7761 = vpop.f32.mrb[0].mxu0
        %7762 = vmatprep.mubr.bf16.mxu0 0
        %7763 = vmatmul.mubr.bf16.gmra.mrb[0].mxu0 %v6536
        %v7764 = vpop.f32.mrb[0].mxu0
        %v7765 = vadd.f32 0.0, %v7764
        %v7766 = vpop.f32.mrb[0].mxu0
        %v7767 = vpop.f32.mrb[0].mxu0
        %v7768 = vadd.f32 0.0, %v7767
        %v7769 = vpop.f32.mrb[0].mxu0
        %7770 = vmatprep.mubr.bf16.mxu0 0
        %7771 = vmatmul.mubr.bf16.gmra.mrb[0].mxu0 %v6537
        %v7772 = vpop.f32.mrb[0].mxu0
        %v7773 = vadd.f32 0.0, %v7772
        %v7774 = vpop.f32.mrb[0].mxu0
        %v7775 = vpop.f32.mrb[0].mxu0
        %v7776 = vadd.f32 0.0, %v7775
        %v7777 = vpop.f32.mrb[0].mxu0
        %7778 = vmatprep.mubr.bf16.mxu0 0
        %7779 = vmatmul.mubr.bf16.gmra.mrb[0].mxu0 %v6538
        %v7780 = vpop.f32.mrb[0].mxu0
        %v7781 = vadd.f32 0.0, %v7780
        %v7782 = vpop.f32.mrb[0].mxu0
        %v7783 = vpop.f32.mrb[0].mxu0
        %v7784 = vadd.f32 0.0, %v7783
        %v7785 = vpop.f32.mrb[0].mxu0
        %7786 = vmatprep.mubr.bf16.mxu0 0
        %7787 = vmatmul.mubr.bf16.gmra.mrb[0].mxu0 %v6539
        %v7788 = vpop.f32.mrb[0].mxu0
        %v7789 = vadd.f32 0.0, %v7788
        %v7790 = vpop.f32.mrb[0].mxu0
        %v7791 = vpop.f32.mrb[0].mxu0
        %v7792 = vadd.f32 0.0, %v7791
        %v7793 = vpop.f32.mrb[0].mxu0
        %7794 = vmatprep.mubr.bf16.mxu0 0
        %7795 = vmatmul.mubr.bf16.gmra.mrb[0].mxu0 %v6540
        %v7796 = vpop.f32.mrb[0].mxu0
        %v7797 = vadd.f32 0.0, %v7796
        %v7798 = vpop.f32.mrb[0].mxu0
        %v7799 = vpop.f32.mrb[0].mxu0
        %v7800 = vadd.f32 0.0, %v7799
        %v7801 = vpop.f32.mrb[0].mxu0
        %7802 = vmatprep.mubr.bf16.mxu0 0
        %7803 = vmatmul.mubr.bf16.gmra.mrb[0].mxu0 %v6541
        %v7804 = vpop.f32.mrb[0].mxu0
        %v7805 = vadd.f32 0.0, %v7804
        %v7806 = vpop.f32.mrb[0].mxu0
        %v7807 = vpop.f32.mrb[0].mxu0
        %v7808 = vadd.f32 0.0, %v7807
        %v7809 = vpop.f32.mrb[0].mxu0
        %7810 = vmatprep.mubr.bf16.mxu0 0
        %7811 = vmatmul.mubr.bf16.gmra.mrb[0].mxu0 %v6542
        %v7812 = vpop.f32.mrb[0].mxu0
        %v7813 = vadd.f32 0.0, %v7812
        %v7814 = vpop.f32.mrb[0].mxu0
        %v7815 = vpop.f32.mrb[0].mxu0
        %v7816 = vadd.f32 0.0, %v7815
        %v7817 = vpop.f32.mrb[0].mxu0
        %7818 = vmatprep.mubr.bf16.mxu0 0
        %7819 = vmatmul.mubr.bf16.gmra.mrb[0].mxu0 %v6543
        %v7820 = vpop.f32.mrb[0].mxu0
        %v7821 = vadd.f32 0.0, %v7820
        %v7822 = vpop.f32.mrb[0].mxu0
        %v7823 = vpop.f32.mrb[0].mxu0
        %v7824 = vadd.f32 0.0, %v7823
        %v7825 = vpop.f32.mrb[0].mxu0
        %7826 = vmatprep.mubr.bf16.mxu0 0
        %7827 = vmatmul.mubr.bf16.gmra.mrb[0].mxu0 %v6544
        %v7828 = vpop.f32.mrb[0].mxu0
        %v7829 = vadd.f32 0.0, %v7828
        %v7830 = vpop.f32.mrb[0].mxu0
        %v7831 = vpop.f32.mrb[0].mxu0
        %v7832 = vadd.f32 0.0, %v7831
        %v7833 = vpop.f32.mrb[0].mxu0
        %7834 = vmatprep.mubr.bf16.mxu0 0
        %7835 = vmatmul.mubr.bf16.gmra.mrb[0].mxu0 %v6545
        %v7836 = vpop.f32.mrb[0].mxu0
        %v7837 = vadd.f32 0.0, %v7836
        %v7838 = vpop.f32.mrb[0].mxu0
        %v7839 = vpop.f32.mrb[0].mxu0
        %v7840 = vadd.f32 0.0, %v7839
        %v7841 = vpop.f32.mrb[0].mxu0
        %7842 = vmatprep.mubr.bf16.mxu0 0
        %7843 = vmatmul.mubr.bf16.gmra.mrb[0].mxu0 %v6546
        %v7844 = vpop.f32.mrb[0].mxu0
        %v7845 = vadd.f32 0.0, %v7844
        %v7846 = vpop.f32.mrb[0].mxu0
        %v7847 = vpop.f32.mrb[0].mxu0
        %v7848 = vadd.f32 0.0, %v7847
        %v7849 = vpop.f32.mrb[0].mxu0
        %7850 = vmatprep.mubr.bf16.mxu0 0
        %7851 = vmatmul.mubr.bf16.gmra.mrb[0].mxu0 %v6547
        %v7852 = vpop.f32.mrb[0].mxu0
        %v7853 = vadd.f32 0.0, %v7852
        %v7854 = vpop.f32.mrb[0].mxu0
        %v7855 = vpop.f32.mrb[0].mxu0
        %v7856 = vadd.f32 0.0, %v7855
        %v7857 = vpop.f32.mrb[0].mxu0
        %7858 = vmatprep.mubr.bf16.mxu0 0
        %7859 = vmatmul.mubr.bf16.gmra.mrb[0].mxu0 %v6548
        %v7860 = vpop.f32.mrb[0].mxu0
        %v7861 = vadd.f32 0.0, %v7860
        %v7862 = vpop.f32.mrb[0].mxu0
        %v7863 = vpop.f32.mrb[0].mxu0
        %v7864 = vadd.f32 0.0, %v7863
        %v7865 = vpop.f32.mrb[0].mxu0
        %7866 = vdwg.mxu0
        %v7867 = vrot.slane %v7613, 2
        %v7868 = vrot.slane %v7616, 2
        %v7869 = vrot.slane %v7621, 2
        %v7870 = vrot.slane %v7624, 2
        %v7871 = vrot.slane %v7629, 2
        %v7872 = vrot.slane %v7632, 2
        %v7873 = vrot.slane %v7637, 2
        %v7874 = vrot.slane %v7640, 2
        %v7875 = vrot.slane %v7645, 2
        %v7876 = vrot.slane %v7648, 2
        %v7877 = vrot.slane %v7653, 2
        %v7878 = vrot.slane %v7656, 2
        %v7879 = vrot.slane %v7661, 2
        %v7880 = vrot.slane %v7664, 2
        %v7881 = vrot.slane %v7669, 2
        %v7882 = vrot.slane %v7672, 2
        %v7883 = vrot.slane %v7677, 2
        %v7884 = vrot.slane %v7680, 2
        %v7885 = vrot.slane %v7685, 2
        %v7886 = vrot.slane %v7688, 2
        %v7887 = vrot.slane %v7693, 2
        %v7888 = vrot.slane %v7696, 2
        %v7889 = vrot.slane %v7701, 2
        %v7890 = vrot.slane %v7704, 2
        %v7891 = vrot.slane %v7709, 2
        %v7892 = vrot.slane %v7712, 2
        %v7893 = vrot.slane %v7717, 2
        %v7894 = vrot.slane %v7720, 2
        %v7895 = vrot.slane %v7725, 2
        %v7896 = vrot.slane %v7728, 2
        %v7897 = vrot.slane %v7733, 2
        %v7898 = vrot.slane %v7736, 2
        %v7899 = vrot.slane %v7741, 2
        %v7900 = vrot.slane %v7744, 2
        %v7901 = vrot.slane %v7749, 2
        %v7902 = vrot.slane %v7752, 2
        %v7903 = vrot.slane %v7757, 2
        %v7904 = vrot.slane %v7760, 2
        %v7905 = vrot.slane %v7765, 2
        %v7906 = vrot.slane %v7768, 2
        %v7907 = vrot.slane %v7773, 2
        %v7908 = vrot.slane %v7776, 2
        %v7909 = vrot.slane %v7781, 2
        %v7910 = vrot.slane %v7784, 2
        %v7911 = vrot.slane %v7789, 2
        %v7912 = vrot.slane %v7792, 2
        %v7913 = vrot.slane %v7797, 2
        %v7914 = vrot.slane %v7800, 2
        %v7915 = vrot.slane %v7805, 2
        %v7916 = vrot.slane %v7808, 2
        %v7917 = vrot.slane %v7813, 2
        %v7918 = vrot.slane %v7816, 2
        %v7919 = vrot.slane %v7821, 2
        %v7920 = vrot.slane %v7824, 2
        %v7921 = vrot.slane %v7829, 2
        %v7922 = vrot.slane %v7832, 2
        %v7923 = vrot.slane %v7837, 2
        %v7924 = vrot.slane %v7840, 2
        %v7925 = vrot.slane %v7845, 2
        %v7926 = vrot.slane %v7848, 2
        %v7927 = vrot.slane %v7853, 2
        %v7928 = vrot.slane %v7856, 2
        %v7929 = vrot.slane %v7861, 2
        %v7930 = vrot.slane %v7864, 2
        %v7931 = vsel %vm6388, %v7929, %v7930
        %v7932 = vsel %vm6388, %v7928, %v7929
        %v7933 = vsel %vm6388, %v7927, %v7928
        %v7934 = vsel %vm6388, %v7926, %v7927
        %v7935 = vsel %vm6388, %v7925, %v7926
        %v7936 = vsel %vm6388, %v7924, %v7925
        %v7937 = vsel %vm6388, %v7923, %v7924
        %v7938 = vsel %vm6388, %v7922, %v7923
        %v7939 = vsel %vm6388, %v7921, %v7922
        %v7940 = vsel %vm6388, %v7920, %v7921
        %v7941 = vsel %vm6388, %v7919, %v7920
        %v7942 = vsel %vm6388, %v7918, %v7919
        %v7943 = vsel %vm6388, %v7917, %v7918
        %v7944 = vsel %vm6388, %v7916, %v7917
        %v7945 = vsel %vm6388, %v7915, %v7916
        %v7946 = vsel %vm6388, %v7914, %v7915
        %v7947 = vsel %vm6388, %v7913, %v7914
        %v7948 = vsel %vm6388, %v7912, %v7913
        %v7949 = vsel %vm6388, %v7911, %v7912
        %v7950 = vsel %vm6388, %v7910, %v7911
        %v7951 = vsel %vm6388, %v7909, %v7910
        %v7952 = vsel %vm6388, %v7908, %v7909
        %v7953 = vsel %vm6388, %v7907, %v7908
        %v7954 = vsel %vm6388, %v7906, %v7907
        %v7955 = vsel %vm6388, %v7905, %v7906
        %v7956 = vsel %vm6388, %v7904, %v7905
        %v7957 = vsel %vm6388, %v7903, %v7904
        %v7958 = vsel %vm6388, %v7902, %v7903
        %v7959 = vsel %vm6388, %v7901, %v7902
        %v7960 = vsel %vm6388, %v7900, %v7901
        %v7961 = vsel %vm6388, %v7899, %v7900
        %v7962 = vsel %vm6388, %v7898, %v7899
        %v7963 = vsel %vm6388, %v7897, %v7898
        %v7964 = vsel %vm6388, %v7896, %v7897
        %v7965 = vsel %vm6388, %v7895, %v7896
        %v7966 = vsel %vm6388, %v7894, %v7895
        %v7967 = vsel %vm6388, %v7893, %v7894
        %v7968 = vsel %vm6388, %v7892, %v7893
        %v7969 = vsel %vm6388, %v7891, %v7892
        %v7970 = vsel %vm6388, %v7890, %v7891
        %v7971 = vsel %vm6388, %v7889, %v7890
        %v7972 = vsel %vm6388, %v7888, %v7889
        %v7973 = vsel %vm6388, %v7887, %v7888
        %v7974 = vsel %vm6388, %v7886, %v7887
        %v7975 = vsel %vm6388, %v7885, %v7886
        %v7976 = vsel %vm6388, %v7884, %v7885
        %v7977 = vsel %vm6388, %v7883, %v7884
        %v7978 = vsel %vm6388, %v7882, %v7883
        %v7979 = vsel %vm6388, %v7881, %v7882
        %v7980 = vsel %vm6388, %v7880, %v7881
        %v7981 = vsel %vm6388, %v7879, %v7880
        %v7982 = vsel %vm6388, %v7878, %v7879
        %v7983 = vsel %vm6388, %v7877, %v7878
        %v7984 = vsel %vm6388, %v7876, %v7877
        %v7985 = vsel %vm6388, %v7875, %v7876
        %v7986 = vsel %vm6388, %v7874, %v7875
        %v7987 = vsel %vm6388, %v7873, %v7874
        %v7988 = vsel %vm6388, %v7872, %v7873
        %v7989 = vsel %vm6388, %v7871, %v7872
        %v7990 = vsel %vm6388, %v7870, %v7871
        %v7991 = vsel %vm6388, %v7869, %v7870
        %v7992 = vsel %vm6388, %v7868, %v7869
        %v7993 = vsel %vm6388, %v7867, %v7868
        %v7994 = vsel %vm6388, %v7930, %v7867
        %v7995 = vadd.f32 %v7449, %v7993
        %v7996 = vadd.f32 %v7450, %v7992
        %v7997 = vadd.f32 %v7451, %v7991
        %v7998 = vadd.f32 %v7452, %v7990
        %v7999 = vadd.f32 %v7453, %v7989
        %v8000 = vadd.f32 %v7454, %v7988
        %v8001 = vadd.f32 %v7455, %v7987
        %v8002 = vadd.f32 %v7456, %v7986
        %v8003 = vadd.f32 %v7457, %v7985
        %v8004 = vadd.f32 %v7458, %v7984
        %v8005 = vadd.f32 %v7459, %v7983
        %v8006 = vadd.f32 %v7460, %v7982
        %v8007 = vadd.f32 %v7461, %v7981
        %v8008 = vadd.f32 %v7462, %v7980
        %v8009 = vadd.f32 %v7463, %v7979
        %v8010 = vadd.f32 %v7464, %v7978
        %v8011 = vadd.f32 %v7465, %v7977
        %v8012 = vadd.f32 %v7466, %v7976
        %v8013 = vadd.f32 %v7467, %v7975
        %v8014 = vadd.f32 %v7468, %v7974
        %v8015 = vadd.f32 %v7469, %v7973
        %v8016 = vadd.f32 %v7470, %v7972
        %v8017 = vadd.f32 %v7471, %v7971
        %v8018 = vadd.f32 %v7472, %v7970
        %v8019 = vadd.f32 %v7473, %v7969
        %v8020 = vadd.f32 %v7474, %v7968
        %v8021 = vadd.f32 %v7475, %v7967
        %v8022 = vadd.f32 %v7476, %v7966
        %v8023 = vadd.f32 %v7477, %v7965
        %v8024 = vadd.f32 %v7478, %v7964
        %v8025 = vadd.f32 %v7479, %v7963
        %v8026 = vadd.f32 %v7480, %v7962
        %v8027 = vadd.f32 %v7481, %v7961
        %v8028 = vadd.f32 %v7482, %v7960
        %v8029 = vadd.f32 %v7483, %v7959
        %v8030 = vadd.f32 %v7484, %v7958
        %v8031 = vadd.f32 %v7485, %v7957
        %v8032 = vadd.f32 %v7486, %v7956
        %v8033 = vadd.f32 %v7487, %v7955
        %v8034 = vadd.f32 %v7488, %v7954
        %v8035 = vadd.f32 %v7489, %v7953
        %v8036 = vadd.f32 %v7490, %v7952
        %v8037 = vadd.f32 %v7491, %v7951
        %v8038 = vadd.f32 %v7492, %v7950
        %v8039 = vadd.f32 %v7493, %v7949
        %v8040 = vadd.f32 %v7494, %v7948
        %v8041 = vadd.f32 %v7495, %v7947
        %v8042 = vadd.f32 %v7496, %v7946
        %v8043 = vadd.f32 %v7497, %v7945
        %v8044 = vadd.f32 %v7498, %v7944
        %v8045 = vadd.f32 %v7499, %v7943
        %v8046 = vadd.f32 %v7500, %v7942
        %v8047 = vadd.f32 %v7501, %v7941
        %v8048 = vadd.f32 %v7502, %v7940
        %v8049 = vadd.f32 %v7503, %v7939
        %v8050 = vadd.f32 %v7504, %v7938
        %v8051 = vadd.f32 %v7505, %v7937
        %v8052 = vadd.f32 %v7506, %v7936
        %v8053 = vadd.f32 %v7507, %v7935
        %v8054 = vadd.f32 %v7508, %v7934
        %v8055 = vadd.f32 %v7509, %v7933
        %v8056 = vadd.f32 %v7510, %v7932
        %v8057 = vadd.f32 %v7511, %v7931
        %v8058 = vadd.f32 %v7512, %v7994
        %s8059 = scalar_lea.vmem [#allocation3], 64
        %v8060 = vld [vmem:[%s8059] sm:$0xff]
        %v8061 = vld [vmem:[%s8059 + $0x8] sm:$0xff]
        %v8062 = vld [vmem:[%s8059 + $0x10] sm:$0xff]
        %v8063 = vld [vmem:[%s8059 + $0x18] sm:$0xff]
        %v8064 = vld [vmem:[%s8059 + $0x20] sm:$0xff]
        %v8065 = vld [vmem:[%s8059 + $0x28] sm:$0xff]
        %v8066 = vld [vmem:[%s8059 + $0x30] sm:$0xff]
        %v8067 = vld [vmem:[%s8059 + $0x38] sm:$0xff]
        %v8068 = vld [vmem:[%s8059 + $0x40] sm:$0xff]
        %v8069 = vld [vmem:[%s8059 + $0x48] sm:$0xff]
        %v8070 = vld [vmem:[%s8059 + $0x50] sm:$0xff]
        %v8071 = vld [vmem:[%s8059 + $0x58] sm:$0xff]
        %v8072 = vld [vmem:[%s8059 + $0x60] sm:$0xff]
        %v8073 = vld [vmem:[%s8059 + $0x68] sm:$0xff]
        %v8074 = vld [vmem:[%s8059 + $0x70] sm:$0xff]
        %v8075 = vld [vmem:[%s8059 + $0x78] sm:$0xff]
        %v8076 = vld [vmem:[%s8059 + $0x80] sm:$0xff]
        %v8077 = vld [vmem:[%s8059 + $0x88] sm:$0xff]
        %v8078 = vld [vmem:[%s8059 + $0x90] sm:$0xff]
        %v8079 = vld [vmem:[%s8059 + $0x98] sm:$0xff]
        %v8080 = vld [vmem:[%s8059 + $0xa0] sm:$0xff]
        %v8081 = vld [vmem:[%s8059 + $0xa8] sm:$0xff]
        %v8082 = vld [vmem:[%s8059 + $0xb0] sm:$0xff]
        %v8083 = vld [vmem:[%s8059 + $0xb8] sm:$0xff]
        %v8084 = vld [vmem:[%s8059 + $0xc0] sm:$0xff]
        %v8085 = vld [vmem:[%s8059 + $0xc8] sm:$0xff]
        %v8086 = vld [vmem:[%s8059 + $0xd0] sm:$0xff]
        %v8087 = vld [vmem:[%s8059 + $0xd8] sm:$0xff]
        %v8088 = vld [vmem:[%s8059 + $0xe0] sm:$0xff]
        %v8089 = vld [vmem:[%s8059 + $0xe8] sm:$0xff]
        %v8090 = vld [vmem:[%s8059 + $0xf0] sm:$0xff]
        %v8091 = vld [vmem:[%s8059 + $0xf8] sm:$0xff]
        %s8092 = scalar_lea.vmem %s6, 384
        %v8093 = vld [vmem:[%s8092] sm:$0xf]
        %v8094 = vld [vmem:[%s8092 + $0x4] sm:$0xf]
        %v8095 = vld [vmem:[%s8092 + $0x8] sm:$0xf]
        %v8096 = vld [vmem:[%s8092 + $0xc] sm:$0xf]
        %v8097 = vld [vmem:[%s8092 + $0x10] sm:$0xf]
        %v8098 = vld [vmem:[%s8092 + $0x14] sm:$0xf]
        %v8099 = vld [vmem:[%s8092 + $0x18] sm:$0xf]
        %v8100 = vld [vmem:[%s8092 + $0x1c] sm:$0xf]
        %v8101 = vld [vmem:[%s8092 + $0x20] sm:$0xf]
        %v8102 = vld [vmem:[%s8092 + $0x24] sm:$0xf]
        %v8103 = vld [vmem:[%s8092 + $0x28] sm:$0xf]
        %v8104 = vld [vmem:[%s8092 + $0x2c] sm:$0xf]
        %v8105 = vld [vmem:[%s8092 + $0x30] sm:$0xf]
        %v8106 = vld [vmem:[%s8092 + $0x34] sm:$0xf]
        %v8107 = vld [vmem:[%s8092 + $0x38] sm:$0xf]
        %v8108 = vld [vmem:[%s8092 + $0x3c] sm:$0xf]
        %v8125 = vunpack.c.l.b16 %v8093
        %v8126 = vunpack.c.l.b16 %v8094
        %v8127 = vunpack.c.l.b16 %v8095
        %v8128 = vunpack.c.l.b16 %v8096
        %v8129 = vunpack.c.l.b16 %v8097
        %v8130 = vunpack.c.l.b16 %v8098
        %v8131 = vunpack.c.l.b16 %v8099
        %v8132 = vunpack.c.l.b16 %v8100
        %v8133 = vunpack.c.l.b16 %v8101
        %v8134 = vunpack.c.l.b16 %v8102
        %v8135 = vunpack.c.l.b16 %v8103
        %v8136 = vunpack.c.l.b16 %v8104
        %v8137 = vunpack.c.l.b16 %v8105
        %v8138 = vunpack.c.l.b16 %v8106
        %v8139 = vunpack.c.l.b16 %v8107
        %v8140 = vunpack.c.l.b16 %v8108
        %v8141 = vpack.c.b16 %v8126, %v8125
        %v8142 = vpack.c.b16 %v8128, %v8127
        %v8143 = vpack.c.b16 %v8130, %v8129
        %v8144 = vpack.c.b16 %v8132, %v8131
        %v8145 = vpack.c.b16 %v8134, %v8133
        %v8146 = vpack.c.b16 %v8136, %v8135
        %v8147 = vpack.c.b16 %v8138, %v8137
        %v8148 = vpack.c.b16 %v8140, %v8139
        %8157 = vmatprep.subr.bf16.mxu0 0
        %8158 = vmatpush1.bf16.msra.mxu0 %v8141
        %8159 = vmatprep.subr.bf16.mxu0 0
        %8160 = vmatpush1.bf16.msra.mxu0 %v8142
        %8161 = vmatprep.subr.bf16.mxu0 0
        %8162 = vmatpush1.bf16.msra.mxu0 %v8143
        %8163 = vmatprep.subr.bf16.mxu0 0
        %8164 = vmatpush1.bf16.msra.mxu0 %v8144
        %8165 = vmatprep.subr.bf16.mxu0 0
        %8166 = vmatpush1.bf16.msra.mxu0 %v8145
        %8167 = vmatprep.subr.bf16.mxu0 0
        %8168 = vmatpush1.bf16.msra.mxu0 %v8146
        %8169 = vmatprep.subr.bf16.mxu0 0
        %8170 = vmatpush1.bf16.msra.mxu0 %v8147
        %8171 = vmatprep.subr.bf16.mxu0 0
        %8172 = vmatpush1.bf16.msra.mxu0 %v8148
        %8173 = vmatprep.subr.bf16.mxu0 0
        %8174 = vmatpush1.bf16.msra.mxu0 0
        %8175 = vmatprep.subr.bf16.mxu0 0
        %8176 = vmatpush1.bf16.msra.mxu0 0
        %8177 = vmatprep.subr.bf16.mxu0 0
        %8178 = vmatpush1.bf16.msra.mxu0 0
        %8179 = vmatprep.subr.bf16.mxu0 0
        %8180 = vmatpush1.bf16.msra.mxu0 0
        %8181 = vmatprep.subr.bf16.mxu0 0
        %8182 = vmatpush1.bf16.msra.mxu0 0
        %8183 = vmatprep.subr.bf16.mxu0 0
        %8184 = vmatpush1.bf16.msra.mxu0 0
        %8185 = vmatprep.subr.bf16.mxu0 0
        %8186 = vmatpush1.bf16.msra.mxu0 0
        %8187 = vmatprep.subr.bf16.mxu0 0
        %8188 = vmatpush1.bf16.msra.mxu0 0
        %8189 = vmatprep.mubr.bf16.mxu0 0
        %8190 = vmatmul.mubr.bf16.gmra.mrb[0].mxu0 %v8060
        %v8191 = vpop.f32.mrb[0].mxu0
        %v8192 = vadd.f32 0.0, %v8191
        %v8193 = vpop.f32.mrb[0].mxu0
        %v8194 = vpop.f32.mrb[0].mxu0
        %v8195 = vadd.f32 0.0, %v8194
        %v8196 = vpop.f32.mrb[0].mxu0
        %8197 = vmatprep.mubr.bf16.mxu0 0
        %8198 = vmatmul.mubr.bf16.gmra.mrb[0].mxu0 %v8061
        %v8199 = vpop.f32.mrb[0].mxu0
        %v8200 = vadd.f32 0.0, %v8199
        %v8201 = vpop.f32.mrb[0].mxu0
        %v8202 = vpop.f32.mrb[0].mxu0
        %v8203 = vadd.f32 0.0, %v8202
        %v8204 = vpop.f32.mrb[0].mxu0
        %8205 = vmatprep.mubr.bf16.mxu0 0
        %8206 = vmatmul.mubr.bf16.gmra.mrb[0].mxu0 %v8062
        %v8207 = vpop.f32.mrb[0].mxu0
        %v8208 = vadd.f32 0.0, %v8207
        %v8209 = vpop.f32.mrb[0].mxu0
        %v8210 = vpop.f32.mrb[0].mxu0
        %v8211 = vadd.f32 0.0, %v8210
        %v8212 = vpop.f32.mrb[0].mxu0
        %8213 = vmatprep.mubr.bf16.mxu0 0
        %8214 = vmatmul.mubr.bf16.gmra.mrb[0].mxu0 %v8063
        %v8215 = vpop.f32.mrb[0].mxu0
        %v8216 = vadd.f32 0.0, %v8215
        %v8217 = vpop.f32.mrb[0].mxu0
        %v8218 = vpop.f32.mrb[0].mxu0
        %v8219 = vadd.f32 0.0, %v8218
        %v8220 = vpop.f32.mrb[0].mxu0
        %8221 = vmatprep.mubr.bf16.mxu0 0
        %8222 = vmatmul.mubr.bf16.gmra.mrb[0].mxu0 %v8064
        %v8223 = vpop.f32.mrb[0].mxu0
        %v8224 = vadd.f32 0.0, %v8223
        %v8225 = vpop.f32.mrb[0].mxu0
        %v8226 = vpop.f32.mrb[0].mxu0
        %v8227 = vadd.f32 0.0, %v8226
        %v8228 = vpop.f32.mrb[0].mxu0
        %8229 = vmatprep.mubr.bf16.mxu0 0
        %8230 = vmatmul.mubr.bf16.gmra.mrb[0].mxu0 %v8065
        %v8231 = vpop.f32.mrb[0].mxu0
        %v8232 = vadd.f32 0.0, %v8231
        %v8233 = vpop.f32.mrb[0].mxu0
        %v8234 = vpop.f32.mrb[0].mxu0
        %v8235 = vadd.f32 0.0, %v8234
        %v8236 = vpop.f32.mrb[0].mxu0
        %8237 = vmatprep.mubr.bf16.mxu0 0
        %8238 = vmatmul.mubr.bf16.gmra.mrb[0].mxu0 %v8066
        %v8239 = vpop.f32.mrb[0].mxu0
        %v8240 = vadd.f32 0.0, %v8239
        %v8241 = vpop.f32.mrb[0].mxu0
        %v8242 = vpop.f32.mrb[0].mxu0
        %v8243 = vadd.f32 0.0, %v8242
        %v8244 = vpop.f32.mrb[0].mxu0
        %8245 = vmatprep.mubr.bf16.mxu0 0
        %8246 = vmatmul.mubr.bf16.gmra.mrb[0].mxu0 %v8067
        %v8247 = vpop.f32.mrb[0].mxu0
        %v8248 = vadd.f32 0.0, %v8247
        %v8249 = vpop.f32.mrb[0].mxu0
        %v8250 = vpop.f32.mrb[0].mxu0
        %v8251 = vadd.f32 0.0, %v8250
        %v8252 = vpop.f32.mrb[0].mxu0
        %8253 = vmatprep.mubr.bf16.mxu0 0
        %8254 = vmatmul.mubr.bf16.gmra.mrb[0].mxu0 %v8068
        %v8255 = vpop.f32.mrb[0].mxu0
        %v8256 = vadd.f32 0.0, %v8255
        %v8257 = vpop.f32.mrb[0].mxu0
        %v8258 = vpop.f32.mrb[0].mxu0
        %v8259 = vadd.f32 0.0, %v8258
        %v8260 = vpop.f32.mrb[0].mxu0
        %8261 = vmatprep.mubr.bf16.mxu0 0
        %8262 = vmatmul.mubr.bf16.gmra.mrb[0].mxu0 %v8069
        %v8263 = vpop.f32.mrb[0].mxu0
        %v8264 = vadd.f32 0.0, %v8263
        %v8265 = vpop.f32.mrb[0].mxu0
        %v8266 = vpop.f32.mrb[0].mxu0
        %v8267 = vadd.f32 0.0, %v8266
        %v8268 = vpop.f32.mrb[0].mxu0
        %8269 = vmatprep.mubr.bf16.mxu0 0
        %8270 = vmatmul.mubr.bf16.gmra.mrb[0].mxu0 %v8070
        %v8271 = vpop.f32.mrb[0].mxu0
        %v8272 = vadd.f32 0.0, %v8271
        %v8273 = vpop.f32.mrb[0].mxu0
        %v8274 = vpop.f32.mrb[0].mxu0
        %v8275 = vadd.f32 0.0, %v8274
        %v8276 = vpop.f32.mrb[0].mxu0
        %8277 = vmatprep.mubr.bf16.mxu0 0
        %8278 = vmatmul.mubr.bf16.gmra.mrb[0].mxu0 %v8071
        %v8279 = vpop.f32.mrb[0].mxu0
        %v8280 = vadd.f32 0.0, %v8279
        %v8281 = vpop.f32.mrb[0].mxu0
        %v8282 = vpop.f32.mrb[0].mxu0
        %v8283 = vadd.f32 0.0, %v8282
        %v8284 = vpop.f32.mrb[0].mxu0
        %8285 = vmatprep.mubr.bf16.mxu0 0
        %8286 = vmatmul.mubr.bf16.gmra.mrb[0].mxu0 %v8072
        %v8287 = vpop.f32.mrb[0].mxu0
        %v8288 = vadd.f32 0.0, %v8287
        %v8289 = vpop.f32.mrb[0].mxu0
        %v8290 = vpop.f32.mrb[0].mxu0
        %v8291 = vadd.f32 0.0, %v8290
        %v8292 = vpop.f32.mrb[0].mxu0
        %8293 = vmatprep.mubr.bf16.mxu0 0
        %8294 = vmatmul.mubr.bf16.gmra.mrb[0].mxu0 %v8073
        %v8295 = vpop.f32.mrb[0].mxu0
        %v8296 = vadd.f32 0.0, %v8295
        %v8297 = vpop.f32.mrb[0].mxu0
        %v8298 = vpop.f32.mrb[0].mxu0
        %v8299 = vadd.f32 0.0, %v8298
        %v8300 = vpop.f32.mrb[0].mxu0
        %8301 = vmatprep.mubr.bf16.mxu0 0
        %8302 = vmatmul.mubr.bf16.gmra.mrb[0].mxu0 %v8074
        %v8303 = vpop.f32.mrb[0].mxu0
        %v8304 = vadd.f32 0.0, %v8303
        %v8305 = vpop.f32.mrb[0].mxu0
        %v8306 = vpop.f32.mrb[0].mxu0
        %v8307 = vadd.f32 0.0, %v8306
        %v8308 = vpop.f32.mrb[0].mxu0
        %8309 = vmatprep.mubr.bf16.mxu0 0
        %8310 = vmatmul.mubr.bf16.gmra.mrb[0].mxu0 %v8075
        %v8311 = vpop.f32.mrb[0].mxu0
        %v8312 = vadd.f32 0.0, %v8311
        %v8313 = vpop.f32.mrb[0].mxu0
        %v8314 = vpop.f32.mrb[0].mxu0
        %v8315 = vadd.f32 0.0, %v8314
        %v8316 = vpop.f32.mrb[0].mxu0
        %8317 = vmatprep.mubr.bf16.mxu0 0
        %8318 = vmatmul.mubr.bf16.gmra.mrb[0].mxu0 %v8076
        %v8319 = vpop.f32.mrb[0].mxu0
        %v8320 = vadd.f32 0.0, %v8319
        %v8321 = vpop.f32.mrb[0].mxu0
        %v8322 = vpop.f32.mrb[0].mxu0
        %v8323 = vadd.f32 0.0, %v8322
        %v8324 = vpop.f32.mrb[0].mxu0
        %8325 = vmatprep.mubr.bf16.mxu0 0
        %8326 = vmatmul.mubr.bf16.gmra.mrb[0].mxu0 %v8077
        %v8327 = vpop.f32.mrb[0].mxu0
        %v8328 = vadd.f32 0.0, %v8327
        %v8329 = vpop.f32.mrb[0].mxu0
        %v8330 = vpop.f32.mrb[0].mxu0
        %v8331 = vadd.f32 0.0, %v8330
        %v8332 = vpop.f32.mrb[0].mxu0
        %8333 = vmatprep.mubr.bf16.mxu0 0
        %8334 = vmatmul.mubr.bf16.gmra.mrb[0].mxu0 %v8078
        %v8335 = vpop.f32.mrb[0].mxu0
        %v8336 = vadd.f32 0.0, %v8335
        %v8337 = vpop.f32.mrb[0].mxu0
        %v8338 = vpop.f32.mrb[0].mxu0
        %v8339 = vadd.f32 0.0, %v8338
        %v8340 = vpop.f32.mrb[0].mxu0
        %8341 = vmatprep.mubr.bf16.mxu0 0
        %8342 = vmatmul.mubr.bf16.gmra.mrb[0].mxu0 %v8079
        %v8343 = vpop.f32.mrb[0].mxu0
        %v8344 = vadd.f32 0.0, %v8343
        %v8345 = vpop.f32.mrb[0].mxu0
        %v8346 = vpop.f32.mrb[0].mxu0
        %v8347 = vadd.f32 0.0, %v8346
        %v8348 = vpop.f32.mrb[0].mxu0
        %8349 = vmatprep.mubr.bf16.mxu0 0
        %8350 = vmatmul.mubr.bf16.gmra.mrb[0].mxu0 %v8080
        %v8351 = vpop.f32.mrb[0].mxu0
        %v8352 = vadd.f32 0.0, %v8351
        %v8353 = vpop.f32.mrb[0].mxu0
        %v8354 = vpop.f32.mrb[0].mxu0
        %v8355 = vadd.f32 0.0, %v8354
        %v8356 = vpop.f32.mrb[0].mxu0
        %8357 = vmatprep.mubr.bf16.mxu0 0
        %8358 = vmatmul.mubr.bf16.gmra.mrb[0].mxu0 %v8081
        %v8359 = vpop.f32.mrb[0].mxu0
        %v8360 = vadd.f32 0.0, %v8359
        %v8361 = vpop.f32.mrb[0].mxu0
        %v8362 = vpop.f32.mrb[0].mxu0
        %v8363 = vadd.f32 0.0, %v8362
        %v8364 = vpop.f32.mrb[0].mxu0
        %8365 = vmatprep.mubr.bf16.mxu0 0
        %8366 = vmatmul.mubr.bf16.gmra.mrb[0].mxu0 %v8082
        %v8367 = vpop.f32.mrb[0].mxu0
        %v8368 = vadd.f32 0.0, %v8367
        %v8369 = vpop.f32.mrb[0].mxu0
        %v8370 = vpop.f32.mrb[0].mxu0
        %v8371 = vadd.f32 0.0, %v8370
        %v8372 = vpop.f32.mrb[0].mxu0
        %8373 = vmatprep.mubr.bf16.mxu0 0
        %8374 = vmatmul.mubr.bf16.gmra.mrb[0].mxu0 %v8083
        %v8375 = vpop.f32.mrb[0].mxu0
        %v8376 = vadd.f32 0.0, %v8375
        %v8377 = vpop.f32.mrb[0].mxu0
        %v8378 = vpop.f32.mrb[0].mxu0
        %v8379 = vadd.f32 0.0, %v8378
        %v8380 = vpop.f32.mrb[0].mxu0
        %8381 = vmatprep.mubr.bf16.mxu0 0
        %8382 = vmatmul.mubr.bf16.gmra.mrb[0].mxu0 %v8084
        %v8383 = vpop.f32.mrb[0].mxu0
        %v8384 = vadd.f32 0.0, %v8383
        %v8385 = vpop.f32.mrb[0].mxu0
        %v8386 = vpop.f32.mrb[0].mxu0
        %v8387 = vadd.f32 0.0, %v8386
        %v8388 = vpop.f32.mrb[0].mxu0
        %8389 = vmatprep.mubr.bf16.mxu0 0
        %8390 = vmatmul.mubr.bf16.gmra.mrb[0].mxu0 %v8085
        %v8391 = vpop.f32.mrb[0].mxu0
        %v8392 = vadd.f32 0.0, %v8391
        %v8393 = vpop.f32.mrb[0].mxu0
        %v8394 = vpop.f32.mrb[0].mxu0
        %v8395 = vadd.f32 0.0, %v8394
        %v8396 = vpop.f32.mrb[0].mxu0
        %8397 = vmatprep.mubr.bf16.mxu0 0
        %8398 = vmatmul.mubr.bf16.gmra.mrb[0].mxu0 %v8086
        %v8399 = vpop.f32.mrb[0].mxu0
        %v8400 = vadd.f32 0.0, %v8399
        %v8401 = vpop.f32.mrb[0].mxu0
        %v8402 = vpop.f32.mrb[0].mxu0
        %v8403 = vadd.f32 0.0, %v8402
        %v8404 = vpop.f32.mrb[0].mxu0
        %8405 = vmatprep.mubr.bf16.mxu0 0
        %8406 = vmatmul.mubr.bf16.gmra.mrb[0].mxu0 %v8087
        %v8407 = vpop.f32.mrb[0].mxu0
        %v8408 = vadd.f32 0.0, %v8407
        %v8409 = vpop.f32.mrb[0].mxu0
        %v8410 = vpop.f32.mrb[0].mxu0
        %v8411 = vadd.f32 0.0, %v8410
        %v8412 = vpop.f32.mrb[0].mxu0
        %8413 = vmatprep.mubr.bf16.mxu0 0
        %8414 = vmatmul.mubr.bf16.gmra.mrb[0].mxu0 %v8088
        %v8415 = vpop.f32.mrb[0].mxu0
        %v8416 = vadd.f32 0.0, %v8415
        %v8417 = vpop.f32.mrb[0].mxu0
        %v8418 = vpop.f32.mrb[0].mxu0
        %v8419 = vadd.f32 0.0, %v8418
        %v8420 = vpop.f32.mrb[0].mxu0
        %8421 = vmatprep.mubr.bf16.mxu0 0
        %8422 = vmatmul.mubr.bf16.gmra.mrb[0].mxu0 %v8089
        %v8423 = vpop.f32.mrb[0].mxu0
        %v8424 = vadd.f32 0.0, %v8423
        %v8425 = vpop.f32.mrb[0].mxu0
        %v8426 = vpop.f32.mrb[0].mxu0
        %v8427 = vadd.f32 0.0, %v8426
        %v8428 = vpop.f32.mrb[0].mxu0
        %8429 = vmatprep.mubr.bf16.mxu0 0
        %8430 = vmatmul.mubr.bf16.gmra.mrb[0].mxu0 %v8090
        %v8431 = vpop.f32.mrb[0].mxu0
        %v8432 = vadd.f32 0.0, %v8431
        %v8433 = vpop.f32.mrb[0].mxu0
        %v8434 = vpop.f32.mrb[0].mxu0
        %v8435 = vadd.f32 0.0, %v8434
        %v8436 = vpop.f32.mrb[0].mxu0
        %8437 = vmatprep.mubr.bf16.mxu0 0
        %8438 = vmatmul.mubr.bf16.gmra.mrb[0].mxu0 %v8091
        %v8439 = vpop.f32.mrb[0].mxu0
        %v8440 = vadd.f32 0.0, %v8439
        %v8441 = vpop.f32.mrb[0].mxu0
        %v8442 = vpop.f32.mrb[0].mxu0
        %v8443 = vadd.f32 0.0, %v8442
        %v8444 = vpop.f32.mrb[0].mxu0
        %8445 = vdwg.mxu0
        %v8446 = vrot.slane %v8192, 6
        %v8447 = vrot.slane %v8195, 6
        %v8448 = vrot.slane %v8200, 6
        %v8449 = vrot.slane %v8203, 6
        %v8450 = vrot.slane %v8208, 6
        %v8451 = vrot.slane %v8211, 6
        %v8452 = vrot.slane %v8216, 6
        %v8453 = vrot.slane %v8219, 6
        %v8454 = vrot.slane %v8224, 6
        %v8455 = vrot.slane %v8227, 6
        %v8456 = vrot.slane %v8232, 6
        %v8457 = vrot.slane %v8235, 6
        %v8458 = vrot.slane %v8240, 6
        %v8459 = vrot.slane %v8243, 6
        %v8460 = vrot.slane %v8248, 6
        %v8461 = vrot.slane %v8251, 6
        %v8462 = vrot.slane %v8256, 6
        %v8463 = vrot.slane %v8259, 6
        %v8464 = vrot.slane %v8264, 6
        %v8465 = vrot.slane %v8267, 6
        %v8466 = vrot.slane %v8272, 6
        %v8467 = vrot.slane %v8275, 6
        %v8468 = vrot.slane %v8280, 6
        %v8469 = vrot.slane %v8283, 6
        %v8470 = vrot.slane %v8288, 6
        %v8471 = vrot.slane %v8291, 6
        %v8472 = vrot.slane %v8296, 6
        %v8473 = vrot.slane %v8299, 6
        %v8474 = vrot.slane %v8304, 6
        %v8475 = vrot.slane %v8307, 6
        %v8476 = vrot.slane %v8312, 6
        %v8477 = vrot.slane %v8315, 6
        %v8478 = vrot.slane %v8320, 6
        %v8479 = vrot.slane %v8323, 6
        %v8480 = vrot.slane %v8328, 6
        %v8481 = vrot.slane %v8331, 6
        %v8482 = vrot.slane %v8336, 6
        %v8483 = vrot.slane %v8339, 6
        %v8484 = vrot.slane %v8344, 6
        %v8485 = vrot.slane %v8347, 6
        %v8486 = vrot.slane %v8352, 6
        %v8487 = vrot.slane %v8355, 6
        %v8488 = vrot.slane %v8360, 6
        %v8489 = vrot.slane %v8363, 6
        %v8490 = vrot.slane %v8368, 6
        %v8491 = vrot.slane %v8371, 6
        %v8492 = vrot.slane %v8376, 6
        %v8493 = vrot.slane %v8379, 6
        %v8494 = vrot.slane %v8384, 6
        %v8495 = vrot.slane %v8387, 6
        %v8496 = vrot.slane %v8392, 6
        %v8497 = vrot.slane %v8395, 6
        %v8498 = vrot.slane %v8400, 6
        %v8499 = vrot.slane %v8403, 6
        %v8500 = vrot.slane %v8408, 6
        %v8501 = vrot.slane %v8411, 6
        %v8502 = vrot.slane %v8416, 6
        %v8503 = vrot.slane %v8419, 6
        %v8504 = vrot.slane %v8424, 6
        %v8505 = vrot.slane %v8427, 6
        %v8506 = vrot.slane %v8432, 6
        %v8507 = vrot.slane %v8435, 6
        %v8508 = vrot.slane %v8440, 6
        %v8509 = vrot.slane %v8443, 6
        %v8510 = vsel %vm5487, %v8508, %v8509
        %v8511 = vsel %vm5487, %v8507, %v8508
        %v8512 = vsel %vm5487, %v8506, %v8507
        %v8513 = vsel %vm5487, %v8505, %v8506
        %v8514 = vsel %vm5487, %v8504, %v8505
        %v8515 = vsel %vm5487, %v8503, %v8504
        %v8516 = vsel %vm5487, %v8502, %v8503
        %v8517 = vsel %vm5487, %v8501, %v8502
        %v8518 = vsel %vm5487, %v8500, %v8501
        %v8519 = vsel %vm5487, %v8499, %v8500
        %v8520 = vsel %vm5487, %v8498, %v8499
        %v8521 = vsel %vm5487, %v8497, %v8498
        %v8522 = vsel %vm5487, %v8496, %v8497
        %v8523 = vsel %vm5487, %v8495, %v8496
        %v8524 = vsel %vm5487, %v8494, %v8495
        %v8525 = vsel %vm5487, %v8493, %v8494
        %v8526 = vsel %vm5487, %v8492, %v8493
        %v8527 = vsel %vm5487, %v8491, %v8492
        %v8528 = vsel %vm5487, %v8490, %v8491
        %v8529 = vsel %vm5487, %v8489, %v8490
        %v8530 = vsel %vm5487, %v8488, %v8489
        %v8531 = vsel %vm5487, %v8487, %v8488
        %v8532 = vsel %vm5487, %v8486, %v8487
        %v8533 = vsel %vm5487, %v8485, %v8486
        %v8534 = vsel %vm5487, %v8484, %v8485
        %v8535 = vsel %vm5487, %v8483, %v8484
        %v8536 = vsel %vm5487, %v8482, %v8483
        %v8537 = vsel %vm5487, %v8481, %v8482
        %v8538 = vsel %vm5487, %v8480, %v8481
        %v8539 = vsel %vm5487, %v8479, %v8480
        %v8540 = vsel %vm5487, %v8478, %v8479
        %v8541 = vsel %vm5487, %v8477, %v8478
        %v8542 = vsel %vm5487, %v8476, %v8477
        %v8543 = vsel %vm5487, %v8475, %v8476
        %v8544 = vsel %vm5487, %v8474, %v8475
        %v8545 = vsel %vm5487, %v8473, %v8474
        %v8546 = vsel %vm5487, %v8472, %v8473
        %v8547 = vsel %vm5487, %v8471, %v8472
        %v8548 = vsel %vm5487, %v8470, %v8471
        %v8549 = vsel %vm5487, %v8469, %v8470
        %v8550 = vsel %vm5487, %v8468, %v8469
        %v8551 = vsel %vm5487, %v8467, %v8468
        %v8552 = vsel %vm5487, %v8466, %v8467
        %v8553 = vsel %vm5487, %v8465, %v8466
        %v8554 = vsel %vm5487, %v8464, %v8465
        %v8555 = vsel %vm5487, %v8463, %v8464
        %v8556 = vsel %vm5487, %v8462, %v8463
        %v8557 = vsel %vm5487, %v8461, %v8462
        %v8558 = vsel %vm5487, %v8460, %v8461
        %v8559 = vsel %vm5487, %v8459, %v8460
        %v8560 = vsel %vm5487, %v8458, %v8459
        %v8561 = vsel %vm5487, %v8457, %v8458
        %v8562 = vsel %vm5487, %v8456, %v8457
        %v8563 = vsel %vm5487, %v8455, %v8456
        %v8564 = vsel %vm5487, %v8454, %v8455
        %v8565 = vsel %vm5487, %v8453, %v8454
        %v8566 = vsel %vm5487, %v8452, %v8453
        %v8567 = vsel %vm5487, %v8451, %v8452
        %v8568 = vsel %vm5487, %v8450, %v8451
        %v8569 = vsel %vm5487, %v8449, %v8450
        %v8570 = vsel %vm5487, %v8448, %v8449
        %v8571 = vsel %vm5487, %v8447, %v8448
        %v8572 = vsel %vm5487, %v8446, %v8447
        %v8573 = vsel %vm5487, %v8509, %v8446
        %v8574 = vadd.f32 %v7995, %v8573
        %v8575 = vadd.f32 %v7996, %v8572
        %v8576 = vadd.f32 %v7997, %v8571
        %v8577 = vadd.f32 %v7998, %v8570
        %v8578 = vadd.f32 %v7999, %v8569
        %v8579 = vadd.f32 %v8000, %v8568
        %v8580 = vadd.f32 %v8001, %v8567
        %v8581 = vadd.f32 %v8002, %v8566
        %v8582 = vadd.f32 %v8003, %v8565
        %v8583 = vadd.f32 %v8004, %v8564
        %v8584 = vadd.f32 %v8005, %v8563
        %v8585 = vadd.f32 %v8006, %v8562
        %v8586 = vadd.f32 %v8007, %v8561
        %v8587 = vadd.f32 %v8008, %v8560
        %v8588 = vadd.f32 %v8009, %v8559
        %v8589 = vadd.f32 %v8010, %v8558
        %v8590 = vadd.f32 %v8011, %v8557
        %v8591 = vadd.f32 %v8012, %v8556
        %v8592 = vadd.f32 %v8013, %v8555
        %v8593 = vadd.f32 %v8014, %v8554
        %v8594 = vadd.f32 %v8015, %v8553
        %v8595 = vadd.f32 %v8016, %v8552
        %v8596 = vadd.f32 %v8017, %v8551
        %v8597 = vadd.f32 %v8018, %v8550
        %v8598 = vadd.f32 %v8019, %v8549
        %v8599 = vadd.f32 %v8020, %v8548
        %v8600 = vadd.f32 %v8021, %v8547
        %v8601 = vadd.f32 %v8022, %v8546
        %v8602 = vadd.f32 %v8023, %v8545
        %v8603 = vadd.f32 %v8024, %v8544
        %v8604 = vadd.f32 %v8025, %v8543
        %v8605 = vadd.f32 %v8026, %v8542
        %v8606 = vadd.f32 %v8027, %v8541
        %v8607 = vadd.f32 %v8028, %v8540
        %v8608 = vadd.f32 %v8029, %v8539
        %v8609 = vadd.f32 %v8030, %v8538
        %v8610 = vadd.f32 %v8031, %v8537
        %v8611 = vadd.f32 %v8032, %v8536
        %v8612 = vadd.f32 %v8033, %v8535
        %v8613 = vadd.f32 %v8034, %v8534
        %v8614 = vadd.f32 %v8035, %v8533
        %v8615 = vadd.f32 %v8036, %v8532
        %v8616 = vadd.f32 %v8037, %v8531
        %v8617 = vadd.f32 %v8038, %v8530
        %v8618 = vadd.f32 %v8039, %v8529
        %v8619 = vadd.f32 %v8040, %v8528
        %v8620 = vadd.f32 %v8041, %v8527
        %v8621 = vadd.f32 %v8042, %v8526
        %v8622 = vadd.f32 %v8043, %v8525
        %v8623 = vadd.f32 %v8044, %v8524
        %v8624 = vadd.f32 %v8045, %v8523
        %v8625 = vadd.f32 %v8046, %v8522
        %v8626 = vadd.f32 %v8047, %v8521
        %v8627 = vadd.f32 %v8048, %v8520
        %v8628 = vadd.f32 %v8049, %v8519
        %v8629 = vadd.f32 %v8050, %v8518
        %v8630 = vadd.f32 %v8051, %v8517
        %v8631 = vadd.f32 %v8052, %v8516
        %v8632 = vadd.f32 %v8053, %v8515
        %v8633 = vadd.f32 %v8054, %v8514
        %v8634 = vadd.f32 %v8055, %v8513
        %v8635 = vadd.f32 %v8056, %v8512
        %v8636 = vadd.f32 %v8057, %v8511
        %v8637 = vadd.f32 %v8058, %v8510
        %s8638 = scalar_lea.vmem %s6, 448
        %v8639 = vld [vmem:[%s8638] sm:$0xf]
        %v8640 = vld [vmem:[%s8638 + $0x4] sm:$0xf]
        %v8641 = vld [vmem:[%s8638 + $0x8] sm:$0xf]
        %v8642 = vld [vmem:[%s8638 + $0xc] sm:$0xf]
        %v8643 = vld [vmem:[%s8638 + $0x10] sm:$0xf]
        %v8644 = vld [vmem:[%s8638 + $0x14] sm:$0xf]
        %v8645 = vld [vmem:[%s8638 + $0x18] sm:$0xf]
        %v8646 = vld [vmem:[%s8638 + $0x1c] sm:$0xf]
        %v8647 = vld [vmem:[%s8638 + $0x20] sm:$0xf]
        %v8648 = vld [vmem:[%s8638 + $0x24] sm:$0xf]
        %v8649 = vld [vmem:[%s8638 + $0x28] sm:$0xf]
        %v8650 = vld [vmem:[%s8638 + $0x2c] sm:$0xf]
        %v8651 = vld [vmem:[%s8638 + $0x30] sm:$0xf]
        %v8652 = vld [vmem:[%s8638 + $0x34] sm:$0xf]
        %v8653 = vld [vmem:[%s8638 + $0x38] sm:$0xf]
        %v8654 = vld [vmem:[%s8638 + $0x3c] sm:$0xf]
        %v8671 = vunpack.c.l.b16 %v8639
        %v8672 = vunpack.c.l.b16 %v8640
        %v8673 = vunpack.c.l.b16 %v8641
        %v8674 = vunpack.c.l.b16 %v8642
        %v8675 = vunpack.c.l.b16 %v8643
        %v8676 = vunpack.c.l.b16 %v8644
        %v8677 = vunpack.c.l.b16 %v8645
        %v8678 = vunpack.c.l.b16 %v8646
        %v8679 = vunpack.c.l.b16 %v8647
        %v8680 = vunpack.c.l.b16 %v8648
        %v8681 = vunpack.c.l.b16 %v8649
        %v8682 = vunpack.c.l.b16 %v8650
        %v8683 = vunpack.c.l.b16 %v8651
        %v8684 = vunpack.c.l.b16 %v8652
        %v8685 = vunpack.c.l.b16 %v8653
        %v8686 = vunpack.c.l.b16 %v8654
        %v8687 = vpack.c.b16 %v8672, %v8671
        %v8688 = vpack.c.b16 %v8674, %v8673
        %v8689 = vpack.c.b16 %v8676, %v8675
        %v8690 = vpack.c.b16 %v8678, %v8677
        %v8691 = vpack.c.b16 %v8680, %v8679
        %v8692 = vpack.c.b16 %v8682, %v8681
        %v8693 = vpack.c.b16 %v8684, %v8683
        %v8694 = vpack.c.b16 %v8686, %v8685
        %8703 = vmatprep.subr.bf16.mxu0 0
        %8704 = vmatpush1.bf16.msra.mxu0 %v8687
        %8705 = vmatprep.subr.bf16.mxu0 0
        %8706 = vmatpush1.bf16.msra.mxu0 %v8688
        %8707 = vmatprep.subr.bf16.mxu0 0
        %8708 = vmatpush1.bf16.msra.mxu0 %v8689
        %8709 = vmatprep.subr.bf16.mxu0 0
        %8710 = vmatpush1.bf16.msra.mxu0 %v8690
        %8711 = vmatprep.subr.bf16.mxu0 0
        %8712 = vmatpush1.bf16.msra.mxu0 %v8691
        %8713 = vmatprep.subr.bf16.mxu0 0
        %8714 = vmatpush1.bf16.msra.mxu0 %v8692
        %8715 = vmatprep.subr.bf16.mxu0 0
        %8716 = vmatpush1.bf16.msra.mxu0 %v8693
        %8717 = vmatprep.subr.bf16.mxu0 0
        %8718 = vmatpush1.bf16.msra.mxu0 %v8694
        %8719 = vmatprep.subr.bf16.mxu0 0
        %8720 = vmatpush1.bf16.msra.mxu0 0
        %8721 = vmatprep.subr.bf16.mxu0 0
        %8722 = vmatpush1.bf16.msra.mxu0 0
        %8723 = vmatprep.subr.bf16.mxu0 0
        %8724 = vmatpush1.bf16.msra.mxu0 0
        %8725 = vmatprep.subr.bf16.mxu0 0
        %8726 = vmatpush1.bf16.msra.mxu0 0
        %8727 = vmatprep.subr.bf16.mxu0 0
        %8728 = vmatpush1.bf16.msra.mxu0 0
        %8729 = vmatprep.subr.bf16.mxu0 0
        %8730 = vmatpush1.bf16.msra.mxu0 0
        %8731 = vmatprep.subr.bf16.mxu0 0
        %8732 = vmatpush1.bf16.msra.mxu0 0
        %8733 = vmatprep.subr.bf16.mxu0 0
        %8734 = vmatpush1.bf16.msra.mxu0 0
        %8735 = vmatprep.mubr.bf16.mxu0 0
        %8736 = vmatmul.mubr.bf16.gmra.mrb[0].mxu0 %v8060
        %v8737 = vpop.f32.mrb[0].mxu0
        %v8738 = vadd.f32 0.0, %v8737
        %v8739 = vpop.f32.mrb[0].mxu0
        %v8740 = vpop.f32.mrb[0].mxu0
        %v8741 = vadd.f32 0.0, %v8740
        %v8742 = vpop.f32.mrb[0].mxu0
        %8743 = vmatprep.mubr.bf16.mxu0 0
        %8744 = vmatmul.mubr.bf16.gmra.mrb[0].mxu0 %v8061
        %v8745 = vpop.f32.mrb[0].mxu0
        %v8746 = vadd.f32 0.0, %v8745
        %v8747 = vpop.f32.mrb[0].mxu0
        %v8748 = vpop.f32.mrb[0].mxu0
        %v8749 = vadd.f32 0.0, %v8748
        %v8750 = vpop.f32.mrb[0].mxu0
        %8751 = vmatprep.mubr.bf16.mxu0 0
        %8752 = vmatmul.mubr.bf16.gmra.mrb[0].mxu0 %v8062
        %v8753 = vpop.f32.mrb[0].mxu0
        %v8754 = vadd.f32 0.0, %v8753
        %v8755 = vpop.f32.mrb[0].mxu0
        %v8756 = vpop.f32.mrb[0].mxu0
        %v8757 = vadd.f32 0.0, %v8756
        %v8758 = vpop.f32.mrb[0].mxu0
        %8759 = vmatprep.mubr.bf16.mxu0 0
        %8760 = vmatmul.mubr.bf16.gmra.mrb[0].mxu0 %v8063
        %v8761 = vpop.f32.mrb[0].mxu0
        %v8762 = vadd.f32 0.0, %v8761
        %v8763 = vpop.f32.mrb[0].mxu0
        %v8764 = vpop.f32.mrb[0].mxu0
        %v8765 = vadd.f32 0.0, %v8764
        %v8766 = vpop.f32.mrb[0].mxu0
        %8767 = vmatprep.mubr.bf16.mxu0 0
        %8768 = vmatmul.mubr.bf16.gmra.mrb[0].mxu0 %v8064
        %v8769 = vpop.f32.mrb[0].mxu0
        %v8770 = vadd.f32 0.0, %v8769
        %v8771 = vpop.f32.mrb[0].mxu0
        %v8772 = vpop.f32.mrb[0].mxu0
        %v8773 = vadd.f32 0.0, %v8772
        %v8774 = vpop.f32.mrb[0].mxu0
        %8775 = vmatprep.mubr.bf16.mxu0 0
        %8776 = vmatmul.mubr.bf16.gmra.mrb[0].mxu0 %v8065
        %v8777 = vpop.f32.mrb[0].mxu0
        %v8778 = vadd.f32 0.0, %v8777
        %v8779 = vpop.f32.mrb[0].mxu0
        %v8780 = vpop.f32.mrb[0].mxu0
        %v8781 = vadd.f32 0.0, %v8780
        %v8782 = vpop.f32.mrb[0].mxu0
        %8783 = vmatprep.mubr.bf16.mxu0 0
        %8784 = vmatmul.mubr.bf16.gmra.mrb[0].mxu0 %v8066
        %v8785 = vpop.f32.mrb[0].mxu0
        %v8786 = vadd.f32 0.0, %v8785
        %v8787 = vpop.f32.mrb[0].mxu0
        %v8788 = vpop.f32.mrb[0].mxu0
        %v8789 = vadd.f32 0.0, %v8788
        %v8790 = vpop.f32.mrb[0].mxu0
        %8791 = vmatprep.mubr.bf16.mxu0 0
        %8792 = vmatmul.mubr.bf16.gmra.mrb[0].mxu0 %v8067
        %v8793 = vpop.f32.mrb[0].mxu0
        %v8794 = vadd.f32 0.0, %v8793
        %v8795 = vpop.f32.mrb[0].mxu0
        %v8796 = vpop.f32.mrb[0].mxu0
        %v8797 = vadd.f32 0.0, %v8796
        %v8798 = vpop.f32.mrb[0].mxu0
        %8799 = vmatprep.mubr.bf16.mxu0 0
        %8800 = vmatmul.mubr.bf16.gmra.mrb[0].mxu0 %v8068
        %v8801 = vpop.f32.mrb[0].mxu0
        %v8802 = vadd.f32 0.0, %v8801
        %v8803 = vpop.f32.mrb[0].mxu0
        %v8804 = vpop.f32.mrb[0].mxu0
        %v8805 = vadd.f32 0.0, %v8804
        %v8806 = vpop.f32.mrb[0].mxu0
        %8807 = vmatprep.mubr.bf16.mxu0 0
        %8808 = vmatmul.mubr.bf16.gmra.mrb[0].mxu0 %v8069
        %v8809 = vpop.f32.mrb[0].mxu0
        %v8810 = vadd.f32 0.0, %v8809
        %v8811 = vpop.f32.mrb[0].mxu0
        %v8812 = vpop.f32.mrb[0].mxu0
        %v8813 = vadd.f32 0.0, %v8812
        %v8814 = vpop.f32.mrb[0].mxu0
        %8815 = vmatprep.mubr.bf16.mxu0 0
        %8816 = vmatmul.mubr.bf16.gmra.mrb[0].mxu0 %v8070
        %v8817 = vpop.f32.mrb[0].mxu0
        %v8818 = vadd.f32 0.0, %v8817
        %v8819 = vpop.f32.mrb[0].mxu0
        %v8820 = vpop.f32.mrb[0].mxu0
        %v8821 = vadd.f32 0.0, %v8820
        %v8822 = vpop.f32.mrb[0].mxu0
        %8823 = vmatprep.mubr.bf16.mxu0 0
        %8824 = vmatmul.mubr.bf16.gmra.mrb[0].mxu0 %v8071
        %v8825 = vpop.f32.mrb[0].mxu0
        %v8826 = vadd.f32 0.0, %v8825
        %v8827 = vpop.f32.mrb[0].mxu0
        %v8828 = vpop.f32.mrb[0].mxu0
        %v8829 = vadd.f32 0.0, %v8828
        %v8830 = vpop.f32.mrb[0].mxu0
        %8831 = vmatprep.mubr.bf16.mxu0 0
        %8832 = vmatmul.mubr.bf16.gmra.mrb[0].mxu0 %v8072
        %v8833 = vpop.f32.mrb[0].mxu0
        %v8834 = vadd.f32 0.0, %v8833
        %v8835 = vpop.f32.mrb[0].mxu0
        %v8836 = vpop.f32.mrb[0].mxu0
        %v8837 = vadd.f32 0.0, %v8836
        %v8838 = vpop.f32.mrb[0].mxu0
        %8839 = vmatprep.mubr.bf16.mxu0 0
        %8840 = vmatmul.mubr.bf16.gmra.mrb[0].mxu0 %v8073
        %v8841 = vpop.f32.mrb[0].mxu0
        %v8842 = vadd.f32 0.0, %v8841
        %v8843 = vpop.f32.mrb[0].mxu0
        %v8844 = vpop.f32.mrb[0].mxu0
        %v8845 = vadd.f32 0.0, %v8844
        %v8846 = vpop.f32.mrb[0].mxu0
        %8847 = vmatprep.mubr.bf16.mxu0 0
        %8848 = vmatmul.mubr.bf16.gmra.mrb[0].mxu0 %v8074
        %v8849 = vpop.f32.mrb[0].mxu0
        %v8850 = vadd.f32 0.0, %v8849
        %v8851 = vpop.f32.mrb[0].mxu0
        %v8852 = vpop.f32.mrb[0].mxu0
        %v8853 = vadd.f32 0.0, %v8852
        %v8854 = vpop.f32.mrb[0].mxu0
        %8855 = vmatprep.mubr.bf16.mxu0 0
        %8856 = vmatmul.mubr.bf16.gmra.mrb[0].mxu0 %v8075
        %v8857 = vpop.f32.mrb[0].mxu0
        %v8858 = vadd.f32 0.0, %v8857
        %v8859 = vpop.f32.mrb[0].mxu0
        %v8860 = vpop.f32.mrb[0].mxu0
        %v8861 = vadd.f32 0.0, %v8860
        %v8862 = vpop.f32.mrb[0].mxu0
        %8863 = vmatprep.mubr.bf16.mxu0 0
        %8864 = vmatmul.mubr.bf16.gmra.mrb[0].mxu0 %v8076
        %v8865 = vpop.f32.mrb[0].mxu0
        %v8866 = vadd.f32 0.0, %v8865
        %v8867 = vpop.f32.mrb[0].mxu0
        %v8868 = vpop.f32.mrb[0].mxu0
        %v8869 = vadd.f32 0.0, %v8868
        %v8870 = vpop.f32.mrb[0].mxu0
        %8871 = vmatprep.mubr.bf16.mxu0 0
        %8872 = vmatmul.mubr.bf16.gmra.mrb[0].mxu0 %v8077
        %v8873 = vpop.f32.mrb[0].mxu0
        %v8874 = vadd.f32 0.0, %v8873
        %v8875 = vpop.f32.mrb[0].mxu0
        %v8876 = vpop.f32.mrb[0].mxu0
        %v8877 = vadd.f32 0.0, %v8876
        %v8878 = vpop.f32.mrb[0].mxu0
        %8879 = vmatprep.mubr.bf16.mxu0 0
        %8880 = vmatmul.mubr.bf16.gmra.mrb[0].mxu0 %v8078
        %v8881 = vpop.f32.mrb[0].mxu0
        %v8882 = vadd.f32 0.0, %v8881
        %v8883 = vpop.f32.mrb[0].mxu0
        %v8884 = vpop.f32.mrb[0].mxu0
        %v8885 = vadd.f32 0.0, %v8884
        %v8886 = vpop.f32.mrb[0].mxu0
        %8887 = vmatprep.mubr.bf16.mxu0 0
        %8888 = vmatmul.mubr.bf16.gmra.mrb[0].mxu0 %v8079
        %v8889 = vpop.f32.mrb[0].mxu0
        %v8890 = vadd.f32 0.0, %v8889
        %v8891 = vpop.f32.mrb[0].mxu0
        %v8892 = vpop.f32.mrb[0].mxu0
        %v8893 = vadd.f32 0.0, %v8892
        %v8894 = vpop.f32.mrb[0].mxu0
        %8895 = vmatprep.mubr.bf16.mxu0 0
        %8896 = vmatmul.mubr.bf16.gmra.mrb[0].mxu0 %v8080
        %v8897 = vpop.f32.mrb[0].mxu0
        %v8898 = vadd.f32 0.0, %v8897
        %v8899 = vpop.f32.mrb[0].mxu0
        %v8900 = vpop.f32.mrb[0].mxu0
        %v8901 = vadd.f32 0.0, %v8900
        %v8902 = vpop.f32.mrb[0].mxu0
        %8903 = vmatprep.mubr.bf16.mxu0 0
        %8904 = vmatmul.mubr.bf16.gmra.mrb[0].mxu0 %v8081
        %v8905 = vpop.f32.mrb[0].mxu0
        %v8906 = vadd.f32 0.0, %v8905
        %v8907 = vpop.f32.mrb[0].mxu0
        %v8908 = vpop.f32.mrb[0].mxu0
        %v8909 = vadd.f32 0.0, %v8908
        %v8910 = vpop.f32.mrb[0].mxu0
        %8911 = vmatprep.mubr.bf16.mxu0 0
        %8912 = vmatmul.mubr.bf16.gmra.mrb[0].mxu0 %v8082
        %v8913 = vpop.f32.mrb[0].mxu0
        %v8914 = vadd.f32 0.0, %v8913
        %v8915 = vpop.f32.mrb[0].mxu0
        %v8916 = vpop.f32.mrb[0].mxu0
        %v8917 = vadd.f32 0.0, %v8916
        %v8918 = vpop.f32.mrb[0].mxu0
        %8919 = vmatprep.mubr.bf16.mxu0 0
        %8920 = vmatmul.mubr.bf16.gmra.mrb[0].mxu0 %v8083
        %v8921 = vpop.f32.mrb[0].mxu0
        %v8922 = vadd.f32 0.0, %v8921
        %v8923 = vpop.f32.mrb[0].mxu0
        %v8924 = vpop.f32.mrb[0].mxu0
        %v8925 = vadd.f32 0.0, %v8924
        %v8926 = vpop.f32.mrb[0].mxu0
        %8927 = vmatprep.mubr.bf16.mxu0 0
        %8928 = vmatmul.mubr.bf16.gmra.mrb[0].mxu0 %v8084
        %v8929 = vpop.f32.mrb[0].mxu0
        %v8930 = vadd.f32 0.0, %v8929
        %v8931 = vpop.f32.mrb[0].mxu0
        %v8932 = vpop.f32.mrb[0].mxu0
        %v8933 = vadd.f32 0.0, %v8932
        %v8934 = vpop.f32.mrb[0].mxu0
        %8935 = vmatprep.mubr.bf16.mxu0 0
        %8936 = vmatmul.mubr.bf16.gmra.mrb[0].mxu0 %v8085
        %v8937 = vpop.f32.mrb[0].mxu0
        %v8938 = vadd.f32 0.0, %v8937
        %v8939 = vpop.f32.mrb[0].mxu0
        %v8940 = vpop.f32.mrb[0].mxu0
        %v8941 = vadd.f32 0.0, %v8940
        %v8942 = vpop.f32.mrb[0].mxu0
        %8943 = vmatprep.mubr.bf16.mxu0 0
        %8944 = vmatmul.mubr.bf16.gmra.mrb[0].mxu0 %v8086
        %v8945 = vpop.f32.mrb[0].mxu0
        %v8946 = vadd.f32 0.0, %v8945
        %v8947 = vpop.f32.mrb[0].mxu0
        %v8948 = vpop.f32.mrb[0].mxu0
        %v8949 = vadd.f32 0.0, %v8948
        %v8950 = vpop.f32.mrb[0].mxu0
        %8951 = vmatprep.mubr.bf16.mxu0 0
        %8952 = vmatmul.mubr.bf16.gmra.mrb[0].mxu0 %v8087
        %v8953 = vpop.f32.mrb[0].mxu0
        %v8954 = vadd.f32 0.0, %v8953
        %v8955 = vpop.f32.mrb[0].mxu0
        %v8956 = vpop.f32.mrb[0].mxu0
        %v8957 = vadd.f32 0.0, %v8956
        %v8958 = vpop.f32.mrb[0].mxu0
        %8959 = vmatprep.mubr.bf16.mxu0 0
        %8960 = vmatmul.mubr.bf16.gmra.mrb[0].mxu0 %v8088
        %v8961 = vpop.f32.mrb[0].mxu0
        %v8962 = vadd.f32 0.0, %v8961
        %v8963 = vpop.f32.mrb[0].mxu0
        %v8964 = vpop.f32.mrb[0].mxu0
        %v8965 = vadd.f32 0.0, %v8964
        %v8966 = vpop.f32.mrb[0].mxu0
        %8967 = vmatprep.mubr.bf16.mxu0 0
        %8968 = vmatmul.mubr.bf16.gmra.mrb[0].mxu0 %v8089
        %v8969 = vpop.f32.mrb[0].mxu0
        %v8970 = vadd.f32 0.0, %v8969
        %v8971 = vpop.f32.mrb[0].mxu0
        %v8972 = vpop.f32.mrb[0].mxu0
        %v8973 = vadd.f32 0.0, %v8972
        %v8974 = vpop.f32.mrb[0].mxu0
        %8975 = vmatprep.mubr.bf16.mxu0 0
        %8976 = vmatmul.mubr.bf16.gmra.mrb[0].mxu0 %v8090
        %v8977 = vpop.f32.mrb[0].mxu0
        %v8978 = vadd.f32 0.0, %v8977
        %v8979 = vpop.f32.mrb[0].mxu0
        %v8980 = vpop.f32.mrb[0].mxu0
        %v8981 = vadd.f32 0.0, %v8980
        %v8982 = vpop.f32.mrb[0].mxu0
        %8983 = vmatprep.mubr.bf16.mxu0 0
        %8984 = vmatmul.mubr.bf16.gmra.mrb[0].mxu0 %v8091
        %v8985 = vpop.f32.mrb[0].mxu0
        %v8986 = vadd.f32 0.0, %v8985
        %v8987 = vpop.f32.mrb[0].mxu0
        %v8988 = vpop.f32.mrb[0].mxu0
        %v8989 = vadd.f32 0.0, %v8988
        %v8990 = vpop.f32.mrb[0].mxu0
        %8991 = vdwg.mxu0
        %v8992 = vadd.f32 %v8574, %v8738
        %v8993 = vadd.f32 %v8575, %v8741
        %v8994 = vadd.f32 %v8576, %v8746
        %v8995 = vadd.f32 %v8577, %v8749
        %v8996 = vadd.f32 %v8578, %v8754
        %v8997 = vadd.f32 %v8579, %v8757
        %v8998 = vadd.f32 %v8580, %v8762
        %v8999 = vadd.f32 %v8581, %v8765
        %v9000 = vadd.f32 %v8582, %v8770
        %v9001 = vadd.f32 %v8583, %v8773
        %v9002 = vadd.f32 %v8584, %v8778
        %v9003 = vadd.f32 %v8585, %v8781
        %v9004 = vadd.f32 %v8586, %v8786
        %v9005 = vadd.f32 %v8587, %v8789
        %v9006 = vadd.f32 %v8588, %v8794
        %v9007 = vadd.f32 %v8589, %v8797
        %v9008 = vadd.f32 %v8590, %v8802
        %v9009 = vadd.f32 %v8591, %v8805
        %v9010 = vadd.f32 %v8592, %v8810
        %v9011 = vadd.f32 %v8593, %v8813
        %v9012 = vadd.f32 %v8594, %v8818
        %v9013 = vadd.f32 %v8595, %v8821
        %v9014 = vadd.f32 %v8596, %v8826
        %v9015 = vadd.f32 %v8597, %v8829
        %v9016 = vadd.f32 %v8598, %v8834
        %v9017 = vadd.f32 %v8599, %v8837
        %v9018 = vadd.f32 %v8600, %v8842
        %v9019 = vadd.f32 %v8601, %v8845
        %v9020 = vadd.f32 %v8602, %v8850
        %v9021 = vadd.f32 %v8603, %v8853
        %v9022 = vadd.f32 %v8604, %v8858
        %v9023 = vadd.f32 %v8605, %v8861
        %v9024 = vadd.f32 %v8606, %v8866
        %v9025 = vadd.f32 %v8607, %v8869
        %v9026 = vadd.f32 %v8608, %v8874
        %v9027 = vadd.f32 %v8609, %v8877
        %v9028 = vadd.f32 %v8610, %v8882
        %v9029 = vadd.f32 %v8611, %v8885
        %v9030 = vadd.f32 %v8612, %v8890
        %v9031 = vadd.f32 %v8613, %v8893
        %v9032 = vadd.f32 %v8614, %v8898
        %v9033 = vadd.f32 %v8615, %v8901
        %v9034 = vadd.f32 %v8616, %v8906
        %v9035 = vadd.f32 %v8617, %v8909
        %v9036 = vadd.f32 %v8618, %v8914
        %v9037 = vadd.f32 %v8619, %v8917
        %v9038 = vadd.f32 %v8620, %v8922
        %v9039 = vadd.f32 %v8621, %v8925
        %v9040 = vadd.f32 %v8622, %v8930
        %v9041 = vadd.f32 %v8623, %v8933
        %v9042 = vadd.f32 %v8624, %v8938
        %v9043 = vadd.f32 %v8625, %v8941
        %v9044 = vadd.f32 %v8626, %v8946
        %v9045 = vadd.f32 %v8627, %v8949
        %v9046 = vadd.f32 %v8628, %v8954
        %v9047 = vadd.f32 %v8629, %v8957
        %v9048 = vadd.f32 %v8630, %v8962
        %v9049 = vadd.f32 %v8631, %v8965
        %v9050 = vadd.f32 %v8632, %v8970
        %v9051 = vadd.f32 %v8633, %v8973
        %v9052 = vadd.f32 %v8634, %v8978
        %v9053 = vadd.f32 %v8635, %v8981
        %v9054 = vadd.f32 %v8636, %v8986
        %v9055 = vadd.f32 %v8637, %v8989
        %s9056 = scalar_lea.vmem %s6, 512
        %v9057 = vld [vmem:[%s9056] sm:$0xf]
        %v9058 = vld [vmem:[%s9056 + $0x4] sm:$0xf]
        %v9059 = vld [vmem:[%s9056 + $0x8] sm:$0xf]
        %v9060 = vld [vmem:[%s9056 + $0xc] sm:$0xf]
        %v9061 = vld [vmem:[%s9056 + $0x10] sm:$0xf]
        %v9062 = vld [vmem:[%s9056 + $0x14] sm:$0xf]
        %v9063 = vld [vmem:[%s9056 + $0x18] sm:$0xf]
        %v9064 = vld [vmem:[%s9056 + $0x1c] sm:$0xf]
        %v9065 = vld [vmem:[%s9056 + $0x20] sm:$0xf]
        %v9066 = vld [vmem:[%s9056 + $0x24] sm:$0xf]
        %v9067 = vld [vmem:[%s9056 + $0x28] sm:$0xf]
        %v9068 = vld [vmem:[%s9056 + $0x2c] sm:$0xf]
        %v9069 = vld [vmem:[%s9056 + $0x30] sm:$0xf]
        %v9070 = vld [vmem:[%s9056 + $0x34] sm:$0xf]
        %v9071 = vld [vmem:[%s9056 + $0x38] sm:$0xf]
        %v9072 = vld [vmem:[%s9056 + $0x3c] sm:$0xf]
        %v9089 = vunpack.c.l.b16 %v9057
        %v9090 = vunpack.c.l.b16 %v9058
        %v9091 = vunpack.c.l.b16 %v9059
        %v9092 = vunpack.c.l.b16 %v9060
        %v9093 = vunpack.c.l.b16 %v9061
        %v9094 = vunpack.c.l.b16 %v9062
        %v9095 = vunpack.c.l.b16 %v9063
        %v9096 = vunpack.c.l.b16 %v9064
        %v9097 = vunpack.c.l.b16 %v9065
        %v9098 = vunpack.c.l.b16 %v9066
        %v9099 = vunpack.c.l.b16 %v9067
        %v9100 = vunpack.c.l.b16 %v9068
        %v9101 = vunpack.c.l.b16 %v9069
        %v9102 = vunpack.c.l.b16 %v9070
        %v9103 = vunpack.c.l.b16 %v9071
        %v9104 = vunpack.c.l.b16 %v9072
        %v9105 = vpack.c.b16 %v9090, %v9089
        %v9106 = vpack.c.b16 %v9092, %v9091
        %v9107 = vpack.c.b16 %v9094, %v9093
        %v9108 = vpack.c.b16 %v9096, %v9095
        %v9109 = vpack.c.b16 %v9098, %v9097
        %v9110 = vpack.c.b16 %v9100, %v9099
        %v9111 = vpack.c.b16 %v9102, %v9101
        %v9112 = vpack.c.b16 %v9104, %v9103
        %9121 = vmatprep.subr.bf16.mxu0 0
        %9122 = vmatpush1.bf16.msra.mxu0 %v9105
        %9123 = vmatprep.subr.bf16.mxu0 0
        %9124 = vmatpush1.bf16.msra.mxu0 %v9106
        %9125 = vmatprep.subr.bf16.mxu0 0
        %9126 = vmatpush1.bf16.msra.mxu0 %v9107
        %9127 = vmatprep.subr.bf16.mxu0 0
        %9128 = vmatpush1.bf16.msra.mxu0 %v9108
        %9129 = vmatprep.subr.bf16.mxu0 0
        %9130 = vmatpush1.bf16.msra.mxu0 %v9109
        %9131 = vmatprep.subr.bf16.mxu0 0
        %9132 = vmatpush1.bf16.msra.mxu0 %v9110
        %9133 = vmatprep.subr.bf16.mxu0 0
        %9134 = vmatpush1.bf16.msra.mxu0 %v9111
        %9135 = vmatprep.subr.bf16.mxu0 0
        %9136 = vmatpush1.bf16.msra.mxu0 %v9112
        %9137 = vmatprep.subr.bf16.mxu0 0
        %9138 = vmatpush1.bf16.msra.mxu0 0
        %9139 = vmatprep.subr.bf16.mxu0 0
        %9140 = vmatpush1.bf16.msra.mxu0 0
        %9141 = vmatprep.subr.bf16.mxu0 0
        %9142 = vmatpush1.bf16.msra.mxu0 0
        %9143 = vmatprep.subr.bf16.mxu0 0
        %9144 = vmatpush1.bf16.msra.mxu0 0
        %9145 = vmatprep.subr.bf16.mxu0 0
        %9146 = vmatpush1.bf16.msra.mxu0 0
        %9147 = vmatprep.subr.bf16.mxu0 0
        %9148 = vmatpush1.bf16.msra.mxu0 0
        %9149 = vmatprep.subr.bf16.mxu0 0
        %9150 = vmatpush1.bf16.msra.mxu0 0
        %9151 = vmatprep.subr.bf16.mxu0 0
        %9152 = vmatpush1.bf16.msra.mxu0 0
        %9153 = vmatprep.mubr.bf16.mxu0 0
        %9154 = vmatmul.mubr.bf16.gmra.mrb[0].mxu0 %v8060
        %v9155 = vpop.f32.mrb[0].mxu0
        %v9156 = vadd.f32 0.0, %v9155
        %v9157 = vpop.f32.mrb[0].mxu0
        %v9158 = vpop.f32.mrb[0].mxu0
        %v9159 = vadd.f32 0.0, %v9158
        %v9160 = vpop.f32.mrb[0].mxu0
        %9161 = vmatprep.mubr.bf16.mxu0 0
        %9162 = vmatmul.mubr.bf16.gmra.mrb[0].mxu0 %v8061
        %v9163 = vpop.f32.mrb[0].mxu0
        %v9164 = vadd.f32 0.0, %v9163
        %v9165 = vpop.f32.mrb[0].mxu0
        %v9166 = vpop.f32.mrb[0].mxu0
        %v9167 = vadd.f32 0.0, %v9166
        %v9168 = vpop.f32.mrb[0].mxu0
        %9169 = vmatprep.mubr.bf16.mxu0 0
        %9170 = vmatmul.mubr.bf16.gmra.mrb[0].mxu0 %v8062
        %v9171 = vpop.f32.mrb[0].mxu0
        %v9172 = vadd.f32 0.0, %v9171
        %v9173 = vpop.f32.mrb[0].mxu0
        %v9174 = vpop.f32.mrb[0].mxu0
        %v9175 = vadd.f32 0.0, %v9174
        %v9176 = vpop.f32.mrb[0].mxu0
        %9177 = vmatprep.mubr.bf16.mxu0 0
        %9178 = vmatmul.mubr.bf16.gmra.mrb[0].mxu0 %v8063
        %v9179 = vpop.f32.mrb[0].mxu0
        %v9180 = vadd.f32 0.0, %v9179
        %v9181 = vpop.f32.mrb[0].mxu0
        %v9182 = vpop.f32.mrb[0].mxu0
        %v9183 = vadd.f32 0.0, %v9182
        %v9184 = vpop.f32.mrb[0].mxu0
        %9185 = vmatprep.mubr.bf16.mxu0 0
        %9186 = vmatmul.mubr.bf16.gmra.mrb[0].mxu0 %v8064
        %v9187 = vpop.f32.mrb[0].mxu0
        %v9188 = vadd.f32 0.0, %v9187
        %v9189 = vpop.f32.mrb[0].mxu0
        %v9190 = vpop.f32.mrb[0].mxu0
        %v9191 = vadd.f32 0.0, %v9190
        %v9192 = vpop.f32.mrb[0].mxu0
        %9193 = vmatprep.mubr.bf16.mxu0 0
        %9194 = vmatmul.mubr.bf16.gmra.mrb[0].mxu0 %v8065
        %v9195 = vpop.f32.mrb[0].mxu0
        %v9196 = vadd.f32 0.0, %v9195
        %v9197 = vpop.f32.mrb[0].mxu0
        %v9198 = vpop.f32.mrb[0].mxu0
        %v9199 = vadd.f32 0.0, %v9198
        %v9200 = vpop.f32.mrb[0].mxu0
        %9201 = vmatprep.mubr.bf16.mxu0 0
        %9202 = vmatmul.mubr.bf16.gmra.mrb[0].mxu0 %v8066
        %v9203 = vpop.f32.mrb[0].mxu0
        %v9204 = vadd.f32 0.0, %v9203
        %v9205 = vpop.f32.mrb[0].mxu0
        %v9206 = vpop.f32.mrb[0].mxu0
        %v9207 = vadd.f32 0.0, %v9206
        %v9208 = vpop.f32.mrb[0].mxu0
        %9209 = vmatprep.mubr.bf16.mxu0 0
        %9210 = vmatmul.mubr.bf16.gmra.mrb[0].mxu0 %v8067
        %v9211 = vpop.f32.mrb[0].mxu0
        %v9212 = vadd.f32 0.0, %v9211
        %v9213 = vpop.f32.mrb[0].mxu0
        %v9214 = vpop.f32.mrb[0].mxu0
        %v9215 = vadd.f32 0.0, %v9214
        %v9216 = vpop.f32.mrb[0].mxu0
        %9217 = vmatprep.mubr.bf16.mxu0 0
        %9218 = vmatmul.mubr.bf16.gmra.mrb[0].mxu0 %v8068
        %v9219 = vpop.f32.mrb[0].mxu0
        %v9220 = vadd.f32 0.0, %v9219
        %v9221 = vpop.f32.mrb[0].mxu0
        %v9222 = vpop.f32.mrb[0].mxu0
        %v9223 = vadd.f32 0.0, %v9222
        %v9224 = vpop.f32.mrb[0].mxu0
        %9225 = vmatprep.mubr.bf16.mxu0 0
        %9226 = vmatmul.mubr.bf16.gmra.mrb[0].mxu0 %v8069
        %v9227 = vpop.f32.mrb[0].mxu0
        %v9228 = vadd.f32 0.0, %v9227
        %v9229 = vpop.f32.mrb[0].mxu0
        %v9230 = vpop.f32.mrb[0].mxu0
        %v9231 = vadd.f32 0.0, %v9230
        %v9232 = vpop.f32.mrb[0].mxu0
        %9233 = vmatprep.mubr.bf16.mxu0 0
        %9234 = vmatmul.mubr.bf16.gmra.mrb[0].mxu0 %v8070
        %v9235 = vpop.f32.mrb[0].mxu0
        %v9236 = vadd.f32 0.0, %v9235
        %v9237 = vpop.f32.mrb[0].mxu0
        %v9238 = vpop.f32.mrb[0].mxu0
        %v9239 = vadd.f32 0.0, %v9238
        %v9240 = vpop.f32.mrb[0].mxu0
        %9241 = vmatprep.mubr.bf16.mxu0 0
        %9242 = vmatmul.mubr.bf16.gmra.mrb[0].mxu0 %v8071
        %v9243 = vpop.f32.mrb[0].mxu0
        %v9244 = vadd.f32 0.0, %v9243
        %v9245 = vpop.f32.mrb[0].mxu0
        %v9246 = vpop.f32.mrb[0].mxu0
        %v9247 = vadd.f32 0.0, %v9246
        %v9248 = vpop.f32.mrb[0].mxu0
        %9249 = vmatprep.mubr.bf16.mxu0 0
        %9250 = vmatmul.mubr.bf16.gmra.mrb[0].mxu0 %v8072
        %v9251 = vpop.f32.mrb[0].mxu0
        %v9252 = vadd.f32 0.0, %v9251
        %v9253 = vpop.f32.mrb[0].mxu0
        %v9254 = vpop.f32.mrb[0].mxu0
        %v9255 = vadd.f32 0.0, %v9254
        %v9256 = vpop.f32.mrb[0].mxu0
        %9257 = vmatprep.mubr.bf16.mxu0 0
        %9258 = vmatmul.mubr.bf16.gmra.mrb[0].mxu0 %v8073
        %v9259 = vpop.f32.mrb[0].mxu0
        %v9260 = vadd.f32 0.0, %v9259
        %v9261 = vpop.f32.mrb[0].mxu0
        %v9262 = vpop.f32.mrb[0].mxu0
        %v9263 = vadd.f32 0.0, %v9262
        %v9264 = vpop.f32.mrb[0].mxu0
        %9265 = vmatprep.mubr.bf16.mxu0 0
        %9266 = vmatmul.mubr.bf16.gmra.mrb[0].mxu0 %v8074
        %v9267 = vpop.f32.mrb[0].mxu0
        %v9268 = vadd.f32 0.0, %v9267
        %v9269 = vpop.f32.mrb[0].mxu0
        %v9270 = vpop.f32.mrb[0].mxu0
        %v9271 = vadd.f32 0.0, %v9270
        %v9272 = vpop.f32.mrb[0].mxu0
        %9273 = vmatprep.mubr.bf16.mxu0 0
        %9274 = vmatmul.mubr.bf16.gmra.mrb[0].mxu0 %v8075
        %v9275 = vpop.f32.mrb[0].mxu0
        %v9276 = vadd.f32 0.0, %v9275
        %v9277 = vpop.f32.mrb[0].mxu0
        %v9278 = vpop.f32.mrb[0].mxu0
        %v9279 = vadd.f32 0.0, %v9278
        %v9280 = vpop.f32.mrb[0].mxu0
        %9281 = vmatprep.mubr.bf16.mxu0 0
        %9282 = vmatmul.mubr.bf16.gmra.mrb[0].mxu0 %v8076
        %v9283 = vpop.f32.mrb[0].mxu0
        %v9284 = vadd.f32 0.0, %v9283
        %v9285 = vpop.f32.mrb[0].mxu0
        %v9286 = vpop.f32.mrb[0].mxu0
        %v9287 = vadd.f32 0.0, %v9286
        %v9288 = vpop.f32.mrb[0].mxu0
        %9289 = vmatprep.mubr.bf16.mxu0 0
        %9290 = vmatmul.mubr.bf16.gmra.mrb[0].mxu0 %v8077
        %v9291 = vpop.f32.mrb[0].mxu0
        %v9292 = vadd.f32 0.0, %v9291
        %v9293 = vpop.f32.mrb[0].mxu0
        %v9294 = vpop.f32.mrb[0].mxu0
        %v9295 = vadd.f32 0.0, %v9294
        %v9296 = vpop.f32.mrb[0].mxu0
        %9297 = vmatprep.mubr.bf16.mxu0 0
        %9298 = vmatmul.mubr.bf16.gmra.mrb[0].mxu0 %v8078
        %v9299 = vpop.f32.mrb[0].mxu0
        %v9300 = vadd.f32 0.0, %v9299
        %v9301 = vpop.f32.mrb[0].mxu0
        %v9302 = vpop.f32.mrb[0].mxu0
        %v9303 = vadd.f32 0.0, %v9302
        %v9304 = vpop.f32.mrb[0].mxu0
        %9305 = vmatprep.mubr.bf16.mxu0 0
        %9306 = vmatmul.mubr.bf16.gmra.mrb[0].mxu0 %v8079
        %v9307 = vpop.f32.mrb[0].mxu0
        %v9308 = vadd.f32 0.0, %v9307
        %v9309 = vpop.f32.mrb[0].mxu0
        %v9310 = vpop.f32.mrb[0].mxu0
        %v9311 = vadd.f32 0.0, %v9310
        %v9312 = vpop.f32.mrb[0].mxu0
        %9313 = vmatprep.mubr.bf16.mxu0 0
        %9314 = vmatmul.mubr.bf16.gmra.mrb[0].mxu0 %v8080
        %v9315 = vpop.f32.mrb[0].mxu0
        %v9316 = vadd.f32 0.0, %v9315
        %v9317 = vpop.f32.mrb[0].mxu0
        %v9318 = vpop.f32.mrb[0].mxu0
        %v9319 = vadd.f32 0.0, %v9318
        %v9320 = vpop.f32.mrb[0].mxu0
        %9321 = vmatprep.mubr.bf16.mxu0 0
        %9322 = vmatmul.mubr.bf16.gmra.mrb[0].mxu0 %v8081
        %v9323 = vpop.f32.mrb[0].mxu0
        %v9324 = vadd.f32 0.0, %v9323
        %v9325 = vpop.f32.mrb[0].mxu0
        %v9326 = vpop.f32.mrb[0].mxu0
        %v9327 = vadd.f32 0.0, %v9326
        %v9328 = vpop.f32.mrb[0].mxu0
        %9329 = vmatprep.mubr.bf16.mxu0 0
        %9330 = vmatmul.mubr.bf16.gmra.mrb[0].mxu0 %v8082
        %v9331 = vpop.f32.mrb[0].mxu0
        %v9332 = vadd.f32 0.0, %v9331
        %v9333 = vpop.f32.mrb[0].mxu0
        %v9334 = vpop.f32.mrb[0].mxu0
        %v9335 = vadd.f32 0.0, %v9334
        %v9336 = vpop.f32.mrb[0].mxu0
        %9337 = vmatprep.mubr.bf16.mxu0 0
        %9338 = vmatmul.mubr.bf16.gmra.mrb[0].mxu0 %v8083
        %v9339 = vpop.f32.mrb[0].mxu0
        %v9340 = vadd.f32 0.0, %v9339
        %v9341 = vpop.f32.mrb[0].mxu0
        %v9342 = vpop.f32.mrb[0].mxu0
        %v9343 = vadd.f32 0.0, %v9342
        %v9344 = vpop.f32.mrb[0].mxu0
        %9345 = vmatprep.mubr.bf16.mxu0 0
        %9346 = vmatmul.mubr.bf16.gmra.mrb[0].mxu0 %v8084
        %v9347 = vpop.f32.mrb[0].mxu0
        %v9348 = vadd.f32 0.0, %v9347
        %v9349 = vpop.f32.mrb[0].mxu0
        %v9350 = vpop.f32.mrb[0].mxu0
        %v9351 = vadd.f32 0.0, %v9350
        %v9352 = vpop.f32.mrb[0].mxu0
        %9353 = vmatprep.mubr.bf16.mxu0 0
        %9354 = vmatmul.mubr.bf16.gmra.mrb[0].mxu0 %v8085
        %v9355 = vpop.f32.mrb[0].mxu0
        %v9356 = vadd.f32 0.0, %v9355
        %v9357 = vpop.f32.mrb[0].mxu0
        %v9358 = vpop.f32.mrb[0].mxu0
        %v9359 = vadd.f32 0.0, %v9358
        %v9360 = vpop.f32.mrb[0].mxu0
        %9361 = vmatprep.mubr.bf16.mxu0 0
        %9362 = vmatmul.mubr.bf16.gmra.mrb[0].mxu0 %v8086
        %v9363 = vpop.f32.mrb[0].mxu0
        %v9364 = vadd.f32 0.0, %v9363
        %v9365 = vpop.f32.mrb[0].mxu0
        %v9366 = vpop.f32.mrb[0].mxu0
        %v9367 = vadd.f32 0.0, %v9366
        %v9368 = vpop.f32.mrb[0].mxu0
        %9369 = vmatprep.mubr.bf16.mxu0 0
        %9370 = vmatmul.mubr.bf16.gmra.mrb[0].mxu0 %v8087
        %v9371 = vpop.f32.mrb[0].mxu0
        %v9372 = vadd.f32 0.0, %v9371
        %v9373 = vpop.f32.mrb[0].mxu0
        %v9374 = vpop.f32.mrb[0].mxu0
        %v9375 = vadd.f32 0.0, %v9374
        %v9376 = vpop.f32.mrb[0].mxu0
        %9377 = vmatprep.mubr.bf16.mxu0 0
        %9378 = vmatmul.mubr.bf16.gmra.mrb[0].mxu0 %v8088
        %v9379 = vpop.f32.mrb[0].mxu0
        %v9380 = vadd.f32 0.0, %v9379
        %v9381 = vpop.f32.mrb[0].mxu0
        %v9382 = vpop.f32.mrb[0].mxu0
        %v9383 = vadd.f32 0.0, %v9382
        %v9384 = vpop.f32.mrb[0].mxu0
        %9385 = vmatprep.mubr.bf16.mxu0 0
        %9386 = vmatmul.mubr.bf16.gmra.mrb[0].mxu0 %v8089
        %v9387 = vpop.f32.mrb[0].mxu0
        %v9388 = vadd.f32 0.0, %v9387
        %v9389 = vpop.f32.mrb[0].mxu0
        %v9390 = vpop.f32.mrb[0].mxu0
        %v9391 = vadd.f32 0.0, %v9390
        %v9392 = vpop.f32.mrb[0].mxu0
        %9393 = vmatprep.mubr.bf16.mxu0 0
        %9394 = vmatmul.mubr.bf16.gmra.mrb[0].mxu0 %v8090
        %v9395 = vpop.f32.mrb[0].mxu0
        %v9396 = vadd.f32 0.0, %v9395
        %v9397 = vpop.f32.mrb[0].mxu0
        %v9398 = vpop.f32.mrb[0].mxu0
        %v9399 = vadd.f32 0.0, %v9398
        %v9400 = vpop.f32.mrb[0].mxu0
        %9401 = vmatprep.mubr.bf16.mxu0 0
        %9402 = vmatmul.mubr.bf16.gmra.mrb[0].mxu0 %v8091
        %v9403 = vpop.f32.mrb[0].mxu0
        %v9404 = vadd.f32 0.0, %v9403
        %v9405 = vpop.f32.mrb[0].mxu0
        %v9406 = vpop.f32.mrb[0].mxu0
        %v9407 = vadd.f32 0.0, %v9406
        %v9408 = vpop.f32.mrb[0].mxu0
        %9409 = vdwg.mxu0
        %v9410 = vrot.slane %v9156, 2
        %v9411 = vrot.slane %v9159, 2
        %v9412 = vrot.slane %v9164, 2
        %v9413 = vrot.slane %v9167, 2
        %v9414 = vrot.slane %v9172, 2
        %v9415 = vrot.slane %v9175, 2
        %v9416 = vrot.slane %v9180, 2
        %v9417 = vrot.slane %v9183, 2
        %v9418 = vrot.slane %v9188, 2
        %v9419 = vrot.slane %v9191, 2
        %v9420 = vrot.slane %v9196, 2
        %v9421 = vrot.slane %v9199, 2
        %v9422 = vrot.slane %v9204, 2
        %v9423 = vrot.slane %v9207, 2
        %v9424 = vrot.slane %v9212, 2
        %v9425 = vrot.slane %v9215, 2
        %v9426 = vrot.slane %v9220, 2
        %v9427 = vrot.slane %v9223, 2
        %v9428 = vrot.slane %v9228, 2
        %v9429 = vrot.slane %v9231, 2
        %v9430 = vrot.slane %v9236, 2
        %v9431 = vrot.slane %v9239, 2
        %v9432 = vrot.slane %v9244, 2
        %v9433 = vrot.slane %v9247, 2
        %v9434 = vrot.slane %v9252, 2
        %v9435 = vrot.slane %v9255, 2
        %v9436 = vrot.slane %v9260, 2
        %v9437 = vrot.slane %v9263, 2
        %v9438 = vrot.slane %v9268, 2
        %v9439 = vrot.slane %v9271, 2
        %v9440 = vrot.slane %v9276, 2
        %v9441 = vrot.slane %v9279, 2
        %v9442 = vrot.slane %v9284, 2
        %v9443 = vrot.slane %v9287, 2
        %v9444 = vrot.slane %v9292, 2
        %v9445 = vrot.slane %v9295, 2
        %v9446 = vrot.slane %v9300, 2
        %v9447 = vrot.slane %v9303, 2
        %v9448 = vrot.slane %v9308, 2
        %v9449 = vrot.slane %v9311, 2
        %v9450 = vrot.slane %v9316, 2
        %v9451 = vrot.slane %v9319, 2
        %v9452 = vrot.slane %v9324, 2
        %v9453 = vrot.slane %v9327, 2
        %v9454 = vrot.slane %v9332, 2
        %v9455 = vrot.slane %v9335, 2
        %v9456 = vrot.slane %v9340, 2
        %v9457 = vrot.slane %v9343, 2
        %v9458 = vrot.slane %v9348, 2
        %v9459 = vrot.slane %v9351, 2
        %v9460 = vrot.slane %v9356, 2
        %v9461 = vrot.slane %v9359, 2
        %v9462 = vrot.slane %v9364, 2
        %v9463 = vrot.slane %v9367, 2
        %v9464 = vrot.slane %v9372, 2
        %v9465 = vrot.slane %v9375, 2
        %v9466 = vrot.slane %v9380, 2
        %v9467 = vrot.slane %v9383, 2
        %v9468 = vrot.slane %v9388, 2
        %v9469 = vrot.slane %v9391, 2
        %v9470 = vrot.slane %v9396, 2
        %v9471 = vrot.slane %v9399, 2
        %v9472 = vrot.slane %v9404, 2
        %v9473 = vrot.slane %v9407, 2
        %v9474 = vsel %vm6388, %v9472, %v9473
        %v9475 = vsel %vm6388, %v9471, %v9472
        %v9476 = vsel %vm6388, %v9470, %v9471
        %v9477 = vsel %vm6388, %v9469, %v9470
        %v9478 = vsel %vm6388, %v9468, %v9469
        %v9479 = vsel %vm6388, %v9467, %v9468
        %v9480 = vsel %vm6388, %v9466, %v9467
        %v9481 = vsel %vm6388, %v9465, %v9466
        %v9482 = vsel %vm6388, %v9464, %v9465
        %v9483 = vsel %vm6388, %v9463, %v9464
        %v9484 = vsel %vm6388, %v9462, %v9463
        %v9485 = vsel %vm6388, %v9461, %v9462
        %v9486 = vsel %vm6388, %v9460, %v9461
        %v9487 = vsel %vm6388, %v9459, %v9460
        %v9488 = vsel %vm6388, %v9458, %v9459
        %v9489 = vsel %vm6388, %v9457, %v9458
        %v9490 = vsel %vm6388, %v9456, %v9457
        %v9491 = vsel %vm6388, %v9455, %v9456
        %v9492 = vsel %vm6388, %v9454, %v9455
        %v9493 = vsel %vm6388, %v9453, %v9454
        %v9494 = vsel %vm6388, %v9452, %v9453
        %v9495 = vsel %vm6388, %v9451, %v9452
        %v9496 = vsel %vm6388, %v9450, %v9451
        %v9497 = vsel %vm6388, %v9449, %v9450
        %v9498 = vsel %vm6388, %v9448, %v9449
        %v9499 = vsel %vm6388, %v9447, %v9448
        %v9500 = vsel %vm6388, %v9446, %v9447
        %v9501 = vsel %vm6388, %v9445, %v9446
        %v9502 = vsel %vm6388, %v9444, %v9445
        %v9503 = vsel %vm6388, %v9443, %v9444
        %v9504 = vsel %vm6388, %v9442, %v9443
        %v9505 = vsel %vm6388, %v9441, %v9442
        %v9506 = vsel %vm6388, %v9440, %v9441
        %v9507 = vsel %vm6388, %v9439, %v9440
        %v9508 = vsel %vm6388, %v9438, %v9439
        %v9509 = vsel %vm6388, %v9437, %v9438
        %v9510 = vsel %vm6388, %v9436, %v9437
        %v9511 = vsel %vm6388, %v9435, %v9436
        %v9512 = vsel %vm6388, %v9434, %v9435
        %v9513 = vsel %vm6388, %v9433, %v9434
        %v9514 = vsel %vm6388, %v9432, %v9433
        %v9515 = vsel %vm6388, %v9431, %v9432
        %v9516 = vsel %vm6388, %v9430, %v9431
        %v9517 = vsel %vm6388, %v9429, %v9430
        %v9518 = vsel %vm6388, %v9428, %v9429
        %v9519 = vsel %vm6388, %v9427, %v9428
        %v9520 = vsel %vm6388, %v9426, %v9427
        %v9521 = vsel %vm6388, %v9425, %v9426
        %v9522 = vsel %vm6388, %v9424, %v9425
        %v9523 = vsel %vm6388, %v9423, %v9424
        %v9524 = vsel %vm6388, %v9422, %v9423
        %v9525 = vsel %vm6388, %v9421, %v9422
        %v9526 = vsel %vm6388, %v9420, %v9421
        %v9527 = vsel %vm6388, %v9419, %v9420
        %v9528 = vsel %vm6388, %v9418, %v9419
        %v9529 = vsel %vm6388, %v9417, %v9418
        %v9530 = vsel %vm6388, %v9416, %v9417
        %v9531 = vsel %vm6388, %v9415, %v9416
        %v9532 = vsel %vm6388, %v9414, %v9415
        %v9533 = vsel %vm6388, %v9413, %v9414
        %v9534 = vsel %vm6388, %v9412, %v9413
        %v9535 = vsel %vm6388, %v9411, %v9412
        %v9536 = vsel %vm6388, %v9410, %v9411
        %v9537 = vsel %vm6388, %v9473, %v9410
        %v9538 = vadd.f32 %v8992, %v9536
        %v9539 = vadd.f32 %v8993, %v9535
        %v9540 = vadd.f32 %v8994, %v9534
        %v9541 = vadd.f32 %v8995, %v9533
        %v9542 = vadd.f32 %v8996, %v9532
        %v9543 = vadd.f32 %v8997, %v9531
        %v9544 = vadd.f32 %v8998, %v9530
        %v9545 = vadd.f32 %v8999, %v9529
        %v9546 = vadd.f32 %v9000, %v9528
        %v9547 = vadd.f32 %v9001, %v9527
        %v9548 = vadd.f32 %v9002, %v9526
        %v9549 = vadd.f32 %v9003, %v9525
        %v9550 = vadd.f32 %v9004, %v9524
        %v9551 = vadd.f32 %v9005, %v9523
        %v9552 = vadd.f32 %v9006, %v9522
        %v9553 = vadd.f32 %v9007, %v9521
        %v9554 = vadd.f32 %v9008, %v9520
        %v9555 = vadd.f32 %v9009, %v9519
        %v9556 = vadd.f32 %v9010, %v9518
        %v9557 = vadd.f32 %v9011, %v9517
        %v9558 = vadd.f32 %v9012, %v9516
        %v9559 = vadd.f32 %v9013, %v9515
        %v9560 = vadd.f32 %v9014, %v9514
        %v9561 = vadd.f32 %v9015, %v9513
        %v9562 = vadd.f32 %v9016, %v9512
        %v9563 = vadd.f32 %v9017, %v9511
        %v9564 = vadd.f32 %v9018, %v9510
        %v9565 = vadd.f32 %v9019, %v9509
        %v9566 = vadd.f32 %v9020, %v9508
        %v9567 = vadd.f32 %v9021, %v9507
        %v9568 = vadd.f32 %v9022, %v9506
        %v9569 = vadd.f32 %v9023, %v9505
        %v9570 = vadd.f32 %v9024, %v9504
        %v9571 = vadd.f32 %v9025, %v9503
        %v9572 = vadd.f32 %v9026, %v9502
        %v9573 = vadd.f32 %v9027, %v9501
        %v9574 = vadd.f32 %v9028, %v9500
        %v9575 = vadd.f32 %v9029, %v9499
        %v9576 = vadd.f32 %v9030, %v9498
        %v9577 = vadd.f32 %v9031, %v9497
        %v9578 = vadd.f32 %v9032, %v9496
        %v9579 = vadd.f32 %v9033, %v9495
        %v9580 = vadd.f32 %v9034, %v9494
        %v9581 = vadd.f32 %v9035, %v9493
        %v9582 = vadd.f32 %v9036, %v9492
        %v9583 = vadd.f32 %v9037, %v9491
        %v9584 = vadd.f32 %v9038, %v9490
        %v9585 = vadd.f32 %v9039, %v9489
        %v9586 = vadd.f32 %v9040, %v9488
        %v9587 = vadd.f32 %v9041, %v9487
        %v9588 = vadd.f32 %v9042, %v9486
        %v9589 = vadd.f32 %v9043, %v9485
        %v9590 = vadd.f32 %v9044, %v9484
        %v9591 = vadd.f32 %v9045, %v9483
        %v9592 = vadd.f32 %v9046, %v9482
        %v9593 = vadd.f32 %v9047, %v9481
        %v9594 = vadd.f32 %v9048, %v9480
        %v9595 = vadd.f32 %v9049, %v9479
        %v9596 = vadd.f32 %v9050, %v9478
        %v9597 = vadd.f32 %v9051, %v9477
        %v9598 = vadd.f32 %v9052, %v9476
        %v9599 = vadd.f32 %v9053, %v9475
        %v9600 = vadd.f32 %v9054, %v9474
        %v9601 = vadd.f32 %v9055, %v9537
        %v9602 = vld [vmem:[%s7] sm:$0x1]
        %v9604 = vlaneseq
        %v9605 = vshrl.u32 %v9604, 7
        %v9606 = vsub.s32 0, %v9605
        %v9607 = vrot.slane %v9602, %v9606
        %v9609 = vmul.f32 %v9538, %v9607
        %v9610 = vmul.f32 %v9539, %v9607
        %v9611 = vmul.f32 %v9540, %v9607
        %v9612 = vmul.f32 %v9541, %v9607
        %v9613 = vmul.f32 %v9542, %v9607
        %v9614 = vmul.f32 %v9543, %v9607
        %v9615 = vmul.f32 %v9544, %v9607
        %v9616 = vmul.f32 %v9545, %v9607
        %v9617 = vmul.f32 %v9546, %v9607
        %v9618 = vmul.f32 %v9547, %v9607
        %v9619 = vmul.f32 %v9548, %v9607
        %v9620 = vmul.f32 %v9549, %v9607
        %v9621 = vmul.f32 %v9550, %v9607
        %v9622 = vmul.f32 %v9551, %v9607
        %v9623 = vmul.f32 %v9552, %v9607
        %v9624 = vmul.f32 %v9553, %v9607
        %v9625 = vmul.f32 %v9554, %v9607
        %v9626 = vmul.f32 %v9555, %v9607
        %v9627 = vmul.f32 %v9556, %v9607
        %v9628 = vmul.f32 %v9557, %v9607
        %v9629 = vmul.f32 %v9558, %v9607
        %v9630 = vmul.f32 %v9559, %v9607
        %v9631 = vmul.f32 %v9560, %v9607
        %v9632 = vmul.f32 %v9561, %v9607
        %v9633 = vmul.f32 %v9562, %v9607
        %v9634 = vmul.f32 %v9563, %v9607
        %v9635 = vmul.f32 %v9564, %v9607
        %v9636 = vmul.f32 %v9565, %v9607
        %v9637 = vmul.f32 %v9566, %v9607
        %v9638 = vmul.f32 %v9567, %v9607
        %v9639 = vmul.f32 %v9568, %v9607
        %v9640 = vmul.f32 %v9569, %v9607
        %v9641 = vmul.f32 %v9570, %v9607
        %v9642 = vmul.f32 %v9571, %v9607
        %v9643 = vmul.f32 %v9572, %v9607
        %v9644 = vmul.f32 %v9573, %v9607
        %v9645 = vmul.f32 %v9574, %v9607
        %v9646 = vmul.f32 %v9575, %v9607
        %v9647 = vmul.f32 %v9576, %v9607
        %v9648 = vmul.f32 %v9577, %v9607
        %v9649 = vmul.f32 %v9578, %v9607
        %v9650 = vmul.f32 %v9579, %v9607
        %v9651 = vmul.f32 %v9580, %v9607
        %v9652 = vmul.f32 %v9581, %v9607
        %v9653 = vmul.f32 %v9582, %v9607
        %v9654 = vmul.f32 %v9583, %v9607
        %v9655 = vmul.f32 %v9584, %v9607
        %v9656 = vmul.f32 %v9585, %v9607
        %v9657 = vmul.f32 %v9586, %v9607
        %v9658 = vmul.f32 %v9587, %v9607
        %v9659 = vmul.f32 %v9588, %v9607
        %v9660 = vmul.f32 %v9589, %v9607
        %v9661 = vmul.f32 %v9590, %v9607
        %v9662 = vmul.f32 %v9591, %v9607
        %v9663 = vmul.f32 %v9592, %v9607
        %v9664 = vmul.f32 %v9593, %v9607
        %v9665 = vmul.f32 %v9594, %v9607
        %v9666 = vmul.f32 %v9595, %v9607
        %v9667 = vmul.f32 %v9596, %v9607
        %v9668 = vmul.f32 %v9597, %v9607
        %v9669 = vmul.f32 %v9598, %v9607
        %v9670 = vmul.f32 %v9599, %v9607
        %v9671 = vmul.f32 %v9600, %v9607
        %v9672 = vmul.f32 %v9601, %v9607
        %v9673 = vld [vmem:[%s8] sm:$0x1]
        %v9675 = vlaneseq
        %v9676 = vshrl.u32 %v9675, 7
        %v9677 = vsub.s32 0, %v9676
        %v9678 = vrot.slane %v9673, %v9677
        %v9680 = vadd.f32 %v9609, %v9678
        %v9681 = vadd.f32 %v9610, %v9678
        %v9682 = vadd.f32 %v9611, %v9678
        %v9683 = vadd.f32 %v9612, %v9678
        %v9684 = vadd.f32 %v9613, %v9678
        %v9685 = vadd.f32 %v9614, %v9678
        %v9686 = vadd.f32 %v9615, %v9678
        %v9687 = vadd.f32 %v9616, %v9678
        %v9688 = vadd.f32 %v9617, %v9678
        %v9689 = vadd.f32 %v9618, %v9678
        %v9690 = vadd.f32 %v9619, %v9678
        %v9691 = vadd.f32 %v9620, %v9678
        %v9692 = vadd.f32 %v9621, %v9678
        %v9693 = vadd.f32 %v9622, %v9678
        %v9694 = vadd.f32 %v9623, %v9678
        %v9695 = vadd.f32 %v9624, %v9678
        %v9696 = vadd.f32 %v9625, %v9678
        %v9697 = vadd.f32 %v9626, %v9678
        %v9698 = vadd.f32 %v9627, %v9678
        %v9699 = vadd.f32 %v9628, %v9678
        %v9700 = vadd.f32 %v9629, %v9678
        %v9701 = vadd.f32 %v9630, %v9678
        %v9702 = vadd.f32 %v9631, %v9678
        %v9703 = vadd.f32 %v9632, %v9678
        %v9704 = vadd.f32 %v9633, %v9678
        %v9705 = vadd.f32 %v9634, %v9678
        %v9706 = vadd.f32 %v9635, %v9678
        %v9707 = vadd.f32 %v9636, %v9678
        %v9708 = vadd.f32 %v9637, %v9678
        %v9709 = vadd.f32 %v9638, %v9678
        %v9710 = vadd.f32 %v9639, %v9678
        %v9711 = vadd.f32 %v9640, %v9678
        %v9712 = vadd.f32 %v9641, %v9678
        %v9713 = vadd.f32 %v9642, %v9678
        %v9714 = vadd.f32 %v9643, %v9678
        %v9715 = vadd.f32 %v9644, %v9678
        %v9716 = vadd.f32 %v9645, %v9678
        %v9717 = vadd.f32 %v9646, %v9678
        %v9718 = vadd.f32 %v9647, %v9678
        %v9719 = vadd.f32 %v9648, %v9678
        %v9720 = vadd.f32 %v9649, %v9678
        %v9721 = vadd.f32 %v9650, %v9678
        %v9722 = vadd.f32 %v9651, %v9678
        %v9723 = vadd.f32 %v9652, %v9678
        %v9724 = vadd.f32 %v9653, %v9678
        %v9725 = vadd.f32 %v9654, %v9678
        %v9726 = vadd.f32 %v9655, %v9678
        %v9727 = vadd.f32 %v9656, %v9678
        %v9728 = vadd.f32 %v9657, %v9678
        %v9729 = vadd.f32 %v9658, %v9678
        %v9730 = vadd.f32 %v9659, %v9678
        %v9731 = vadd.f32 %v9660, %v9678
        %v9732 = vadd.f32 %v9661, %v9678
        %v9733 = vadd.f32 %v9662, %v9678
        %v9734 = vadd.f32 %v9663, %v9678
        %v9735 = vadd.f32 %v9664, %v9678
        %v9736 = vadd.f32 %v9665, %v9678
        %v9737 = vadd.f32 %v9666, %v9678
        %v9738 = vadd.f32 %v9667, %v9678
        %v9739 = vadd.f32 %v9668, %v9678
        %v9740 = vadd.f32 %v9669, %v9678
        %v9741 = vadd.f32 %v9670, %v9678
        %v9742 = vadd.f32 %v9671, %v9678
        %v9743 = vadd.f32 %v9672, %v9678
        %v9744 = vmax.f32 %v9680, 0.0
        %v9745 = vmax.f32 %v9681, 0.0
        %v9746 = vmax.f32 %v9682, 0.0
        %v9747 = vmax.f32 %v9683, 0.0
        %v9748 = vmax.f32 %v9684, 0.0
        %v9749 = vmax.f32 %v9685, 0.0
        %v9750 = vmax.f32 %v9686, 0.0
        %v9751 = vmax.f32 %v9687, 0.0
        %v9752 = vmax.f32 %v9688, 0.0
        %v9753 = vmax.f32 %v9689, 0.0
        %v9754 = vmax.f32 %v9690, 0.0
        %v9755 = vmax.f32 %v9691, 0.0
        %v9756 = vmax.f32 %v9692, 0.0
        %v9757 = vmax.f32 %v9693, 0.0
        %v9758 = vmax.f32 %v9694, 0.0
        %v9759 = vmax.f32 %v9695, 0.0
        %v9760 = vmax.f32 %v9696, 0.0
        %v9761 = vmax.f32 %v9697, 0.0
        %v9762 = vmax.f32 %v9698, 0.0
        %v9763 = vmax.f32 %v9699, 0.0
        %v9764 = vmax.f32 %v9700, 0.0
        %v9765 = vmax.f32 %v9701, 0.0
        %v9766 = vmax.f32 %v9702, 0.0
        %v9767 = vmax.f32 %v9703, 0.0
        %v9768 = vmax.f32 %v9704, 0.0
        %v9769 = vmax.f32 %v9705, 0.0
        %v9770 = vmax.f32 %v9706, 0.0
        %v9771 = vmax.f32 %v9707, 0.0
        %v9772 = vmax.f32 %v9708, 0.0
        %v9773 = vmax.f32 %v9709, 0.0
        %v9774 = vmax.f32 %v9710, 0.0
        %v9775 = vmax.f32 %v9711, 0.0
        %v9776 = vmax.f32 %v9712, 0.0
        %v9777 = vmax.f32 %v9713, 0.0
        %v9778 = vmax.f32 %v9714, 0.0
        %v9779 = vmax.f32 %v9715, 0.0
        %v9780 = vmax.f32 %v9716, 0.0
        %v9781 = vmax.f32 %v9717, 0.0
        %v9782 = vmax.f32 %v9718, 0.0
        %v9783 = vmax.f32 %v9719, 0.0
        %v9784 = vmax.f32 %v9720, 0.0
        %v9785 = vmax.f32 %v9721, 0.0
        %v9786 = vmax.f32 %v9722, 0.0
        %v9787 = vmax.f32 %v9723, 0.0
        %v9788 = vmax.f32 %v9724, 0.0
        %v9789 = vmax.f32 %v9725, 0.0
        %v9790 = vmax.f32 %v9726, 0.0
        %v9791 = vmax.f32 %v9727, 0.0
        %v9792 = vmax.f32 %v9728, 0.0
        %v9793 = vmax.f32 %v9729, 0.0
        %v9794 = vmax.f32 %v9730, 0.0
        %v9795 = vmax.f32 %v9731, 0.0
        %v9796 = vmax.f32 %v9732, 0.0
        %v9797 = vmax.f32 %v9733, 0.0
        %v9798 = vmax.f32 %v9734, 0.0
        %v9799 = vmax.f32 %v9735, 0.0
        %v9800 = vmax.f32 %v9736, 0.0
        %v9801 = vmax.f32 %v9737, 0.0
        %v9802 = vmax.f32 %v9738, 0.0
        %v9803 = vmax.f32 %v9739, 0.0
        %v9804 = vmax.f32 %v9740, 0.0
        %v9805 = vmax.f32 %v9741, 0.0
        %v9806 = vmax.f32 %v9742, 0.0
        %v9807 = vmax.f32 %v9743, 0.0
        %v9808 = vld [vmem:[%s351] sm:$0xff]
        %v9809 = vld [vmem:[%s351 + $0x8] sm:$0xff]
        %v9810 = vld [vmem:[%s351 + $0x10] sm:$0xff]
        %v9811 = vld [vmem:[%s351 + $0x18] sm:$0xff]
        %v9812 = vld [vmem:[%s351 + $0x20] sm:$0xff]
        %v9813 = vld [vmem:[%s351 + $0x28] sm:$0xff]
        %v9814 = vld [vmem:[%s351 + $0x30] sm:$0xff]
        %v9815 = vld [vmem:[%s351 + $0x38] sm:$0xff]
        %v9816 = vld [vmem:[%s351 + $0x40] sm:$0xff]
        %v9817 = vld [vmem:[%s351 + $0x48] sm:$0xff]
        %v9818 = vld [vmem:[%s351 + $0x50] sm:$0xff]
        %v9819 = vld [vmem:[%s351 + $0x58] sm:$0xff]
        %v9820 = vld [vmem:[%s351 + $0x60] sm:$0xff]
        %v9821 = vld [vmem:[%s351 + $0x68] sm:$0xff]
        %v9822 = vld [vmem:[%s351 + $0x70] sm:$0xff]
        %v9823 = vld [vmem:[%s351 + $0x78] sm:$0xff]
        %v9824 = vld [vmem:[%s351 + $0x80] sm:$0xff]
        %v9825 = vld [vmem:[%s351 + $0x88] sm:$0xff]
        %v9826 = vld [vmem:[%s351 + $0x90] sm:$0xff]
        %v9827 = vld [vmem:[%s351 + $0x98] sm:$0xff]
        %v9828 = vld [vmem:[%s351 + $0xa0] sm:$0xff]
        %v9829 = vld [vmem:[%s351 + $0xa8] sm:$0xff]
        %v9830 = vld [vmem:[%s351 + $0xb0] sm:$0xff]
        %v9831 = vld [vmem:[%s351 + $0xb8] sm:$0xff]
        %v9832 = vld [vmem:[%s351 + $0xc0] sm:$0xff]
        %v9833 = vld [vmem:[%s351 + $0xc8] sm:$0xff]
        %v9834 = vld [vmem:[%s351 + $0xd0] sm:$0xff]
        %v9835 = vld [vmem:[%s351 + $0xd8] sm:$0xff]
        %v9836 = vld [vmem:[%s351 + $0xe0] sm:$0xff]
        %v9837 = vld [vmem:[%s351 + $0xe8] sm:$0xff]
        %v9838 = vld [vmem:[%s351 + $0xf0] sm:$0xff]
        %v9839 = vld [vmem:[%s351 + $0xf8] sm:$0xff]
        %v9840 = vld [vmem:[%s351 + $0x100] sm:$0xff]
        %v9841 = vld [vmem:[%s351 + $0x108] sm:$0xff]
        %v9842 = vld [vmem:[%s351 + $0x110] sm:$0xff]
        %v9843 = vld [vmem:[%s351 + $0x118] sm:$0xff]
        %v9844 = vld [vmem:[%s351 + $0x120] sm:$0xff]
        %v9845 = vld [vmem:[%s351 + $0x128] sm:$0xff]
        %v9846 = vld [vmem:[%s351 + $0x130] sm:$0xff]
        %v9847 = vld [vmem:[%s351 + $0x138] sm:$0xff]
        %v9848 = vld [vmem:[%s351 + $0x140] sm:$0xff]
        %v9849 = vld [vmem:[%s351 + $0x148] sm:$0xff]
        %v9850 = vld [vmem:[%s351 + $0x150] sm:$0xff]
        %v9851 = vld [vmem:[%s351 + $0x158] sm:$0xff]
        %v9852 = vld [vmem:[%s351 + $0x160] sm:$0xff]
        %v9853 = vld [vmem:[%s351 + $0x168] sm:$0xff]
        %v9854 = vld [vmem:[%s351 + $0x170] sm:$0xff]
        %v9855 = vld [vmem:[%s351 + $0x178] sm:$0xff]
        %v9856 = vld [vmem:[%s351 + $0x180] sm:$0xff]
        %v9857 = vld [vmem:[%s351 + $0x188] sm:$0xff]
        %v9858 = vld [vmem:[%s351 + $0x190] sm:$0xff]
        %v9859 = vld [vmem:[%s351 + $0x198] sm:$0xff]
        %v9860 = vld [vmem:[%s351 + $0x1a0] sm:$0xff]
        %v9861 = vld [vmem:[%s351 + $0x1a8] sm:$0xff]
        %v9862 = vld [vmem:[%s351 + $0x1b0] sm:$0xff]
        %v9863 = vld [vmem:[%s351 + $0x1b8] sm:$0xff]
        %v9864 = vld [vmem:[%s351 + $0x1c0] sm:$0xff]
        %v9865 = vld [vmem:[%s351 + $0x1c8] sm:$0xff]
        %v9866 = vld [vmem:[%s351 + $0x1d0] sm:$0xff]
        %v9867 = vld [vmem:[%s351 + $0x1d8] sm:$0xff]
        %v9868 = vld [vmem:[%s351 + $0x1e0] sm:$0xff]
        %v9869 = vld [vmem:[%s351 + $0x1e8] sm:$0xff]
        %v9870 = vld [vmem:[%s351 + $0x1f0] sm:$0xff]
        %v9871 = vld [vmem:[%s351 + $0x1f8] sm:$0xff]
        %v9872 = vadd.f32 %v9808, %v9744
        %v9873 = vadd.f32 %v9809, %v9745
        %v9874 = vadd.f32 %v9810, %v9746
        %v9875 = vadd.f32 %v9811, %v9747
        %v9876 = vadd.f32 %v9812, %v9748
        %v9877 = vadd.f32 %v9813, %v9749
        %v9878 = vadd.f32 %v9814, %v9750
        %v9879 = vadd.f32 %v9815, %v9751
        %v9880 = vadd.f32 %v9816, %v9752
        %v9881 = vadd.f32 %v9817, %v9753
        %v9882 = vadd.f32 %v9818, %v9754
        %v9883 = vadd.f32 %v9819, %v9755
        %v9884 = vadd.f32 %v9820, %v9756
        %v9885 = vadd.f32 %v9821, %v9757
        %v9886 = vadd.f32 %v9822, %v9758
        %v9887 = vadd.f32 %v9823, %v9759
        %v9888 = vadd.f32 %v9824, %v9760
        %v9889 = vadd.f32 %v9825, %v9761
        %v9890 = vadd.f32 %v9826, %v9762
        %v9891 = vadd.f32 %v9827, %v9763
        %v9892 = vadd.f32 %v9828, %v9764
        %v9893 = vadd.f32 %v9829, %v9765
        %v9894 = vadd.f32 %v9830, %v9766
        %v9895 = vadd.f32 %v9831, %v9767
        %v9896 = vadd.f32 %v9832, %v9768
        %v9897 = vadd.f32 %v9833, %v9769
        %v9898 = vadd.f32 %v9834, %v9770
        %v9899 = vadd.f32 %v9835, %v9771
        %v9900 = vadd.f32 %v9836, %v9772
        %v9901 = vadd.f32 %v9837, %v9773
        %v9902 = vadd.f32 %v9838, %v9774
        %v9903 = vadd.f32 %v9839, %v9775
        %v9904 = vadd.f32 %v9840, %v9776
        %v9905 = vadd.f32 %v9841, %v9777
        %v9906 = vadd.f32 %v9842, %v9778
        %v9907 = vadd.f32 %v9843, %v9779
        %v9908 = vadd.f32 %v9844, %v9780
        %v9909 = vadd.f32 %v9845, %v9781
        %v9910 = vadd.f32 %v9846, %v9782
        %v9911 = vadd.f32 %v9847, %v9783
        %v9912 = vadd.f32 %v9848, %v9784
        %v9913 = vadd.f32 %v9849, %v9785
        %v9914 = vadd.f32 %v9850, %v9786
        %v9915 = vadd.f32 %v9851, %v9787
        %v9916 = vadd.f32 %v9852, %v9788
        %v9917 = vadd.f32 %v9853, %v9789
        %v9918 = vadd.f32 %v9854, %v9790
        %v9919 = vadd.f32 %v9855, %v9791
        %v9920 = vadd.f32 %v9856, %v9792
        %v9921 = vadd.f32 %v9857, %v9793
        %v9922 = vadd.f32 %v9858, %v9794
        %v9923 = vadd.f32 %v9859, %v9795
        %v9924 = vadd.f32 %v9860, %v9796
        %v9925 = vadd.f32 %v9861, %v9797
        %v9926 = vadd.f32 %v9862, %v9798
        %v9927 = vadd.f32 %v9863, %v9799
        %v9928 = vadd.f32 %v9864, %v9800
        %v9929 = vadd.f32 %v9865, %v9801
        %v9930 = vadd.f32 %v9866, %v9802
        %v9931 = vadd.f32 %v9867, %v9803
        %v9932 = vadd.f32 %v9868, %v9804
        %v9933 = vadd.f32 %v9869, %v9805
        %v9934 = vadd.f32 %v9870, %v9806
        %v9935 = vadd.f32 %v9871, %v9807
        %9936 = vst [vmem:[%s351] sm:$0xff] %v9872
        %9937 = vst [vmem:[%s351 + $0x8] sm:$0xff] %v9873
        %9938 = vst [vmem:[%s351 + $0x10] sm:$0xff] %v9874
        %9939 = vst [vmem:[%s351 + $0x18] sm:$0xff] %v9875
        %9940 = vst [vmem:[%s351 + $0x20] sm:$0xff] %v9876
        %9941 = vst [vmem:[%s351 + $0x28] sm:$0xff] %v9877
        %9942 = vst [vmem:[%s351 + $0x30] sm:$0xff] %v9878
        %9943 = vst [vmem:[%s351 + $0x38] sm:$0xff] %v9879
        %9944 = vst [vmem:[%s351 + $0x40] sm:$0xff] %v9880
        %9945 = vst [vmem:[%s351 + $0x48] sm:$0xff] %v9881
        %9946 = vst [vmem:[%s351 + $0x50] sm:$0xff] %v9882
        %9947 = vst [vmem:[%s351 + $0x58] sm:$0xff] %v9883
        %9948 = vst [vmem:[%s351 + $0x60] sm:$0xff] %v9884
        %9949 = vst [vmem:[%s351 + $0x68] sm:$0xff] %v9885
        %9950 = vst [vmem:[%s351 + $0x70] sm:$0xff] %v9886
        %9951 = vst [vmem:[%s351 + $0x78] sm:$0xff] %v9887
        %9952 = vst [vmem:[%s351 + $0x80] sm:$0xff] %v9888
        %9953 = vst [vmem:[%s351 + $0x88] sm:$0xff] %v9889
        %9954 = vst [vmem:[%s351 + $0x90] sm:$0xff] %v9890
        %9955 = vst [vmem:[%s351 + $0x98] sm:$0xff] %v9891
        %9956 = vst [vmem:[%s351 + $0xa0] sm:$0xff] %v9892
        %9957 = vst [vmem:[%s351 + $0xa8] sm:$0xff] %v9893
        %9958 = vst [vmem:[%s351 + $0xb0] sm:$0xff] %v9894
        %9959 = vst [vmem:[%s351 + $0xb8] sm:$0xff] %v9895
        %9960 = vst [vmem:[%s351 + $0xc0] sm:$0xff] %v9896
        %9961 = vst [vmem:[%s351 + $0xc8] sm:$0xff] %v9897
        %9962 = vst [vmem:[%s351 + $0xd0] sm:$0xff] %v9898
        %9963 = vst [vmem:[%s351 + $0xd8] sm:$0xff] %v9899
        %9964 = vst [vmem:[%s351 + $0xe0] sm:$0xff] %v9900
        %9965 = vst [vmem:[%s351 + $0xe8] sm:$0xff] %v9901
        %9966 = vst [vmem:[%s351 + $0xf0] sm:$0xff] %v9902
        %9967 = vst [vmem:[%s351 + $0xf8] sm:$0xff] %v9903
        %9968 = vst [vmem:[%s351 + $0x100] sm:$0xff] %v9904
        %9969 = vst [vmem:[%s351 + $0x108] sm:$0xff] %v9905
        %9970 = vst [vmem:[%s351 + $0x110] sm:$0xff] %v9906
        %9971 = vst [vmem:[%s351 + $0x118] sm:$0xff] %v9907
        %9972 = vst [vmem:[%s351 + $0x120] sm:$0xff] %v9908
        %9973 = vst [vmem:[%s351 + $0x128] sm:$0xff] %v9909
        %9974 = vst [vmem:[%s351 + $0x130] sm:$0xff] %v9910
        %9975 = vst [vmem:[%s351 + $0x138] sm:$0xff] %v9911
        %9976 = vst [vmem:[%s351 + $0x140] sm:$0xff] %v9912
        %9977 = vst [vmem:[%s351 + $0x148] sm:$0xff] %v9913
        %9978 = vst [vmem:[%s351 + $0x150] sm:$0xff] %v9914
        %9979 = vst [vmem:[%s351 + $0x158] sm:$0xff] %v9915
        %9980 = vst [vmem:[%s351 + $0x160] sm:$0xff] %v9916
        %9981 = vst [vmem:[%s351 + $0x168] sm:$0xff] %v9917
        %9982 = vst [vmem:[%s351 + $0x170] sm:$0xff] %v9918
        %9983 = vst [vmem:[%s351 + $0x178] sm:$0xff] %v9919
        %9984 = vst [vmem:[%s351 + $0x180] sm:$0xff] %v9920
        %9985 = vst [vmem:[%s351 + $0x188] sm:$0xff] %v9921
        %9986 = vst [vmem:[%s351 + $0x190] sm:$0xff] %v9922
        %9987 = vst [vmem:[%s351 + $0x198] sm:$0xff] %v9923
        %9988 = vst [vmem:[%s351 + $0x1a0] sm:$0xff] %v9924
        %9989 = vst [vmem:[%s351 + $0x1a8] sm:$0xff] %v9925
        %9990 = vst [vmem:[%s351 + $0x1b0] sm:$0xff] %v9926
        %9991 = vst [vmem:[%s351 + $0x1b8] sm:$0xff] %v9927
        %9992 = vst [vmem:[%s351 + $0x1c0] sm:$0xff] %v9928
        %9993 = vst [vmem:[%s351 + $0x1c8] sm:$0xff] %v9929
        %9994 = vst [vmem:[%s351 + $0x1d0] sm:$0xff] %v9930
        %9995 = vst [vmem:[%s351 + $0x1d8] sm:$0xff] %v9931
        %9996 = vst [vmem:[%s351 + $0x1e0] sm:$0xff] %v9932
        %9997 = vst [vmem:[%s351 + $0x1e8] sm:$0xff] %v9933
        %9998 = vst [vmem:[%s351 + $0x1f0] sm:$0xff] %v9934
        %9999 = vst [vmem:[%s351 + $0x1f8] sm:$0xff] %v9935
        %s10000 = sand.u32 %s227, 1
        %s10001 = scalar_lea.sflag [#allocation6], %s10000
        %s10002 = sand.u32 %s227, 1
        %s10003 = smul.addr %s10002, 512
        %s10004 = scalar_lea.vmem [#allocation9], %s10003
        // Predicated region
        $region65: #{tpu_custom_call.1} parent=55 // pred_check
          %p10005 = pneg %p237
        $region66: #{tpu_custom_call.1} parent=55 // pred_check_branch
          %10007 = sbr.rel (%p10005) target = $region68
        $region67: #{tpu_custom_call.1} parent=55 // pred_region
          %s10009 = ssub.s32 8192, 8192
          %10010 = vsyncadd %s10001, %s10009
          %s10011 = smul.addr %s25, 64
          %s10012 = smul.addr %s10011, 128
          %s10013 = scalar_lea.hbm %s9, %s10012
          %s10014 = sshll.u32 %s10004, 4
          %s10015 = int_to_ptr.vmem [resolvable:$true] %s10014
          %10020 = dma.vmem_to_hbm [thread:$0]  %s10015, 8192, %s10013, %s10001, 128, 128, 8
        $region68: #{tpu_custom_call.1} parent=55 // pred_fallthru
          _
      $region56: #{tpu_custom_call.1} parent=5 // pred_fallthru
        _
      %p10021 = scmp.le.s32.totalorder 2, %s20
      // Predicated region
      $region69: #{tpu_custom_call.1} parent=5 // pred_check
        %p10022 = pneg %p10021
      $region70: #{tpu_custom_call.1} parent=5 // pred_check_branch
        %10024 = sbr.rel (%p10022) target = $region72
      $region71: #{tpu_custom_call.1} parent=5 // pred_region
        %s10025 = ssub.s32 %s20, 2
        // Predicated region
        $region73: #{tpu_custom_call.1} parent=71 // pred_check
          %p10026 = pneg %p243
        $region74: #{tpu_custom_call.1} parent=71 // pred_check_branch
          %10028 = sbr.rel (%p10026) target = $region76
        $region75: #{tpu_custom_call.1} parent=71 // pred_region
          %s10029 = sand.u32 %s228, 1
          %s10030 = scalar_lea.sflag [#allocation6], %s10029
          %s10031 = sand.u32 %s228, 1
          %s10032 = smul.addr %s10031, 512
          %s10033 = scalar_lea.vmem [#allocation9], %s10032
          %10034 = dma.done %s10030, 8192
        $region76: #{tpu_custom_call.1} parent=71 // pred_fallthru
          _
      $region72: #{tpu_custom_call.1} parent=5 // pred_fallthru
        _
    $region6: #{tpu_custom_call.1} parent=1 // loop_footer
      %s24 = sadd.s32 1, %s20
    $region7: #{tpu_custom_call.1} parent=1 // loop_footer_branch
      %19 = sbr.rel target = $region3
    $region8: #{tpu_custom_call.1} parent=1 // loop_exit
      _
    %10035 = vsyncpa [#allocation5], 1
    %s10036 = scalar_lea.sflag [#allocation5], 1
    %10037 = vsyncpa %s10036, 1
    %10038 = vsyncpa [#allocation8], 1
    %10039 = vsyncpa [#allocation6], 1
    %s10040 = scalar_lea.sflag [#allocation6], 1
    %10041 = vsyncpa %s10040, 1

</llo_original>
